<compile_context>
chip_gen: v7x
topology: tpu7x:2x2x1
jax: 0.10.0
libtpu: 0.0.40
codegen_flags: <defaults>
</compile_context>

<pallas_src>
import functools
import math

import jax
import jax.numpy as jnp
from jax.experimental import pallas as pl
from jax.experimental.pallas import tpu as pltpu


# --------------------------------------------------------------------------
# Conv1d(k=2, 'same') + ReLU + MaxPool1d(ks, ks) for one batch element.
# x_cat: (L, 2*Cin) with lanes [x[t] | x[t+1]] (right zero pad already applied).
# wref packed rows: [0:2Cin] = [w_tap0; w_tap1] (Cin,Cout each), [2Cin] = bias.
# --------------------------------------------------------------------------
def _conv_pool_stage(x_cat, wref, zbuf, ks):
    L = x_cat.shape[0]
    cin2 = wref.shape[0] - 1
    cout = wref.shape[1]
    Lout = L // ks
    w = wref[0:cin2, :]
    b = wref[cin2:cin2 + 1, :]
    # both conv taps in a single matmul
    z = jnp.dot(x_cat, w, preferred_element_type=jnp.float32)            # (L, Cout)
    zbuf[0:L, :] = z
    zbuf[L:L + 8, :] = jnp.zeros((8, cout), jnp.float32)                 # pad rows for shifted reads
    # window max of width ks via contiguous shifted maxima (doubling widths)
    m = z
    width = 1
    while width < ks:                                                    # static -> unrolled
        step = min(width, ks - width)
        m = jnp.maximum(m, zbuf[step:step + L, :])                       # contiguous offset read
        zbuf[0:L, :] = m
        width += step
    pooled = zbuf[pl.ds(0, Lout, stride=ks), :]                          # ONE strided downsample
    return jnp.maximum(pooled + b, 0.0)                                  # bias+ReLU after max (exact)


# --------------------------------------------------------------------------
# Build the tap-fused input [a[t] | a[t+1]] for the next conv stage.
# --------------------------------------------------------------------------
def _make_cat(a, catbuf):
    L, C = a.shape
    catbuf[0:L, 0:C] = a
    nxt = catbuf[1:L, 0:C]                                               # a shifted by one time step
    catbuf[0:L - 1, C:2 * C] = nxt
    catbuf[L - 1:L, C:2 * C] = jnp.zeros((1, C), jnp.float32)            # 'same' right zero pad
    return catbuf[0:L, :]


# --------------------------------------------------------------------------
# Fused bidirectional LSTM layer (one batch element).
# pref packed rows: [0:In]=W_ih^T, [In:In+2H]=W_hh^T (block-diag over directions),
# [In+2H]=b_ih+b_hh, [In+2H+1]=forward-lane mask.
# Gate-lane layout (8H lanes): [i_f i_b | f_f f_b | o_f o_b | g_f g_b], H lanes each.
# --------------------------------------------------------------------------
def _bilstm_layer(x, pref, gxbuf, gsbuf, hfbuf, hbbuf):
    T = x.shape[0]
    H = pref.shape[1] // 8
    twoH = 2 * H
    In = pref.shape[0] - twoH - 2
    wih = pref[0:In, :]
    whh = pref[In:In + twoH, :]
    bias = pref[In + twoH:In + twoH + 1, :]
    dmask = pref[In + twoH + 1:In + twoH + 2, :]
    is_fwd = dmask > 0.5                                                 # (1, 8H)

    # hoisted input projection + hoisted per-step direction select (off the recurrence path)
    gxbuf[...] = jnp.dot(x, wih, preferred_element_type=jnp.float32) + bias   # (T, 8H)
    for s in range(T):
        gsbuf[s:s + 1, :] = jnp.where(is_fwd, gxbuf[s:s + 1, :],
                                      gxbuf[T - 1 - s:T - s, :])

    h = jnp.zeros((1, twoH), jnp.float32)
    c = jnp.zeros((1, twoH), jnp.float32)
    for s in range(T):                                                   # T static -> fully unrolled
        gates = gsbuf[s:s + 1, :] + jnp.dot(h, whh, preferred_element_type=jnp.float32)
        sig = jax.nn.sigmoid(gates[:, 0:3 * twoH])                       # i, f, o in one EUP pass
        g = jnp.tanh(gates[:, 3 * twoH:4 * twoH])
        c = sig[:, twoH:2 * twoH] * c + sig[:, 0:twoH] * g
        h = sig[:, 2 * twoH:3 * twoH] * jnp.tanh(c)
        hfbuf[s:s + 1, :] = h                                            # full-width stores, no lane offset
        hbbuf[T - 1 - s:T - s, :] = h
    hmask = dmask[:, 0:twoH] > 0.5                                       # forward lanes of the 2H output
    return jnp.where(hmask, hfbuf[...], hbbuf[...])                      # (T, 2H), [fwd_t | bwd_t]


# --------------------------------------------------------------------------
# The fused whole-model kernel (one grid step == one batch element).
# --------------------------------------------------------------------------
def _model5_kernel(x_ref, c1p, c2p, c3p, l1p, l2p, fcp, o_ref,
                   zb1, cat2, zb2, cat3, zb3,
                   gx1, gs1, hf1, hb1, gx2, gs2, hf2, hb2,
                   *, ks1, ks2, ks3):
    # ---- conv / relu / pool stack (all in VMEM) ----
    a1 = _conv_pool_stage(x_ref[...], c1p, zb1, ks1)                     # (L2, F1)
    a2 = _conv_pool_stage(_make_cat(a1, cat2), c2p, zb2, ks2)            # (L3, F2)
    a3 = _conv_pool_stage(_make_cat(a2, cat3), c3p, zb3, ks3)            # (T, F3) == permute(0,2,1)

    # ---- bidirectional LSTM layers ----
    y1 = _bilstm_layer(a3, l1p, gx1, gs1, hf1, hb1)                      # (T, 2*H1)
    y2 = _bilstm_layer(y1, l2p, gx2, gs2, hf2, hb2)                      # (T, 2*H2)

    # ---- collapsed fc1..fc4 (no inter-layer activations in the reference) + ReLU ----
    # Flatten folded into per-time-step row blocks of the collapsed weight:
    #   out = b_all + sum_t y2[t] @ W_all[t*2H2:(t+1)*2H2, :]
    T, twoH2 = y2.shape
    hf2[...] = y2                                                        # reuse scratch for cheap row reads
    acc = fcp[T * twoH2:T * twoH2 + 1, :]                                # collapsed bias (1, outfeat)
    for t in range(T):
        acc = acc + jnp.dot(hf2[t:t + 1, :], fcp[t * twoH2:(t + 1) * twoH2, :],
                            preferred_element_type=jnp.float32)
    o_ref[...] = jnp.maximum(acc, 0.0)                                   # act4 = ReLU


# --------------------------------------------------------------------------
# Wrapper: one pallas_call for the whole forward pass.
# --------------------------------------------------------------------------
def model5_forward(x_ncl, params):
    # x_ncl: (B, 3, L), PyTorch Conv1d layout.
    cfg = params["cfg"]
    B, Cin, _ = x_ncl.shape
    L1, ks1, ks2, ks3 = cfg["L"], cfg["ks1"], cfg["ks2"], cfg["ks3"]
    F1, F2, F3 = cfg["f1"], cfg["f2"], cfg["f3"]
    H1, H2, outfeat = cfg["lstm1"], cfg["lstm2"], cfg["outfeat"]
    L2 = L1 // ks1
    L3 = L2 // ks2
    T = L3 // ks3
    assert params["fc"].shape[0] == T * 2 * H2 + 1

    # channels-last + tap-fused input [x[t] | x[t+1]] built host-side for stage 1
    x_blc = jnp.transpose(x_ncl, (0, 2, 1)).astype(jnp.float32)          # (B, L, Cin)
    x_shift = jnp.concatenate(
        [x_blc[:, 1:, :], jnp.zeros((B, 1, Cin), jnp.float32)], axis=1)
    x_cat = jnp.concatenate([x_blc, x_shift], axis=2)                    # (B, L, 2*Cin)

    flat_inputs = (x_cat, params["conv1"], params["conv2"], params["conv3"],
                   params["lstm1"], params["lstm2"], params["fc"])

    def wspec(a):
        zeros = (0,) * a.ndim
        return pl.BlockSpec(a.shape, lambda b, _z=zeros: _z)

    in_specs = ([pl.BlockSpec((None, L1, 2 * Cin), lambda b: (b, 0, 0))]
                + [wspec(a) for a in flat_inputs[1:]])

    kernel = functools.partial(_model5_kernel, ks1=ks1, ks2=ks2, ks3=ks3)

    out = pl.pallas_call(
        kernel,
        out_shape=jax.ShapeDtypeStruct((B, 1, outfeat), jnp.float32),
        grid=(B,),
        in_specs=in_specs,
        out_specs=pl.BlockSpec((None, 1, outfeat), lambda b: (b, 0, 0)),
        scratch_shapes=[
            pltpu.VMEM((L1 + 8, F1), jnp.float32),     # conv1 z / running-max buffer (+pad)
            pltpu.VMEM((L2, 2 * F1), jnp.float32),     # conv2 tap-fused input
            pltpu.VMEM((L2 + 8, F2), jnp.float32),     # conv2 z buffer
            pltpu.VMEM((L3, 2 * F2), jnp.float32),     # conv3 tap-fused input
            pltpu.VMEM((L3 + 8, F3), jnp.float32),     # conv3 z buffer
            pltpu.VMEM((T, 8 * H1), jnp.float32),      # lstm1 hoisted input projection
            pltpu.VMEM((T, 8 * H1), jnp.float32),      # lstm1 direction-selected gates
            pltpu.VMEM((T, 2 * H1), jnp.float32),      # lstm1 forward-step h buffer
            pltpu.VMEM((T, 2 * H1), jnp.float32),      # lstm1 backward-step h buffer
            pltpu.VMEM((T, 8 * H2), jnp.float32),      # lstm2 hoisted input projection
            pltpu.VMEM((T, 8 * H2), jnp.float32),      # lstm2 direction-selected gates
            pltpu.VMEM((T, 2 * H2), jnp.float32),      # lstm2 forward-step h buffer
            pltpu.VMEM((T, 2 * H2), jnp.float32),      # lstm2 backward-step h buffer
        ],
        compiler_params=pltpu.CompilerParams(
            dimension_semantics=("parallel",)),        # v7x: one batch element per TensorCore
    )(*flat_inputs)
    return out.reshape(B, outfeat)


# --------------------------------------------------------------------------
# Deterministic synthetic parameters, pre-packed for the fused kernel.
# --------------------------------------------------------------------------
def init_params(key, filters1, filters2, filters3, ks1, ks2, ks3,
                lstm1, lstm2, outfeat, seq_len):
    def unif(k, shape, fan_in):
        s = 1.0 / math.sqrt(float(fan_in))
        return jax.random.uniform(k, shape, jnp.float32, -s, s)

    keys = iter(jax.random.split(key, 64))

    def conv_p(cin, cout):
        # two taps of the (Cout, Cin, 2) PyTorch kernel, pre-transposed and stacked + bias row
        fan = cin * 2
        w0 = unif(next(keys), (cin, cout), fan)
        w1 = unif(next(keys), (cin, cout), fan)
        b = unif(next(keys), (1, cout), fan)
        return jnp.concatenate([w0, w1, b], axis=0)          # (2*cin + 1, cout)

    def lstm_dir(in_dim, h):
        # per-gate blocks, internal gate order (i, f, o, g)
        wih = unif(next(keys), (in_dim, 4 * h), h)
        whh = unif(next(keys), (h, 4 * h), h)
        b = unif(next(keys), (1, 4 * h), h)                  # b_ih + b_hh combined
        split = lambda m: [m[:, g * h:(g + 1) * h] for g in range(4)]
        return split(wih), split(whh), split(b)

    def pack_bilstm(in_dim, h):
        wf, uf, bf = lstm_dir(in_dim, h)
        wb, ub, bb = lstm_dir(in_dim, h)
        # lane layout per gate: [fwd H | bwd H]; gate order i, f, o, g (sigmoids contiguous)
        wih = jnp.concatenate([blk for g in range(4) for blk in (wf[g], wb[g])], axis=1)
        z = jnp.zeros((h, h), jnp.float32)
        top = jnp.concatenate([blk for g in range(4) for blk in (uf[g], z)], axis=1)
        bot = jnp.concatenate([blk for g in range(4) for blk in (z, ub[g])], axis=1)
        whh = jnp.concatenate([top, bot], axis=0)            # (2h, 8h) block-diagonal
        bias = jnp.concatenate([blk for g in range(4) for blk in (bf[g], bb[g])], axis=1)
        dmask = jnp.concatenate(
            [jnp.ones((1, h), jnp.float32), jnp.zeros((1, h), jnp.float32)] * 4, axis=1)
        return jnp.concatenate([wih, whh, bias, dmask], axis=0)   # (in + 2h + 2, 8h)

    p = {}
    p["conv1"] = conv_p(3, filters1)
    p["conv2"] = conv_p(filters1, filters2)
    p["conv3"] = conv_p(filters2, filters3)
    p["lstm1"] = pack_bilstm(filters3, lstm1)
    p["lstm2"] = pack_bilstm(2 * lstm1, lstm2)

    # fc1..fc4 collapsed host-side (the reference has NO activation between them):
    #   W_all = W1t @ W2t @ W3t @ W4t,  b_all = ((b1@W2t + b2)@W3t + b3)@W4t + b4
    fc1_in = int(lstm2 * 2 * int(seq_len / (ks1 * ks2 * ks3)))   # mirrors the nn.Linear definition
    dims = [fc1_in, 256, 128, 64, outfeat]
    Ws, bs = [], []
    for i in range(4):
        Ws.append(unif(next(keys), (dims[i], dims[i + 1]), dims[i]))
        bs.append(unif(next(keys), (1, dims[i + 1]), dims[i]))
    W = Ws[0]
    b = bs[0]
    for i in range(1, 4):
        W = W @ Ws[i]
        b = b @ Ws[i] + bs[i]
    p["fc"] = jnp.concatenate([W, b], axis=0)                # (fc1_in + 1, outfeat)

    p["cfg"] = dict(L=seq_len, ks1=ks1, ks2=ks2, ks3=ks3,
                    f1=filters1, f2=filters2, f3=filters3,
                    lstm1=lstm1, lstm2=lstm2, outfeat=outfeat)
    return p


if __name__ == "__main__":
    # L = 550 is implied by the module's fc1 definition.
    filters1, filters2, filters3 = 8, 16, 16
    ks1, ks2, ks3 = 5, 5, 2
    lstm1, lstm2, outfeat = 16, 16, 4
    B, L = 2, 550

    key = jax.random.PRNGKey(0)
    k_x, k_p = jax.random.split(key)
    params = init_params(k_p, filters1, filters2, filters3, ks1, ks2, ks3,
                         lstm1, lstm2, outfeat, L)
    x = jax.random.normal(k_x, (B, 3, L), jnp.float32)

    out = model5_forward(x, params)
    out = jax.block_until_ready(out)
    assert out.shape == (B, outfeat), out.shape
    assert bool(jnp.all(jnp.isfinite(out)))
    print("KERNEL_OK")
</pallas_src>

<mosaic_0001>
module attributes {stable_mosaic.version = 11 : i64} {
  func.func @_model5_kernel(%arg0: i32, %arg1: memref<1x550x6xf32, #tpu.memory_space<vmem>>, %arg2: memref<7x8xf32, #tpu.memory_space<vmem>>, %arg3: memref<17x16xf32, #tpu.memory_space<vmem>>, %arg4: memref<33x16xf32, #tpu.memory_space<vmem>>, %arg5: memref<50x128xf32, #tpu.memory_space<vmem>>, %arg6: memref<66x128xf32, #tpu.memory_space<vmem>>, %arg7: memref<353x4xf32, #tpu.memory_space<vmem>>, %arg8: memref<1x1x4xf32, #tpu.memory_space<vmem>>, %arg9: memref<558x8xf32, #tpu.memory_space<vmem>>, %arg10: memref<110x16xf32, #tpu.memory_space<vmem>>, %arg11: memref<118x16xf32, #tpu.memory_space<vmem>>, %arg12: memref<22x32xf32, #tpu.memory_space<vmem>>, %arg13: memref<30x16xf32, #tpu.memory_space<vmem>>, %arg14: memref<11x128xf32, #tpu.memory_space<vmem>>, %arg15: memref<11x128xf32, #tpu.memory_space<vmem>>, %arg16: memref<11x32xf32, #tpu.memory_space<vmem>>, %arg17: memref<11x32xf32, #tpu.memory_space<vmem>>, %arg18: memref<11x128xf32, #tpu.memory_space<vmem>>, %arg19: memref<11x128xf32, #tpu.memory_space<vmem>>, %arg20: memref<11x32xf32, #tpu.memory_space<vmem>>, %arg21: memref<11x32xf32, #tpu.memory_space<vmem>>) attributes {dimension_semantics = [#tpu.dimension_semantics<parallel>], iteration_bounds = array<i64: 2>, scalar_prefetch = 0 : i64, scratch_operands = 13 : i64, tpu.core_type = #tpu.core_type<tc>, window_params = [{transform_indices = @transform_0, window_bounds = array<i64: 1, 550, 6>}, {pipeline_mode = #tpu.pipeline_mode<synchronous>, transform_indices = @transform_1, window_bounds = array<i64: 7, 8>}, {pipeline_mode = #tpu.pipeline_mode<synchronous>, transform_indices = @transform_2, window_bounds = array<i64: 17, 16>}, {pipeline_mode = #tpu.pipeline_mode<synchronous>, transform_indices = @transform_3, window_bounds = array<i64: 33, 16>}, {pipeline_mode = #tpu.pipeline_mode<synchronous>, transform_indices = @transform_4, window_bounds = array<i64: 50, 128>}, {pipeline_mode = #tpu.pipeline_mode<synchronous>, transform_indices = @transform_5, window_bounds = array<i64: 66, 128>}, {pipeline_mode = #tpu.pipeline_mode<synchronous>, transform_indices = @transform_6, window_bounds = array<i64: 353, 4>}, {transform_indices = @transform_7, window_bounds = array<i64: 1, 1, 4>}]} {
    %c0 = arith.constant 0 : index
    %c0_0 = arith.constant 0 : index
    %c0_1 = arith.constant 0 : index
    %0 = vector.load %arg1[%c0, %c0_0, %c0_1] : memref<1x550x6xf32, #tpu.memory_space<vmem>>, vector<1x550x6xf32>
    %1 = vector.shape_cast %0 : vector<1x550x6xf32> to vector<550x6xf32>
    %c0_2 = arith.constant 0 : index
    %c0_3 = arith.constant 0 : index
    %2 = vector.load %arg2[%c0_2, %c0_3] : memref<7x8xf32, #tpu.memory_space<vmem>>, vector<6x8xf32>
    %c6 = arith.constant 6 : index
    %c0_4 = arith.constant 0 : index
    %3 = vector.load %arg2[%c6, %c0_4] : memref<7x8xf32, #tpu.memory_space<vmem>>, vector<1x8xf32>
    %cst = arith.constant dense<0.000000e+00> : vector<550x8xf32>
    %4 = tpu.matmul %1, %2, %cst {dimension_numbers = #tpu.dot_dimension_numbers<[1], [0], [0], [1], [0, 0, 1, 1], [], []>} : vector<550x6xf32>, vector<6x8xf32>, vector<550x8xf32> -> vector<550x8xf32>
    %c0_5 = arith.constant 0 : index
    %c0_6 = arith.constant 0 : index
    %5 = vector.load %arg9[%c0_5, %c0_6] : memref<558x8xf32, #tpu.memory_space<vmem>>, vector<550x8xf32>
    tpu.vector_store %arg9[%c0_5, %c0_6], %4 {strides = array<i32>} : memref<558x8xf32, #tpu.memory_space<vmem>>, vector<550x8xf32>,
    %cst_7 = arith.constant 0.000000e+00 : f32
    %6 = vector.broadcast %cst_7 : f32 to vector<8x8xf32>
    %c550 = arith.constant 550 : index
    %c0_8 = arith.constant 0 : index
    %7 = vector.load %arg9[%c550, %c0_8] : memref<558x8xf32, #tpu.memory_space<vmem>>, vector<8x8xf32>
    tpu.vector_store %arg9[%c550, %c0_8], %6 {strides = array<i32>} : memref<558x8xf32, #tpu.memory_space<vmem>>, vector<8x8xf32>,
    %c1 = arith.constant 1 : index
    %c0_9 = arith.constant 0 : index
    %8 = vector.load %arg9[%c1, %c0_9] : memref<558x8xf32, #tpu.memory_space<vmem>>, vector<550x8xf32>
    %9 = arith.maximumf %4, %8 : vector<550x8xf32>
    %c0_10 = arith.constant 0 : index
    %c0_11 = arith.constant 0 : index
    %10 = vector.load %arg9[%c0_10, %c0_11] : memref<558x8xf32, #tpu.memory_space<vmem>>, vector<550x8xf32>
    tpu.vector_store %arg9[%c0_10, %c0_11], %9 {strides = array<i32>} : memref<558x8xf32, #tpu.memory_space<vmem>>, vector<550x8xf32>,
    %c2 = arith.constant 2 : index
    %c0_12 = arith.constant 0 : index
    %11 = vector.load %arg9[%c2, %c0_12] : memref<558x8xf32, #tpu.memory_space<vmem>>, vector<550x8xf32>
    %12 = arith.maximumf %9, %11 : vector<550x8xf32>
    %c0_13 = arith.constant 0 : index
    %c0_14 = arith.constant 0 : index
    %13 = vector.load %arg9[%c0_13, %c0_14] : memref<558x8xf32, #tpu.memory_space<vmem>>, vector<550x8xf32>
    tpu.vector_store %arg9[%c0_13, %c0_14], %12 {strides = array<i32>} : memref<558x8xf32, #tpu.memory_space<vmem>>, vector<550x8xf32>,
    %c1_15 = arith.constant 1 : index
    %c0_16 = arith.constant 0 : index
    %14 = vector.load %arg9[%c1_15, %c0_16] : memref<558x8xf32, #tpu.memory_space<vmem>>, vector<550x8xf32>
    %15 = arith.maximumf %12, %14 : vector<550x8xf32>
    %c0_17 = arith.constant 0 : index
    %c0_18 = arith.constant 0 : index
    %16 = vector.load %arg9[%c0_17, %c0_18] : memref<558x8xf32, #tpu.memory_space<vmem>>, vector<550x8xf32>
    tpu.vector_store %arg9[%c0_17, %c0_18], %15 {strides = array<i32>} : memref<558x8xf32, #tpu.memory_space<vmem>>, vector<550x8xf32>,
    %c0_19 = arith.constant 0 : index
    %c0_20 = arith.constant 0 : index
    %17 = tpu.strided_load %arg9[%c0_19, %c0_20] {strides = array<i32: 5, 1>} : memref<558x8xf32, #tpu.memory_space<vmem>>, vector<110x8xf32>
    %18 = vector.broadcast %3 : vector<1x8xf32> to vector<110x8xf32>
    %19 = arith.addf %17, %18 : vector<110x8xf32>
    %cst_21 = arith.constant 0.000000e+00 : f32
    %20 = vector.broadcast %cst_21 : f32 to vector<110x8xf32>
    %21 = arith.maximumf %19, %20 : vector<110x8xf32>
    %c0_22 = arith.constant 0 : index
    %c0_23 = arith.constant 0 : index
    %22 = vector.load %arg10[%c0_22, %c0_23] : memref<110x16xf32, #tpu.memory_space<vmem>>, vector<110x8xf32>
    tpu.vector_store %arg10[%c0_22, %c0_23], %21 {strides = array<i32>} : memref<110x16xf32, #tpu.memory_space<vmem>>, vector<110x8xf32>,
    %c1_24 = arith.constant 1 : index
    %c0_25 = arith.constant 0 : index
    %23 = vector.load %arg10[%c1_24, %c0_25] : memref<110x16xf32, #tpu.memory_space<vmem>>, vector<109x8xf32>
    %c0_26 = arith.constant 0 : index
    %c8 = arith.constant 8 : index
    %24 = vector.load %arg10[%c0_26, %c8] : memref<110x16xf32, #tpu.memory_space<vmem>>, vector<109x8xf32>
    tpu.vector_store %arg10[%c0_26, %c8], %23 {strides = array<i32>} : memref<110x16xf32, #tpu.memory_space<vmem>>, vector<109x8xf32>,
    %cst_27 = arith.constant 0.000000e+00 : f32
    %25 = vector.broadcast %cst_27 : f32 to vector<1x8xf32>
    %c109 = arith.constant 109 : index
    %c8_28 = arith.constant 8 : index
    %26 = vector.load %arg10[%c109, %c8_28] : memref<110x16xf32, #tpu.memory_space<vmem>>, vector<1x8xf32>
    tpu.vector_store %arg10[%c109, %c8_28], %25 {strides = array<i32>} : memref<110x16xf32, #tpu.memory_space<vmem>>, vector<1x8xf32>,
    %c0_29 = arith.constant 0 : index
    %c0_30 = arith.constant 0 : index
    %27 = vector.load %arg10[%c0_29, %c0_30] : memref<110x16xf32, #tpu.memory_space<vmem>>, vector<110x16xf32>
    %c0_31 = arith.constant 0 : index
    %c0_32 = arith.constant 0 : index
    %28 = vector.load %arg3[%c0_31, %c0_32] : memref<17x16xf32, #tpu.memory_space<vmem>>, vector<16x16xf32>
    %c16 = arith.constant 16 : index
    %c0_33 = arith.constant 0 : index
    %29 = vector.load %arg3[%c16, %c0_33] : memref<17x16xf32, #tpu.memory_space<vmem>>, vector<1x16xf32>
    %cst_34 = arith.constant dense<0.000000e+00> : vector<110x16xf32>
    %30 = tpu.matmul %27, %28, %cst_34 {dimension_numbers = #tpu.dot_dimension_numbers<[1], [0], [0], [1], [0, 0, 1, 1], [], []>} : vector<110x16xf32>, vector<16x16xf32>, vector<110x16xf32> -> vector<110x16xf32>
    %c0_35 = arith.constant 0 : index
    %c0_36 = arith.constant 0 : index
    %31 = vector.load %arg11[%c0_35, %c0_36] : memref<118x16xf32, #tpu.memory_space<vmem>>, vector<110x16xf32>
    tpu.vector_store %arg11[%c0_35, %c0_36], %30 {strides = array<i32>} : memref<118x16xf32, #tpu.memory_space<vmem>>, vector<110x16xf32>,
    %cst_37 = arith.constant 0.000000e+00 : f32
    %32 = vector.broadcast %cst_37 : f32 to vector<8x16xf32>
    %c110 = arith.constant 110 : index
    %c0_38 = arith.constant 0 : index
    %33 = vector.load %arg11[%c110, %c0_38] : memref<118x16xf32, #tpu.memory_space<vmem>>, vector<8x16xf32>
    tpu.vector_store %arg11[%c110, %c0_38], %32 {strides = array<i32>} : memref<118x16xf32, #tpu.memory_space<vmem>>, vector<8x16xf32>,
    %c1_39 = arith.constant 1 : index
    %c0_40 = arith.constant 0 : index
    %34 = vector.load %arg11[%c1_39, %c0_40] : memref<118x16xf32, #tpu.memory_space<vmem>>, vector<110x16xf32>
    %35 = arith.maximumf %30, %34 : vector<110x16xf32>
    %c0_41 = arith.constant 0 : index
    %c0_42 = arith.constant 0 : index
    %36 = vector.load %arg11[%c0_41, %c0_42] : memref<118x16xf32, #tpu.memory_space<vmem>>, vector<110x16xf32>
    tpu.vector_store %arg11[%c0_41, %c0_42], %35 {strides = array<i32>} : memref<118x16xf32, #tpu.memory_space<vmem>>, vector<110x16xf32>,
    %c2_43 = arith.constant 2 : index
    %c0_44 = arith.constant 0 : index
    %37 = vector.load %arg11[%c2_43, %c0_44] : memref<118x16xf32, #tpu.memory_space<vmem>>, vector<110x16xf32>
    %38 = arith.maximumf %35, %37 : vector<110x16xf32>
    %c0_45 = arith.constant 0 : index
    %c0_46 = arith.constant 0 : index
    %39 = vector.load %arg11[%c0_45, %c0_46] : memref<118x16xf32, #tpu.memory_space<vmem>>, vector<110x16xf32>
    tpu.vector_store %arg11[%c0_45, %c0_46], %38 {strides = array<i32>} : memref<118x16xf32, #tpu.memory_space<vmem>>, vector<110x16xf32>,
    %c1_47 = arith.constant 1 : index
    %c0_48 = arith.constant 0 : index
    %40 = vector.load %arg11[%c1_47, %c0_48] : memref<118x16xf32, #tpu.memory_space<vmem>>, vector<110x16xf32>
    %41 = arith.maximumf %38, %40 : vector<110x16xf32>
    %c0_49 = arith.constant 0 : index
    %c0_50 = arith.constant 0 : index
    %42 = vector.load %arg11[%c0_49, %c0_50] : memref<118x16xf32, #tpu.memory_space<vmem>>, vector<110x16xf32>
    tpu.vector_store %arg11[%c0_49, %c0_50], %41 {strides = array<i32>} : memref<118x16xf32, #tpu.memory_space<vmem>>, vector<110x16xf32>,
    %c0_51 = arith.constant 0 : index
    %c0_52 = arith.constant 0 : index
    %43 = tpu.strided_load %arg11[%c0_51, %c0_52] {strides = array<i32: 5, 1>} : memref<118x16xf32, #tpu.memory_space<vmem>>, vector<22x16xf32>
    %44 = vector.broadcast %29 : vector<1x16xf32> to vector<22x16xf32>
    %45 = arith.addf %43, %44 : vector<22x16xf32>
    %cst_53 = arith.constant 0.000000e+00 : f32
    %46 = vector.broadcast %cst_53 : f32 to vector<22x16xf32>
    %47 = arith.maximumf %45, %46 : vector<22x16xf32>
    %c0_54 = arith.constant 0 : index
    %c0_55 = arith.constant 0 : index
    %48 = vector.load %arg12[%c0_54, %c0_55] : memref<22x32xf32, #tpu.memory_space<vmem>>, vector<22x16xf32>
    tpu.vector_store %arg12[%c0_54, %c0_55], %47 {strides = array<i32>} : memref<22x32xf32, #tpu.memory_space<vmem>>, vector<22x16xf32>,
    %c1_56 = arith.constant 1 : index
    %c0_57 = arith.constant 0 : index
    %49 = vector.load %arg12[%c1_56, %c0_57] : memref<22x32xf32, #tpu.memory_space<vmem>>, vector<21x16xf32>
    %c0_58 = arith.constant 0 : index
    %c16_59 = arith.constant 16 : index
    %50 = vector.load %arg12[%c0_58, %c16_59] : memref<22x32xf32, #tpu.memory_space<vmem>>, vector<21x16xf32>
    tpu.vector_store %arg12[%c0_58, %c16_59], %49 {strides = array<i32>} : memref<22x32xf32, #tpu.memory_space<vmem>>, vector<21x16xf32>,
    %cst_60 = arith.constant 0.000000e+00 : f32
    %51 = vector.broadcast %cst_60 : f32 to vector<1x16xf32>
    %c21 = arith.constant 21 : index
    %c16_61 = arith.constant 16 : index
    %52 = vector.load %arg12[%c21, %c16_61] : memref<22x32xf32, #tpu.memory_space<vmem>>, vector<1x16xf32>
    tpu.vector_store %arg12[%c21, %c16_61], %51 {strides = array<i32>} : memref<22x32xf32, #tpu.memory_space<vmem>>, vector<1x16xf32>,
    %c0_62 = arith.constant 0 : index
    %c0_63 = arith.constant 0 : index
    %53 = vector.load %arg12[%c0_62, %c0_63] : memref<22x32xf32, #tpu.memory_space<vmem>>, vector<22x32xf32>
    %c0_64 = arith.constant 0 : index
    %c0_65 = arith.constant 0 : index
    %54 = vector.load %arg4[%c0_64, %c0_65] : memref<33x16xf32, #tpu.memory_space<vmem>>, vector<32x16xf32>
    %c32 = arith.constant 32 : index
    %c0_66 = arith.constant 0 : index
    %55 = vector.load %arg4[%c32, %c0_66] : memref<33x16xf32, #tpu.memory_space<vmem>>, vector<1x16xf32>
    %cst_67 = arith.constant dense<0.000000e+00> : vector<22x16xf32>
    %56 = tpu.matmul %53, %54, %cst_67 {dimension_numbers = #tpu.dot_dimension_numbers<[1], [0], [0], [1], [0, 0, 1, 1], [], []>} : vector<22x32xf32>, vector<32x16xf32>, vector<22x16xf32> -> vector<22x16xf32>
    %c0_68 = arith.constant 0 : index
    %c0_69 = arith.constant 0 : index
    %57 = vector.load %arg13[%c0_68, %c0_69] : memref<30x16xf32, #tpu.memory_space<vmem>>, vector<22x16xf32>
    tpu.vector_store %arg13[%c0_68, %c0_69], %56 {strides = array<i32>} : memref<30x16xf32, #tpu.memory_space<vmem>>, vector<22x16xf32>,
    %cst_70 = arith.constant 0.000000e+00 : f32
    %58 = vector.broadcast %cst_70 : f32 to vector<8x16xf32>
    %c22 = arith.constant 22 : index
    %c0_71 = arith.constant 0 : index
    %59 = vector.load %arg13[%c22, %c0_71] : memref<30x16xf32, #tpu.memory_space<vmem>>, vector<8x16xf32>
    tpu.vector_store %arg13[%c22, %c0_71], %58 {strides = array<i32>} : memref<30x16xf32, #tpu.memory_space<vmem>>, vector<8x16xf32>,
    %c1_72 = arith.constant 1 : index
    %c0_73 = arith.constant 0 : index
    %60 = vector.load %arg13[%c1_72, %c0_73] : memref<30x16xf32, #tpu.memory_space<vmem>>, vector<22x16xf32>
    %61 = arith.maximumf %56, %60 : vector<22x16xf32>
    %c0_74 = arith.constant 0 : index
    %c0_75 = arith.constant 0 : index
    %62 = vector.load %arg13[%c0_74, %c0_75] : memref<30x16xf32, #tpu.memory_space<vmem>>, vector<22x16xf32>
    tpu.vector_store %arg13[%c0_74, %c0_75], %61 {strides = array<i32>} : memref<30x16xf32, #tpu.memory_space<vmem>>, vector<22x16xf32>,
    %c0_76 = arith.constant 0 : index
    %c0_77 = arith.constant 0 : index
    %63 = tpu.strided_load %arg13[%c0_76, %c0_77] {strides = array<i32: 2, 1>} : memref<30x16xf32, #tpu.memory_space<vmem>>, vector<11x16xf32>
    %64 = vector.broadcast %55 : vector<1x16xf32> to vector<11x16xf32>
    %65 = arith.addf %63, %64 : vector<11x16xf32>
    %cst_78 = arith.constant 0.000000e+00 : f32
    %66 = vector.broadcast %cst_78 : f32 to vector<11x16xf32>
    %67 = arith.maximumf %65, %66 : vector<11x16xf32>
    %c0_79 = arith.constant 0 : index
    %c0_80 = arith.constant 0 : index
    %68 = vector.load %arg5[%c0_79, %c0_80] : memref<50x128xf32, #tpu.memory_space<vmem>>, vector<16x128xf32>
    %c16_81 = arith.constant 16 : index
    %c0_82 = arith.constant 0 : index
    %69 = vector.load %arg5[%c16_81, %c0_82] : memref<50x128xf32, #tpu.memory_space<vmem>>, vector<32x128xf32>
    %c48 = arith.constant 48 : index
    %c0_83 = arith.constant 0 : index
    %70 = vector.load %arg5[%c48, %c0_83] : memref<50x128xf32, #tpu.memory_space<vmem>>, vector<1x128xf32>
    %c49 = arith.constant 49 : index
    %c0_84 = arith.constant 0 : index
    %71 = vector.load %arg5[%c49, %c0_84] : memref<50x128xf32, #tpu.memory_space<vmem>>, vector<1x128xf32>
    %cst_85 = arith.constant 5.000000e-01 : f32
    %72 = vector.broadcast %cst_85 : f32 to vector<1x128xf32>
    %73 = arith.cmpf ogt, %71, %72 : vector<1x128xf32>
    %cst_86 = arith.constant dense<0.000000e+00> : vector<11x128xf32>
    %74 = tpu.matmul %67, %68, %cst_86 {dimension_numbers = #tpu.dot_dimension_numbers<[1], [0], [0], [1], [0, 0, 1, 1], [], []>} : vector<11x16xf32>, vector<16x128xf32>, vector<11x128xf32> -> vector<11x128xf32>
    %75 = vector.broadcast %70 : vector<1x128xf32> to vector<11x128xf32>
    %76 = arith.addf %74, %75 : vector<11x128xf32>
    %c0_87 = arith.constant 0 : index
    %c0_88 = arith.constant 0 : index
    %77 = vector.load %arg14[%c0_87, %c0_88] : memref<11x128xf32, #tpu.memory_space<vmem>>, vector<11x128xf32>
    tpu.vector_store %arg14[%c0_87, %c0_88], %76 {strides = array<i32>} : memref<11x128xf32, #tpu.memory_space<vmem>>, vector<11x128xf32>,
    %c0_89 = arith.constant 0 : index
    %c0_90 = arith.constant 0 : index
    %78 = vector.load %arg14[%c0_89, %c0_90] : memref<11x128xf32, #tpu.memory_space<vmem>>, vector<1x128xf32>
    %c10 = arith.constant 10 : index
    %c0_91 = arith.constant 0 : index
    %79 = vector.load %arg14[%c10, %c0_91] : memref<11x128xf32, #tpu.memory_space<vmem>>, vector<1x128xf32>
    %80 = arith.select %73, %78, %79 : vector<1x128xi1>, vector<1x128xf32>
    %c0_92 = arith.constant 0 : index
    %c0_93 = arith.constant 0 : index
    %81 = vector.load %arg15[%c0_92, %c0_93] : memref<11x128xf32, #tpu.memory_space<vmem>>, vector<1x128xf32>
    tpu.vector_store %arg15[%c0_92, %c0_93], %80 {strides = array<i32>} : memref<11x128xf32, #tpu.memory_space<vmem>>, vector<1x128xf32>,
    %c1_94 = arith.constant 1 : index
    %c0_95 = arith.constant 0 : index
    %82 = vector.load %arg14[%c1_94, %c0_95] : memref<11x128xf32, #tpu.memory_space<vmem>>, vector<1x128xf32>
    %c9 = arith.constant 9 : index
    %c0_96 = arith.constant 0 : index
    %83 = vector.load %arg14[%c9, %c0_96] : memref<11x128xf32, #tpu.memory_space<vmem>>, vector<1x128xf32>
    %84 = arith.select %73, %82, %83 : vector<1x128xi1>, vector<1x128xf32>
    %c1_97 = arith.constant 1 : index
    %c0_98 = arith.constant 0 : index
    %85 = vector.load %arg15[%c1_97, %c0_98] : memref<11x128xf32, #tpu.memory_space<vmem>>, vector<1x128xf32>
    tpu.vector_store %arg15[%c1_97, %c0_98], %84 {strides = array<i32>} : memref<11x128xf32, #tpu.memory_space<vmem>>, vector<1x128xf32>,
    %c2_99 = arith.constant 2 : index
    %c0_100 = arith.constant 0 : index
    %86 = vector.load %arg14[%c2_99, %c0_100] : memref<11x128xf32, #tpu.memory_space<vmem>>, vector<1x128xf32>
    %c8_101 = arith.constant 8 : index
    %c0_102 = arith.constant 0 : index
    %87 = vector.load %arg14[%c8_101, %c0_102] : memref<11x128xf32, #tpu.memory_space<vmem>>, vector<1x128xf32>
    %88 = arith.select %73, %86, %87 : vector<1x128xi1>, vector<1x128xf32>
    %c2_103 = arith.constant 2 : index
    %c0_104 = arith.constant 0 : index
    %89 = vector.load %arg15[%c2_103, %c0_104] : memref<11x128xf32, #tpu.memory_space<vmem>>, vector<1x128xf32>
    tpu.vector_store %arg15[%c2_103, %c0_104], %88 {strides = array<i32>} : memref<11x128xf32, #tpu.memory_space<vmem>>, vector<1x128xf32>,
    %c3 = arith.constant 3 : index
    %c0_105 = arith.constant 0 : index
    %90 = vector.load %arg14[%c3, %c0_105] : memref<11x128xf32, #tpu.memory_space<vmem>>, vector<1x128xf32>
    %c7 = arith.constant 7 : index
    %c0_106 = arith.constant 0 : index
    %91 = vector.load %arg14[%c7, %c0_106] : memref<11x128xf32, #tpu.memory_space<vmem>>, vector<1x128xf32>
    %92 = arith.select %73, %90, %91 : vector<1x128xi1>, vector<1x128xf32>
    %c3_107 = arith.constant 3 : index
    %c0_108 = arith.constant 0 : index
    %93 = vector.load %arg15[%c3_107, %c0_108] : memref<11x128xf32, #tpu.memory_space<vmem>>, vector<1x128xf32>
    tpu.vector_store %arg15[%c3_107, %c0_108], %92 {strides = array<i32>} : memref<11x128xf32, #tpu.memory_space<vmem>>, vector<1x128xf32>,
    %c4 = arith.constant 4 : index
    %c0_109 = arith.constant 0 : index
    %94 = vector.load %arg14[%c4, %c0_109] : memref<11x128xf32, #tpu.memory_space<vmem>>, vector<1x128xf32>
    %c6_110 = arith.constant 6 : index
    %c0_111 = arith.constant 0 : index
    %95 = vector.load %arg14[%c6_110, %c0_111] : memref<11x128xf32, #tpu.memory_space<vmem>>, vector<1x128xf32>
    %96 = arith.select %73, %94, %95 : vector<1x128xi1>, vector<1x128xf32>
    %c4_112 = arith.constant 4 : index
    %c0_113 = arith.constant 0 : index
    %97 = vector.load %arg15[%c4_112, %c0_113] : memref<11x128xf32, #tpu.memory_space<vmem>>, vector<1x128xf32>
    tpu.vector_store %arg15[%c4_112, %c0_113], %96 {strides = array<i32>} : memref<11x128xf32, #tpu.memory_space<vmem>>, vector<1x128xf32>,
    %c5 = arith.constant 5 : index
    %c0_114 = arith.constant 0 : index
    %98 = vector.load %arg14[%c5, %c0_114] : memref<11x128xf32, #tpu.memory_space<vmem>>, vector<1x128xf32>
    %c5_115 = arith.constant 5 : index
    %c0_116 = arith.constant 0 : index
    %99 = vector.load %arg14[%c5_115, %c0_116] : memref<11x128xf32, #tpu.memory_space<vmem>>, vector<1x128xf32>
    %100 = arith.select %73, %98, %99 : vector<1x128xi1>, vector<1x128xf32>
    %c5_117 = arith.constant 5 : index
    %c0_118 = arith.constant 0 : index
    %101 = vector.load %arg15[%c5_117, %c0_118] : memref<11x128xf32, #tpu.memory_space<vmem>>, vector<1x128xf32>
    tpu.vector_store %arg15[%c5_117, %c0_118], %100 {strides = array<i32>} : memref<11x128xf32, #tpu.memory_space<vmem>>, vector<1x128xf32>,
    %c6_119 = arith.constant 6 : index
    %c0_120 = arith.constant 0 : index
    %102 = vector.load %arg14[%c6_119, %c0_120] : memref<11x128xf32, #tpu.memory_space<vmem>>, vector<1x128xf32>
    %c4_121 = arith.constant 4 : index
    %c0_122 = arith.constant 0 : index
    %103 = vector.load %arg14[%c4_121, %c0_122] : memref<11x128xf32, #tpu.memory_space<vmem>>, vector<1x128xf32>
    %104 = arith.select %73, %102, %103 : vector<1x128xi1>, vector<1x128xf32>
    %c6_123 = arith.constant 6 : index
    %c0_124 = arith.constant 0 : index
    %105 = vector.load %arg15[%c6_123, %c0_124] : memref<11x128xf32, #tpu.memory_space<vmem>>, vector<1x128xf32>
    tpu.vector_store %arg15[%c6_123, %c0_124], %104 {strides = array<i32>} : memref<11x128xf32, #tpu.memory_space<vmem>>, vector<1x128xf32>,
    %c7_125 = arith.constant 7 : index
    %c0_126 = arith.constant 0 : index
    %106 = vector.load %arg14[%c7_125, %c0_126] : memref<11x128xf32, #tpu.memory_space<vmem>>, vector<1x128xf32>
    %c3_127 = arith.constant 3 : index
    %c0_128 = arith.constant 0 : index
    %107 = vector.load %arg14[%c3_127, %c0_128] : memref<11x128xf32, #tpu.memory_space<vmem>>, vector<1x128xf32>
    %108 = arith.select %73, %106, %107 : vector<1x128xi1>, vector<1x128xf32>
    %c7_129 = arith.constant 7 : index
    %c0_130 = arith.constant 0 : index
    %109 = vector.load %arg15[%c7_129, %c0_130] : memref<11x128xf32, #tpu.memory_space<vmem>>, vector<1x128xf32>
    tpu.vector_store %arg15[%c7_129, %c0_130], %108 {strides = array<i32>} : memref<11x128xf32, #tpu.memory_space<vmem>>, vector<1x128xf32>,
    %c8_131 = arith.constant 8 : index
    %c0_132 = arith.constant 0 : index
    %110 = vector.load %arg14[%c8_131, %c0_132] : memref<11x128xf32, #tpu.memory_space<vmem>>, vector<1x128xf32>
    %c2_133 = arith.constant 2 : index
    %c0_134 = arith.constant 0 : index
    %111 = vector.load %arg14[%c2_133, %c0_134] : memref<11x128xf32, #tpu.memory_space<vmem>>, vector<1x128xf32>
    %112 = arith.select %73, %110, %111 : vector<1x128xi1>, vector<1x128xf32>
    %c8_135 = arith.constant 8 : index
    %c0_136 = arith.constant 0 : index
    %113 = vector.load %arg15[%c8_135, %c0_136] : memref<11x128xf32, #tpu.memory_space<vmem>>, vector<1x128xf32>
    tpu.vector_store %arg15[%c8_135, %c0_136], %112 {strides = array<i32>} : memref<11x128xf32, #tpu.memory_space<vmem>>, vector<1x128xf32>,
    %c9_137 = arith.constant 9 : index
    %c0_138 = arith.constant 0 : index
    %114 = vector.load %arg14[%c9_137, %c0_138] : memref<11x128xf32, #tpu.memory_space<vmem>>, vector<1x128xf32>
    %c1_139 = arith.constant 1 : index
    %c0_140 = arith.constant 0 : index
    %115 = vector.load %arg14[%c1_139, %c0_140] : memref<11x128xf32, #tpu.memory_space<vmem>>, vector<1x128xf32>
    %116 = arith.select %73, %114, %115 : vector<1x128xi1>, vector<1x128xf32>
    %c9_141 = arith.constant 9 : index
    %c0_142 = arith.constant 0 : index
    %117 = vector.load %arg15[%c9_141, %c0_142] : memref<11x128xf32, #tpu.memory_space<vmem>>, vector<1x128xf32>
    tpu.vector_store %arg15[%c9_141, %c0_142], %116 {strides = array<i32>} : memref<11x128xf32, #tpu.memory_space<vmem>>, vector<1x128xf32>,
    %c10_143 = arith.constant 10 : index
    %c0_144 = arith.constant 0 : index
    %118 = vector.load %arg14[%c10_143, %c0_144] : memref<11x128xf32, #tpu.memory_space<vmem>>, vector<1x128xf32>
    %c0_145 = arith.constant 0 : index
    %c0_146 = arith.constant 0 : index
    %119 = vector.load %arg14[%c0_145, %c0_146] : memref<11x128xf32, #tpu.memory_space<vmem>>, vector<1x128xf32>
    %120 = arith.select %73, %118, %119 : vector<1x128xi1>, vector<1x128xf32>
    %c10_147 = arith.constant 10 : index
    %c0_148 = arith.constant 0 : index
    %121 = vector.load %arg15[%c10_147, %c0_148] : memref<11x128xf32, #tpu.memory_space<vmem>>, vector<1x128xf32>
    tpu.vector_store %arg15[%c10_147, %c0_148], %120 {strides = array<i32>} : memref<11x128xf32, #tpu.memory_space<vmem>>, vector<1x128xf32>,
    %cst_149 = arith.constant 0.000000e+00 : f32
    %122 = vector.broadcast %cst_149 : f32 to vector<1x32xf32>
    %cst_150 = arith.constant 0.000000e+00 : f32
    %123 = vector.broadcast %cst_150 : f32 to vector<1x32xf32>
    %c0_151 = arith.constant 0 : index
    %c0_152 = arith.constant 0 : index
    %124 = vector.load %arg15[%c0_151, %c0_152] : memref<11x128xf32, #tpu.memory_space<vmem>>, vector<1x128xf32>
    %cst_153 = arith.constant dense<0.000000e+00> : vector<1x128xf32>
    %125 = tpu.matmul %122, %69, %cst_153 {dimension_numbers = #tpu.dot_dimension_numbers<[1], [0], [0], [1], [0, 0, 1, 1], [], []>} : vector<1x32xf32>, vector<32x128xf32>, vector<1x128xf32> -> vector<1x128xf32>
    %126 = arith.addf %124, %125 : vector<1x128xf32>
    %127 = vector.extract_strided_slice %126 {offsets = [0, 0], sizes = [1, 96], strides = [1, 1]} : vector<1x128xf32> to vector<1x96xf32>
    %128 = arith.negf %127 : vector<1x96xf32>
    %129 = math.exp %128 : vector<1x96xf32>
    %cst_154 = arith.constant 1.000000e+00 : f32
    %130 = vector.broadcast %cst_154 : f32 to vector<1x96xf32>
    %131 = arith.addf %130, %129 : vector<1x96xf32>
    %132 = arith.divf %130, %131 : vector<1x96xf32>
    %133 = vector.extract_strided_slice %126 {offsets = [0, 96], sizes = [1, 32], strides = [1, 1]} : vector<1x128xf32> to vector<1x32xf32>
    %134 = math.tanh %133 : vector<1x32xf32>
    %135 = vector.extract_strided_slice %132 {offsets = [0, 32], sizes = [1, 32], strides = [1, 1]} : vector<1x96xf32> to vector<1x32xf32>
    %136 = arith.mulf %135, %123 : vector<1x32xf32>
    %137 = vector.extract_strided_slice %132 {offsets = [0, 0], sizes = [1, 32], strides = [1, 1]} : vector<1x96xf32> to vector<1x32xf32>
    %138 = arith.mulf %137, %134 : vector<1x32xf32>
    %139 = arith.addf %136, %138 : vector<1x32xf32>
    %140 = vector.extract_strided_slice %132 {offsets = [0, 64], sizes = [1, 32], strides = [1, 1]} : vector<1x96xf32> to vector<1x32xf32>
    %141 = math.tanh %139 : vector<1x32xf32>
    %142 = arith.mulf %140, %141 : vector<1x32xf32>
    %c0_155 = arith.constant 0 : index
    %c0_156 = arith.constant 0 : index
    %143 = vector.load %arg16[%c0_155, %c0_156] : memref<11x32xf32, #tpu.memory_space<vmem>>, vector<1x32xf32>
    tpu.vector_store %arg16[%c0_155, %c0_156], %142 {strides = array<i32>} : memref<11x32xf32, #tpu.memory_space<vmem>>, vector<1x32xf32>,
    %c10_157 = arith.constant 10 : index
    %c0_158 = arith.constant 0 : index
    %144 = vector.load %arg17[%c10_157, %c0_158] : memref<11x32xf32, #tpu.memory_space<vmem>>, vector<1x32xf32>
    tpu.vector_store %arg17[%c10_157, %c0_158], %142 {strides = array<i32>} : memref<11x32xf32, #tpu.memory_space<vmem>>, vector<1x32xf32>,
    %c1_159 = arith.constant 1 : index
    %c0_160 = arith.constant 0 : index
    %145 = vector.load %arg15[%c1_159, %c0_160] : memref<11x128xf32, #tpu.memory_space<vmem>>, vector<1x128xf32>
    %cst_161 = arith.constant dense<0.000000e+00> : vector<1x128xf32>
    %146 = tpu.matmul %142, %69, %cst_161 {dimension_numbers = #tpu.dot_dimension_numbers<[1], [0], [0], [1], [0, 0, 1, 1], [], []>} : vector<1x32xf32>, vector<32x128xf32>, vector<1x128xf32> -> vector<1x128xf32>
    %147 = arith.addf %145, %146 : vector<1x128xf32>
    %148 = vector.extract_strided_slice %147 {offsets = [0, 0], sizes = [1, 96], strides = [1, 1]} : vector<1x128xf32> to vector<1x96xf32>
    %149 = arith.negf %148 : vector<1x96xf32>
    %150 = math.exp %149 : vector<1x96xf32>
    %cst_162 = arith.constant 1.000000e+00 : f32
    %151 = vector.broadcast %cst_162 : f32 to vector<1x96xf32>
    %152 = arith.addf %151, %150 : vector<1x96xf32>
    %153 = arith.divf %151, %152 : vector<1x96xf32>
    %154 = vector.extract_strided_slice %147 {offsets = [0, 96], sizes = [1, 32], strides = [1, 1]} : vector<1x128xf32> to vector<1x32xf32>
    %155 = math.tanh %154 : vector<1x32xf32>
    %156 = vector.extract_strided_slice %153 {offsets = [0, 32], sizes = [1, 32], strides = [1, 1]} : vector<1x96xf32> to vector<1x32xf32>
    %157 = arith.mulf %156, %139 : vector<1x32xf32>
    %158 = vector.extract_strided_slice %153 {offsets = [0, 0], sizes = [1, 32], strides = [1, 1]} : vector<1x96xf32> to vector<1x32xf32>
    %159 = arith.mulf %158, %155 : vector<1x32xf32>
    %160 = arith.addf %157, %159 : vector<1x32xf32>
    %161 = vector.extract_strided_slice %153 {offsets = [0, 64], sizes = [1, 32], strides = [1, 1]} : vector<1x96xf32> to vector<1x32xf32>
    %162 = math.tanh %160 : vector<1x32xf32>
    %163 = arith.mulf %161, %162 : vector<1x32xf32>
    %c1_163 = arith.constant 1 : index
    %c0_164 = arith.constant 0 : index
    %164 = vector.load %arg16[%c1_163, %c0_164] : memref<11x32xf32, #tpu.memory_space<vmem>>, vector<1x32xf32>
    tpu.vector_store %arg16[%c1_163, %c0_164], %163 {strides = array<i32>} : memref<11x32xf32, #tpu.memory_space<vmem>>, vector<1x32xf32>,
    %c9_165 = arith.constant 9 : index
    %c0_166 = arith.constant 0 : index
    %165 = vector.load %arg17[%c9_165, %c0_166] : memref<11x32xf32, #tpu.memory_space<vmem>>, vector<1x32xf32>
    tpu.vector_store %arg17[%c9_165, %c0_166], %163 {strides = array<i32>} : memref<11x32xf32, #tpu.memory_space<vmem>>, vector<1x32xf32>,
    %c2_167 = arith.constant 2 : index
    %c0_168 = arith.constant 0 : index
    %166 = vector.load %arg15[%c2_167, %c0_168] : memref<11x128xf32, #tpu.memory_space<vmem>>, vector<1x128xf32>
    %cst_169 = arith.constant dense<0.000000e+00> : vector<1x128xf32>
    %167 = tpu.matmul %163, %69, %cst_169 {dimension_numbers = #tpu.dot_dimension_numbers<[1], [0], [0], [1], [0, 0, 1, 1], [], []>} : vector<1x32xf32>, vector<32x128xf32>, vector<1x128xf32> -> vector<1x128xf32>
    %168 = arith.addf %166, %167 : vector<1x128xf32>
    %169 = vector.extract_strided_slice %168 {offsets = [0, 0], sizes = [1, 96], strides = [1, 1]} : vector<1x128xf32> to vector<1x96xf32>
    %170 = arith.negf %169 : vector<1x96xf32>
    %171 = math.exp %170 : vector<1x96xf32>
    %cst_170 = arith.constant 1.000000e+00 : f32
    %172 = vector.broadcast %cst_170 : f32 to vector<1x96xf32>
    %173 = arith.addf %172, %171 : vector<1x96xf32>
    %174 = arith.divf %172, %173 : vector<1x96xf32>
    %175 = vector.extract_strided_slice %168 {offsets = [0, 96], sizes = [1, 32], strides = [1, 1]} : vector<1x128xf32> to vector<1x32xf32>
    %176 = math.tanh %175 : vector<1x32xf32>
    %177 = vector.extract_strided_slice %174 {offsets = [0, 32], sizes = [1, 32], strides = [1, 1]} : vector<1x96xf32> to vector<1x32xf32>
    %178 = arith.mulf %177, %160 : vector<1x32xf32>
    %179 = vector.extract_strided_slice %174 {offsets = [0, 0], sizes = [1, 32], strides = [1, 1]} : vector<1x96xf32> to vector<1x32xf32>
    %180 = arith.mulf %179, %176 : vector<1x32xf32>
    %181 = arith.addf %178, %180 : vector<1x32xf32>
    %182 = vector.extract_strided_slice %174 {offsets = [0, 64], sizes = [1, 32], strides = [1, 1]} : vector<1x96xf32> to vector<1x32xf32>
    %183 = math.tanh %181 : vector<1x32xf32>
    %184 = arith.mulf %182, %183 : vector<1x32xf32>
    %c2_171 = arith.constant 2 : index
    %c0_172 = arith.constant 0 : index
    %185 = vector.load %arg16[%c2_171, %c0_172] : memref<11x32xf32, #tpu.memory_space<vmem>>, vector<1x32xf32>
    tpu.vector_store %arg16[%c2_171, %c0_172], %184 {strides = array<i32>} : memref<11x32xf32, #tpu.memory_space<vmem>>, vector<1x32xf32>,
    %c8_173 = arith.constant 8 : index
    %c0_174 = arith.constant 0 : index
    %186 = vector.load %arg17[%c8_173, %c0_174] : memref<11x32xf32, #tpu.memory_space<vmem>>, vector<1x32xf32>
    tpu.vector_store %arg17[%c8_173, %c0_174], %184 {strides = array<i32>} : memref<11x32xf32, #tpu.memory_space<vmem>>, vector<1x32xf32>,
    %c3_175 = arith.constant 3 : index
    %c0_176 = arith.constant 0 : index
    %187 = vector.load %arg15[%c3_175, %c0_176] : memref<11x128xf32, #tpu.memory_space<vmem>>, vector<1x128xf32>
    %cst_177 = arith.constant dense<0.000000e+00> : vector<1x128xf32>
    %188 = tpu.matmul %184, %69, %cst_177 {dimension_numbers = #tpu.dot_dimension_numbers<[1], [0], [0], [1], [0, 0, 1, 1], [], []>} : vector<1x32xf32>, vector<32x128xf32>, vector<1x128xf32> -> vector<1x128xf32>
    %189 = arith.addf %187, %188 : vector<1x128xf32>
    %190 = vector.extract_strided_slice %189 {offsets = [0, 0], sizes = [1, 96], strides = [1, 1]} : vector<1x128xf32> to vector<1x96xf32>
    %191 = arith.negf %190 : vector<1x96xf32>
    %192 = math.exp %191 : vector<1x96xf32>
    %cst_178 = arith.constant 1.000000e+00 : f32
    %193 = vector.broadcast %cst_178 : f32 to vector<1x96xf32>
    %194 = arith.addf %193, %192 : vector<1x96xf32>
    %195 = arith.divf %193, %194 : vector<1x96xf32>
    %196 = vector.extract_strided_slice %189 {offsets = [0, 96], sizes = [1, 32], strides = [1, 1]} : vector<1x128xf32> to vector<1x32xf32>
    %197 = math.tanh %196 : vector<1x32xf32>
    %198 = vector.extract_strided_slice %195 {offsets = [0, 32], sizes = [1, 32], strides = [1, 1]} : vector<1x96xf32> to vector<1x32xf32>
    %199 = arith.mulf %198, %181 : vector<1x32xf32>
    %200 = vector.extract_strided_slice %195 {offsets = [0, 0], sizes = [1, 32], strides = [1, 1]} : vector<1x96xf32> to vector<1x32xf32>
    %201 = arith.mulf %200, %197 : vector<1x32xf32>
    %202 = arith.addf %199, %201 : vector<1x32xf32>
    %203 = vector.extract_strided_slice %195 {offsets = [0, 64], sizes = [1, 32], strides = [1, 1]} : vector<1x96xf32> to vector<1x32xf32>
    %204 = math.tanh %202 : vector<1x32xf32>
    %205 = arith.mulf %203, %204 : vector<1x32xf32>
    %c3_179 = arith.constant 3 : index
    %c0_180 = arith.constant 0 : index
    %206 = vector.load %arg16[%c3_179, %c0_180] : memref<11x32xf32, #tpu.memory_space<vmem>>, vector<1x32xf32>
    tpu.vector_store %arg16[%c3_179, %c0_180], %205 {strides = array<i32>} : memref<11x32xf32, #tpu.memory_space<vmem>>, vector<1x32xf32>,
    %c7_181 = arith.constant 7 : index
    %c0_182 = arith.constant 0 : index
    %207 = vector.load %arg17[%c7_181, %c0_182] : memref<11x32xf32, #tpu.memory_space<vmem>>, vector<1x32xf32>
    tpu.vector_store %arg17[%c7_181, %c0_182], %205 {strides = array<i32>} : memref<11x32xf32, #tpu.memory_space<vmem>>, vector<1x32xf32>,
    %c4_183 = arith.constant 4 : index
    %c0_184 = arith.constant 0 : index
    %208 = vector.load %arg15[%c4_183, %c0_184] : memref<11x128xf32, #tpu.memory_space<vmem>>, vector<1x128xf32>
    %cst_185 = arith.constant dense<0.000000e+00> : vector<1x128xf32>
    %209 = tpu.matmul %205, %69, %cst_185 {dimension_numbers = #tpu.dot_dimension_numbers<[1], [0], [0], [1], [0, 0, 1, 1], [], []>} : vector<1x32xf32>, vector<32x128xf32>, vector<1x128xf32> -> vector<1x128xf32>
    %210 = arith.addf %208, %209 : vector<1x128xf32>
    %211 = vector.extract_strided_slice %210 {offsets = [0, 0], sizes = [1, 96], strides = [1, 1]} : vector<1x128xf32> to vector<1x96xf32>
    %212 = arith.negf %211 : vector<1x96xf32>
    %213 = math.exp %212 : vector<1x96xf32>
    %cst_186 = arith.constant 1.000000e+00 : f32
    %214 = vector.broadcast %cst_186 : f32 to vector<1x96xf32>
    %215 = arith.addf %214, %213 : vector<1x96xf32>
    %216 = arith.divf %214, %215 : vector<1x96xf32>
    %217 = vector.extract_strided_slice %210 {offsets = [0, 96], sizes = [1, 32], strides = [1, 1]} : vector<1x128xf32> to vector<1x32xf32>
    %218 = math.tanh %217 : vector<1x32xf32>
    %219 = vector.extract_strided_slice %216 {offsets = [0, 32], sizes = [1, 32], strides = [1, 1]} : vector<1x96xf32> to vector<1x32xf32>
    %220 = arith.mulf %219, %202 : vector<1x32xf32>
    %221 = vector.extract_strided_slice %216 {offsets = [0, 0], sizes = [1, 32], strides = [1, 1]} : vector<1x96xf32> to vector<1x32xf32>
    %222 = arith.mulf %221, %218 : vector<1x32xf32>
    %223 = arith.addf %220, %222 : vector<1x32xf32>
    %224 = vector.extract_strided_slice %216 {offsets = [0, 64], sizes = [1, 32], strides = [1, 1]} : vector<1x96xf32> to vector<1x32xf32>
    %225 = math.tanh %223 : vector<1x32xf32>
    %226 = arith.mulf %224, %225 : vector<1x32xf32>
    %c4_187 = arith.constant 4 : index
    %c0_188 = arith.constant 0 : index
    %227 = vector.load %arg16[%c4_187, %c0_188] : memref<11x32xf32, #tpu.memory_space<vmem>>, vector<1x32xf32>
    tpu.vector_store %arg16[%c4_187, %c0_188], %226 {strides = array<i32>} : memref<11x32xf32, #tpu.memory_space<vmem>>, vector<1x32xf32>,
    %c6_189 = arith.constant 6 : index
    %c0_190 = arith.constant 0 : index
    %228 = vector.load %arg17[%c6_189, %c0_190] : memref<11x32xf32, #tpu.memory_space<vmem>>, vector<1x32xf32>
    tpu.vector_store %arg17[%c6_189, %c0_190], %226 {strides = array<i32>} : memref<11x32xf32, #tpu.memory_space<vmem>>, vector<1x32xf32>,
    %c5_191 = arith.constant 5 : index
    %c0_192 = arith.constant 0 : index
    %229 = vector.load %arg15[%c5_191, %c0_192] : memref<11x128xf32, #tpu.memory_space<vmem>>, vector<1x128xf32>
    %cst_193 = arith.constant dense<0.000000e+00> : vector<1x128xf32>
    %230 = tpu.matmul %226, %69, %cst_193 {dimension_numbers = #tpu.dot_dimension_numbers<[1], [0], [0], [1], [0, 0, 1, 1], [], []>} : vector<1x32xf32>, vector<32x128xf32>, vector<1x128xf32> -> vector<1x128xf32>
    %231 = arith.addf %229, %230 : vector<1x128xf32>
    %232 = vector.extract_strided_slice %231 {offsets = [0, 0], sizes = [1, 96], strides = [1, 1]} : vector<1x128xf32> to vector<1x96xf32>
    %233 = arith.negf %232 : vector<1x96xf32>
    %234 = math.exp %233 : vector<1x96xf32>
    %cst_194 = arith.constant 1.000000e+00 : f32
    %235 = vector.broadcast %cst_194 : f32 to vector<1x96xf32>
    %236 = arith.addf %235, %234 : vector<1x96xf32>
    %237 = arith.divf %235, %236 : vector<1x96xf32>
    %238 = vector.extract_strided_slice %231 {offsets = [0, 96], sizes = [1, 32], strides = [1, 1]} : vector<1x128xf32> to vector<1x32xf32>
    %239 = math.tanh %238 : vector<1x32xf32>
    %240 = vector.extract_strided_slice %237 {offsets = [0, 32], sizes = [1, 32], strides = [1, 1]} : vector<1x96xf32> to vector<1x32xf32>
    %241 = arith.mulf %240, %223 : vector<1x32xf32>
    %242 = vector.extract_strided_slice %237 {offsets = [0, 0], sizes = [1, 32], strides = [1, 1]} : vector<1x96xf32> to vector<1x32xf32>
    %243 = arith.mulf %242, %239 : vector<1x32xf32>
    %244 = arith.addf %241, %243 : vector<1x32xf32>
    %245 = vector.extract_strided_slice %237 {offsets = [0, 64], sizes = [1, 32], strides = [1, 1]} : vector<1x96xf32> to vector<1x32xf32>
    %246 = math.tanh %244 : vector<1x32xf32>
    %247 = arith.mulf %245, %246 : vector<1x32xf32>
    %c5_195 = arith.constant 5 : index
    %c0_196 = arith.constant 0 : index
    %248 = vector.load %arg16[%c5_195, %c0_196] : memref<11x32xf32, #tpu.memory_space<vmem>>, vector<1x32xf32>
    tpu.vector_store %arg16[%c5_195, %c0_196], %247 {strides = array<i32>} : memref<11x32xf32, #tpu.memory_space<vmem>>, vector<1x32xf32>,
    %c5_197 = arith.constant 5 : index
    %c0_198 = arith.constant 0 : index
    %249 = vector.load %arg17[%c5_197, %c0_198] : memref<11x32xf32, #tpu.memory_space<vmem>>, vector<1x32xf32>
    tpu.vector_store %arg17[%c5_197, %c0_198], %247 {strides = array<i32>} : memref<11x32xf32, #tpu.memory_space<vmem>>, vector<1x32xf32>,
    %c6_199 = arith.constant 6 : index
    %c0_200 = arith.constant 0 : index
    %250 = vector.load %arg15[%c6_199, %c0_200] : memref<11x128xf32, #tpu.memory_space<vmem>>, vector<1x128xf32>
    %cst_201 = arith.constant dense<0.000000e+00> : vector<1x128xf32>
    %251 = tpu.matmul %247, %69, %cst_201 {dimension_numbers = #tpu.dot_dimension_numbers<[1], [0], [0], [1], [0, 0, 1, 1], [], []>} : vector<1x32xf32>, vector<32x128xf32>, vector<1x128xf32> -> vector<1x128xf32>
    %252 = arith.addf %250, %251 : vector<1x128xf32>
    %253 = vector.extract_strided_slice %252 {offsets = [0, 0], sizes = [1, 96], strides = [1, 1]} : vector<1x128xf32> to vector<1x96xf32>
    %254 = arith.negf %253 : vector<1x96xf32>
    %255 = math.exp %254 : vector<1x96xf32>
    %cst_202 = arith.constant 1.000000e+00 : f32
    %256 = vector.broadcast %cst_202 : f32 to vector<1x96xf32>
    %257 = arith.addf %256, %255 : vector<1x96xf32>
    %258 = arith.divf %256, %257 : vector<1x96xf32>
    %259 = vector.extract_strided_slice %252 {offsets = [0, 96], sizes = [1, 32], strides = [1, 1]} : vector<1x128xf32> to vector<1x32xf32>
    %260 = math.tanh %259 : vector<1x32xf32>
    %261 = vector.extract_strided_slice %258 {offsets = [0, 32], sizes = [1, 32], strides = [1, 1]} : vector<1x96xf32> to vector<1x32xf32>
    %262 = arith.mulf %261, %244 : vector<1x32xf32>
    %263 = vector.extract_strided_slice %258 {offsets = [0, 0], sizes = [1, 32], strides = [1, 1]} : vector<1x96xf32> to vector<1x32xf32>
    %264 = arith.mulf %263, %260 : vector<1x32xf32>
    %265 = arith.addf %262, %264 : vector<1x32xf32>
    %266 = vector.extract_strided_slice %258 {offsets = [0, 64], sizes = [1, 32], strides = [1, 1]} : vector<1x96xf32> to vector<1x32xf32>
    %267 = math.tanh %265 : vector<1x32xf32>
    %268 = arith.mulf %266, %267 : vector<1x32xf32>
    %c6_203 = arith.constant 6 : index
    %c0_204 = arith.constant 0 : index
    %269 = vector.load %arg16[%c6_203, %c0_204] : memref<11x32xf32, #tpu.memory_space<vmem>>, vector<1x32xf32>
    tpu.vector_store %arg16[%c6_203, %c0_204], %268 {strides = array<i32>} : memref<11x32xf32, #tpu.memory_space<vmem>>, vector<1x32xf32>,
    %c4_205 = arith.constant 4 : index
    %c0_206 = arith.constant 0 : index
    %270 = vector.load %arg17[%c4_205, %c0_206] : memref<11x32xf32, #tpu.memory_space<vmem>>, vector<1x32xf32>
    tpu.vector_store %arg17[%c4_205, %c0_206], %268 {strides = array<i32>} : memref<11x32xf32, #tpu.memory_space<vmem>>, vector<1x32xf32>,
    %c7_207 = arith.constant 7 : index
    %c0_208 = arith.constant 0 : index
    %271 = vector.load %arg15[%c7_207, %c0_208] : memref<11x128xf32, #tpu.memory_space<vmem>>, vector<1x128xf32>
    %cst_209 = arith.constant dense<0.000000e+00> : vector<1x128xf32>
    %272 = tpu.matmul %268, %69, %cst_209 {dimension_numbers = #tpu.dot_dimension_numbers<[1], [0], [0], [1], [0, 0, 1, 1], [], []>} : vector<1x32xf32>, vector<32x128xf32>, vector<1x128xf32> -> vector<1x128xf32>
    %273 = arith.addf %271, %272 : vector<1x128xf32>
    %274 = vector.extract_strided_slice %273 {offsets = [0, 0], sizes = [1, 96], strides = [1, 1]} : vector<1x128xf32> to vector<1x96xf32>
    %275 = arith.negf %274 : vector<1x96xf32>
    %276 = math.exp %275 : vector<1x96xf32>
    %cst_210 = arith.constant 1.000000e+00 : f32
    %277 = vector.broadcast %cst_210 : f32 to vector<1x96xf32>
    %278 = arith.addf %277, %276 : vector<1x96xf32>
    %279 = arith.divf %277, %278 : vector<1x96xf32>
    %280 = vector.extract_strided_slice %273 {offsets = [0, 96], sizes = [1, 32], strides = [1, 1]} : vector<1x128xf32> to vector<1x32xf32>
    %281 = math.tanh %280 : vector<1x32xf32>
    %282 = vector.extract_strided_slice %279 {offsets = [0, 32], sizes = [1, 32], strides = [1, 1]} : vector<1x96xf32> to vector<1x32xf32>
    %283 = arith.mulf %282, %265 : vector<1x32xf32>
    %284 = vector.extract_strided_slice %279 {offsets = [0, 0], sizes = [1, 32], strides = [1, 1]} : vector<1x96xf32> to vector<1x32xf32>
    %285 = arith.mulf %284, %281 : vector<1x32xf32>
    %286 = arith.addf %283, %285 : vector<1x32xf32>
    %287 = vector.extract_strided_slice %279 {offsets = [0, 64], sizes = [1, 32], strides = [1, 1]} : vector<1x96xf32> to vector<1x32xf32>
    %288 = math.tanh %286 : vector<1x32xf32>
    %289 = arith.mulf %287, %288 : vector<1x32xf32>
    %c7_211 = arith.constant 7 : index
    %c0_212 = arith.constant 0 : index
    %290 = vector.load %arg16[%c7_211, %c0_212] : memref<11x32xf32, #tpu.memory_space<vmem>>, vector<1x32xf32>
    tpu.vector_store %arg16[%c7_211, %c0_212], %289 {strides = array<i32>} : memref<11x32xf32, #tpu.memory_space<vmem>>, vector<1x32xf32>,
    %c3_213 = arith.constant 3 : index
    %c0_214 = arith.constant 0 : index
    %291 = vector.load %arg17[%c3_213, %c0_214] : memref<11x32xf32, #tpu.memory_space<vmem>>, vector<1x32xf32>
    tpu.vector_store %arg17[%c3_213, %c0_214], %289 {strides = array<i32>} : memref<11x32xf32, #tpu.memory_space<vmem>>, vector<1x32xf32>,
    %c8_215 = arith.constant 8 : index
    %c0_216 = arith.constant 0 : index
    %292 = vector.load %arg15[%c8_215, %c0_216] : memref<11x128xf32, #tpu.memory_space<vmem>>, vector<1x128xf32>
    %cst_217 = arith.constant dense<0.000000e+00> : vector<1x128xf32>
    %293 = tpu.matmul %289, %69, %cst_217 {dimension_numbers = #tpu.dot_dimension_numbers<[1], [0], [0], [1], [0, 0, 1, 1], [], []>} : vector<1x32xf32>, vector<32x128xf32>, vector<1x128xf32> -> vector<1x128xf32>
    %294 = arith.addf %292, %293 : vector<1x128xf32>
    %295 = vector.extract_strided_slice %294 {offsets = [0, 0], sizes = [1, 96], strides = [1, 1]} : vector<1x128xf32> to vector<1x96xf32>
    %296 = arith.negf %295 : vector<1x96xf32>
    %297 = math.exp %296 : vector<1x96xf32>
    %cst_218 = arith.constant 1.000000e+00 : f32
    %298 = vector.broadcast %cst_218 : f32 to vector<1x96xf32>
    %299 = arith.addf %298, %297 : vector<1x96xf32>
    %300 = arith.divf %298, %299 : vector<1x96xf32>
    %301 = vector.extract_strided_slice %294 {offsets = [0, 96], sizes = [1, 32], strides = [1, 1]} : vector<1x128xf32> to vector<1x32xf32>
    %302 = math.tanh %301 : vector<1x32xf32>
    %303 = vector.extract_strided_slice %300 {offsets = [0, 32], sizes = [1, 32], strides = [1, 1]} : vector<1x96xf32> to vector<1x32xf32>
    %304 = arith.mulf %303, %286 : vector<1x32xf32>
    %305 = vector.extract_strided_slice %300 {offsets = [0, 0], sizes = [1, 32], strides = [1, 1]} : vector<1x96xf32> to vector<1x32xf32>
    %306 = arith.mulf %305, %302 : vector<1x32xf32>
    %307 = arith.addf %304, %306 : vector<1x32xf32>
    %308 = vector.extract_strided_slice %300 {offsets = [0, 64], sizes = [1, 32], strides = [1, 1]} : vector<1x96xf32> to vector<1x32xf32>
    %309 = math.tanh %307 : vector<1x32xf32>
    %310 = arith.mulf %308, %309 : vector<1x32xf32>
    %c8_219 = arith.constant 8 : index
    %c0_220 = arith.constant 0 : index
    %311 = vector.load %arg16[%c8_219, %c0_220] : memref<11x32xf32, #tpu.memory_space<vmem>>, vector<1x32xf32>
    tpu.vector_store %arg16[%c8_219, %c0_220], %310 {strides = array<i32>} : memref<11x32xf32, #tpu.memory_space<vmem>>, vector<1x32xf32>,
    %c2_221 = arith.constant 2 : index
    %c0_222 = arith.constant 0 : index
    %312 = vector.load %arg17[%c2_221, %c0_222] : memref<11x32xf32, #tpu.memory_space<vmem>>, vector<1x32xf32>
    tpu.vector_store %arg17[%c2_221, %c0_222], %310 {strides = array<i32>} : memref<11x32xf32, #tpu.memory_space<vmem>>, vector<1x32xf32>,
    %c9_223 = arith.constant 9 : index
    %c0_224 = arith.constant 0 : index
    %313 = vector.load %arg15[%c9_223, %c0_224] : memref<11x128xf32, #tpu.memory_space<vmem>>, vector<1x128xf32>
    %cst_225 = arith.constant dense<0.000000e+00> : vector<1x128xf32>
    %314 = tpu.matmul %310, %69, %cst_225 {dimension_numbers = #tpu.dot_dimension_numbers<[1], [0], [0], [1], [0, 0, 1, 1], [], []>} : vector<1x32xf32>, vector<32x128xf32>, vector<1x128xf32> -> vector<1x128xf32>
    %315 = arith.addf %313, %314 : vector<1x128xf32>
    %316 = vector.extract_strided_slice %315 {offsets = [0, 0], sizes = [1, 96], strides = [1, 1]} : vector<1x128xf32> to vector<1x96xf32>
    %317 = arith.negf %316 : vector<1x96xf32>
    %318 = math.exp %317 : vector<1x96xf32>
    %cst_226 = arith.constant 1.000000e+00 : f32
    %319 = vector.broadcast %cst_226 : f32 to vector<1x96xf32>
    %320 = arith.addf %319, %318 : vector<1x96xf32>
    %321 = arith.divf %319, %320 : vector<1x96xf32>
    %322 = vector.extract_strided_slice %315 {offsets = [0, 96], sizes = [1, 32], strides = [1, 1]} : vector<1x128xf32> to vector<1x32xf32>
    %323 = math.tanh %322 : vector<1x32xf32>
    %324 = vector.extract_strided_slice %321 {offsets = [0, 32], sizes = [1, 32], strides = [1, 1]} : vector<1x96xf32> to vector<1x32xf32>
    %325 = arith.mulf %324, %307 : vector<1x32xf32>
    %326 = vector.extract_strided_slice %321 {offsets = [0, 0], sizes = [1, 32], strides = [1, 1]} : vector<1x96xf32> to vector<1x32xf32>
    %327 = arith.mulf %326, %323 : vector<1x32xf32>
    %328 = arith.addf %325, %327 : vector<1x32xf32>
    %329 = vector.extract_strided_slice %321 {offsets = [0, 64], sizes = [1, 32], strides = [1, 1]} : vector<1x96xf32> to vector<1x32xf32>
    %330 = math.tanh %328 : vector<1x32xf32>
    %331 = arith.mulf %329, %330 : vector<1x32xf32>
    %c9_227 = arith.constant 9 : index
    %c0_228 = arith.constant 0 : index
    %332 = vector.load %arg16[%c9_227, %c0_228] : memref<11x32xf32, #tpu.memory_space<vmem>>, vector<1x32xf32>
    tpu.vector_store %arg16[%c9_227, %c0_228], %331 {strides = array<i32>} : memref<11x32xf32, #tpu.memory_space<vmem>>, vector<1x32xf32>,
    %c1_229 = arith.constant 1 : index
    %c0_230 = arith.constant 0 : index
    %333 = vector.load %arg17[%c1_229, %c0_230] : memref<11x32xf32, #tpu.memory_space<vmem>>, vector<1x32xf32>
    tpu.vector_store %arg17[%c1_229, %c0_230], %331 {strides = array<i32>} : memref<11x32xf32, #tpu.memory_space<vmem>>, vector<1x32xf32>,
    %c10_231 = arith.constant 10 : index
    %c0_232 = arith.constant 0 : index
    %334 = vector.load %arg15[%c10_231, %c0_232] : memref<11x128xf32, #tpu.memory_space<vmem>>, vector<1x128xf32>
    %cst_233 = arith.constant dense<0.000000e+00> : vector<1x128xf32>
    %335 = tpu.matmul %331, %69, %cst_233 {dimension_numbers = #tpu.dot_dimension_numbers<[1], [0], [0], [1], [0, 0, 1, 1], [], []>} : vector<1x32xf32>, vector<32x128xf32>, vector<1x128xf32> -> vector<1x128xf32>
    %336 = arith.addf %334, %335 : vector<1x128xf32>
    %337 = vector.extract_strided_slice %336 {offsets = [0, 0], sizes = [1, 96], strides = [1, 1]} : vector<1x128xf32> to vector<1x96xf32>
    %338 = arith.negf %337 : vector<1x96xf32>
    %339 = math.exp %338 : vector<1x96xf32>
    %cst_234 = arith.constant 1.000000e+00 : f32
    %340 = vector.broadcast %cst_234 : f32 to vector<1x96xf32>
    %341 = arith.addf %340, %339 : vector<1x96xf32>
    %342 = arith.divf %340, %341 : vector<1x96xf32>
    %343 = vector.extract_strided_slice %336 {offsets = [0, 96], sizes = [1, 32], strides = [1, 1]} : vector<1x128xf32> to vector<1x32xf32>
    %344 = math.tanh %343 : vector<1x32xf32>
    %345 = vector.extract_strided_slice %342 {offsets = [0, 32], sizes = [1, 32], strides = [1, 1]} : vector<1x96xf32> to vector<1x32xf32>
    %346 = arith.mulf %345, %328 : vector<1x32xf32>
    %347 = vector.extract_strided_slice %342 {offsets = [0, 0], sizes = [1, 32], strides = [1, 1]} : vector<1x96xf32> to vector<1x32xf32>
    %348 = arith.mulf %347, %344 : vector<1x32xf32>
    %349 = arith.addf %346, %348 : vector<1x32xf32>
    %350 = vector.extract_strided_slice %342 {offsets = [0, 64], sizes = [1, 32], strides = [1, 1]} : vector<1x96xf32> to vector<1x32xf32>
    %351 = math.tanh %349 : vector<1x32xf32>
    %352 = arith.mulf %350, %351 : vector<1x32xf32>
    %c10_235 = arith.constant 10 : index
    %c0_236 = arith.constant 0 : index
    %353 = vector.load %arg16[%c10_235, %c0_236] : memref<11x32xf32, #tpu.memory_space<vmem>>, vector<1x32xf32>
    tpu.vector_store %arg16[%c10_235, %c0_236], %352 {strides = array<i32>} : memref<11x32xf32, #tpu.memory_space<vmem>>, vector<1x32xf32>,
    %c0_237 = arith.constant 0 : index
    %c0_238 = arith.constant 0 : index
    %354 = vector.load %arg17[%c0_237, %c0_238] : memref<11x32xf32, #tpu.memory_space<vmem>>, vector<1x32xf32>
    tpu.vector_store %arg17[%c0_237, %c0_238], %352 {strides = array<i32>} : memref<11x32xf32, #tpu.memory_space<vmem>>, vector<1x32xf32>,
    %355 = vector.extract_strided_slice %71 {offsets = [0, 0], sizes = [1, 32], strides = [1, 1]} : vector<1x128xf32> to vector<1x32xf32>
    %cst_239 = arith.constant 5.000000e-01 : f32
    %356 = vector.broadcast %cst_239 : f32 to vector<1x32xf32>
    %357 = arith.cmpf ogt, %355, %356 : vector<1x32xf32>
    %c0_240 = arith.constant 0 : index
    %c0_241 = arith.constant 0 : index
    %358 = vector.load %arg16[%c0_240, %c0_241] : memref<11x32xf32, #tpu.memory_space<vmem>>, vector<11x32xf32>
    %c0_242 = arith.constant 0 : index
    %c0_243 = arith.constant 0 : index
    %359 = vector.load %arg17[%c0_242, %c0_243] : memref<11x32xf32, #tpu.memory_space<vmem>>, vector<11x32xf32>
    %360 = vector.shape_cast %357 : vector<1x32xi1> to vector<1x32xi1>
    %361 = vector.broadcast %360 : vector<1x32xi1> to vector<11x32xi1>
    %362 = arith.select %361, %358, %359 : vector<11x32xi1>, vector<11x32xf32>
    %c0_244 = arith.constant 0 : index
    %c0_245 = arith.constant 0 : index
    %363 = vector.load %arg6[%c0_244, %c0_245] : memref<66x128xf32, #tpu.memory_space<vmem>>, vector<32x128xf32>
    %c32_246 = arith.constant 32 : index
    %c0_247 = arith.constant 0 : index
    %364 = vector.load %arg6[%c32_246, %c0_247] : memref<66x128xf32, #tpu.memory_space<vmem>>, vector<32x128xf32>
    %c64 = arith.constant 64 : index
    %c0_248 = arith.constant 0 : index
    %365 = vector.load %arg6[%c64, %c0_248] : memref<66x128xf32, #tpu.memory_space<vmem>>, vector<1x128xf32>
    %c65 = arith.constant 65 : index
    %c0_249 = arith.constant 0 : index
    %366 = vector.load %arg6[%c65, %c0_249] : memref<66x128xf32, #tpu.memory_space<vmem>>, vector<1x128xf32>
    %cst_250 = arith.constant 5.000000e-01 : f32
    %367 = vector.broadcast %cst_250 : f32 to vector<1x128xf32>
    %368 = arith.cmpf ogt, %366, %367 : vector<1x128xf32>
    %cst_251 = arith.constant dense<0.000000e+00> : vector<11x128xf32>
    %369 = tpu.matmul %362, %363, %cst_251 {dimension_numbers = #tpu.dot_dimension_numbers<[1], [0], [0], [1], [0, 0, 1, 1], [], []>} : vector<11x32xf32>, vector<32x128xf32>, vector<11x128xf32> -> vector<11x128xf32>
    %370 = vector.broadcast %365 : vector<1x128xf32> to vector<11x128xf32>
    %371 = arith.addf %369, %370 : vector<11x128xf32>
    %c0_252 = arith.constant 0 : index
    %c0_253 = arith.constant 0 : index
    %372 = vector.load %arg18[%c0_252, %c0_253] : memref<11x128xf32, #tpu.memory_space<vmem>>, vector<11x128xf32>
    tpu.vector_store %arg18[%c0_252, %c0_253], %371 {strides = array<i32>} : memref<11x128xf32, #tpu.memory_space<vmem>>, vector<11x128xf32>,
    %c0_254 = arith.constant 0 : index
    %c0_255 = arith.constant 0 : index
    %373 = vector.load %arg18[%c0_254, %c0_255] : memref<11x128xf32, #tpu.memory_space<vmem>>, vector<1x128xf32>
    %c10_256 = arith.constant 10 : index
    %c0_257 = arith.constant 0 : index
    %374 = vector.load %arg18[%c10_256, %c0_257] : memref<11x128xf32, #tpu.memory_space<vmem>>, vector<1x128xf32>
    %375 = arith.select %368, %373, %374 : vector<1x128xi1>, vector<1x128xf32>
    %c0_258 = arith.constant 0 : index
    %c0_259 = arith.constant 0 : index
    %376 = vector.load %arg19[%c0_258, %c0_259] : memref<11x128xf32, #tpu.memory_space<vmem>>, vector<1x128xf32>
    tpu.vector_store %arg19[%c0_258, %c0_259], %375 {strides = array<i32>} : memref<11x128xf32, #tpu.memory_space<vmem>>, vector<1x128xf32>,
    %c1_260 = arith.constant 1 : index
    %c0_261 = arith.constant 0 : index
    %377 = vector.load %arg18[%c1_260, %c0_261] : memref<11x128xf32, #tpu.memory_space<vmem>>, vector<1x128xf32>
    %c9_262 = arith.constant 9 : index
    %c0_263 = arith.constant 0 : index
    %378 = vector.load %arg18[%c9_262, %c0_263] : memref<11x128xf32, #tpu.memory_space<vmem>>, vector<1x128xf32>
    %379 = arith.select %368, %377, %378 : vector<1x128xi1>, vector<1x128xf32>
    %c1_264 = arith.constant 1 : index
    %c0_265 = arith.constant 0 : index
    %380 = vector.load %arg19[%c1_264, %c0_265] : memref<11x128xf32, #tpu.memory_space<vmem>>, vector<1x128xf32>
    tpu.vector_store %arg19[%c1_264, %c0_265], %379 {strides = array<i32>} : memref<11x128xf32, #tpu.memory_space<vmem>>, vector<1x128xf32>,
    %c2_266 = arith.constant 2 : index
    %c0_267 = arith.constant 0 : index
    %381 = vector.load %arg18[%c2_266, %c0_267] : memref<11x128xf32, #tpu.memory_space<vmem>>, vector<1x128xf32>
    %c8_268 = arith.constant 8 : index
    %c0_269 = arith.constant 0 : index
    %382 = vector.load %arg18[%c8_268, %c0_269] : memref<11x128xf32, #tpu.memory_space<vmem>>, vector<1x128xf32>
    %383 = arith.select %368, %381, %382 : vector<1x128xi1>, vector<1x128xf32>
    %c2_270 = arith.constant 2 : index
    %c0_271 = arith.constant 0 : index
    %384 = vector.load %arg19[%c2_270, %c0_271] : memref<11x128xf32, #tpu.memory_space<vmem>>, vector<1x128xf32>
    tpu.vector_store %arg19[%c2_270, %c0_271], %383 {strides = array<i32>} : memref<11x128xf32, #tpu.memory_space<vmem>>, vector<1x128xf32>,
    %c3_272 = arith.constant 3 : index
    %c0_273 = arith.constant 0 : index
    %385 = vector.load %arg18[%c3_272, %c0_273] : memref<11x128xf32, #tpu.memory_space<vmem>>, vector<1x128xf32>
    %c7_274 = arith.constant 7 : index
    %c0_275 = arith.constant 0 : index
    %386 = vector.load %arg18[%c7_274, %c0_275] : memref<11x128xf32, #tpu.memory_space<vmem>>, vector<1x128xf32>
    %387 = arith.select %368, %385, %386 : vector<1x128xi1>, vector<1x128xf32>
    %c3_276 = arith.constant 3 : index
    %c0_277 = arith.constant 0 : index
    %388 = vector.load %arg19[%c3_276, %c0_277] : memref<11x128xf32, #tpu.memory_space<vmem>>, vector<1x128xf32>
    tpu.vector_store %arg19[%c3_276, %c0_277], %387 {strides = array<i32>} : memref<11x128xf32, #tpu.memory_space<vmem>>, vector<1x128xf32>,
    %c4_278 = arith.constant 4 : index
    %c0_279 = arith.constant 0 : index
    %389 = vector.load %arg18[%c4_278, %c0_279] : memref<11x128xf32, #tpu.memory_space<vmem>>, vector<1x128xf32>
    %c6_280 = arith.constant 6 : index
    %c0_281 = arith.constant 0 : index
    %390 = vector.load %arg18[%c6_280, %c0_281] : memref<11x128xf32, #tpu.memory_space<vmem>>, vector<1x128xf32>
    %391 = arith.select %368, %389, %390 : vector<1x128xi1>, vector<1x128xf32>
    %c4_282 = arith.constant 4 : index
    %c0_283 = arith.constant 0 : index
    %392 = vector.load %arg19[%c4_282, %c0_283] : memref<11x128xf32, #tpu.memory_space<vmem>>, vector<1x128xf32>
    tpu.vector_store %arg19[%c4_282, %c0_283], %391 {strides = array<i32>} : memref<11x128xf32, #tpu.memory_space<vmem>>, vector<1x128xf32>,
    %c5_284 = arith.constant 5 : index
    %c0_285 = arith.constant 0 : index
    %393 = vector.load %arg18[%c5_284, %c0_285] : memref<11x128xf32, #tpu.memory_space<vmem>>, vector<1x128xf32>
    %c5_286 = arith.constant 5 : index
    %c0_287 = arith.constant 0 : index
    %394 = vector.load %arg18[%c5_286, %c0_287] : memref<11x128xf32, #tpu.memory_space<vmem>>, vector<1x128xf32>
    %395 = arith.select %368, %393, %394 : vector<1x128xi1>, vector<1x128xf32>
    %c5_288 = arith.constant 5 : index
    %c0_289 = arith.constant 0 : index
    %396 = vector.load %arg19[%c5_288, %c0_289] : memref<11x128xf32, #tpu.memory_space<vmem>>, vector<1x128xf32>
    tpu.vector_store %arg19[%c5_288, %c0_289], %395 {strides = array<i32>} : memref<11x128xf32, #tpu.memory_space<vmem>>, vector<1x128xf32>,
    %c6_290 = arith.constant 6 : index
    %c0_291 = arith.constant 0 : index
    %397 = vector.load %arg18[%c6_290, %c0_291] : memref<11x128xf32, #tpu.memory_space<vmem>>, vector<1x128xf32>
    %c4_292 = arith.constant 4 : index
    %c0_293 = arith.constant 0 : index
    %398 = vector.load %arg18[%c4_292, %c0_293] : memref<11x128xf32, #tpu.memory_space<vmem>>, vector<1x128xf32>
    %399 = arith.select %368, %397, %398 : vector<1x128xi1>, vector<1x128xf32>
    %c6_294 = arith.constant 6 : index
    %c0_295 = arith.constant 0 : index
    %400 = vector.load %arg19[%c6_294, %c0_295] : memref<11x128xf32, #tpu.memory_space<vmem>>, vector<1x128xf32>
    tpu.vector_store %arg19[%c6_294, %c0_295], %399 {strides = array<i32>} : memref<11x128xf32, #tpu.memory_space<vmem>>, vector<1x128xf32>,
    %c7_296 = arith.constant 7 : index
    %c0_297 = arith.constant 0 : index
    %401 = vector.load %arg18[%c7_296, %c0_297] : memref<11x128xf32, #tpu.memory_space<vmem>>, vector<1x128xf32>
    %c3_298 = arith.constant 3 : index
    %c0_299 = arith.constant 0 : index
    %402 = vector.load %arg18[%c3_298, %c0_299] : memref<11x128xf32, #tpu.memory_space<vmem>>, vector<1x128xf32>
    %403 = arith.select %368, %401, %402 : vector<1x128xi1>, vector<1x128xf32>
    %c7_300 = arith.constant 7 : index
    %c0_301 = arith.constant 0 : index
    %404 = vector.load %arg19[%c7_300, %c0_301] : memref<11x128xf32, #tpu.memory_space<vmem>>, vector<1x128xf32>
    tpu.vector_store %arg19[%c7_300, %c0_301], %403 {strides = array<i32>} : memref<11x128xf32, #tpu.memory_space<vmem>>, vector<1x128xf32>,
    %c8_302 = arith.constant 8 : index
    %c0_303 = arith.constant 0 : index
    %405 = vector.load %arg18[%c8_302, %c0_303] : memref<11x128xf32, #tpu.memory_space<vmem>>, vector<1x128xf32>
    %c2_304 = arith.constant 2 : index
    %c0_305 = arith.constant 0 : index
    %406 = vector.load %arg18[%c2_304, %c0_305] : memref<11x128xf32, #tpu.memory_space<vmem>>, vector<1x128xf32>
    %407 = arith.select %368, %405, %406 : vector<1x128xi1>, vector<1x128xf32>
    %c8_306 = arith.constant 8 : index
    %c0_307 = arith.constant 0 : index
    %408 = vector.load %arg19[%c8_306, %c0_307] : memref<11x128xf32, #tpu.memory_space<vmem>>, vector<1x128xf32>
    tpu.vector_store %arg19[%c8_306, %c0_307], %407 {strides = array<i32>} : memref<11x128xf32, #tpu.memory_space<vmem>>, vector<1x128xf32>,
    %c9_308 = arith.constant 9 : index
    %c0_309 = arith.constant 0 : index
    %409 = vector.load %arg18[%c9_308, %c0_309] : memref<11x128xf32, #tpu.memory_space<vmem>>, vector<1x128xf32>
    %c1_310 = arith.constant 1 : index
    %c0_311 = arith.constant 0 : index
    %410 = vector.load %arg18[%c1_310, %c0_311] : memref<11x128xf32, #tpu.memory_space<vmem>>, vector<1x128xf32>
    %411 = arith.select %368, %409, %410 : vector<1x128xi1>, vector<1x128xf32>
    %c9_312 = arith.constant 9 : index
    %c0_313 = arith.constant 0 : index
    %412 = vector.load %arg19[%c9_312, %c0_313] : memref<11x128xf32, #tpu.memory_space<vmem>>, vector<1x128xf32>
    tpu.vector_store %arg19[%c9_312, %c0_313], %411 {strides = array<i32>} : memref<11x128xf32, #tpu.memory_space<vmem>>, vector<1x128xf32>,
    %c10_314 = arith.constant 10 : index
    %c0_315 = arith.constant 0 : index
    %413 = vector.load %arg18[%c10_314, %c0_315] : memref<11x128xf32, #tpu.memory_space<vmem>>, vector<1x128xf32>
    %c0_316 = arith.constant 0 : index
    %c0_317 = arith.constant 0 : index
    %414 = vector.load %arg18[%c0_316, %c0_317] : memref<11x128xf32, #tpu.memory_space<vmem>>, vector<1x128xf32>
    %415 = arith.select %368, %413, %414 : vector<1x128xi1>, vector<1x128xf32>
    %c10_318 = arith.constant 10 : index
    %c0_319 = arith.constant 0 : index
    %416 = vector.load %arg19[%c10_318, %c0_319] : memref<11x128xf32, #tpu.memory_space<vmem>>, vector<1x128xf32>
    tpu.vector_store %arg19[%c10_318, %c0_319], %415 {strides = array<i32>} : memref<11x128xf32, #tpu.memory_space<vmem>>, vector<1x128xf32>,
    %cst_320 = arith.constant 0.000000e+00 : f32
    %417 = vector.broadcast %cst_320 : f32 to vector<1x32xf32>
    %cst_321 = arith.constant 0.000000e+00 : f32
    %418 = vector.broadcast %cst_321 : f32 to vector<1x32xf32>
    %c0_322 = arith.constant 0 : index
    %c0_323 = arith.constant 0 : index
    %419 = vector.load %arg19[%c0_322, %c0_323] : memref<11x128xf32, #tpu.memory_space<vmem>>, vector<1x128xf32>
    %cst_324 = arith.constant dense<0.000000e+00> : vector<1x128xf32>
    %420 = tpu.matmul %417, %364, %cst_324 {dimension_numbers = #tpu.dot_dimension_numbers<[1], [0], [0], [1], [0, 0, 1, 1], [], []>} : vector<1x32xf32>, vector<32x128xf32>, vector<1x128xf32> -> vector<1x128xf32>
    %421 = arith.addf %419, %420 : vector<1x128xf32>
    %422 = vector.extract_strided_slice %421 {offsets = [0, 0], sizes = [1, 96], strides = [1, 1]} : vector<1x128xf32> to vector<1x96xf32>
    %423 = arith.negf %422 : vector<1x96xf32>
    %424 = math.exp %423 : vector<1x96xf32>
    %cst_325 = arith.constant 1.000000e+00 : f32
    %425 = vector.broadcast %cst_325 : f32 to vector<1x96xf32>
    %426 = arith.addf %425, %424 : vector<1x96xf32>
    %427 = arith.divf %425, %426 : vector<1x96xf32>
    %428 = vector.extract_strided_slice %421 {offsets = [0, 96], sizes = [1, 32], strides = [1, 1]} : vector<1x128xf32> to vector<1x32xf32>
    %429 = math.tanh %428 : vector<1x32xf32>
    %430 = vector.extract_strided_slice %427 {offsets = [0, 32], sizes = [1, 32], strides = [1, 1]} : vector<1x96xf32> to vector<1x32xf32>
    %431 = arith.mulf %430, %418 : vector<1x32xf32>
    %432 = vector.extract_strided_slice %427 {offsets = [0, 0], sizes = [1, 32], strides = [1, 1]} : vector<1x96xf32> to vector<1x32xf32>
    %433 = arith.mulf %432, %429 : vector<1x32xf32>
    %434 = arith.addf %431, %433 : vector<1x32xf32>
    %435 = vector.extract_strided_slice %427 {offsets = [0, 64], sizes = [1, 32], strides = [1, 1]} : vector<1x96xf32> to vector<1x32xf32>
    %436 = math.tanh %434 : vector<1x32xf32>
    %437 = arith.mulf %435, %436 : vector<1x32xf32>
    %c0_326 = arith.constant 0 : index
    %c0_327 = arith.constant 0 : index
    %438 = vector.load %arg20[%c0_326, %c0_327] : memref<11x32xf32, #tpu.memory_space<vmem>>, vector<1x32xf32>
    tpu.vector_store %arg20[%c0_326, %c0_327], %437 {strides = array<i32>} : memref<11x32xf32, #tpu.memory_space<vmem>>, vector<1x32xf32>,
    %c10_328 = arith.constant 10 : index
    %c0_329 = arith.constant 0 : index
    %439 = vector.load %arg21[%c10_328, %c0_329] : memref<11x32xf32, #tpu.memory_space<vmem>>, vector<1x32xf32>
    tpu.vector_store %arg21[%c10_328, %c0_329], %437 {strides = array<i32>} : memref<11x32xf32, #tpu.memory_space<vmem>>, vector<1x32xf32>,
    %c1_330 = arith.constant 1 : index
    %c0_331 = arith.constant 0 : index
    %440 = vector.load %arg19[%c1_330, %c0_331] : memref<11x128xf32, #tpu.memory_space<vmem>>, vector<1x128xf32>
    %cst_332 = arith.constant dense<0.000000e+00> : vector<1x128xf32>
    %441 = tpu.matmul %437, %364, %cst_332 {dimension_numbers = #tpu.dot_dimension_numbers<[1], [0], [0], [1], [0, 0, 1, 1], [], []>} : vector<1x32xf32>, vector<32x128xf32>, vector<1x128xf32> -> vector<1x128xf32>
    %442 = arith.addf %440, %441 : vector<1x128xf32>
    %443 = vector.extract_strided_slice %442 {offsets = [0, 0], sizes = [1, 96], strides = [1, 1]} : vector<1x128xf32> to vector<1x96xf32>
    %444 = arith.negf %443 : vector<1x96xf32>
    %445 = math.exp %444 : vector<1x96xf32>
    %cst_333 = arith.constant 1.000000e+00 : f32
    %446 = vector.broadcast %cst_333 : f32 to vector<1x96xf32>
    %447 = arith.addf %446, %445 : vector<1x96xf32>
    %448 = arith.divf %446, %447 : vector<1x96xf32>
    %449 = vector.extract_strided_slice %442 {offsets = [0, 96], sizes = [1, 32], strides = [1, 1]} : vector<1x128xf32> to vector<1x32xf32>
    %450 = math.tanh %449 : vector<1x32xf32>
    %451 = vector.extract_strided_slice %448 {offsets = [0, 32], sizes = [1, 32], strides = [1, 1]} : vector<1x96xf32> to vector<1x32xf32>
    %452 = arith.mulf %451, %434 : vector<1x32xf32>
    %453 = vector.extract_strided_slice %448 {offsets = [0, 0], sizes = [1, 32], strides = [1, 1]} : vector<1x96xf32> to vector<1x32xf32>
    %454 = arith.mulf %453, %450 : vector<1x32xf32>
    %455 = arith.addf %452, %454 : vector<1x32xf32>
    %456 = vector.extract_strided_slice %448 {offsets = [0, 64], sizes = [1, 32], strides = [1, 1]} : vector<1x96xf32> to vector<1x32xf32>
    %457 = math.tanh %455 : vector<1x32xf32>
    %458 = arith.mulf %456, %457 : vector<1x32xf32>
    %c1_334 = arith.constant 1 : index
    %c0_335 = arith.constant 0 : index
    %459 = vector.load %arg20[%c1_334, %c0_335] : memref<11x32xf32, #tpu.memory_space<vmem>>, vector<1x32xf32>
    tpu.vector_store %arg20[%c1_334, %c0_335], %458 {strides = array<i32>} : memref<11x32xf32, #tpu.memory_space<vmem>>, vector<1x32xf32>,
    %c9_336 = arith.constant 9 : index
    %c0_337 = arith.constant 0 : index
    %460 = vector.load %arg21[%c9_336, %c0_337] : memref<11x32xf32, #tpu.memory_space<vmem>>, vector<1x32xf32>
    tpu.vector_store %arg21[%c9_336, %c0_337], %458 {strides = array<i32>} : memref<11x32xf32, #tpu.memory_space<vmem>>, vector<1x32xf32>,
    %c2_338 = arith.constant 2 : index
    %c0_339 = arith.constant 0 : index
    %461 = vector.load %arg19[%c2_338, %c0_339] : memref<11x128xf32, #tpu.memory_space<vmem>>, vector<1x128xf32>
    %cst_340 = arith.constant dense<0.000000e+00> : vector<1x128xf32>
    %462 = tpu.matmul %458, %364, %cst_340 {dimension_numbers = #tpu.dot_dimension_numbers<[1], [0], [0], [1], [0, 0, 1, 1], [], []>} : vector<1x32xf32>, vector<32x128xf32>, vector<1x128xf32> -> vector<1x128xf32>
    %463 = arith.addf %461, %462 : vector<1x128xf32>
    %464 = vector.extract_strided_slice %463 {offsets = [0, 0], sizes = [1, 96], strides = [1, 1]} : vector<1x128xf32> to vector<1x96xf32>
    %465 = arith.negf %464 : vector<1x96xf32>
    %466 = math.exp %465 : vector<1x96xf32>
    %cst_341 = arith.constant 1.000000e+00 : f32
    %467 = vector.broadcast %cst_341 : f32 to vector<1x96xf32>
    %468 = arith.addf %467, %466 : vector<1x96xf32>
    %469 = arith.divf %467, %468 : vector<1x96xf32>
    %470 = vector.extract_strided_slice %463 {offsets = [0, 96], sizes = [1, 32], strides = [1, 1]} : vector<1x128xf32> to vector<1x32xf32>
    %471 = math.tanh %470 : vector<1x32xf32>
    %472 = vector.extract_strided_slice %469 {offsets = [0, 32], sizes = [1, 32], strides = [1, 1]} : vector<1x96xf32> to vector<1x32xf32>
    %473 = arith.mulf %472, %455 : vector<1x32xf32>
    %474 = vector.extract_strided_slice %469 {offsets = [0, 0], sizes = [1, 32], strides = [1, 1]} : vector<1x96xf32> to vector<1x32xf32>
    %475 = arith.mulf %474, %471 : vector<1x32xf32>
    %476 = arith.addf %473, %475 : vector<1x32xf32>
    %477 = vector.extract_strided_slice %469 {offsets = [0, 64], sizes = [1, 32], strides = [1, 1]} : vector<1x96xf32> to vector<1x32xf32>
    %478 = math.tanh %476 : vector<1x32xf32>
    %479 = arith.mulf %477, %478 : vector<1x32xf32>
    %c2_342 = arith.constant 2 : index
    %c0_343 = arith.constant 0 : index
    %480 = vector.load %arg20[%c2_342, %c0_343] : memref<11x32xf32, #tpu.memory_space<vmem>>, vector<1x32xf32>
    tpu.vector_store %arg20[%c2_342, %c0_343], %479 {strides = array<i32>} : memref<11x32xf32, #tpu.memory_space<vmem>>, vector<1x32xf32>,
    %c8_344 = arith.constant 8 : index
    %c0_345 = arith.constant 0 : index
    %481 = vector.load %arg21[%c8_344, %c0_345] : memref<11x32xf32, #tpu.memory_space<vmem>>, vector<1x32xf32>
    tpu.vector_store %arg21[%c8_344, %c0_345], %479 {strides = array<i32>} : memref<11x32xf32, #tpu.memory_space<vmem>>, vector<1x32xf32>,
    %c3_346 = arith.constant 3 : index
    %c0_347 = arith.constant 0 : index
    %482 = vector.load %arg19[%c3_346, %c0_347] : memref<11x128xf32, #tpu.memory_space<vmem>>, vector<1x128xf32>
    %cst_348 = arith.constant dense<0.000000e+00> : vector<1x128xf32>
    %483 = tpu.matmul %479, %364, %cst_348 {dimension_numbers = #tpu.dot_dimension_numbers<[1], [0], [0], [1], [0, 0, 1, 1], [], []>} : vector<1x32xf32>, vector<32x128xf32>, vector<1x128xf32> -> vector<1x128xf32>
    %484 = arith.addf %482, %483 : vector<1x128xf32>
    %485 = vector.extract_strided_slice %484 {offsets = [0, 0], sizes = [1, 96], strides = [1, 1]} : vector<1x128xf32> to vector<1x96xf32>
    %486 = arith.negf %485 : vector<1x96xf32>
    %487 = math.exp %486 : vector<1x96xf32>
    %cst_349 = arith.constant 1.000000e+00 : f32
    %488 = vector.broadcast %cst_349 : f32 to vector<1x96xf32>
    %489 = arith.addf %488, %487 : vector<1x96xf32>
    %490 = arith.divf %488, %489 : vector<1x96xf32>
    %491 = vector.extract_strided_slice %484 {offsets = [0, 96], sizes = [1, 32], strides = [1, 1]} : vector<1x128xf32> to vector<1x32xf32>
    %492 = math.tanh %491 : vector<1x32xf32>
    %493 = vector.extract_strided_slice %490 {offsets = [0, 32], sizes = [1, 32], strides = [1, 1]} : vector<1x96xf32> to vector<1x32xf32>
    %494 = arith.mulf %493, %476 : vector<1x32xf32>
    %495 = vector.extract_strided_slice %490 {offsets = [0, 0], sizes = [1, 32], strides = [1, 1]} : vector<1x96xf32> to vector<1x32xf32>
    %496 = arith.mulf %495, %492 : vector<1x32xf32>
    %497 = arith.addf %494, %496 : vector<1x32xf32>
    %498 = vector.extract_strided_slice %490 {offsets = [0, 64], sizes = [1, 32], strides = [1, 1]} : vector<1x96xf32> to vector<1x32xf32>
    %499 = math.tanh %497 : vector<1x32xf32>
    %500 = arith.mulf %498, %499 : vector<1x32xf32>
    %c3_350 = arith.constant 3 : index
    %c0_351 = arith.constant 0 : index
    %501 = vector.load %arg20[%c3_350, %c0_351] : memref<11x32xf32, #tpu.memory_space<vmem>>, vector<1x32xf32>
    tpu.vector_store %arg20[%c3_350, %c0_351], %500 {strides = array<i32>} : memref<11x32xf32, #tpu.memory_space<vmem>>, vector<1x32xf32>,
    %c7_352 = arith.constant 7 : index
    %c0_353 = arith.constant 0 : index
    %502 = vector.load %arg21[%c7_352, %c0_353] : memref<11x32xf32, #tpu.memory_space<vmem>>, vector<1x32xf32>
    tpu.vector_store %arg21[%c7_352, %c0_353], %500 {strides = array<i32>} : memref<11x32xf32, #tpu.memory_space<vmem>>, vector<1x32xf32>,
    %c4_354 = arith.constant 4 : index
    %c0_355 = arith.constant 0 : index
    %503 = vector.load %arg19[%c4_354, %c0_355] : memref<11x128xf32, #tpu.memory_space<vmem>>, vector<1x128xf32>
    %cst_356 = arith.constant dense<0.000000e+00> : vector<1x128xf32>
    %504 = tpu.matmul %500, %364, %cst_356 {dimension_numbers = #tpu.dot_dimension_numbers<[1], [0], [0], [1], [0, 0, 1, 1], [], []>} : vector<1x32xf32>, vector<32x128xf32>, vector<1x128xf32> -> vector<1x128xf32>
    %505 = arith.addf %503, %504 : vector<1x128xf32>
    %506 = vector.extract_strided_slice %505 {offsets = [0, 0], sizes = [1, 96], strides = [1, 1]} : vector<1x128xf32> to vector<1x96xf32>
    %507 = arith.negf %506 : vector<1x96xf32>
    %508 = math.exp %507 : vector<1x96xf32>
    %cst_357 = arith.constant 1.000000e+00 : f32
    %509 = vector.broadcast %cst_357 : f32 to vector<1x96xf32>
    %510 = arith.addf %509, %508 : vector<1x96xf32>
    %511 = arith.divf %509, %510 : vector<1x96xf32>
    %512 = vector.extract_strided_slice %505 {offsets = [0, 96], sizes = [1, 32], strides = [1, 1]} : vector<1x128xf32> to vector<1x32xf32>
    %513 = math.tanh %512 : vector<1x32xf32>
    %514 = vector.extract_strided_slice %511 {offsets = [0, 32], sizes = [1, 32], strides = [1, 1]} : vector<1x96xf32> to vector<1x32xf32>
    %515 = arith.mulf %514, %497 : vector<1x32xf32>
    %516 = vector.extract_strided_slice %511 {offsets = [0, 0], sizes = [1, 32], strides = [1, 1]} : vector<1x96xf32> to vector<1x32xf32>
    %517 = arith.mulf %516, %513 : vector<1x32xf32>
    %518 = arith.addf %515, %517 : vector<1x32xf32>
    %519 = vector.extract_strided_slice %511 {offsets = [0, 64], sizes = [1, 32], strides = [1, 1]} : vector<1x96xf32> to vector<1x32xf32>
    %520 = math.tanh %518 : vector<1x32xf32>
    %521 = arith.mulf %519, %520 : vector<1x32xf32>
    %c4_358 = arith.constant 4 : index
    %c0_359 = arith.constant 0 : index
    %522 = vector.load %arg20[%c4_358, %c0_359] : memref<11x32xf32, #tpu.memory_space<vmem>>, vector<1x32xf32>
    tpu.vector_store %arg20[%c4_358, %c0_359], %521 {strides = array<i32>} : memref<11x32xf32, #tpu.memory_space<vmem>>, vector<1x32xf32>,
    %c6_360 = arith.constant 6 : index
    %c0_361 = arith.constant 0 : index
    %523 = vector.load %arg21[%c6_360, %c0_361] : memref<11x32xf32, #tpu.memory_space<vmem>>, vector<1x32xf32>
    tpu.vector_store %arg21[%c6_360, %c0_361], %521 {strides = array<i32>} : memref<11x32xf32, #tpu.memory_space<vmem>>, vector<1x32xf32>,
    %c5_362 = arith.constant 5 : index
    %c0_363 = arith.constant 0 : index
    %524 = vector.load %arg19[%c5_362, %c0_363] : memref<11x128xf32, #tpu.memory_space<vmem>>, vector<1x128xf32>
    %cst_364 = arith.constant dense<0.000000e+00> : vector<1x128xf32>
    %525 = tpu.matmul %521, %364, %cst_364 {dimension_numbers = #tpu.dot_dimension_numbers<[1], [0], [0], [1], [0, 0, 1, 1], [], []>} : vector<1x32xf32>, vector<32x128xf32>, vector<1x128xf32> -> vector<1x128xf32>
    %526 = arith.addf %524, %525 : vector<1x128xf32>
    %527 = vector.extract_strided_slice %526 {offsets = [0, 0], sizes = [1, 96], strides = [1, 1]} : vector<1x128xf32> to vector<1x96xf32>
    %528 = arith.negf %527 : vector<1x96xf32>
    %529 = math.exp %528 : vector<1x96xf32>
    %cst_365 = arith.constant 1.000000e+00 : f32
    %530 = vector.broadcast %cst_365 : f32 to vector<1x96xf32>
    %531 = arith.addf %530, %529 : vector<1x96xf32>
    %532 = arith.divf %530, %531 : vector<1x96xf32>
    %533 = vector.extract_strided_slice %526 {offsets = [0, 96], sizes = [1, 32], strides = [1, 1]} : vector<1x128xf32> to vector<1x32xf32>
    %534 = math.tanh %533 : vector<1x32xf32>
    %535 = vector.extract_strided_slice %532 {offsets = [0, 32], sizes = [1, 32], strides = [1, 1]} : vector<1x96xf32> to vector<1x32xf32>
    %536 = arith.mulf %535, %518 : vector<1x32xf32>
    %537 = vector.extract_strided_slice %532 {offsets = [0, 0], sizes = [1, 32], strides = [1, 1]} : vector<1x96xf32> to vector<1x32xf32>
    %538 = arith.mulf %537, %534 : vector<1x32xf32>
    %539 = arith.addf %536, %538 : vector<1x32xf32>
    %540 = vector.extract_strided_slice %532 {offsets = [0, 64], sizes = [1, 32], strides = [1, 1]} : vector<1x96xf32> to vector<1x32xf32>
    %541 = math.tanh %539 : vector<1x32xf32>
    %542 = arith.mulf %540, %541 : vector<1x32xf32>
    %c5_366 = arith.constant 5 : index
    %c0_367 = arith.constant 0 : index
    %543 = vector.load %arg20[%c5_366, %c0_367] : memref<11x32xf32, #tpu.memory_space<vmem>>, vector<1x32xf32>
    tpu.vector_store %arg20[%c5_366, %c0_367], %542 {strides = array<i32>} : memref<11x32xf32, #tpu.memory_space<vmem>>, vector<1x32xf32>,
    %c5_368 = arith.constant 5 : index
    %c0_369 = arith.constant 0 : index
    %544 = vector.load %arg21[%c5_368, %c0_369] : memref<11x32xf32, #tpu.memory_space<vmem>>, vector<1x32xf32>
    tpu.vector_store %arg21[%c5_368, %c0_369], %542 {strides = array<i32>} : memref<11x32xf32, #tpu.memory_space<vmem>>, vector<1x32xf32>,
    %c6_370 = arith.constant 6 : index
    %c0_371 = arith.constant 0 : index
    %545 = vector.load %arg19[%c6_370, %c0_371] : memref<11x128xf32, #tpu.memory_space<vmem>>, vector<1x128xf32>
    %cst_372 = arith.constant dense<0.000000e+00> : vector<1x128xf32>
    %546 = tpu.matmul %542, %364, %cst_372 {dimension_numbers = #tpu.dot_dimension_numbers<[1], [0], [0], [1], [0, 0, 1, 1], [], []>} : vector<1x32xf32>, vector<32x128xf32>, vector<1x128xf32> -> vector<1x128xf32>
    %547 = arith.addf %545, %546 : vector<1x128xf32>
    %548 = vector.extract_strided_slice %547 {offsets = [0, 0], sizes = [1, 96], strides = [1, 1]} : vector<1x128xf32> to vector<1x96xf32>
    %549 = arith.negf %548 : vector<1x96xf32>
    %550 = math.exp %549 : vector<1x96xf32>
    %cst_373 = arith.constant 1.000000e+00 : f32
    %551 = vector.broadcast %cst_373 : f32 to vector<1x96xf32>
    %552 = arith.addf %551, %550 : vector<1x96xf32>
    %553 = arith.divf %551, %552 : vector<1x96xf32>
    %554 = vector.extract_strided_slice %547 {offsets = [0, 96], sizes = [1, 32], strides = [1, 1]} : vector<1x128xf32> to vector<1x32xf32>
    %555 = math.tanh %554 : vector<1x32xf32>
    %556 = vector.extract_strided_slice %553 {offsets = [0, 32], sizes = [1, 32], strides = [1, 1]} : vector<1x96xf32> to vector<1x32xf32>
    %557 = arith.mulf %556, %539 : vector<1x32xf32>
    %558 = vector.extract_strided_slice %553 {offsets = [0, 0], sizes = [1, 32], strides = [1, 1]} : vector<1x96xf32> to vector<1x32xf32>
    %559 = arith.mulf %558, %555 : vector<1x32xf32>
    %560 = arith.addf %557, %559 : vector<1x32xf32>
    %561 = vector.extract_strided_slice %553 {offsets = [0, 64], sizes = [1, 32], strides = [1, 1]} : vector<1x96xf32> to vector<1x32xf32>
    %562 = math.tanh %560 : vector<1x32xf32>
    %563 = arith.mulf %561, %562 : vector<1x32xf32>
    %c6_374 = arith.constant 6 : index
    %c0_375 = arith.constant 0 : index
    %564 = vector.load %arg20[%c6_374, %c0_375] : memref<11x32xf32, #tpu.memory_space<vmem>>, vector<1x32xf32>
    tpu.vector_store %arg20[%c6_374, %c0_375], %563 {strides = array<i32>} : memref<11x32xf32, #tpu.memory_space<vmem>>, vector<1x32xf32>,
    %c4_376 = arith.constant 4 : index
    %c0_377 = arith.constant 0 : index
    %565 = vector.load %arg21[%c4_376, %c0_377] : memref<11x32xf32, #tpu.memory_space<vmem>>, vector<1x32xf32>
    tpu.vector_store %arg21[%c4_376, %c0_377], %563 {strides = array<i32>} : memref<11x32xf32, #tpu.memory_space<vmem>>, vector<1x32xf32>,
    %c7_378 = arith.constant 7 : index
    %c0_379 = arith.constant 0 : index
    %566 = vector.load %arg19[%c7_378, %c0_379] : memref<11x128xf32, #tpu.memory_space<vmem>>, vector<1x128xf32>
    %cst_380 = arith.constant dense<0.000000e+00> : vector<1x128xf32>
    %567 = tpu.matmul %563, %364, %cst_380 {dimension_numbers = #tpu.dot_dimension_numbers<[1], [0], [0], [1], [0, 0, 1, 1], [], []>} : vector<1x32xf32>, vector<32x128xf32>, vector<1x128xf32> -> vector<1x128xf32>
    %568 = arith.addf %566, %567 : vector<1x128xf32>
    %569 = vector.extract_strided_slice %568 {offsets = [0, 0], sizes = [1, 96], strides = [1, 1]} : vector<1x128xf32> to vector<1x96xf32>
    %570 = arith.negf %569 : vector<1x96xf32>
    %571 = math.exp %570 : vector<1x96xf32>
    %cst_381 = arith.constant 1.000000e+00 : f32
    %572 = vector.broadcast %cst_381 : f32 to vector<1x96xf32>
    %573 = arith.addf %572, %571 : vector<1x96xf32>
    %574 = arith.divf %572, %573 : vector<1x96xf32>
    %575 = vector.extract_strided_slice %568 {offsets = [0, 96], sizes = [1, 32], strides = [1, 1]} : vector<1x128xf32> to vector<1x32xf32>
    %576 = math.tanh %575 : vector<1x32xf32>
    %577 = vector.extract_strided_slice %574 {offsets = [0, 32], sizes = [1, 32], strides = [1, 1]} : vector<1x96xf32> to vector<1x32xf32>
    %578 = arith.mulf %577, %560 : vector<1x32xf32>
    %579 = vector.extract_strided_slice %574 {offsets = [0, 0], sizes = [1, 32], strides = [1, 1]} : vector<1x96xf32> to vector<1x32xf32>
    %580 = arith.mulf %579, %576 : vector<1x32xf32>
    %581 = arith.addf %578, %580 : vector<1x32xf32>
    %582 = vector.extract_strided_slice %574 {offsets = [0, 64], sizes = [1, 32], strides = [1, 1]} : vector<1x96xf32> to vector<1x32xf32>
    %583 = math.tanh %581 : vector<1x32xf32>
    %584 = arith.mulf %582, %583 : vector<1x32xf32>
    %c7_382 = arith.constant 7 : index
    %c0_383 = arith.constant 0 : index
    %585 = vector.load %arg20[%c7_382, %c0_383] : memref<11x32xf32, #tpu.memory_space<vmem>>, vector<1x32xf32>
    tpu.vector_store %arg20[%c7_382, %c0_383], %584 {strides = array<i32>} : memref<11x32xf32, #tpu.memory_space<vmem>>, vector<1x32xf32>,
    %c3_384 = arith.constant 3 : index
    %c0_385 = arith.constant 0 : index
    %586 = vector.load %arg21[%c3_384, %c0_385] : memref<11x32xf32, #tpu.memory_space<vmem>>, vector<1x32xf32>
    tpu.vector_store %arg21[%c3_384, %c0_385], %584 {strides = array<i32>} : memref<11x32xf32, #tpu.memory_space<vmem>>, vector<1x32xf32>,
    %c8_386 = arith.constant 8 : index
    %c0_387 = arith.constant 0 : index
    %587 = vector.load %arg19[%c8_386, %c0_387] : memref<11x128xf32, #tpu.memory_space<vmem>>, vector<1x128xf32>
    %cst_388 = arith.constant dense<0.000000e+00> : vector<1x128xf32>
    %588 = tpu.matmul %584, %364, %cst_388 {dimension_numbers = #tpu.dot_dimension_numbers<[1], [0], [0], [1], [0, 0, 1, 1], [], []>} : vector<1x32xf32>, vector<32x128xf32>, vector<1x128xf32> -> vector<1x128xf32>
    %589 = arith.addf %587, %588 : vector<1x128xf32>
    %590 = vector.extract_strided_slice %589 {offsets = [0, 0], sizes = [1, 96], strides = [1, 1]} : vector<1x128xf32> to vector<1x96xf32>
    %591 = arith.negf %590 : vector<1x96xf32>
    %592 = math.exp %591 : vector<1x96xf32>
    %cst_389 = arith.constant 1.000000e+00 : f32
    %593 = vector.broadcast %cst_389 : f32 to vector<1x96xf32>
    %594 = arith.addf %593, %592 : vector<1x96xf32>
    %595 = arith.divf %593, %594 : vector<1x96xf32>
    %596 = vector.extract_strided_slice %589 {offsets = [0, 96], sizes = [1, 32], strides = [1, 1]} : vector<1x128xf32> to vector<1x32xf32>
    %597 = math.tanh %596 : vector<1x32xf32>
    %598 = vector.extract_strided_slice %595 {offsets = [0, 32], sizes = [1, 32], strides = [1, 1]} : vector<1x96xf32> to vector<1x32xf32>
    %599 = arith.mulf %598, %581 : vector<1x32xf32>
    %600 = vector.extract_strided_slice %595 {offsets = [0, 0], sizes = [1, 32], strides = [1, 1]} : vector<1x96xf32> to vector<1x32xf32>
    %601 = arith.mulf %600, %597 : vector<1x32xf32>
    %602 = arith.addf %599, %601 : vector<1x32xf32>
    %603 = vector.extract_strided_slice %595 {offsets = [0, 64], sizes = [1, 32], strides = [1, 1]} : vector<1x96xf32> to vector<1x32xf32>
    %604 = math.tanh %602 : vector<1x32xf32>
    %605 = arith.mulf %603, %604 : vector<1x32xf32>
    %c8_390 = arith.constant 8 : index
    %c0_391 = arith.constant 0 : index
    %606 = vector.load %arg20[%c8_390, %c0_391] : memref<11x32xf32, #tpu.memory_space<vmem>>, vector<1x32xf32>
    tpu.vector_store %arg20[%c8_390, %c0_391], %605 {strides = array<i32>} : memref<11x32xf32, #tpu.memory_space<vmem>>, vector<1x32xf32>,
    %c2_392 = arith.constant 2 : index
    %c0_393 = arith.constant 0 : index
    %607 = vector.load %arg21[%c2_392, %c0_393] : memref<11x32xf32, #tpu.memory_space<vmem>>, vector<1x32xf32>
    tpu.vector_store %arg21[%c2_392, %c0_393], %605 {strides = array<i32>} : memref<11x32xf32, #tpu.memory_space<vmem>>, vector<1x32xf32>,
    %c9_394 = arith.constant 9 : index
    %c0_395 = arith.constant 0 : index
    %608 = vector.load %arg19[%c9_394, %c0_395] : memref<11x128xf32, #tpu.memory_space<vmem>>, vector<1x128xf32>
    %cst_396 = arith.constant dense<0.000000e+00> : vector<1x128xf32>
    %609 = tpu.matmul %605, %364, %cst_396 {dimension_numbers = #tpu.dot_dimension_numbers<[1], [0], [0], [1], [0, 0, 1, 1], [], []>} : vector<1x32xf32>, vector<32x128xf32>, vector<1x128xf32> -> vector<1x128xf32>
    %610 = arith.addf %608, %609 : vector<1x128xf32>
    %611 = vector.extract_strided_slice %610 {offsets = [0, 0], sizes = [1, 96], strides = [1, 1]} : vector<1x128xf32> to vector<1x96xf32>
    %612 = arith.negf %611 : vector<1x96xf32>
    %613 = math.exp %612 : vector<1x96xf32>
    %cst_397 = arith.constant 1.000000e+00 : f32
    %614 = vector.broadcast %cst_397 : f32 to vector<1x96xf32>
    %615 = arith.addf %614, %613 : vector<1x96xf32>
    %616 = arith.divf %614, %615 : vector<1x96xf32>
    %617 = vector.extract_strided_slice %610 {offsets = [0, 96], sizes = [1, 32], strides = [1, 1]} : vector<1x128xf32> to vector<1x32xf32>
    %618 = math.tanh %617 : vector<1x32xf32>
    %619 = vector.extract_strided_slice %616 {offsets = [0, 32], sizes = [1, 32], strides = [1, 1]} : vector<1x96xf32> to vector<1x32xf32>
    %620 = arith.mulf %619, %602 : vector<1x32xf32>
    %621 = vector.extract_strided_slice %616 {offsets = [0, 0], sizes = [1, 32], strides = [1, 1]} : vector<1x96xf32> to vector<1x32xf32>
    %622 = arith.mulf %621, %618 : vector<1x32xf32>
    %623 = arith.addf %620, %622 : vector<1x32xf32>
    %624 = vector.extract_strided_slice %616 {offsets = [0, 64], sizes = [1, 32], strides = [1, 1]} : vector<1x96xf32> to vector<1x32xf32>
    %625 = math.tanh %623 : vector<1x32xf32>
    %626 = arith.mulf %624, %625 : vector<1x32xf32>
    %c9_398 = arith.constant 9 : index
    %c0_399 = arith.constant 0 : index
    %627 = vector.load %arg20[%c9_398, %c0_399] : memref<11x32xf32, #tpu.memory_space<vmem>>, vector<1x32xf32>
    tpu.vector_store %arg20[%c9_398, %c0_399], %626 {strides = array<i32>} : memref<11x32xf32, #tpu.memory_space<vmem>>, vector<1x32xf32>,
    %c1_400 = arith.constant 1 : index
    %c0_401 = arith.constant 0 : index
    %628 = vector.load %arg21[%c1_400, %c0_401] : memref<11x32xf32, #tpu.memory_space<vmem>>, vector<1x32xf32>
    tpu.vector_store %arg21[%c1_400, %c0_401], %626 {strides = array<i32>} : memref<11x32xf32, #tpu.memory_space<vmem>>, vector<1x32xf32>,
    %c10_402 = arith.constant 10 : index
    %c0_403 = arith.constant 0 : index
    %629 = vector.load %arg19[%c10_402, %c0_403] : memref<11x128xf32, #tpu.memory_space<vmem>>, vector<1x128xf32>
    %cst_404 = arith.constant dense<0.000000e+00> : vector<1x128xf32>
    %630 = tpu.matmul %626, %364, %cst_404 {dimension_numbers = #tpu.dot_dimension_numbers<[1], [0], [0], [1], [0, 0, 1, 1], [], []>} : vector<1x32xf32>, vector<32x128xf32>, vector<1x128xf32> -> vector<1x128xf32>
    %631 = arith.addf %629, %630 : vector<1x128xf32>
    %632 = vector.extract_strided_slice %631 {offsets = [0, 0], sizes = [1, 96], strides = [1, 1]} : vector<1x128xf32> to vector<1x96xf32>
    %633 = arith.negf %632 : vector<1x96xf32>
    %634 = math.exp %633 : vector<1x96xf32>
    %cst_405 = arith.constant 1.000000e+00 : f32
    %635 = vector.broadcast %cst_405 : f32 to vector<1x96xf32>
    %636 = arith.addf %635, %634 : vector<1x96xf32>
    %637 = arith.divf %635, %636 : vector<1x96xf32>
    %638 = vector.extract_strided_slice %631 {offsets = [0, 96], sizes = [1, 32], strides = [1, 1]} : vector<1x128xf32> to vector<1x32xf32>
    %639 = math.tanh %638 : vector<1x32xf32>
    %640 = vector.extract_strided_slice %637 {offsets = [0, 32], sizes = [1, 32], strides = [1, 1]} : vector<1x96xf32> to vector<1x32xf32>
    %641 = arith.mulf %640, %623 : vector<1x32xf32>
    %642 = vector.extract_strided_slice %637 {offsets = [0, 0], sizes = [1, 32], strides = [1, 1]} : vector<1x96xf32> to vector<1x32xf32>
    %643 = arith.mulf %642, %639 : vector<1x32xf32>
    %644 = arith.addf %641, %643 : vector<1x32xf32>
    %645 = vector.extract_strided_slice %637 {offsets = [0, 64], sizes = [1, 32], strides = [1, 1]} : vector<1x96xf32> to vector<1x32xf32>
    %646 = math.tanh %644 : vector<1x32xf32>
    %647 = arith.mulf %645, %646 : vector<1x32xf32>
    %c10_406 = arith.constant 10 : index
    %c0_407 = arith.constant 0 : index
    %648 = vector.load %arg20[%c10_406, %c0_407] : memref<11x32xf32, #tpu.memory_space<vmem>>, vector<1x32xf32>
    tpu.vector_store %arg20[%c10_406, %c0_407], %647 {strides = array<i32>} : memref<11x32xf32, #tpu.memory_space<vmem>>, vector<1x32xf32>,
    %c0_408 = arith.constant 0 : index
    %c0_409 = arith.constant 0 : index
    %649 = vector.load %arg21[%c0_408, %c0_409] : memref<11x32xf32, #tpu.memory_space<vmem>>, vector<1x32xf32>
    tpu.vector_store %arg21[%c0_408, %c0_409], %647 {strides = array<i32>} : memref<11x32xf32, #tpu.memory_space<vmem>>, vector<1x32xf32>,
    %650 = vector.extract_strided_slice %366 {offsets = [0, 0], sizes = [1, 32], strides = [1, 1]} : vector<1x128xf32> to vector<1x32xf32>
    %cst_410 = arith.constant 5.000000e-01 : f32
    %651 = vector.broadcast %cst_410 : f32 to vector<1x32xf32>
    %652 = arith.cmpf ogt, %650, %651 : vector<1x32xf32>
    %c0_411 = arith.constant 0 : index
    %c0_412 = arith.constant 0 : index
    %653 = vector.load %arg20[%c0_411, %c0_412] : memref<11x32xf32, #tpu.memory_space<vmem>>, vector<11x32xf32>
    %c0_413 = arith.constant 0 : index
    %c0_414 = arith.constant 0 : index
    %654 = vector.load %arg21[%c0_413, %c0_414] : memref<11x32xf32, #tpu.memory_space<vmem>>, vector<11x32xf32>
    %655 = vector.shape_cast %652 : vector<1x32xi1> to vector<1x32xi1>
    %656 = vector.broadcast %655 : vector<1x32xi1> to vector<11x32xi1>
    %657 = arith.select %656, %653, %654 : vector<11x32xi1>, vector<11x32xf32>
    %c0_415 = arith.constant 0 : index
    %c0_416 = arith.constant 0 : index
    %658 = vector.load %arg20[%c0_415, %c0_416] : memref<11x32xf32, #tpu.memory_space<vmem>>, vector<11x32xf32>
    tpu.vector_store %arg20[%c0_415, %c0_416], %657 {strides = array<i32>} : memref<11x32xf32, #tpu.memory_space<vmem>>, vector<11x32xf32>,
    %c352 = arith.constant 352 : index
    %c0_417 = arith.constant 0 : index
    %659 = vector.load %arg7[%c352, %c0_417] : memref<353x4xf32, #tpu.memory_space<vmem>>, vector<1x4xf32>
    %c0_418 = arith.constant 0 : index
    %c0_419 = arith.constant 0 : index
    %660 = vector.load %arg20[%c0_418, %c0_419] : memref<11x32xf32, #tpu.memory_space<vmem>>, vector<1x32xf32>
    %c0_420 = arith.constant 0 : index
    %c0_421 = arith.constant 0 : index
    %661 = vector.load %arg7[%c0_420, %c0_421] : memref<353x4xf32, #tpu.memory_space<vmem>>, vector<32x4xf32>
    %cst_422 = arith.constant dense<0.000000e+00> : vector<1x4xf32>
    %662 = tpu.matmul %660, %661, %cst_422 {dimension_numbers = #tpu.dot_dimension_numbers<[1], [0], [0], [1], [0, 0, 1, 1], [], []>} : vector<1x32xf32>, vector<32x4xf32>, vector<1x4xf32> -> vector<1x4xf32>
    %663 = arith.addf %659, %662 : vector<1x4xf32>
    %c1_423 = arith.constant 1 : index
    %c0_424 = arith.constant 0 : index
    %664 = vector.load %arg20[%c1_423, %c0_424] : memref<11x32xf32, #tpu.memory_space<vmem>>, vector<1x32xf32>
    %c32_425 = arith.constant 32 : index
    %c0_426 = arith.constant 0 : index
    %665 = vector.load %arg7[%c32_425, %c0_426] : memref<353x4xf32, #tpu.memory_space<vmem>>, vector<32x4xf32>
    %cst_427 = arith.constant dense<0.000000e+00> : vector<1x4xf32>
    %666 = tpu.matmul %664, %665, %cst_427 {dimension_numbers = #tpu.dot_dimension_numbers<[1], [0], [0], [1], [0, 0, 1, 1], [], []>} : vector<1x32xf32>, vector<32x4xf32>, vector<1x4xf32> -> vector<1x4xf32>
    %667 = arith.addf %663, %666 : vector<1x4xf32>
    %c2_428 = arith.constant 2 : index
    %c0_429 = arith.constant 0 : index
    %668 = vector.load %arg20[%c2_428, %c0_429] : memref<11x32xf32, #tpu.memory_space<vmem>>, vector<1x32xf32>
    %c64_430 = arith.constant 64 : index
    %c0_431 = arith.constant 0 : index
    %669 = vector.load %arg7[%c64_430, %c0_431] : memref<353x4xf32, #tpu.memory_space<vmem>>, vector<32x4xf32>
    %cst_432 = arith.constant dense<0.000000e+00> : vector<1x4xf32>
    %670 = tpu.matmul %668, %669, %cst_432 {dimension_numbers = #tpu.dot_dimension_numbers<[1], [0], [0], [1], [0, 0, 1, 1], [], []>} : vector<1x32xf32>, vector<32x4xf32>, vector<1x4xf32> -> vector<1x4xf32>
    %671 = arith.addf %667, %670 : vector<1x4xf32>
    %c3_433 = arith.constant 3 : index
    %c0_434 = arith.constant 0 : index
    %672 = vector.load %arg20[%c3_433, %c0_434] : memref<11x32xf32, #tpu.memory_space<vmem>>, vector<1x32xf32>
    %c96 = arith.constant 96 : index
    %c0_435 = arith.constant 0 : index
    %673 = vector.load %arg7[%c96, %c0_435] : memref<353x4xf32, #tpu.memory_space<vmem>>, vector<32x4xf32>
    %cst_436 = arith.constant dense<0.000000e+00> : vector<1x4xf32>
    %674 = tpu.matmul %672, %673, %cst_436 {dimension_numbers = #tpu.dot_dimension_numbers<[1], [0], [0], [1], [0, 0, 1, 1], [], []>} : vector<1x32xf32>, vector<32x4xf32>, vector<1x4xf32> -> vector<1x4xf32>
    %675 = arith.addf %671, %674 : vector<1x4xf32>
    %c4_437 = arith.constant 4 : index
    %c0_438 = arith.constant 0 : index
    %676 = vector.load %arg20[%c4_437, %c0_438] : memref<11x32xf32, #tpu.memory_space<vmem>>, vector<1x32xf32>
    %c128 = arith.constant 128 : index
    %c0_439 = arith.constant 0 : index
    %677 = vector.load %arg7[%c128, %c0_439] : memref<353x4xf32, #tpu.memory_space<vmem>>, vector<32x4xf32>
    %cst_440 = arith.constant dense<0.000000e+00> : vector<1x4xf32>
    %678 = tpu.matmul %676, %677, %cst_440 {dimension_numbers = #tpu.dot_dimension_numbers<[1], [0], [0], [1], [0, 0, 1, 1], [], []>} : vector<1x32xf32>, vector<32x4xf32>, vector<1x4xf32> -> vector<1x4xf32>
    %679 = arith.addf %675, %678 : vector<1x4xf32>
    %c5_441 = arith.constant 5 : index
    %c0_442 = arith.constant 0 : index
    %680 = vector.load %arg20[%c5_441, %c0_442] : memref<11x32xf32, #tpu.memory_space<vmem>>, vector<1x32xf32>
    %c160 = arith.constant 160 : index
    %c0_443 = arith.constant 0 : index
    %681 = vector.load %arg7[%c160, %c0_443] : memref<353x4xf32, #tpu.memory_space<vmem>>, vector<32x4xf32>
    %cst_444 = arith.constant dense<0.000000e+00> : vector<1x4xf32>
    %682 = tpu.matmul %680, %681, %cst_444 {dimension_numbers = #tpu.dot_dimension_numbers<[1], [0], [0], [1], [0, 0, 1, 1], [], []>} : vector<1x32xf32>, vector<32x4xf32>, vector<1x4xf32> -> vector<1x4xf32>
    %683 = arith.addf %679, %682 : vector<1x4xf32>
    %c6_445 = arith.constant 6 : index
    %c0_446 = arith.constant 0 : index
    %684 = vector.load %arg20[%c6_445, %c0_446] : memref<11x32xf32, #tpu.memory_space<vmem>>, vector<1x32xf32>
    %c192 = arith.constant 192 : index
    %c0_447 = arith.constant 0 : index
    %685 = vector.load %arg7[%c192, %c0_447] : memref<353x4xf32, #tpu.memory_space<vmem>>, vector<32x4xf32>
    %cst_448 = arith.constant dense<0.000000e+00> : vector<1x4xf32>
    %686 = tpu.matmul %684, %685, %cst_448 {dimension_numbers = #tpu.dot_dimension_numbers<[1], [0], [0], [1], [0, 0, 1, 1], [], []>} : vector<1x32xf32>, vector<32x4xf32>, vector<1x4xf32> -> vector<1x4xf32>
    %687 = arith.addf %683, %686 : vector<1x4xf32>
    %c7_449 = arith.constant 7 : index
    %c0_450 = arith.constant 0 : index
    %688 = vector.load %arg20[%c7_449, %c0_450] : memref<11x32xf32, #tpu.memory_space<vmem>>, vector<1x32xf32>
    %c224 = arith.constant 224 : index
    %c0_451 = arith.constant 0 : index
    %689 = vector.load %arg7[%c224, %c0_451] : memref<353x4xf32, #tpu.memory_space<vmem>>, vector<32x4xf32>
    %cst_452 = arith.constant dense<0.000000e+00> : vector<1x4xf32>
    %690 = tpu.matmul %688, %689, %cst_452 {dimension_numbers = #tpu.dot_dimension_numbers<[1], [0], [0], [1], [0, 0, 1, 1], [], []>} : vector<1x32xf32>, vector<32x4xf32>, vector<1x4xf32> -> vector<1x4xf32>
    %691 = arith.addf %687, %690 : vector<1x4xf32>
    %c8_453 = arith.constant 8 : index
    %c0_454 = arith.constant 0 : index
    %692 = vector.load %arg20[%c8_453, %c0_454] : memref<11x32xf32, #tpu.memory_space<vmem>>, vector<1x32xf32>
    %c256 = arith.constant 256 : index
    %c0_455 = arith.constant 0 : index
    %693 = vector.load %arg7[%c256, %c0_455] : memref<353x4xf32, #tpu.memory_space<vmem>>, vector<32x4xf32>
    %cst_456 = arith.constant dense<0.000000e+00> : vector<1x4xf32>
    %694 = tpu.matmul %692, %693, %cst_456 {dimension_numbers = #tpu.dot_dimension_numbers<[1], [0], [0], [1], [0, 0, 1, 1], [], []>} : vector<1x32xf32>, vector<32x4xf32>, vector<1x4xf32> -> vector<1x4xf32>
    %695 = arith.addf %691, %694 : vector<1x4xf32>
    %c9_457 = arith.constant 9 : index
    %c0_458 = arith.constant 0 : index
    %696 = vector.load %arg20[%c9_457, %c0_458] : memref<11x32xf32, #tpu.memory_space<vmem>>, vector<1x32xf32>
    %c288 = arith.constant 288 : index
    %c0_459 = arith.constant 0 : index
    %697 = vector.load %arg7[%c288, %c0_459] : memref<353x4xf32, #tpu.memory_space<vmem>>, vector<32x4xf32>
    %cst_460 = arith.constant dense<0.000000e+00> : vector<1x4xf32>
    %698 = tpu.matmul %696, %697, %cst_460 {dimension_numbers = #tpu.dot_dimension_numbers<[1], [0], [0], [1], [0, 0, 1, 1], [], []>} : vector<1x32xf32>, vector<32x4xf32>, vector<1x4xf32> -> vector<1x4xf32>
    %699 = arith.addf %695, %698 : vector<1x4xf32>
    %c10_461 = arith.constant 10 : index
    %c0_462 = arith.constant 0 : index
    %700 = vector.load %arg20[%c10_461, %c0_462] : memref<11x32xf32, #tpu.memory_space<vmem>>, vector<1x32xf32>
    %c320 = arith.constant 320 : index
    %c0_463 = arith.constant 0 : index
    %701 = vector.load %arg7[%c320, %c0_463] : memref<353x4xf32, #tpu.memory_space<vmem>>, vector<32x4xf32>
    %cst_464 = arith.constant dense<0.000000e+00> : vector<1x4xf32>
    %702 = tpu.matmul %700, %701, %cst_464 {dimension_numbers = #tpu.dot_dimension_numbers<[1], [0], [0], [1], [0, 0, 1, 1], [], []>} : vector<1x32xf32>, vector<32x4xf32>, vector<1x4xf32> -> vector<1x4xf32>
    %703 = arith.addf %699, %702 : vector<1x4xf32>
    %cst_465 = arith.constant 0.000000e+00 : f32
    %704 = vector.broadcast %cst_465 : f32 to vector<1x4xf32>
    %705 = arith.maximumf %703, %704 : vector<1x4xf32>
    %c0_466 = arith.constant 0 : index
    %c0_467 = arith.constant 0 : index
    %c0_468 = arith.constant 0 : index
    %706 = vector.load %arg8[%c0_466, %c0_467, %c0_468] : memref<1x1x4xf32, #tpu.memory_space<vmem>>, vector<1x1x4xf32>
    %707 = vector.shape_cast %706 : vector<1x1x4xf32> to vector<1x4xf32>
    %708 = vector.shape_cast %705 : vector<1x4xf32> to vector<1x1x4xf32>
    tpu.vector_store %arg8[%c0_466, %c0_467, %c0_468], %708 {strides = array<i32>} : memref<1x1x4xf32, #tpu.memory_space<vmem>>, vector<1x1x4xf32>,
    return
  }
  func.func @transform_0(%arg0: i32) -> (i32, i32, i32) {
    %c0_i32 = arith.constant 0 : i32
    %c0_i32_0 = arith.constant 0 : i32
    %c0_i32_1 = arith.constant 0 : i32
    return %arg0, %c0_i32, %c0_i32_0 : i32, i32, i32
  }
  func.func @transform_1(%arg0: i32) -> (i32, i32) {
    %c0_i32 = arith.constant 0 : i32
    %c0_i32_0 = arith.constant 0 : i32
    %c0_i32_1 = arith.constant 0 : i32
    return %c0_i32, %c0_i32_0 : i32, i32
  }
  func.func @transform_2(%arg0: i32) -> (i32, i32) {
    %c0_i32 = arith.constant 0 : i32
    %c0_i32_0 = arith.constant 0 : i32
    %c0_i32_1 = arith.constant 0 : i32
    return %c0_i32, %c0_i32_0 : i32, i32
  }
  func.func @transform_3(%arg0: i32) -> (i32, i32) {
    %c0_i32 = arith.constant 0 : i32
    %c0_i32_0 = arith.constant 0 : i32
    %c0_i32_1 = arith.constant 0 : i32
    return %c0_i32, %c0_i32_0 : i32, i32
  }
  func.func @transform_4(%arg0: i32) -> (i32, i32) {
    %c0_i32 = arith.constant 0 : i32
    %c0_i32_0 = arith.constant 0 : i32
    %c0_i32_1 = arith.constant 0 : i32
    return %c0_i32, %c0_i32_0 : i32, i32
  }
  func.func @transform_5(%arg0: i32) -> (i32, i32) {
    %c0_i32 = arith.constant 0 : i32
    %c0_i32_0 = arith.constant 0 : i32
    %c0_i32_1 = arith.constant 0 : i32
    return %c0_i32, %c0_i32_0 : i32, i32
  }
  func.func @transform_6(%arg0: i32) -> (i32, i32) {
    %c0_i32 = arith.constant 0 : i32
    %c0_i32_0 = arith.constant 0 : i32
    %c0_i32_1 = arith.constant 0 : i32
    return %c0_i32, %c0_i32_0 : i32, i32
  }
  func.func @transform_7(%arg0: i32) -> (i32, i32, i32) {
    %c0_i32 = arith.constant 0 : i32
    %c0_i32_0 = arith.constant 0 : i32
    %c0_i32_1 = arith.constant 0 : i32
    return %arg0, %c0_i32, %c0_i32_0 : i32, i32, i32
  }
}

</mosaic_0001>

<llo_original>
// kernel: tpu_custom_call.1
$region0: #{tpu_custom_call.1}
  #allocation0 [shape = 'u32[]', space=smem, size = 0x4, offset = 0x4, fixed_abs, tag = 'smem constant byte address 0x4 - core index']
  #allocation1 [shape = 'u32[144,128]{1,0:T(1,128)}', space=vmem, size = 0x12000, scoped, tag = 'internal scratch']
  #allocation2 [shape = 'f32[558,8]{1,0:T(8,128)}', space=vmem, size = 0x46000, scoped, tag = 'scratch operand']
  #allocation3 [shape = 'f32[110,16]{1,0:T(8,128)}', space=vmem, size = 0xe000, scoped, tag = 'scratch operand']
  #allocation4 [shape = 'f32[118,16]{1,0:T(8,128)}', space=vmem, size = 0xf000, scoped, tag = 'scratch operand']
  #allocation5 [shape = 'f32[22,32]{1,0:T(8,128)}', space=vmem, size = 0x3000, scoped, tag = 'scratch operand']
  #allocation6 [shape = 'f32[30,16]{1,0:T(8,128)}', space=vmem, size = 0x4000, scoped, tag = 'scratch operand']
  #allocation7 [shape = 'f32[11,128]{1,0:T(8,128)}', space=vmem, size = 0x2000, scoped, tag = 'scratch operand']
  #allocation8 [shape = 'f32[11,128]{1,0:T(8,128)}', space=vmem, size = 0x2000, scoped, tag = 'scratch operand']
  #allocation9 [shape = 'f32[11,32]{1,0:T(8,128)}', space=vmem, size = 0x2000, scoped, tag = 'scratch operand']
  #allocation10 [shape = 'f32[11,32]{1,0:T(8,128)}', space=vmem, size = 0x2000, scoped, tag = 'scratch operand']
  #allocation11 [shape = 'f32[11,128]{1,0:T(8,128)}', space=vmem, size = 0x2000, scoped, tag = 'scratch operand']
  #allocation12 [shape = 'f32[11,128]{1,0:T(8,128)}', space=vmem, size = 0x2000, scoped, tag = 'scratch operand']
  #allocation13 [shape = 'f32[11,32]{1,0:T(8,128)}', space=vmem, size = 0x2000, scoped, tag = 'scratch operand']
  #allocation14 [shape = 'f32[11,32]{1,0:T(8,128)}', space=vmem, size = 0x2000, scoped, tag = 'scratch operand']
  %s0 = inlined_call_operand.vmem [shape: f32[2,550,6], index: 0, kind: input, shape index: {}]
  %s1 = inlined_call_operand.vmem [shape: f32[7,8], index: 1, kind: input, shape index: {}]
  %s2 = inlined_call_operand.vmem [shape: f32[17,16], index: 2, kind: input, shape index: {}]
  %s3 = inlined_call_operand.vmem [shape: f32[33,16], index: 3, kind: input, shape index: {}]
  %s4 = inlined_call_operand.vmem [shape: f32[50,128], index: 4, kind: input, shape index: {}]
  %s5 = inlined_call_operand.vmem [shape: f32[66,128], index: 5, kind: input, shape index: {}]
  %s6 = inlined_call_operand.vmem [shape: f32[353,4], index: 6, kind: input, shape index: {}]
  %s7 = inlined_call_operand.hbm [shape: f32[2,1,4], index: 7, kind: output, shape index: {}]
  %s8 = sld [smem:[#allocation0]]
  $region61: #{tpu_custom_call.1} parent=0
    _
  %s10 = ssub.s32 1, %s8
  %s11 = scalar_select 0, %s10, %s8
  $region1: #{tpu_custom_call.1} parent=0
    #allocation15 [shape = 'u8[1024]{0}', space=vmem, size = 0x400, scoped, tag = 'output window, operand 0']
    #allocation16 [shape = 's32[2]{0}', space=sflag, size = 0x8, scoped, tag = 'scoped memory for tpu_custom_call.1']
    %12 = vsyncpa [#allocation16], 0
    %s13 = scalar_lea.sflag [#allocation16], 1
    %14 = vsyncpa %s13, 0
    loop: start=0, step=1, limit=4
    $region2: #{tpu_custom_call.1} parent=1 // loop_pre_header
      _
    $region3: #{tpu_custom_call.1} parent=1 // loop_header
      %s16 = sphi 0, %s20
      %p17 = scmp.ge.s32.totalorder %s16, 4
      %s26 = sphi 0, %s28
      %s29 = sphi 0, %s26
      %s30 = sphi 0, %s29
      %s46 = sphi 0, %s30
      %s50 = sphi 0, %s50
      %s52 = sphi 0, %s50
      %s53 = sphi 0, %s52
      %s67 = sphi 0, %s53
      %s71 = sphi 0, %s71
      %s73 = sphi 0, %s71
      %s74 = sphi 0, %s73
      %s88 = sphi 0, %s74
      %s92 = sphi 0, %s92
      %s94 = sphi 0, %s92
      %s95 = sphi 0, %s94
      %s109 = sphi 0, %s95
      %s113 = sphi 0, %s113
      %s115 = sphi 0, %s113
      %s116 = sphi 0, %s115
      %s130 = sphi 0, %s116
      %s134 = sphi 0, %s134
      %s136 = sphi 0, %s134
      %s137 = sphi 0, %s136
      %s151 = sphi 0, %s137
      %s155 = sphi 0, %s155
      %s157 = sphi 0, %s155
      %s158 = sphi 0, %s157
      %s172 = sphi 0, %s158
      %s178 = sphi 0, %s180
      %s181 = sphi 0, %s178
      %s182 = sphi 0, %s181
      %s198 = sphi 0, %s182
    $region4: #{tpu_custom_call.1} parent=1 // loop_header_branch
      %19 = sbr.rel (%p17) target = $region8
    $region5: #{tpu_custom_call.1} parent=1 // loop_body
      %s21 = ssub.s32 %s16, 1
      %s22 = ssub.s32 %s16, 2
      %s23 = sadd.s32 %s16, 1
      %s24 = ssub.s32 %s16, %s23
      %p25 = scmp.eq.s32.totalorder %s24, 0
      %s27 = sadd.s32 %s26, 1
      %s28 = scalar_select %p25, %s26, %s27
      %p31 = pneg %p25
      %p32 = scmp.eq.s32.totalorder %s16, 1
      %p33 = por %p31, %p32
      %p34 = scmp.ne.s32.totalorder %s26, %s29
      %p35 = scmp.eq.s32.totalorder %s16, 0
      %p36 = por %p34, %p35
      %p37 = scmp.ne.s32.totalorder %s26, %s29
      %p38 = scmp.eq.s32.totalorder %s21, 1
      %p39 = por %p37, %p38
      %p40 = scmp.ne.s32.totalorder %s29, %s30
      %p41 = scmp.eq.s32.totalorder %s21, 0
      %p42 = por %p40, %p41
      %p43 = scmp.ne.s32.totalorder %s29, %s30
      %p44 = scmp.eq.s32.totalorder %s22, 1
      %p45 = por %p43, %p44
      %p47 = scmp.ne.s32.totalorder %s30, %s46
      %p48 = scmp.eq.s32.totalorder %s22, 0
      %p49 = por %p47, %p48
      %s51 = sadd.s32 %s50, 1
      %p54 = scmp.eq.s32.totalorder %s16, 1
      %p55 = scmp.ne.s32.totalorder %s50, %s52
      %p56 = scmp.eq.s32.totalorder %s16, 0
      %p57 = por %p55, %p56
      %p58 = scmp.ne.s32.totalorder %s50, %s52
      %p59 = scmp.eq.s32.totalorder %s21, 1
      %p60 = por %p58, %p59
      %p61 = scmp.ne.s32.totalorder %s52, %s53
      %p62 = scmp.eq.s32.totalorder %s21, 0
      %p63 = por %p61, %p62
      %p64 = scmp.ne.s32.totalorder %s52, %s53
      %p65 = scmp.eq.s32.totalorder %s22, 1
      %p66 = por %p64, %p65
      %p68 = scmp.ne.s32.totalorder %s53, %s67
      %p69 = scmp.eq.s32.totalorder %s22, 0
      %p70 = por %p68, %p69
      %s72 = sadd.s32 %s71, 1
      %p75 = scmp.eq.s32.totalorder %s16, 1
      %p76 = scmp.ne.s32.totalorder %s71, %s73
      %p77 = scmp.eq.s32.totalorder %s16, 0
      %p78 = por %p76, %p77
      %p79 = scmp.ne.s32.totalorder %s71, %s73
      %p80 = scmp.eq.s32.totalorder %s21, 1
      %p81 = por %p79, %p80
      %p82 = scmp.ne.s32.totalorder %s73, %s74
      %p83 = scmp.eq.s32.totalorder %s21, 0
      %p84 = por %p82, %p83
      %p85 = scmp.ne.s32.totalorder %s73, %s74
      %p86 = scmp.eq.s32.totalorder %s22, 1
      %p87 = por %p85, %p86
      %p89 = scmp.ne.s32.totalorder %s74, %s88
      %p90 = scmp.eq.s32.totalorder %s22, 0
      %p91 = por %p89, %p90
      %s93 = sadd.s32 %s92, 1
      %p96 = scmp.eq.s32.totalorder %s16, 1
      %p97 = scmp.ne.s32.totalorder %s92, %s94
      %p98 = scmp.eq.s32.totalorder %s16, 0
      %p99 = por %p97, %p98
      %p100 = scmp.ne.s32.totalorder %s92, %s94
      %p101 = scmp.eq.s32.totalorder %s21, 1
      %p102 = por %p100, %p101
      %p103 = scmp.ne.s32.totalorder %s94, %s95
      %p104 = scmp.eq.s32.totalorder %s21, 0
      %p105 = por %p103, %p104
      %p106 = scmp.ne.s32.totalorder %s94, %s95
      %p107 = scmp.eq.s32.totalorder %s22, 1
      %p108 = por %p106, %p107
      %p110 = scmp.ne.s32.totalorder %s95, %s109
      %p111 = scmp.eq.s32.totalorder %s22, 0
      %p112 = por %p110, %p111
      %s114 = sadd.s32 %s113, 1
      %p117 = scmp.eq.s32.totalorder %s16, 1
      %p118 = scmp.ne.s32.totalorder %s113, %s115
      %p119 = scmp.eq.s32.totalorder %s16, 0
      %p120 = por %p118, %p119
      %p121 = scmp.ne.s32.totalorder %s113, %s115
      %p122 = scmp.eq.s32.totalorder %s21, 1
      %p123 = por %p121, %p122
      %p124 = scmp.ne.s32.totalorder %s115, %s116
      %p125 = scmp.eq.s32.totalorder %s21, 0
      %p126 = por %p124, %p125
      %p127 = scmp.ne.s32.totalorder %s115, %s116
      %p128 = scmp.eq.s32.totalorder %s22, 1
      %p129 = por %p127, %p128
      %p131 = scmp.ne.s32.totalorder %s116, %s130
      %p132 = scmp.eq.s32.totalorder %s22, 0
      %p133 = por %p131, %p132
      %s135 = sadd.s32 %s134, 1
      %p138 = scmp.eq.s32.totalorder %s16, 1
      %p139 = scmp.ne.s32.totalorder %s134, %s136
      %p140 = scmp.eq.s32.totalorder %s16, 0
      %p141 = por %p139, %p140
      %p142 = scmp.ne.s32.totalorder %s134, %s136
      %p143 = scmp.eq.s32.totalorder %s21, 1
      %p144 = por %p142, %p143
      %p145 = scmp.ne.s32.totalorder %s136, %s137
      %p146 = scmp.eq.s32.totalorder %s21, 0
      %p147 = por %p145, %p146
      %p148 = scmp.ne.s32.totalorder %s136, %s137
      %p149 = scmp.eq.s32.totalorder %s22, 1
      %p150 = por %p148, %p149
      %p152 = scmp.ne.s32.totalorder %s137, %s151
      %p153 = scmp.eq.s32.totalorder %s22, 0
      %p154 = por %p152, %p153
      %s156 = sadd.s32 %s155, 1
      %p159 = scmp.eq.s32.totalorder %s16, 1
      %p160 = scmp.ne.s32.totalorder %s155, %s157
      %p161 = scmp.eq.s32.totalorder %s16, 0
      %p162 = por %p160, %p161
      %p163 = scmp.ne.s32.totalorder %s155, %s157
      %p164 = scmp.eq.s32.totalorder %s21, 1
      %p165 = por %p163, %p164
      %p166 = scmp.ne.s32.totalorder %s157, %s158
      %p167 = scmp.eq.s32.totalorder %s21, 0
      %p168 = por %p166, %p167
      %p169 = scmp.ne.s32.totalorder %s157, %s158
      %p170 = scmp.eq.s32.totalorder %s22, 1
      %p171 = por %p169, %p170
      %p173 = scmp.ne.s32.totalorder %s158, %s172
      %p174 = scmp.eq.s32.totalorder %s22, 0
      %p175 = por %p173, %p174
      %s176 = ssub.s32 %s16, %s23
      %p177 = scmp.eq.s32.totalorder %s176, 0
      %s179 = sadd.s32 %s178, 1
      %s180 = scalar_select %p177, %s178, %s179
      %p183 = pneg %p177
      %p184 = scmp.eq.s32.totalorder %s16, 1
      %p185 = por %p183, %p184
      %p186 = scmp.ne.s32.totalorder %s178, %s181
      %p187 = scmp.eq.s32.totalorder %s16, 0
      %p188 = por %p186, %p187
      %p189 = scmp.ne.s32.totalorder %s178, %s181
      %p190 = scmp.eq.s32.totalorder %s21, 1
      %p191 = por %p189, %p190
      %p192 = scmp.ne.s32.totalorder %s181, %s182
      %p193 = scmp.eq.s32.totalorder %s21, 0
      %p194 = por %p192, %p193
      %p195 = scmp.ne.s32.totalorder %s181, %s182
      %p196 = scmp.eq.s32.totalorder %s22, 1
      %p197 = por %p195, %p196
      %p199 = scmp.ne.s32.totalorder %s182, %s198
      %p200 = scmp.eq.s32.totalorder %s22, 0
      %p201 = por %p199, %p200
      %p202 = scmp.le.s32.totalorder 1, %s16
      %p203 = scmp.lt.s32.totalorder %s16, 3
      %p204 = pnand %p202, %p203
      %p205 = pneg %p204
      // Predicated region
      $region9: #{tpu_custom_call.1} parent=5 // pred_check
        _
      $region10: #{tpu_custom_call.1} parent=5 // pred_check_branch
        %207 = sbr.rel (%p204) target = $region12
      $region11: #{tpu_custom_call.1} parent=5 // pred_region
        %s208 = ssub.s32 %s16, 1
        // Predicated region
        $region13: #{tpu_custom_call.1} parent=11 // pred_check
          %p209 = pneg %p63
        $region14: #{tpu_custom_call.1} parent=11 // pred_check_branch
          %211 = sbr.rel (%p209) target = $region16
        $region15: #{tpu_custom_call.1} parent=11 // pred_region
          _
        $region16: #{tpu_custom_call.1} parent=11 // pred_fallthru
          _
        // Predicated region
        $region17: #{tpu_custom_call.1} parent=11 // pred_check
          %p212 = pneg %p84
        $region18: #{tpu_custom_call.1} parent=11 // pred_check_branch
          %214 = sbr.rel (%p212) target = $region20
        $region19: #{tpu_custom_call.1} parent=11 // pred_region
          _
        $region20: #{tpu_custom_call.1} parent=11 // pred_fallthru
          _
        // Predicated region
        $region21: #{tpu_custom_call.1} parent=11 // pred_check
          %p215 = pneg %p105
        $region22: #{tpu_custom_call.1} parent=11 // pred_check_branch
          %217 = sbr.rel (%p215) target = $region24
        $region23: #{tpu_custom_call.1} parent=11 // pred_region
          _
        $region24: #{tpu_custom_call.1} parent=11 // pred_fallthru
          _
        // Predicated region
        $region25: #{tpu_custom_call.1} parent=11 // pred_check
          %p218 = pneg %p126
        $region26: #{tpu_custom_call.1} parent=11 // pred_check_branch
          %220 = sbr.rel (%p218) target = $region28
        $region27: #{tpu_custom_call.1} parent=11 // pred_region
          _
        $region28: #{tpu_custom_call.1} parent=11 // pred_fallthru
          _
        // Predicated region
        $region29: #{tpu_custom_call.1} parent=11 // pred_check
          %p221 = pneg %p147
        $region30: #{tpu_custom_call.1} parent=11 // pred_check_branch
          %223 = sbr.rel (%p221) target = $region32
        $region31: #{tpu_custom_call.1} parent=11 // pred_region
          _
        $region32: #{tpu_custom_call.1} parent=11 // pred_fallthru
          _
        // Predicated region
        $region33: #{tpu_custom_call.1} parent=11 // pred_check
          %p224 = pneg %p168
        $region34: #{tpu_custom_call.1} parent=11 // pred_check_branch
          %226 = sbr.rel (%p224) target = $region36
        $region35: #{tpu_custom_call.1} parent=11 // pred_region
          _
        $region36: #{tpu_custom_call.1} parent=11 // pred_fallthru
          _
      $region12: #{tpu_custom_call.1} parent=5 // pred_fallthru
        _
      %p227 = scmp.lt.s32.totalorder %s16, 2
      // Predicated region
      $region37: #{tpu_custom_call.1} parent=5 // pred_check
        %p228 = pneg %p227
      $region38: #{tpu_custom_call.1} parent=5 // pred_check_branch
        %230 = sbr.rel (%p228) target = $region40
      $region39: #{tpu_custom_call.1} parent=5 // pred_region
        // Predicated region
        $region41: #{tpu_custom_call.1} parent=39 // pred_check
          %p231 = pneg %p36
        $region42: #{tpu_custom_call.1} parent=39 // pred_check_branch
          %233 = sbr.rel (%p231) target = $region44
        $region43: #{tpu_custom_call.1} parent=39 // pred_region
          %p234 = scmp.lt.s32.totalorder %s16, 1
          %s235 = scalar_select %p234, %s16, 1
          %s236 = smul.addr %s235, 69
          %s237 = smul.addr %s236, 8
          %s238 = scalar_lea.vmem %s0, %s237
        $region44: #{tpu_custom_call.1} parent=39 // pred_fallthru
          _
      $region40: #{tpu_custom_call.1} parent=5 // pred_fallthru
        _
      %p239 = scmp.le.s32.totalorder 1, %s16
      %p240 = scmp.lt.s32.totalorder %s16, 3
      %p241 = pnand %p239, %p240
      %p242 = pneg %p241
      // Predicated region
      $region45: #{tpu_custom_call.1} parent=5 // pred_check
        _
      $region46: #{tpu_custom_call.1} parent=5 // pred_check_branch
        %244 = sbr.rel (%p241) target = $region48
      $region47: #{tpu_custom_call.1} parent=5 // pred_region
        %s245 = ssub.s32 %s16, 1
        %p246 = scmp.lt.s32.totalorder %s21, 1
        %s247 = scalar_select %p246, %s21, 1
        %s248 = smul.addr %s247, 69
        %s249 = smul.addr %s248, 8
        %s250 = scalar_lea.vmem %s0, %s249
        %p251 = pneg %p42
        %p252 = pneg %p39
        %p253 = pneg %p63
        %p254 = pneg %p60
        %p255 = pneg %p84
        %p256 = pneg %p81
        %p257 = pneg %p105
        %p258 = pneg %p102
        %p259 = pneg %p126
        %p260 = pneg %p123
        %p261 = pneg %p147
        %p262 = pneg %p144
        %p263 = pneg %p168
        %p264 = pneg %p165
        %p265 = pneg %p194
        %p266 = pneg %p191
        %s267 = sand.u32 %s181, 1
        %s268 = scalar_lea.sflag [#allocation16], %s267
        %s269 = sand.u32 %s181, 1
        %s270 = scalar_lea.vmem [#allocation15], %s269
        %p271 = scmp.lt.s32.totalorder %s21, 1
        %s272 = scalar_select %p271, %s21, 1
        %s273 = smul.addr %s272, 69
        %s274 = smul.addr %s273, 8
        %s275 = scalar_lea.vmem %s0, %s274
        %v276 = vld [vmem:[%s275] sm:$0xff]
        %v277 = vld [vmem:[%s275 + $0x8] sm:$0xff]
        %v278 = vld [vmem:[%s275 + $0x10] sm:$0xff]
        %v279 = vld [vmem:[%s275 + $0x18] sm:$0xff]
        %v280 = vld [vmem:[%s275 + $0x20] sm:$0xff]
        %v281 = vld [vmem:[%s275 + $0x28] sm:$0xff]
        %v282 = vld [vmem:[%s275 + $0x30] sm:$0xff]
        %v283 = vld [vmem:[%s275 + $0x38] sm:$0xff]
        %v284 = vld [vmem:[%s275 + $0x40] sm:$0xff]
        %v285 = vld [vmem:[%s275 + $0x48] sm:$0xff]
        %v286 = vld [vmem:[%s275 + $0x50] sm:$0xff]
        %v287 = vld [vmem:[%s275 + $0x58] sm:$0xff]
        %v288 = vld [vmem:[%s275 + $0x60] sm:$0xff]
        %v289 = vld [vmem:[%s275 + $0x68] sm:$0xff]
        %v290 = vld [vmem:[%s275 + $0x70] sm:$0xff]
        %v291 = vld [vmem:[%s275 + $0x78] sm:$0xff]
        %v292 = vld [vmem:[%s275 + $0x80] sm:$0xff]
        %v293 = vld [vmem:[%s275 + $0x88] sm:$0xff]
        %v294 = vld [vmem:[%s275 + $0x90] sm:$0xff]
        %v295 = vld [vmem:[%s275 + $0x98] sm:$0xff]
        %v296 = vld [vmem:[%s275 + $0xa0] sm:$0xff]
        %v297 = vld [vmem:[%s275 + $0xa8] sm:$0xff]
        %v298 = vld [vmem:[%s275 + $0xb0] sm:$0xff]
        %v299 = vld [vmem:[%s275 + $0xb8] sm:$0xff]
        %v300 = vld [vmem:[%s275 + $0xc0] sm:$0xff]
        %v301 = vld [vmem:[%s275 + $0xc8] sm:$0xff]
        %v302 = vld [vmem:[%s275 + $0xd0] sm:$0xff]
        %v303 = vld [vmem:[%s275 + $0xd8] sm:$0xff]
        %v304 = vld [vmem:[%s275 + $0xe0] sm:$0xff]
        %v305 = vld [vmem:[%s275 + $0xe8] sm:$0xff]
        %v306 = vld [vmem:[%s275 + $0xf0] sm:$0xff]
        %v307 = vld [vmem:[%s275 + $0xf8] sm:$0xff]
        %v308 = vld [vmem:[%s275 + $0x100] sm:$0xff]
        %v309 = vld [vmem:[%s275 + $0x108] sm:$0xff]
        %v310 = vld [vmem:[%s275 + $0x110] sm:$0xff]
        %v311 = vld [vmem:[%s275 + $0x118] sm:$0xff]
        %v312 = vld [vmem:[%s275 + $0x120] sm:$0xff]
        %v313 = vld [vmem:[%s275 + $0x128] sm:$0xff]
        %v314 = vld [vmem:[%s275 + $0x130] sm:$0xff]
        %v315 = vld [vmem:[%s275 + $0x138] sm:$0xff]
        %v316 = vld [vmem:[%s275 + $0x140] sm:$0xff]
        %v317 = vld [vmem:[%s275 + $0x148] sm:$0xff]
        %v318 = vld [vmem:[%s275 + $0x150] sm:$0xff]
        %v319 = vld [vmem:[%s275 + $0x158] sm:$0xff]
        %v320 = vld [vmem:[%s275 + $0x160] sm:$0xff]
        %v321 = vld [vmem:[%s275 + $0x168] sm:$0xff]
        %v322 = vld [vmem:[%s275 + $0x170] sm:$0xff]
        %v323 = vld [vmem:[%s275 + $0x178] sm:$0xff]
        %v324 = vld [vmem:[%s275 + $0x180] sm:$0xff]
        %v325 = vld [vmem:[%s275 + $0x188] sm:$0xff]
        %v326 = vld [vmem:[%s275 + $0x190] sm:$0xff]
        %v327 = vld [vmem:[%s275 + $0x198] sm:$0xff]
        %v328 = vld [vmem:[%s275 + $0x1a0] sm:$0xff]
        %v329 = vld [vmem:[%s275 + $0x1a8] sm:$0xff]
        %v330 = vld [vmem:[%s275 + $0x1b0] sm:$0xff]
        %v331 = vld [vmem:[%s275 + $0x1b8] sm:$0xff]
        %v332 = vld [vmem:[%s275 + $0x1c0] sm:$0xff]
        %v333 = vld [vmem:[%s275 + $0x1c8] sm:$0xff]
        %v334 = vld [vmem:[%s275 + $0x1d0] sm:$0xff]
        %v335 = vld [vmem:[%s275 + $0x1d8] sm:$0xff]
        %v336 = vld [vmem:[%s275 + $0x1e0] sm:$0xff]
        %v337 = vld [vmem:[%s275 + $0x1e8] sm:$0xff]
        %v338 = vld [vmem:[%s275 + $0x1f0] sm:$0xff]
        %v339 = vld [vmem:[%s275 + $0x1f8] sm:$0xff]
        %v340 = vld [vmem:[%s275 + $0x200] sm:$0xff]
        %v341 = vld [vmem:[%s275 + $0x208] sm:$0xff]
        %v342 = vld [vmem:[%s275 + $0x210] sm:$0xff]
        %v343 = vld [vmem:[%s275 + $0x218] sm:$0xff]
        %v344 = vld [vmem:[%s275 + $0x220] sm:$0x3f]
        %v345 = vld [vmem:[%s1] sm:$0x3f]
        %v346 = vld [vmem:[%s1 + $0x6] sm:$0x1]
        %vm347 = vcmask 48128
        %v349 = vsel %vm347, %v276, 0
        %v352 = vsel %vm347, %v277, 0
        %v355 = vsel %vm347, %v278, 0
        %v358 = vsel %vm347, %v279, 0
        %v361 = vsel %vm347, %v280, 0
        %v364 = vsel %vm347, %v281, 0
        %v367 = vsel %vm347, %v282, 0
        %v370 = vsel %vm347, %v283, 0
        %v373 = vsel %vm347, %v284, 0
        %v376 = vsel %vm347, %v285, 0
        %v379 = vsel %vm347, %v286, 0
        %v382 = vsel %vm347, %v287, 0
        %v385 = vsel %vm347, %v288, 0
        %v388 = vsel %vm347, %v289, 0
        %v391 = vsel %vm347, %v290, 0
        %v394 = vsel %vm347, %v291, 0
        %v397 = vsel %vm347, %v292, 0
        %v400 = vsel %vm347, %v293, 0
        %v403 = vsel %vm347, %v294, 0
        %v406 = vsel %vm347, %v295, 0
        %v409 = vsel %vm347, %v296, 0
        %v412 = vsel %vm347, %v297, 0
        %v415 = vsel %vm347, %v298, 0
        %v418 = vsel %vm347, %v299, 0
        %v421 = vsel %vm347, %v300, 0
        %v424 = vsel %vm347, %v301, 0
        %v427 = vsel %vm347, %v302, 0
        %v430 = vsel %vm347, %v303, 0
        %v433 = vsel %vm347, %v304, 0
        %v436 = vsel %vm347, %v305, 0
        %v439 = vsel %vm347, %v306, 0
        %v442 = vsel %vm347, %v307, 0
        %v445 = vsel %vm347, %v308, 0
        %v448 = vsel %vm347, %v309, 0
        %v451 = vsel %vm347, %v310, 0
        %v454 = vsel %vm347, %v311, 0
        %v457 = vsel %vm347, %v312, 0
        %v460 = vsel %vm347, %v313, 0
        %v463 = vsel %vm347, %v314, 0
        %v466 = vsel %vm347, %v315, 0
        %v469 = vsel %vm347, %v316, 0
        %v472 = vsel %vm347, %v317, 0
        %v475 = vsel %vm347, %v318, 0
        %v478 = vsel %vm347, %v319, 0
        %v481 = vsel %vm347, %v320, 0
        %v484 = vsel %vm347, %v321, 0
        %v487 = vsel %vm347, %v322, 0
        %v490 = vsel %vm347, %v323, 0
        %v493 = vsel %vm347, %v324, 0
        %v496 = vsel %vm347, %v325, 0
        %v499 = vsel %vm347, %v326, 0
        %v502 = vsel %vm347, %v327, 0
        %v505 = vsel %vm347, %v328, 0
        %v508 = vsel %vm347, %v329, 0
        %v511 = vsel %vm347, %v330, 0
        %v514 = vsel %vm347, %v331, 0
        %v517 = vsel %vm347, %v332, 0
        %v520 = vsel %vm347, %v333, 0
        %v523 = vsel %vm347, %v334, 0
        %v526 = vsel %vm347, %v335, 0
        %v529 = vsel %vm347, %v336, 0
        %v532 = vsel %vm347, %v337, 0
        %v535 = vsel %vm347, %v338, 0
        %v538 = vsel %vm347, %v339, 0
        %v541 = vsel %vm347, %v340, 0
        %v544 = vsel %vm347, %v341, 0
        %v547 = vsel %vm347, %v342, 0
        %v550 = vsel %vm347, %v343, 0
        %v553 = vsel %vm347, %v344, 0
        %vm555 = vcmask 1045504
        %v557 = vsel %vm555, %v345, 0
        %559 = vmatprep.subr.mxu0 0.0
        %560 = vmatpush1.msra.mxu0 %v557
        %561 = vmatprep.subr.mxu0 0.0
        %562 = vmatpush1.msra.mxu0 0.0
        %563 = vmatprep.subr.mxu0 0.0
        %564 = vmatpush1.msra.mxu0 0.0
        %565 = vmatprep.subr.mxu0 0.0
        %566 = vmatpush1.msra.mxu0 0.0
        %567 = vmatprep.subr.mxu0 0.0
        %568 = vmatpush1.msra.mxu0 0.0
        %569 = vmatprep.subr.mxu0 0.0
        %570 = vmatpush1.msra.mxu0 0.0
        %571 = vmatprep.subr.mxu0 0.0
        %572 = vmatpush1.msra.mxu0 0.0
        %573 = vmatprep.subr.mxu0 0.0
        %574 = vmatpush1.msra.mxu0 0.0
        %575 = vmatprep.subr.mxu0 0.0
        %576 = vmatpush1.msra.mxu0 0.0
        %577 = vmatprep.subr.mxu0 0.0
        %578 = vmatpush1.msra.mxu0 0.0
        %579 = vmatprep.subr.mxu0 0.0
        %580 = vmatpush1.msra.mxu0 0.0
        %581 = vmatprep.subr.mxu0 0.0
        %582 = vmatpush1.msra.mxu0 0.0
        %583 = vmatprep.subr.mxu0 0.0
        %584 = vmatpush1.msra.mxu0 0.0
        %585 = vmatprep.subr.mxu0 0.0
        %586 = vmatpush1.msra.mxu0 0.0
        %587 = vmatprep.subr.mxu0 0.0
        %588 = vmatpush1.msra.mxu0 0.0
        %589 = vmatprep.subr.mxu0 0.0
        %590 = vmatpush1.msra.mxu0 0.0
        %591 = vmatprep.subr.mxu0 0.0
        %592 = vmatpush1.msra.mxu0 0.0
        %593 = vmatprep.subr.mxu0 0.0
        %594 = vmatpush1.msra.mxu0 0.0
        %595 = vmatprep.subr.mxu0 0.0
        %596 = vmatpush1.msra.mxu0 0.0
        %597 = vmatprep.subr.mxu0 0.0
        %598 = vmatpush1.msra.mxu0 0.0
        %599 = vmatprep.subr.mxu0 0.0
        %600 = vmatpush1.msra.mxu0 0.0
        %601 = vmatprep.subr.mxu0 0.0
        %602 = vmatpush1.msra.mxu0 0.0
        %603 = vmatprep.subr.mxu0 0.0
        %604 = vmatpush1.msra.mxu0 0.0
        %605 = vmatprep.subr.mxu0 0.0
        %606 = vmatpush1.msra.mxu0 0.0
        %607 = vmatprep.subr.mxu0 0.0
        %608 = vmatpush1.msra.mxu0 0.0
        %609 = vmatprep.subr.mxu0 0.0
        %610 = vmatpush1.msra.mxu0 0.0
        %611 = vmatprep.subr.mxu0 0.0
        %612 = vmatpush1.msra.mxu0 0.0
        %613 = vmatprep.subr.mxu0 0.0
        %614 = vmatpush1.msra.mxu0 0.0
        %615 = vmatprep.subr.mxu0 0.0
        %616 = vmatpush1.msra.mxu0 0.0
        %617 = vmatprep.subr.mxu0 0.0
        %618 = vmatpush1.msra.mxu0 0.0
        %619 = vmatprep.subr.mxu0 0.0
        %620 = vmatpush1.msra.mxu0 0.0
        %621 = vmatprep.subr.mxu0 0.0
        %622 = vmatpush1.msra.mxu0 0.0
        %623 = vmatprep.mubr.f32.mxu0 0.0
        %624 = vmatmul.mubr.f32.gmra.mrb[0].mxu0 %v349
        %v625 = vpop.f32.mrb[0].mxu0
        %v626 = vadd.f32 0.0, %v625
        %v627 = vpop.f32.mrb[0].mxu0
        %628 = vmatprep.mubr.f32.mxu0 0.0
        %629 = vmatmul.mubr.f32.gmra.mrb[0].mxu0 %v352
        %v630 = vpop.f32.mrb[0].mxu0
        %v631 = vadd.f32 0.0, %v630
        %v632 = vpop.f32.mrb[0].mxu0
        %633 = vmatprep.mubr.f32.mxu0 0.0
        %634 = vmatmul.mubr.f32.gmra.mrb[0].mxu0 %v355
        %v635 = vpop.f32.mrb[0].mxu0
        %v636 = vadd.f32 0.0, %v635
        %v637 = vpop.f32.mrb[0].mxu0
        %638 = vmatprep.mubr.f32.mxu0 0.0
        %639 = vmatmul.mubr.f32.gmra.mrb[0].mxu0 %v358
        %v640 = vpop.f32.mrb[0].mxu0
        %v641 = vadd.f32 0.0, %v640
        %v642 = vpop.f32.mrb[0].mxu0
        %643 = vmatprep.mubr.f32.mxu0 0.0
        %644 = vmatmul.mubr.f32.gmra.mrb[0].mxu0 %v361
        %v645 = vpop.f32.mrb[0].mxu0
        %v646 = vadd.f32 0.0, %v645
        %v647 = vpop.f32.mrb[0].mxu0
        %648 = vmatprep.mubr.f32.mxu0 0.0
        %649 = vmatmul.mubr.f32.gmra.mrb[0].mxu0 %v364
        %v650 = vpop.f32.mrb[0].mxu0
        %v651 = vadd.f32 0.0, %v650
        %v652 = vpop.f32.mrb[0].mxu0
        %653 = vmatprep.mubr.f32.mxu0 0.0
        %654 = vmatmul.mubr.f32.gmra.mrb[0].mxu0 %v367
        %v655 = vpop.f32.mrb[0].mxu0
        %v656 = vadd.f32 0.0, %v655
        %v657 = vpop.f32.mrb[0].mxu0
        %658 = vmatprep.mubr.f32.mxu0 0.0
        %659 = vmatmul.mubr.f32.gmra.mrb[0].mxu0 %v370
        %v660 = vpop.f32.mrb[0].mxu0
        %v661 = vadd.f32 0.0, %v660
        %v662 = vpop.f32.mrb[0].mxu0
        %663 = vmatprep.mubr.f32.mxu0 0.0
        %664 = vmatmul.mubr.f32.gmra.mrb[0].mxu0 %v373
        %v665 = vpop.f32.mrb[0].mxu0
        %v666 = vadd.f32 0.0, %v665
        %v667 = vpop.f32.mrb[0].mxu0
        %668 = vmatprep.mubr.f32.mxu0 0.0
        %669 = vmatmul.mubr.f32.gmra.mrb[0].mxu0 %v376
        %v670 = vpop.f32.mrb[0].mxu0
        %v671 = vadd.f32 0.0, %v670
        %v672 = vpop.f32.mrb[0].mxu0
        %673 = vmatprep.mubr.f32.mxu0 0.0
        %674 = vmatmul.mubr.f32.gmra.mrb[0].mxu0 %v379
        %v675 = vpop.f32.mrb[0].mxu0
        %v676 = vadd.f32 0.0, %v675
        %v677 = vpop.f32.mrb[0].mxu0
        %678 = vmatprep.mubr.f32.mxu0 0.0
        %679 = vmatmul.mubr.f32.gmra.mrb[0].mxu0 %v382
        %v680 = vpop.f32.mrb[0].mxu0
        %v681 = vadd.f32 0.0, %v680
        %v682 = vpop.f32.mrb[0].mxu0
        %683 = vmatprep.mubr.f32.mxu0 0.0
        %684 = vmatmul.mubr.f32.gmra.mrb[0].mxu0 %v385
        %v685 = vpop.f32.mrb[0].mxu0
        %v686 = vadd.f32 0.0, %v685
        %v687 = vpop.f32.mrb[0].mxu0
        %688 = vmatprep.mubr.f32.mxu0 0.0
        %689 = vmatmul.mubr.f32.gmra.mrb[0].mxu0 %v388
        %v690 = vpop.f32.mrb[0].mxu0
        %v691 = vadd.f32 0.0, %v690
        %v692 = vpop.f32.mrb[0].mxu0
        %693 = vmatprep.mubr.f32.mxu0 0.0
        %694 = vmatmul.mubr.f32.gmra.mrb[0].mxu0 %v391
        %v695 = vpop.f32.mrb[0].mxu0
        %v696 = vadd.f32 0.0, %v695
        %v697 = vpop.f32.mrb[0].mxu0
        %698 = vmatprep.mubr.f32.mxu0 0.0
        %699 = vmatmul.mubr.f32.gmra.mrb[0].mxu0 %v394
        %v700 = vpop.f32.mrb[0].mxu0
        %v701 = vadd.f32 0.0, %v700
        %v702 = vpop.f32.mrb[0].mxu0
        %703 = vmatprep.mubr.f32.mxu0 0.0
        %704 = vmatmul.mubr.f32.gmra.mrb[0].mxu0 %v397
        %v705 = vpop.f32.mrb[0].mxu0
        %v706 = vadd.f32 0.0, %v705
        %v707 = vpop.f32.mrb[0].mxu0
        %708 = vmatprep.mubr.f32.mxu0 0.0
        %709 = vmatmul.mubr.f32.gmra.mrb[0].mxu0 %v400
        %v710 = vpop.f32.mrb[0].mxu0
        %v711 = vadd.f32 0.0, %v710
        %v712 = vpop.f32.mrb[0].mxu0
        %713 = vmatprep.mubr.f32.mxu0 0.0
        %714 = vmatmul.mubr.f32.gmra.mrb[0].mxu0 %v403
        %v715 = vpop.f32.mrb[0].mxu0
        %v716 = vadd.f32 0.0, %v715
        %v717 = vpop.f32.mrb[0].mxu0
        %718 = vmatprep.mubr.f32.mxu0 0.0
        %719 = vmatmul.mubr.f32.gmra.mrb[0].mxu0 %v406
        %v720 = vpop.f32.mrb[0].mxu0
        %v721 = vadd.f32 0.0, %v720
        %v722 = vpop.f32.mrb[0].mxu0
        %723 = vmatprep.mubr.f32.mxu0 0.0
        %724 = vmatmul.mubr.f32.gmra.mrb[0].mxu0 %v409
        %v725 = vpop.f32.mrb[0].mxu0
        %v726 = vadd.f32 0.0, %v725
        %v727 = vpop.f32.mrb[0].mxu0
        %728 = vmatprep.mubr.f32.mxu0 0.0
        %729 = vmatmul.mubr.f32.gmra.mrb[0].mxu0 %v412
        %v730 = vpop.f32.mrb[0].mxu0
        %v731 = vadd.f32 0.0, %v730
        %v732 = vpop.f32.mrb[0].mxu0
        %733 = vmatprep.mubr.f32.mxu0 0.0
        %734 = vmatmul.mubr.f32.gmra.mrb[0].mxu0 %v415
        %v735 = vpop.f32.mrb[0].mxu0
        %v736 = vadd.f32 0.0, %v735
        %v737 = vpop.f32.mrb[0].mxu0
        %738 = vmatprep.mubr.f32.mxu0 0.0
        %739 = vmatmul.mubr.f32.gmra.mrb[0].mxu0 %v418
        %v740 = vpop.f32.mrb[0].mxu0
        %v741 = vadd.f32 0.0, %v740
        %v742 = vpop.f32.mrb[0].mxu0
        %743 = vmatprep.mubr.f32.mxu0 0.0
        %744 = vmatmul.mubr.f32.gmra.mrb[0].mxu0 %v421
        %v745 = vpop.f32.mrb[0].mxu0
        %v746 = vadd.f32 0.0, %v745
        %v747 = vpop.f32.mrb[0].mxu0
        %748 = vmatprep.mubr.f32.mxu0 0.0
        %749 = vmatmul.mubr.f32.gmra.mrb[0].mxu0 %v424
        %v750 = vpop.f32.mrb[0].mxu0
        %v751 = vadd.f32 0.0, %v750
        %v752 = vpop.f32.mrb[0].mxu0
        %753 = vmatprep.mubr.f32.mxu0 0.0
        %754 = vmatmul.mubr.f32.gmra.mrb[0].mxu0 %v427
        %v755 = vpop.f32.mrb[0].mxu0
        %v756 = vadd.f32 0.0, %v755
        %v757 = vpop.f32.mrb[0].mxu0
        %758 = vmatprep.mubr.f32.mxu0 0.0
        %759 = vmatmul.mubr.f32.gmra.mrb[0].mxu0 %v430
        %v760 = vpop.f32.mrb[0].mxu0
        %v761 = vadd.f32 0.0, %v760
        %v762 = vpop.f32.mrb[0].mxu0
        %763 = vmatprep.mubr.f32.mxu0 0.0
        %764 = vmatmul.mubr.f32.gmra.mrb[0].mxu0 %v433
        %v765 = vpop.f32.mrb[0].mxu0
        %v766 = vadd.f32 0.0, %v765
        %v767 = vpop.f32.mrb[0].mxu0
        %768 = vmatprep.mubr.f32.mxu0 0.0
        %769 = vmatmul.mubr.f32.gmra.mrb[0].mxu0 %v436
        %v770 = vpop.f32.mrb[0].mxu0
        %v771 = vadd.f32 0.0, %v770
        %v772 = vpop.f32.mrb[0].mxu0
        %773 = vmatprep.mubr.f32.mxu0 0.0
        %774 = vmatmul.mubr.f32.gmra.mrb[0].mxu0 %v439
        %v775 = vpop.f32.mrb[0].mxu0
        %v776 = vadd.f32 0.0, %v775
        %v777 = vpop.f32.mrb[0].mxu0
        %778 = vmatprep.mubr.f32.mxu0 0.0
        %779 = vmatmul.mubr.f32.gmra.mrb[0].mxu0 %v442
        %v780 = vpop.f32.mrb[0].mxu0
        %v781 = vadd.f32 0.0, %v780
        %v782 = vpop.f32.mrb[0].mxu0
        %783 = vmatprep.mubr.f32.mxu0 0.0
        %784 = vmatmul.mubr.f32.gmra.mrb[0].mxu0 %v445
        %v785 = vpop.f32.mrb[0].mxu0
        %v786 = vadd.f32 0.0, %v785
        %v787 = vpop.f32.mrb[0].mxu0
        %788 = vmatprep.mubr.f32.mxu0 0.0
        %789 = vmatmul.mubr.f32.gmra.mrb[0].mxu0 %v448
        %v790 = vpop.f32.mrb[0].mxu0
        %v791 = vadd.f32 0.0, %v790
        %v792 = vpop.f32.mrb[0].mxu0
        %793 = vmatprep.mubr.f32.mxu0 0.0
        %794 = vmatmul.mubr.f32.gmra.mrb[0].mxu0 %v451
        %v795 = vpop.f32.mrb[0].mxu0
        %v796 = vadd.f32 0.0, %v795
        %v797 = vpop.f32.mrb[0].mxu0
        %798 = vmatprep.mubr.f32.mxu0 0.0
        %799 = vmatmul.mubr.f32.gmra.mrb[0].mxu0 %v454
        %v800 = vpop.f32.mrb[0].mxu0
        %v801 = vadd.f32 0.0, %v800
        %v802 = vpop.f32.mrb[0].mxu0
        %803 = vmatprep.mubr.f32.mxu0 0.0
        %804 = vmatmul.mubr.f32.gmra.mrb[0].mxu0 %v457
        %v805 = vpop.f32.mrb[0].mxu0
        %v806 = vadd.f32 0.0, %v805
        %v807 = vpop.f32.mrb[0].mxu0
        %808 = vmatprep.mubr.f32.mxu0 0.0
        %809 = vmatmul.mubr.f32.gmra.mrb[0].mxu0 %v460
        %v810 = vpop.f32.mrb[0].mxu0
        %v811 = vadd.f32 0.0, %v810
        %v812 = vpop.f32.mrb[0].mxu0
        %813 = vmatprep.mubr.f32.mxu0 0.0
        %814 = vmatmul.mubr.f32.gmra.mrb[0].mxu0 %v463
        %v815 = vpop.f32.mrb[0].mxu0
        %v816 = vadd.f32 0.0, %v815
        %v817 = vpop.f32.mrb[0].mxu0
        %818 = vmatprep.mubr.f32.mxu0 0.0
        %819 = vmatmul.mubr.f32.gmra.mrb[0].mxu0 %v466
        %v820 = vpop.f32.mrb[0].mxu0
        %v821 = vadd.f32 0.0, %v820
        %v822 = vpop.f32.mrb[0].mxu0
        %823 = vmatprep.mubr.f32.mxu0 0.0
        %824 = vmatmul.mubr.f32.gmra.mrb[0].mxu0 %v469
        %v825 = vpop.f32.mrb[0].mxu0
        %v826 = vadd.f32 0.0, %v825
        %v827 = vpop.f32.mrb[0].mxu0
        %828 = vmatprep.mubr.f32.mxu0 0.0
        %829 = vmatmul.mubr.f32.gmra.mrb[0].mxu0 %v472
        %v830 = vpop.f32.mrb[0].mxu0
        %v831 = vadd.f32 0.0, %v830
        %v832 = vpop.f32.mrb[0].mxu0
        %833 = vmatprep.mubr.f32.mxu0 0.0
        %834 = vmatmul.mubr.f32.gmra.mrb[0].mxu0 %v475
        %v835 = vpop.f32.mrb[0].mxu0
        %v836 = vadd.f32 0.0, %v835
        %v837 = vpop.f32.mrb[0].mxu0
        %838 = vmatprep.mubr.f32.mxu0 0.0
        %839 = vmatmul.mubr.f32.gmra.mrb[0].mxu0 %v478
        %v840 = vpop.f32.mrb[0].mxu0
        %v841 = vadd.f32 0.0, %v840
        %v842 = vpop.f32.mrb[0].mxu0
        %843 = vmatprep.mubr.f32.mxu0 0.0
        %844 = vmatmul.mubr.f32.gmra.mrb[0].mxu0 %v481
        %v845 = vpop.f32.mrb[0].mxu0
        %v846 = vadd.f32 0.0, %v845
        %v847 = vpop.f32.mrb[0].mxu0
        %848 = vmatprep.mubr.f32.mxu0 0.0
        %849 = vmatmul.mubr.f32.gmra.mrb[0].mxu0 %v484
        %v850 = vpop.f32.mrb[0].mxu0
        %v851 = vadd.f32 0.0, %v850
        %v852 = vpop.f32.mrb[0].mxu0
        %853 = vmatprep.mubr.f32.mxu0 0.0
        %854 = vmatmul.mubr.f32.gmra.mrb[0].mxu0 %v487
        %v855 = vpop.f32.mrb[0].mxu0
        %v856 = vadd.f32 0.0, %v855
        %v857 = vpop.f32.mrb[0].mxu0
        %858 = vmatprep.mubr.f32.mxu0 0.0
        %859 = vmatmul.mubr.f32.gmra.mrb[0].mxu0 %v490
        %v860 = vpop.f32.mrb[0].mxu0
        %v861 = vadd.f32 0.0, %v860
        %v862 = vpop.f32.mrb[0].mxu0
        %863 = vmatprep.mubr.f32.mxu0 0.0
        %864 = vmatmul.mubr.f32.gmra.mrb[0].mxu0 %v493
        %v865 = vpop.f32.mrb[0].mxu0
        %v866 = vadd.f32 0.0, %v865
        %v867 = vpop.f32.mrb[0].mxu0
        %868 = vmatprep.mubr.f32.mxu0 0.0
        %869 = vmatmul.mubr.f32.gmra.mrb[0].mxu0 %v496
        %v870 = vpop.f32.mrb[0].mxu0
        %v871 = vadd.f32 0.0, %v870
        %v872 = vpop.f32.mrb[0].mxu0
        %873 = vmatprep.mubr.f32.mxu0 0.0
        %874 = vmatmul.mubr.f32.gmra.mrb[0].mxu0 %v499
        %v875 = vpop.f32.mrb[0].mxu0
        %v876 = vadd.f32 0.0, %v875
        %v877 = vpop.f32.mrb[0].mxu0
        %878 = vmatprep.mubr.f32.mxu0 0.0
        %879 = vmatmul.mubr.f32.gmra.mrb[0].mxu0 %v502
        %v880 = vpop.f32.mrb[0].mxu0
        %v881 = vadd.f32 0.0, %v880
        %v882 = vpop.f32.mrb[0].mxu0
        %883 = vmatprep.mubr.f32.mxu0 0.0
        %884 = vmatmul.mubr.f32.gmra.mrb[0].mxu0 %v505
        %v885 = vpop.f32.mrb[0].mxu0
        %v886 = vadd.f32 0.0, %v885
        %v887 = vpop.f32.mrb[0].mxu0
        %888 = vmatprep.mubr.f32.mxu0 0.0
        %889 = vmatmul.mubr.f32.gmra.mrb[0].mxu0 %v508
        %v890 = vpop.f32.mrb[0].mxu0
        %v891 = vadd.f32 0.0, %v890
        %v892 = vpop.f32.mrb[0].mxu0
        %893 = vmatprep.mubr.f32.mxu0 0.0
        %894 = vmatmul.mubr.f32.gmra.mrb[0].mxu0 %v511
        %v895 = vpop.f32.mrb[0].mxu0
        %v896 = vadd.f32 0.0, %v895
        %v897 = vpop.f32.mrb[0].mxu0
        %898 = vmatprep.mubr.f32.mxu0 0.0
        %899 = vmatmul.mubr.f32.gmra.mrb[0].mxu0 %v514
        %v900 = vpop.f32.mrb[0].mxu0
        %v901 = vadd.f32 0.0, %v900
        %v902 = vpop.f32.mrb[0].mxu0
        %903 = vmatprep.mubr.f32.mxu0 0.0
        %904 = vmatmul.mubr.f32.gmra.mrb[0].mxu0 %v517
        %v905 = vpop.f32.mrb[0].mxu0
        %v906 = vadd.f32 0.0, %v905
        %v907 = vpop.f32.mrb[0].mxu0
        %908 = vmatprep.mubr.f32.mxu0 0.0
        %909 = vmatmul.mubr.f32.gmra.mrb[0].mxu0 %v520
        %v910 = vpop.f32.mrb[0].mxu0
        %v911 = vadd.f32 0.0, %v910
        %v912 = vpop.f32.mrb[0].mxu0
        %913 = vmatprep.mubr.f32.mxu0 0.0
        %914 = vmatmul.mubr.f32.gmra.mrb[0].mxu0 %v523
        %v915 = vpop.f32.mrb[0].mxu0
        %v916 = vadd.f32 0.0, %v915
        %v917 = vpop.f32.mrb[0].mxu0
        %918 = vmatprep.mubr.f32.mxu0 0.0
        %919 = vmatmul.mubr.f32.gmra.mrb[0].mxu0 %v526
        %v920 = vpop.f32.mrb[0].mxu0
        %v921 = vadd.f32 0.0, %v920
        %v922 = vpop.f32.mrb[0].mxu0
        %923 = vmatprep.mubr.f32.mxu0 0.0
        %924 = vmatmul.mubr.f32.gmra.mrb[0].mxu0 %v529
        %v925 = vpop.f32.mrb[0].mxu0
        %v926 = vadd.f32 0.0, %v925
        %v927 = vpop.f32.mrb[0].mxu0
        %928 = vmatprep.mubr.f32.mxu0 0.0
        %929 = vmatmul.mubr.f32.gmra.mrb[0].mxu0 %v532
        %v930 = vpop.f32.mrb[0].mxu0
        %v931 = vadd.f32 0.0, %v930
        %v932 = vpop.f32.mrb[0].mxu0
        %933 = vmatprep.mubr.f32.mxu0 0.0
        %934 = vmatmul.mubr.f32.gmra.mrb[0].mxu0 %v535
        %v935 = vpop.f32.mrb[0].mxu0
        %v936 = vadd.f32 0.0, %v935
        %v937 = vpop.f32.mrb[0].mxu0
        %938 = vmatprep.mubr.f32.mxu0 0.0
        %939 = vmatmul.mubr.f32.gmra.mrb[0].mxu0 %v538
        %v940 = vpop.f32.mrb[0].mxu0
        %v941 = vadd.f32 0.0, %v940
        %v942 = vpop.f32.mrb[0].mxu0
        %943 = vmatprep.mubr.f32.mxu0 0.0
        %944 = vmatmul.mubr.f32.gmra.mrb[0].mxu0 %v541
        %v945 = vpop.f32.mrb[0].mxu0
        %v946 = vadd.f32 0.0, %v945
        %v947 = vpop.f32.mrb[0].mxu0
        %948 = vmatprep.mubr.f32.mxu0 0.0
        %949 = vmatmul.mubr.f32.gmra.mrb[0].mxu0 %v544
        %v950 = vpop.f32.mrb[0].mxu0
        %v951 = vadd.f32 0.0, %v950
        %v952 = vpop.f32.mrb[0].mxu0
        %953 = vmatprep.mubr.f32.mxu0 0.0
        %954 = vmatmul.mubr.f32.gmra.mrb[0].mxu0 %v547
        %v955 = vpop.f32.mrb[0].mxu0
        %v956 = vadd.f32 0.0, %v955
        %v957 = vpop.f32.mrb[0].mxu0
        %958 = vmatprep.mubr.f32.mxu0 0.0
        %959 = vmatmul.mubr.f32.gmra.mrb[0].mxu0 %v550
        %v960 = vpop.f32.mrb[0].mxu0
        %v961 = vadd.f32 0.0, %v960
        %v962 = vpop.f32.mrb[0].mxu0
        %963 = vmatprep.mubr.f32.mxu0 0.0
        %964 = vmatmul.mubr.f32.gmra.mrb[0].mxu0 %v553
        %v965 = vpop.f32.mrb[0].mxu0
        %v966 = vadd.f32 0.0, %v965
        %v967 = vpop.f32.mrb[0].mxu0
        %968 = vdwg.mxu0
        %vm969 = vcmask 64512
        %970 = vst.msk [vmem:[#allocation2] sm:$0xff] %vm969, %v626
        %971 = vst.msk [vmem:[#allocation2 + $0x8] sm:$0xff] %vm969, %v631
        %972 = vst.msk [vmem:[#allocation2 + $0x10] sm:$0xff] %vm969, %v636
        %973 = vst.msk [vmem:[#allocation2 + $0x18] sm:$0xff] %vm969, %v641
        %974 = vst.msk [vmem:[#allocation2 + $0x20] sm:$0xff] %vm969, %v646
        %975 = vst.msk [vmem:[#allocation2 + $0x28] sm:$0xff] %vm969, %v651
        %976 = vst.msk [vmem:[#allocation2 + $0x30] sm:$0xff] %vm969, %v656
        %977 = vst.msk [vmem:[#allocation2 + $0x38] sm:$0xff] %vm969, %v661
        %978 = vst.msk [vmem:[#allocation2 + $0x40] sm:$0xff] %vm969, %v666
        %979 = vst.msk [vmem:[#allocation2 + $0x48] sm:$0xff] %vm969, %v671
        %980 = vst.msk [vmem:[#allocation2 + $0x50] sm:$0xff] %vm969, %v676
        %981 = vst.msk [vmem:[#allocation2 + $0x58] sm:$0xff] %vm969, %v681
        %982 = vst.msk [vmem:[#allocation2 + $0x60] sm:$0xff] %vm969, %v686
        %983 = vst.msk [vmem:[#allocation2 + $0x68] sm:$0xff] %vm969, %v691
        %984 = vst.msk [vmem:[#allocation2 + $0x70] sm:$0xff] %vm969, %v696
        %985 = vst.msk [vmem:[#allocation2 + $0x78] sm:$0xff] %vm969, %v701
        %986 = vst.msk [vmem:[#allocation2 + $0x80] sm:$0xff] %vm969, %v706
        %987 = vst.msk [vmem:[#allocation2 + $0x88] sm:$0xff] %vm969, %v711
        %988 = vst.msk [vmem:[#allocation2 + $0x90] sm:$0xff] %vm969, %v716
        %989 = vst.msk [vmem:[#allocation2 + $0x98] sm:$0xff] %vm969, %v721
        %990 = vst.msk [vmem:[#allocation2 + $0xa0] sm:$0xff] %vm969, %v726
        %991 = vst.msk [vmem:[#allocation2 + $0xa8] sm:$0xff] %vm969, %v731
        %992 = vst.msk [vmem:[#allocation2 + $0xb0] sm:$0xff] %vm969, %v736
        %993 = vst.msk [vmem:[#allocation2 + $0xb8] sm:$0xff] %vm969, %v741
        %994 = vst.msk [vmem:[#allocation2 + $0xc0] sm:$0xff] %vm969, %v746
        %995 = vst.msk [vmem:[#allocation2 + $0xc8] sm:$0xff] %vm969, %v751
        %996 = vst.msk [vmem:[#allocation2 + $0xd0] sm:$0xff] %vm969, %v756
        %997 = vst.msk [vmem:[#allocation2 + $0xd8] sm:$0xff] %vm969, %v761
        %998 = vst.msk [vmem:[#allocation2 + $0xe0] sm:$0xff] %vm969, %v766
        %999 = vst.msk [vmem:[#allocation2 + $0xe8] sm:$0xff] %vm969, %v771
        %1000 = vst.msk [vmem:[#allocation2 + $0xf0] sm:$0xff] %vm969, %v776
        %1001 = vst.msk [vmem:[#allocation2 + $0xf8] sm:$0xff] %vm969, %v781
        %1002 = vst.msk [vmem:[#allocation2 + $0x100] sm:$0xff] %vm969, %v786
        %1003 = vst.msk [vmem:[#allocation2 + $0x108] sm:$0xff] %vm969, %v791
        %1004 = vst.msk [vmem:[#allocation2 + $0x110] sm:$0xff] %vm969, %v796
        %1005 = vst.msk [vmem:[#allocation2 + $0x118] sm:$0xff] %vm969, %v801
        %1006 = vst.msk [vmem:[#allocation2 + $0x120] sm:$0xff] %vm969, %v806
        %1007 = vst.msk [vmem:[#allocation2 + $0x128] sm:$0xff] %vm969, %v811
        %1008 = vst.msk [vmem:[#allocation2 + $0x130] sm:$0xff] %vm969, %v816
        %1009 = vst.msk [vmem:[#allocation2 + $0x138] sm:$0xff] %vm969, %v821
        %1010 = vst.msk [vmem:[#allocation2 + $0x140] sm:$0xff] %vm969, %v826
        %1011 = vst.msk [vmem:[#allocation2 + $0x148] sm:$0xff] %vm969, %v831
        %1012 = vst.msk [vmem:[#allocation2 + $0x150] sm:$0xff] %vm969, %v836
        %1013 = vst.msk [vmem:[#allocation2 + $0x158] sm:$0xff] %vm969, %v841
        %1014 = vst.msk [vmem:[#allocation2 + $0x160] sm:$0xff] %vm969, %v846
        %1015 = vst.msk [vmem:[#allocation2 + $0x168] sm:$0xff] %vm969, %v851
        %1016 = vst.msk [vmem:[#allocation2 + $0x170] sm:$0xff] %vm969, %v856
        %1017 = vst.msk [vmem:[#allocation2 + $0x178] sm:$0xff] %vm969, %v861
        %1018 = vst.msk [vmem:[#allocation2 + $0x180] sm:$0xff] %vm969, %v866
        %1019 = vst.msk [vmem:[#allocation2 + $0x188] sm:$0xff] %vm969, %v871
        %1020 = vst.msk [vmem:[#allocation2 + $0x190] sm:$0xff] %vm969, %v876
        %1021 = vst.msk [vmem:[#allocation2 + $0x198] sm:$0xff] %vm969, %v881
        %1022 = vst.msk [vmem:[#allocation2 + $0x1a0] sm:$0xff] %vm969, %v886
        %1023 = vst.msk [vmem:[#allocation2 + $0x1a8] sm:$0xff] %vm969, %v891
        %1024 = vst.msk [vmem:[#allocation2 + $0x1b0] sm:$0xff] %vm969, %v896
        %1025 = vst.msk [vmem:[#allocation2 + $0x1b8] sm:$0xff] %vm969, %v901
        %1026 = vst.msk [vmem:[#allocation2 + $0x1c0] sm:$0xff] %vm969, %v906
        %1027 = vst.msk [vmem:[#allocation2 + $0x1c8] sm:$0xff] %vm969, %v911
        %1028 = vst.msk [vmem:[#allocation2 + $0x1d0] sm:$0xff] %vm969, %v916
        %1029 = vst.msk [vmem:[#allocation2 + $0x1d8] sm:$0xff] %vm969, %v921
        %1030 = vst.msk [vmem:[#allocation2 + $0x1e0] sm:$0xff] %vm969, %v926
        %1031 = vst.msk [vmem:[#allocation2 + $0x1e8] sm:$0xff] %vm969, %v931
        %1032 = vst.msk [vmem:[#allocation2 + $0x1f0] sm:$0xff] %vm969, %v936
        %1033 = vst.msk [vmem:[#allocation2 + $0x1f8] sm:$0xff] %vm969, %v941
        %1034 = vst.msk [vmem:[#allocation2 + $0x200] sm:$0xff] %vm969, %v946
        %1035 = vst.msk [vmem:[#allocation2 + $0x208] sm:$0xff] %vm969, %v951
        %1036 = vst.msk [vmem:[#allocation2 + $0x210] sm:$0xff] %vm969, %v956
        %1037 = vst.msk [vmem:[#allocation2 + $0x218] sm:$0xff] %vm969, %v961
        %vm1038 = vcmask 62464
        %1039 = vst.msk [vmem:[#allocation2 + $0x220] sm:$0x3f] %vm1038, %v966
        %1040 = vst.msk [vmem:[#allocation2 + $0x226] sm:$0xff] %vm969, 0.0
        %v1041 = vld [vmem:[#allocation2 + $0x1] sm:$0xff]
        %v1042 = vld [vmem:[#allocation2 + $0x9] sm:$0xff]
        %v1043 = vld [vmem:[#allocation2 + $0x11] sm:$0xff]
        %v1044 = vld [vmem:[#allocation2 + $0x19] sm:$0xff]
        %v1045 = vld [vmem:[#allocation2 + $0x21] sm:$0xff]
        %v1046 = vld [vmem:[#allocation2 + $0x29] sm:$0xff]
        %v1047 = vld [vmem:[#allocation2 + $0x31] sm:$0xff]
        %v1048 = vld [vmem:[#allocation2 + $0x39] sm:$0xff]
        %v1049 = vld [vmem:[#allocation2 + $0x41] sm:$0xff]
        %v1050 = vld [vmem:[#allocation2 + $0x49] sm:$0xff]
        %v1051 = vld [vmem:[#allocation2 + $0x51] sm:$0xff]
        %v1052 = vld [vmem:[#allocation2 + $0x59] sm:$0xff]
        %v1053 = vld [vmem:[#allocation2 + $0x61] sm:$0xff]
        %v1054 = vld [vmem:[#allocation2 + $0x69] sm:$0xff]
        %v1055 = vld [vmem:[#allocation2 + $0x71] sm:$0xff]
        %v1056 = vld [vmem:[#allocation2 + $0x79] sm:$0xff]
        %v1057 = vld [vmem:[#allocation2 + $0x81] sm:$0xff]
        %v1058 = vld [vmem:[#allocation2 + $0x89] sm:$0xff]
        %v1059 = vld [vmem:[#allocation2 + $0x91] sm:$0xff]
        %v1060 = vld [vmem:[#allocation2 + $0x99] sm:$0xff]
        %v1061 = vld [vmem:[#allocation2 + $0xa1] sm:$0xff]
        %v1062 = vld [vmem:[#allocation2 + $0xa9] sm:$0xff]
        %v1063 = vld [vmem:[#allocation2 + $0xb1] sm:$0xff]
        %v1064 = vld [vmem:[#allocation2 + $0xb9] sm:$0xff]
        %v1065 = vld [vmem:[#allocation2 + $0xc1] sm:$0xff]
        %v1066 = vld [vmem:[#allocation2 + $0xc9] sm:$0xff]
        %v1067 = vld [vmem:[#allocation2 + $0xd1] sm:$0xff]
        %v1068 = vld [vmem:[#allocation2 + $0xd9] sm:$0xff]
        %v1069 = vld [vmem:[#allocation2 + $0xe1] sm:$0xff]
        %v1070 = vld [vmem:[#allocation2 + $0xe9] sm:$0xff]
        %v1071 = vld [vmem:[#allocation2 + $0xf1] sm:$0xff]
        %v1072 = vld [vmem:[#allocation2 + $0xf9] sm:$0xff]
        %v1073 = vld [vmem:[#allocation2 + $0x101] sm:$0xff]
        %v1074 = vld [vmem:[#allocation2 + $0x109] sm:$0xff]
        %v1075 = vld [vmem:[#allocation2 + $0x111] sm:$0xff]
        %v1076 = vld [vmem:[#allocation2 + $0x119] sm:$0xff]
        %v1077 = vld [vmem:[#allocation2 + $0x121] sm:$0xff]
        %v1078 = vld [vmem:[#allocation2 + $0x129] sm:$0xff]
        %v1079 = vld [vmem:[#allocation2 + $0x131] sm:$0xff]
        %v1080 = vld [vmem:[#allocation2 + $0x139] sm:$0xff]
        %v1081 = vld [vmem:[#allocation2 + $0x141] sm:$0xff]
        %v1082 = vld [vmem:[#allocation2 + $0x149] sm:$0xff]
        %v1083 = vld [vmem:[#allocation2 + $0x151] sm:$0xff]
        %v1084 = vld [vmem:[#allocation2 + $0x159] sm:$0xff]
        %v1085 = vld [vmem:[#allocation2 + $0x161] sm:$0xff]
        %v1086 = vld [vmem:[#allocation2 + $0x169] sm:$0xff]
        %v1087 = vld [vmem:[#allocation2 + $0x171] sm:$0xff]
        %v1088 = vld [vmem:[#allocation2 + $0x179] sm:$0xff]
        %v1089 = vld [vmem:[#allocation2 + $0x181] sm:$0xff]
        %v1090 = vld [vmem:[#allocation2 + $0x189] sm:$0xff]
        %v1091 = vld [vmem:[#allocation2 + $0x191] sm:$0xff]
        %v1092 = vld [vmem:[#allocation2 + $0x199] sm:$0xff]
        %v1093 = vld [vmem:[#allocation2 + $0x1a1] sm:$0xff]
        %v1094 = vld [vmem:[#allocation2 + $0x1a9] sm:$0xff]
        %v1095 = vld [vmem:[#allocation2 + $0x1b1] sm:$0xff]
        %v1096 = vld [vmem:[#allocation2 + $0x1b9] sm:$0xff]
        %v1097 = vld [vmem:[#allocation2 + $0x1c1] sm:$0xff]
        %v1098 = vld [vmem:[#allocation2 + $0x1c9] sm:$0xff]
        %v1099 = vld [vmem:[#allocation2 + $0x1d1] sm:$0xff]
        %v1100 = vld [vmem:[#allocation2 + $0x1d9] sm:$0xff]
        %v1101 = vld [vmem:[#allocation2 + $0x1e1] sm:$0xff]
        %v1102 = vld [vmem:[#allocation2 + $0x1e9] sm:$0xff]
        %v1103 = vld [vmem:[#allocation2 + $0x1f1] sm:$0xff]
        %v1104 = vld [vmem:[#allocation2 + $0x1f9] sm:$0xff]
        %v1105 = vld [vmem:[#allocation2 + $0x201] sm:$0xff]
        %v1106 = vld [vmem:[#allocation2 + $0x209] sm:$0xff]
        %v1107 = vld [vmem:[#allocation2 + $0x211] sm:$0xff]
        %v1108 = vld [vmem:[#allocation2 + $0x219] sm:$0xff]
        %v1109 = vld [vmem:[#allocation2 + $0x221] sm:$0x3f]
        %v1110 = vmax.f32 %v626, %v1041
        %v1111 = vmax.f32 %v631, %v1042
        %v1112 = vmax.f32 %v636, %v1043
        %v1113 = vmax.f32 %v641, %v1044
        %v1114 = vmax.f32 %v646, %v1045
        %v1115 = vmax.f32 %v651, %v1046
        %v1116 = vmax.f32 %v656, %v1047
        %v1117 = vmax.f32 %v661, %v1048
        %v1118 = vmax.f32 %v666, %v1049
        %v1119 = vmax.f32 %v671, %v1050
        %v1120 = vmax.f32 %v676, %v1051
        %v1121 = vmax.f32 %v681, %v1052
        %v1122 = vmax.f32 %v686, %v1053
        %v1123 = vmax.f32 %v691, %v1054
        %v1124 = vmax.f32 %v696, %v1055
        %v1125 = vmax.f32 %v701, %v1056
        %v1126 = vmax.f32 %v706, %v1057
        %v1127 = vmax.f32 %v711, %v1058
        %v1128 = vmax.f32 %v716, %v1059
        %v1129 = vmax.f32 %v721, %v1060
        %v1130 = vmax.f32 %v726, %v1061
        %v1131 = vmax.f32 %v731, %v1062
        %v1132 = vmax.f32 %v736, %v1063
        %v1133 = vmax.f32 %v741, %v1064
        %v1134 = vmax.f32 %v746, %v1065
        %v1135 = vmax.f32 %v751, %v1066
        %v1136 = vmax.f32 %v756, %v1067
        %v1137 = vmax.f32 %v761, %v1068
        %v1138 = vmax.f32 %v766, %v1069
        %v1139 = vmax.f32 %v771, %v1070
        %v1140 = vmax.f32 %v776, %v1071
        %v1141 = vmax.f32 %v781, %v1072
        %v1142 = vmax.f32 %v786, %v1073
        %v1143 = vmax.f32 %v791, %v1074
        %v1144 = vmax.f32 %v796, %v1075
        %v1145 = vmax.f32 %v801, %v1076
        %v1146 = vmax.f32 %v806, %v1077
        %v1147 = vmax.f32 %v811, %v1078
        %v1148 = vmax.f32 %v816, %v1079
        %v1149 = vmax.f32 %v821, %v1080
        %v1150 = vmax.f32 %v826, %v1081
        %v1151 = vmax.f32 %v831, %v1082
        %v1152 = vmax.f32 %v836, %v1083
        %v1153 = vmax.f32 %v841, %v1084
        %v1154 = vmax.f32 %v846, %v1085
        %v1155 = vmax.f32 %v851, %v1086
        %v1156 = vmax.f32 %v856, %v1087
        %v1157 = vmax.f32 %v861, %v1088
        %v1158 = vmax.f32 %v866, %v1089
        %v1159 = vmax.f32 %v871, %v1090
        %v1160 = vmax.f32 %v876, %v1091
        %v1161 = vmax.f32 %v881, %v1092
        %v1162 = vmax.f32 %v886, %v1093
        %v1163 = vmax.f32 %v891, %v1094
        %v1164 = vmax.f32 %v896, %v1095
        %v1165 = vmax.f32 %v901, %v1096
        %v1166 = vmax.f32 %v906, %v1097
        %v1167 = vmax.f32 %v911, %v1098
        %v1168 = vmax.f32 %v916, %v1099
        %v1169 = vmax.f32 %v921, %v1100
        %v1170 = vmax.f32 %v926, %v1101
        %v1171 = vmax.f32 %v931, %v1102
        %v1172 = vmax.f32 %v936, %v1103
        %v1173 = vmax.f32 %v941, %v1104
        %v1174 = vmax.f32 %v946, %v1105
        %v1175 = vmax.f32 %v951, %v1106
        %v1176 = vmax.f32 %v956, %v1107
        %v1177 = vmax.f32 %v961, %v1108
        %v1178 = vmax.f32 %v966, %v1109
        %1179 = vst.msk [vmem:[#allocation2] sm:$0xff] %vm969, %v1110
        %1180 = vst.msk [vmem:[#allocation2 + $0x8] sm:$0xff] %vm969, %v1111
        %1181 = vst.msk [vmem:[#allocation2 + $0x10] sm:$0xff] %vm969, %v1112
        %1182 = vst.msk [vmem:[#allocation2 + $0x18] sm:$0xff] %vm969, %v1113
        %1183 = vst.msk [vmem:[#allocation2 + $0x20] sm:$0xff] %vm969, %v1114
        %1184 = vst.msk [vmem:[#allocation2 + $0x28] sm:$0xff] %vm969, %v1115
        %1185 = vst.msk [vmem:[#allocation2 + $0x30] sm:$0xff] %vm969, %v1116
        %1186 = vst.msk [vmem:[#allocation2 + $0x38] sm:$0xff] %vm969, %v1117
        %1187 = vst.msk [vmem:[#allocation2 + $0x40] sm:$0xff] %vm969, %v1118
        %1188 = vst.msk [vmem:[#allocation2 + $0x48] sm:$0xff] %vm969, %v1119
        %1189 = vst.msk [vmem:[#allocation2 + $0x50] sm:$0xff] %vm969, %v1120
        %1190 = vst.msk [vmem:[#allocation2 + $0x58] sm:$0xff] %vm969, %v1121
        %1191 = vst.msk [vmem:[#allocation2 + $0x60] sm:$0xff] %vm969, %v1122
        %1192 = vst.msk [vmem:[#allocation2 + $0x68] sm:$0xff] %vm969, %v1123
        %1193 = vst.msk [vmem:[#allocation2 + $0x70] sm:$0xff] %vm969, %v1124
        %1194 = vst.msk [vmem:[#allocation2 + $0x78] sm:$0xff] %vm969, %v1125
        %1195 = vst.msk [vmem:[#allocation2 + $0x80] sm:$0xff] %vm969, %v1126
        %1196 = vst.msk [vmem:[#allocation2 + $0x88] sm:$0xff] %vm969, %v1127
        %1197 = vst.msk [vmem:[#allocation2 + $0x90] sm:$0xff] %vm969, %v1128
        %1198 = vst.msk [vmem:[#allocation2 + $0x98] sm:$0xff] %vm969, %v1129
        %1199 = vst.msk [vmem:[#allocation2 + $0xa0] sm:$0xff] %vm969, %v1130
        %1200 = vst.msk [vmem:[#allocation2 + $0xa8] sm:$0xff] %vm969, %v1131
        %1201 = vst.msk [vmem:[#allocation2 + $0xb0] sm:$0xff] %vm969, %v1132
        %1202 = vst.msk [vmem:[#allocation2 + $0xb8] sm:$0xff] %vm969, %v1133
        %1203 = vst.msk [vmem:[#allocation2 + $0xc0] sm:$0xff] %vm969, %v1134
        %1204 = vst.msk [vmem:[#allocation2 + $0xc8] sm:$0xff] %vm969, %v1135
        %1205 = vst.msk [vmem:[#allocation2 + $0xd0] sm:$0xff] %vm969, %v1136
        %1206 = vst.msk [vmem:[#allocation2 + $0xd8] sm:$0xff] %vm969, %v1137
        %1207 = vst.msk [vmem:[#allocation2 + $0xe0] sm:$0xff] %vm969, %v1138
        %1208 = vst.msk [vmem:[#allocation2 + $0xe8] sm:$0xff] %vm969, %v1139
        %1209 = vst.msk [vmem:[#allocation2 + $0xf0] sm:$0xff] %vm969, %v1140
        %1210 = vst.msk [vmem:[#allocation2 + $0xf8] sm:$0xff] %vm969, %v1141
        %1211 = vst.msk [vmem:[#allocation2 + $0x100] sm:$0xff] %vm969, %v1142
        %1212 = vst.msk [vmem:[#allocation2 + $0x108] sm:$0xff] %vm969, %v1143
        %1213 = vst.msk [vmem:[#allocation2 + $0x110] sm:$0xff] %vm969, %v1144
        %1214 = vst.msk [vmem:[#allocation2 + $0x118] sm:$0xff] %vm969, %v1145
        %1215 = vst.msk [vmem:[#allocation2 + $0x120] sm:$0xff] %vm969, %v1146
        %1216 = vst.msk [vmem:[#allocation2 + $0x128] sm:$0xff] %vm969, %v1147
        %1217 = vst.msk [vmem:[#allocation2 + $0x130] sm:$0xff] %vm969, %v1148
        %1218 = vst.msk [vmem:[#allocation2 + $0x138] sm:$0xff] %vm969, %v1149
        %1219 = vst.msk [vmem:[#allocation2 + $0x140] sm:$0xff] %vm969, %v1150
        %1220 = vst.msk [vmem:[#allocation2 + $0x148] sm:$0xff] %vm969, %v1151
        %1221 = vst.msk [vmem:[#allocation2 + $0x150] sm:$0xff] %vm969, %v1152
        %1222 = vst.msk [vmem:[#allocation2 + $0x158] sm:$0xff] %vm969, %v1153
        %1223 = vst.msk [vmem:[#allocation2 + $0x160] sm:$0xff] %vm969, %v1154
        %1224 = vst.msk [vmem:[#allocation2 + $0x168] sm:$0xff] %vm969, %v1155
        %1225 = vst.msk [vmem:[#allocation2 + $0x170] sm:$0xff] %vm969, %v1156
        %1226 = vst.msk [vmem:[#allocation2 + $0x178] sm:$0xff] %vm969, %v1157
        %1227 = vst.msk [vmem:[#allocation2 + $0x180] sm:$0xff] %vm969, %v1158
        %1228 = vst.msk [vmem:[#allocation2 + $0x188] sm:$0xff] %vm969, %v1159
        %1229 = vst.msk [vmem:[#allocation2 + $0x190] sm:$0xff] %vm969, %v1160
        %1230 = vst.msk [vmem:[#allocation2 + $0x198] sm:$0xff] %vm969, %v1161
        %1231 = vst.msk [vmem:[#allocation2 + $0x1a0] sm:$0xff] %vm969, %v1162
        %1232 = vst.msk [vmem:[#allocation2 + $0x1a8] sm:$0xff] %vm969, %v1163
        %1233 = vst.msk [vmem:[#allocation2 + $0x1b0] sm:$0xff] %vm969, %v1164
        %1234 = vst.msk [vmem:[#allocation2 + $0x1b8] sm:$0xff] %vm969, %v1165
        %1235 = vst.msk [vmem:[#allocation2 + $0x1c0] sm:$0xff] %vm969, %v1166
        %1236 = vst.msk [vmem:[#allocation2 + $0x1c8] sm:$0xff] %vm969, %v1167
        %1237 = vst.msk [vmem:[#allocation2 + $0x1d0] sm:$0xff] %vm969, %v1168
        %1238 = vst.msk [vmem:[#allocation2 + $0x1d8] sm:$0xff] %vm969, %v1169
        %1239 = vst.msk [vmem:[#allocation2 + $0x1e0] sm:$0xff] %vm969, %v1170
        %1240 = vst.msk [vmem:[#allocation2 + $0x1e8] sm:$0xff] %vm969, %v1171
        %1241 = vst.msk [vmem:[#allocation2 + $0x1f0] sm:$0xff] %vm969, %v1172
        %1242 = vst.msk [vmem:[#allocation2 + $0x1f8] sm:$0xff] %vm969, %v1173
        %1243 = vst.msk [vmem:[#allocation2 + $0x200] sm:$0xff] %vm969, %v1174
        %1244 = vst.msk [vmem:[#allocation2 + $0x208] sm:$0xff] %vm969, %v1175
        %1245 = vst.msk [vmem:[#allocation2 + $0x210] sm:$0xff] %vm969, %v1176
        %1246 = vst.msk [vmem:[#allocation2 + $0x218] sm:$0xff] %vm969, %v1177
        %1247 = vst.msk [vmem:[#allocation2 + $0x220] sm:$0x3f] %vm1038, %v1178
        %v1248 = vld [vmem:[#allocation2 + $0x2] sm:$0xff]
        %v1249 = vld [vmem:[#allocation2 + $0xa] sm:$0xff]
        %v1250 = vld [vmem:[#allocation2 + $0x12] sm:$0xff]
        %v1251 = vld [vmem:[#allocation2 + $0x1a] sm:$0xff]
        %v1252 = vld [vmem:[#allocation2 + $0x22] sm:$0xff]
        %v1253 = vld [vmem:[#allocation2 + $0x2a] sm:$0xff]
        %v1254 = vld [vmem:[#allocation2 + $0x32] sm:$0xff]
        %v1255 = vld [vmem:[#allocation2 + $0x3a] sm:$0xff]
        %v1256 = vld [vmem:[#allocation2 + $0x42] sm:$0xff]
        %v1257 = vld [vmem:[#allocation2 + $0x4a] sm:$0xff]
        %v1258 = vld [vmem:[#allocation2 + $0x52] sm:$0xff]
        %v1259 = vld [vmem:[#allocation2 + $0x5a] sm:$0xff]
        %v1260 = vld [vmem:[#allocation2 + $0x62] sm:$0xff]
        %v1261 = vld [vmem:[#allocation2 + $0x6a] sm:$0xff]
        %v1262 = vld [vmem:[#allocation2 + $0x72] sm:$0xff]
        %v1263 = vld [vmem:[#allocation2 + $0x7a] sm:$0xff]
        %v1264 = vld [vmem:[#allocation2 + $0x82] sm:$0xff]
        %v1265 = vld [vmem:[#allocation2 + $0x8a] sm:$0xff]
        %v1266 = vld [vmem:[#allocation2 + $0x92] sm:$0xff]
        %v1267 = vld [vmem:[#allocation2 + $0x9a] sm:$0xff]
        %v1268 = vld [vmem:[#allocation2 + $0xa2] sm:$0xff]
        %v1269 = vld [vmem:[#allocation2 + $0xaa] sm:$0xff]
        %v1270 = vld [vmem:[#allocation2 + $0xb2] sm:$0xff]
        %v1271 = vld [vmem:[#allocation2 + $0xba] sm:$0xff]
        %v1272 = vld [vmem:[#allocation2 + $0xc2] sm:$0xff]
        %v1273 = vld [vmem:[#allocation2 + $0xca] sm:$0xff]
        %v1274 = vld [vmem:[#allocation2 + $0xd2] sm:$0xff]
        %v1275 = vld [vmem:[#allocation2 + $0xda] sm:$0xff]
        %v1276 = vld [vmem:[#allocation2 + $0xe2] sm:$0xff]
        %v1277 = vld [vmem:[#allocation2 + $0xea] sm:$0xff]
        %v1278 = vld [vmem:[#allocation2 + $0xf2] sm:$0xff]
        %v1279 = vld [vmem:[#allocation2 + $0xfa] sm:$0xff]
        %v1280 = vld [vmem:[#allocation2 + $0x102] sm:$0xff]
        %v1281 = vld [vmem:[#allocation2 + $0x10a] sm:$0xff]
        %v1282 = vld [vmem:[#allocation2 + $0x112] sm:$0xff]
        %v1283 = vld [vmem:[#allocation2 + $0x11a] sm:$0xff]
        %v1284 = vld [vmem:[#allocation2 + $0x122] sm:$0xff]
        %v1285 = vld [vmem:[#allocation2 + $0x12a] sm:$0xff]
        %v1286 = vld [vmem:[#allocation2 + $0x132] sm:$0xff]
        %v1287 = vld [vmem:[#allocation2 + $0x13a] sm:$0xff]
        %v1288 = vld [vmem:[#allocation2 + $0x142] sm:$0xff]
        %v1289 = vld [vmem:[#allocation2 + $0x14a] sm:$0xff]
        %v1290 = vld [vmem:[#allocation2 + $0x152] sm:$0xff]
        %v1291 = vld [vmem:[#allocation2 + $0x15a] sm:$0xff]
        %v1292 = vld [vmem:[#allocation2 + $0x162] sm:$0xff]
        %v1293 = vld [vmem:[#allocation2 + $0x16a] sm:$0xff]
        %v1294 = vld [vmem:[#allocation2 + $0x172] sm:$0xff]
        %v1295 = vld [vmem:[#allocation2 + $0x17a] sm:$0xff]
        %v1296 = vld [vmem:[#allocation2 + $0x182] sm:$0xff]
        %v1297 = vld [vmem:[#allocation2 + $0x18a] sm:$0xff]
        %v1298 = vld [vmem:[#allocation2 + $0x192] sm:$0xff]
        %v1299 = vld [vmem:[#allocation2 + $0x19a] sm:$0xff]
        %v1300 = vld [vmem:[#allocation2 + $0x1a2] sm:$0xff]
        %v1301 = vld [vmem:[#allocation2 + $0x1aa] sm:$0xff]
        %v1302 = vld [vmem:[#allocation2 + $0x1b2] sm:$0xff]
        %v1303 = vld [vmem:[#allocation2 + $0x1ba] sm:$0xff]
        %v1304 = vld [vmem:[#allocation2 + $0x1c2] sm:$0xff]
        %v1305 = vld [vmem:[#allocation2 + $0x1ca] sm:$0xff]
        %v1306 = vld [vmem:[#allocation2 + $0x1d2] sm:$0xff]
        %v1307 = vld [vmem:[#allocation2 + $0x1da] sm:$0xff]
        %v1308 = vld [vmem:[#allocation2 + $0x1e2] sm:$0xff]
        %v1309 = vld [vmem:[#allocation2 + $0x1ea] sm:$0xff]
        %v1310 = vld [vmem:[#allocation2 + $0x1f2] sm:$0xff]
        %v1311 = vld [vmem:[#allocation2 + $0x1fa] sm:$0xff]
        %v1312 = vld [vmem:[#allocation2 + $0x202] sm:$0xff]
        %v1313 = vld [vmem:[#allocation2 + $0x20a] sm:$0xff]
        %v1314 = vld [vmem:[#allocation2 + $0x212] sm:$0xff]
        %v1315 = vld [vmem:[#allocation2 + $0x21a] sm:$0xff]
        %v1316 = vld [vmem:[#allocation2 + $0x222] sm:$0x3f]
        %v1317 = vmax.f32 %v1110, %v1248
        %v1318 = vmax.f32 %v1111, %v1249
        %v1319 = vmax.f32 %v1112, %v1250
        %v1320 = vmax.f32 %v1113, %v1251
        %v1321 = vmax.f32 %v1114, %v1252
        %v1322 = vmax.f32 %v1115, %v1253
        %v1323 = vmax.f32 %v1116, %v1254
        %v1324 = vmax.f32 %v1117, %v1255
        %v1325 = vmax.f32 %v1118, %v1256
        %v1326 = vmax.f32 %v1119, %v1257
        %v1327 = vmax.f32 %v1120, %v1258
        %v1328 = vmax.f32 %v1121, %v1259
        %v1329 = vmax.f32 %v1122, %v1260
        %v1330 = vmax.f32 %v1123, %v1261
        %v1331 = vmax.f32 %v1124, %v1262
        %v1332 = vmax.f32 %v1125, %v1263
        %v1333 = vmax.f32 %v1126, %v1264
        %v1334 = vmax.f32 %v1127, %v1265
        %v1335 = vmax.f32 %v1128, %v1266
        %v1336 = vmax.f32 %v1129, %v1267
        %v1337 = vmax.f32 %v1130, %v1268
        %v1338 = vmax.f32 %v1131, %v1269
        %v1339 = vmax.f32 %v1132, %v1270
        %v1340 = vmax.f32 %v1133, %v1271
        %v1341 = vmax.f32 %v1134, %v1272
        %v1342 = vmax.f32 %v1135, %v1273
        %v1343 = vmax.f32 %v1136, %v1274
        %v1344 = vmax.f32 %v1137, %v1275
        %v1345 = vmax.f32 %v1138, %v1276
        %v1346 = vmax.f32 %v1139, %v1277
        %v1347 = vmax.f32 %v1140, %v1278
        %v1348 = vmax.f32 %v1141, %v1279
        %v1349 = vmax.f32 %v1142, %v1280
        %v1350 = vmax.f32 %v1143, %v1281
        %v1351 = vmax.f32 %v1144, %v1282
        %v1352 = vmax.f32 %v1145, %v1283
        %v1353 = vmax.f32 %v1146, %v1284
        %v1354 = vmax.f32 %v1147, %v1285
        %v1355 = vmax.f32 %v1148, %v1286
        %v1356 = vmax.f32 %v1149, %v1287
        %v1357 = vmax.f32 %v1150, %v1288
        %v1358 = vmax.f32 %v1151, %v1289
        %v1359 = vmax.f32 %v1152, %v1290
        %v1360 = vmax.f32 %v1153, %v1291
        %v1361 = vmax.f32 %v1154, %v1292
        %v1362 = vmax.f32 %v1155, %v1293
        %v1363 = vmax.f32 %v1156, %v1294
        %v1364 = vmax.f32 %v1157, %v1295
        %v1365 = vmax.f32 %v1158, %v1296
        %v1366 = vmax.f32 %v1159, %v1297
        %v1367 = vmax.f32 %v1160, %v1298
        %v1368 = vmax.f32 %v1161, %v1299
        %v1369 = vmax.f32 %v1162, %v1300
        %v1370 = vmax.f32 %v1163, %v1301
        %v1371 = vmax.f32 %v1164, %v1302
        %v1372 = vmax.f32 %v1165, %v1303
        %v1373 = vmax.f32 %v1166, %v1304
        %v1374 = vmax.f32 %v1167, %v1305
        %v1375 = vmax.f32 %v1168, %v1306
        %v1376 = vmax.f32 %v1169, %v1307
        %v1377 = vmax.f32 %v1170, %v1308
        %v1378 = vmax.f32 %v1171, %v1309
        %v1379 = vmax.f32 %v1172, %v1310
        %v1380 = vmax.f32 %v1173, %v1311
        %v1381 = vmax.f32 %v1174, %v1312
        %v1382 = vmax.f32 %v1175, %v1313
        %v1383 = vmax.f32 %v1176, %v1314
        %v1384 = vmax.f32 %v1177, %v1315
        %v1385 = vmax.f32 %v1178, %v1316
        %1386 = vst.msk [vmem:[#allocation2] sm:$0xff] %vm969, %v1317
        %1387 = vst.msk [vmem:[#allocation2 + $0x8] sm:$0xff] %vm969, %v1318
        %1388 = vst.msk [vmem:[#allocation2 + $0x10] sm:$0xff] %vm969, %v1319
        %1389 = vst.msk [vmem:[#allocation2 + $0x18] sm:$0xff] %vm969, %v1320
        %1390 = vst.msk [vmem:[#allocation2 + $0x20] sm:$0xff] %vm969, %v1321
        %1391 = vst.msk [vmem:[#allocation2 + $0x28] sm:$0xff] %vm969, %v1322
        %1392 = vst.msk [vmem:[#allocation2 + $0x30] sm:$0xff] %vm969, %v1323
        %1393 = vst.msk [vmem:[#allocation2 + $0x38] sm:$0xff] %vm969, %v1324
        %1394 = vst.msk [vmem:[#allocation2 + $0x40] sm:$0xff] %vm969, %v1325
        %1395 = vst.msk [vmem:[#allocation2 + $0x48] sm:$0xff] %vm969, %v1326
        %1396 = vst.msk [vmem:[#allocation2 + $0x50] sm:$0xff] %vm969, %v1327
        %1397 = vst.msk [vmem:[#allocation2 + $0x58] sm:$0xff] %vm969, %v1328
        %1398 = vst.msk [vmem:[#allocation2 + $0x60] sm:$0xff] %vm969, %v1329
        %1399 = vst.msk [vmem:[#allocation2 + $0x68] sm:$0xff] %vm969, %v1330
        %1400 = vst.msk [vmem:[#allocation2 + $0x70] sm:$0xff] %vm969, %v1331
        %1401 = vst.msk [vmem:[#allocation2 + $0x78] sm:$0xff] %vm969, %v1332
        %1402 = vst.msk [vmem:[#allocation2 + $0x80] sm:$0xff] %vm969, %v1333
        %1403 = vst.msk [vmem:[#allocation2 + $0x88] sm:$0xff] %vm969, %v1334
        %1404 = vst.msk [vmem:[#allocation2 + $0x90] sm:$0xff] %vm969, %v1335
        %1405 = vst.msk [vmem:[#allocation2 + $0x98] sm:$0xff] %vm969, %v1336
        %1406 = vst.msk [vmem:[#allocation2 + $0xa0] sm:$0xff] %vm969, %v1337
        %1407 = vst.msk [vmem:[#allocation2 + $0xa8] sm:$0xff] %vm969, %v1338
        %1408 = vst.msk [vmem:[#allocation2 + $0xb0] sm:$0xff] %vm969, %v1339
        %1409 = vst.msk [vmem:[#allocation2 + $0xb8] sm:$0xff] %vm969, %v1340
        %1410 = vst.msk [vmem:[#allocation2 + $0xc0] sm:$0xff] %vm969, %v1341
        %1411 = vst.msk [vmem:[#allocation2 + $0xc8] sm:$0xff] %vm969, %v1342
        %1412 = vst.msk [vmem:[#allocation2 + $0xd0] sm:$0xff] %vm969, %v1343
        %1413 = vst.msk [vmem:[#allocation2 + $0xd8] sm:$0xff] %vm969, %v1344
        %1414 = vst.msk [vmem:[#allocation2 + $0xe0] sm:$0xff] %vm969, %v1345
        %1415 = vst.msk [vmem:[#allocation2 + $0xe8] sm:$0xff] %vm969, %v1346
        %1416 = vst.msk [vmem:[#allocation2 + $0xf0] sm:$0xff] %vm969, %v1347
        %1417 = vst.msk [vmem:[#allocation2 + $0xf8] sm:$0xff] %vm969, %v1348
        %1418 = vst.msk [vmem:[#allocation2 + $0x100] sm:$0xff] %vm969, %v1349
        %1419 = vst.msk [vmem:[#allocation2 + $0x108] sm:$0xff] %vm969, %v1350
        %1420 = vst.msk [vmem:[#allocation2 + $0x110] sm:$0xff] %vm969, %v1351
        %1421 = vst.msk [vmem:[#allocation2 + $0x118] sm:$0xff] %vm969, %v1352
        %1422 = vst.msk [vmem:[#allocation2 + $0x120] sm:$0xff] %vm969, %v1353
        %1423 = vst.msk [vmem:[#allocation2 + $0x128] sm:$0xff] %vm969, %v1354
        %1424 = vst.msk [vmem:[#allocation2 + $0x130] sm:$0xff] %vm969, %v1355
        %1425 = vst.msk [vmem:[#allocation2 + $0x138] sm:$0xff] %vm969, %v1356
        %1426 = vst.msk [vmem:[#allocation2 + $0x140] sm:$0xff] %vm969, %v1357
        %1427 = vst.msk [vmem:[#allocation2 + $0x148] sm:$0xff] %vm969, %v1358
        %1428 = vst.msk [vmem:[#allocation2 + $0x150] sm:$0xff] %vm969, %v1359
        %1429 = vst.msk [vmem:[#allocation2 + $0x158] sm:$0xff] %vm969, %v1360
        %1430 = vst.msk [vmem:[#allocation2 + $0x160] sm:$0xff] %vm969, %v1361
        %1431 = vst.msk [vmem:[#allocation2 + $0x168] sm:$0xff] %vm969, %v1362
        %1432 = vst.msk [vmem:[#allocation2 + $0x170] sm:$0xff] %vm969, %v1363
        %1433 = vst.msk [vmem:[#allocation2 + $0x178] sm:$0xff] %vm969, %v1364
        %1434 = vst.msk [vmem:[#allocation2 + $0x180] sm:$0xff] %vm969, %v1365
        %1435 = vst.msk [vmem:[#allocation2 + $0x188] sm:$0xff] %vm969, %v1366
        %1436 = vst.msk [vmem:[#allocation2 + $0x190] sm:$0xff] %vm969, %v1367
        %1437 = vst.msk [vmem:[#allocation2 + $0x198] sm:$0xff] %vm969, %v1368
        %1438 = vst.msk [vmem:[#allocation2 + $0x1a0] sm:$0xff] %vm969, %v1369
        %1439 = vst.msk [vmem:[#allocation2 + $0x1a8] sm:$0xff] %vm969, %v1370
        %1440 = vst.msk [vmem:[#allocation2 + $0x1b0] sm:$0xff] %vm969, %v1371
        %1441 = vst.msk [vmem:[#allocation2 + $0x1b8] sm:$0xff] %vm969, %v1372
        %1442 = vst.msk [vmem:[#allocation2 + $0x1c0] sm:$0xff] %vm969, %v1373
        %1443 = vst.msk [vmem:[#allocation2 + $0x1c8] sm:$0xff] %vm969, %v1374
        %1444 = vst.msk [vmem:[#allocation2 + $0x1d0] sm:$0xff] %vm969, %v1375
        %1445 = vst.msk [vmem:[#allocation2 + $0x1d8] sm:$0xff] %vm969, %v1376
        %1446 = vst.msk [vmem:[#allocation2 + $0x1e0] sm:$0xff] %vm969, %v1377
        %1447 = vst.msk [vmem:[#allocation2 + $0x1e8] sm:$0xff] %vm969, %v1378
        %1448 = vst.msk [vmem:[#allocation2 + $0x1f0] sm:$0xff] %vm969, %v1379
        %1449 = vst.msk [vmem:[#allocation2 + $0x1f8] sm:$0xff] %vm969, %v1380
        %1450 = vst.msk [vmem:[#allocation2 + $0x200] sm:$0xff] %vm969, %v1381
        %1451 = vst.msk [vmem:[#allocation2 + $0x208] sm:$0xff] %vm969, %v1382
        %1452 = vst.msk [vmem:[#allocation2 + $0x210] sm:$0xff] %vm969, %v1383
        %1453 = vst.msk [vmem:[#allocation2 + $0x218] sm:$0xff] %vm969, %v1384
        %1454 = vst.msk [vmem:[#allocation2 + $0x220] sm:$0x3f] %vm1038, %v1385
        %v1455 = vld [vmem:[#allocation2 + $0x1] sm:$0xff]
        %v1456 = vld [vmem:[#allocation2 + $0x9] sm:$0xff]
        %v1457 = vld [vmem:[#allocation2 + $0x11] sm:$0xff]
        %v1458 = vld [vmem:[#allocation2 + $0x19] sm:$0xff]
        %v1459 = vld [vmem:[#allocation2 + $0x21] sm:$0xff]
        %v1460 = vld [vmem:[#allocation2 + $0x29] sm:$0xff]
        %v1461 = vld [vmem:[#allocation2 + $0x31] sm:$0xff]
        %v1462 = vld [vmem:[#allocation2 + $0x39] sm:$0xff]
        %v1463 = vld [vmem:[#allocation2 + $0x41] sm:$0xff]
        %v1464 = vld [vmem:[#allocation2 + $0x49] sm:$0xff]
        %v1465 = vld [vmem:[#allocation2 + $0x51] sm:$0xff]
        %v1466 = vld [vmem:[#allocation2 + $0x59] sm:$0xff]
        %v1467 = vld [vmem:[#allocation2 + $0x61] sm:$0xff]
        %v1468 = vld [vmem:[#allocation2 + $0x69] sm:$0xff]
        %v1469 = vld [vmem:[#allocation2 + $0x71] sm:$0xff]
        %v1470 = vld [vmem:[#allocation2 + $0x79] sm:$0xff]
        %v1471 = vld [vmem:[#allocation2 + $0x81] sm:$0xff]
        %v1472 = vld [vmem:[#allocation2 + $0x89] sm:$0xff]
        %v1473 = vld [vmem:[#allocation2 + $0x91] sm:$0xff]
        %v1474 = vld [vmem:[#allocation2 + $0x99] sm:$0xff]
        %v1475 = vld [vmem:[#allocation2 + $0xa1] sm:$0xff]
        %v1476 = vld [vmem:[#allocation2 + $0xa9] sm:$0xff]
        %v1477 = vld [vmem:[#allocation2 + $0xb1] sm:$0xff]
        %v1478 = vld [vmem:[#allocation2 + $0xb9] sm:$0xff]
        %v1479 = vld [vmem:[#allocation2 + $0xc1] sm:$0xff]
        %v1480 = vld [vmem:[#allocation2 + $0xc9] sm:$0xff]
        %v1481 = vld [vmem:[#allocation2 + $0xd1] sm:$0xff]
        %v1482 = vld [vmem:[#allocation2 + $0xd9] sm:$0xff]
        %v1483 = vld [vmem:[#allocation2 + $0xe1] sm:$0xff]
        %v1484 = vld [vmem:[#allocation2 + $0xe9] sm:$0xff]
        %v1485 = vld [vmem:[#allocation2 + $0xf1] sm:$0xff]
        %v1486 = vld [vmem:[#allocation2 + $0xf9] sm:$0xff]
        %v1487 = vld [vmem:[#allocation2 + $0x101] sm:$0xff]
        %v1488 = vld [vmem:[#allocation2 + $0x109] sm:$0xff]
        %v1489 = vld [vmem:[#allocation2 + $0x111] sm:$0xff]
        %v1490 = vld [vmem:[#allocation2 + $0x119] sm:$0xff]
        %v1491 = vld [vmem:[#allocation2 + $0x121] sm:$0xff]
        %v1492 = vld [vmem:[#allocation2 + $0x129] sm:$0xff]
        %v1493 = vld [vmem:[#allocation2 + $0x131] sm:$0xff]
        %v1494 = vld [vmem:[#allocation2 + $0x139] sm:$0xff]
        %v1495 = vld [vmem:[#allocation2 + $0x141] sm:$0xff]
        %v1496 = vld [vmem:[#allocation2 + $0x149] sm:$0xff]
        %v1497 = vld [vmem:[#allocation2 + $0x151] sm:$0xff]
        %v1498 = vld [vmem:[#allocation2 + $0x159] sm:$0xff]
        %v1499 = vld [vmem:[#allocation2 + $0x161] sm:$0xff]
        %v1500 = vld [vmem:[#allocation2 + $0x169] sm:$0xff]
        %v1501 = vld [vmem:[#allocation2 + $0x171] sm:$0xff]
        %v1502 = vld [vmem:[#allocation2 + $0x179] sm:$0xff]
        %v1503 = vld [vmem:[#allocation2 + $0x181] sm:$0xff]
        %v1504 = vld [vmem:[#allocation2 + $0x189] sm:$0xff]
        %v1505 = vld [vmem:[#allocation2 + $0x191] sm:$0xff]
        %v1506 = vld [vmem:[#allocation2 + $0x199] sm:$0xff]
        %v1507 = vld [vmem:[#allocation2 + $0x1a1] sm:$0xff]
        %v1508 = vld [vmem:[#allocation2 + $0x1a9] sm:$0xff]
        %v1509 = vld [vmem:[#allocation2 + $0x1b1] sm:$0xff]
        %v1510 = vld [vmem:[#allocation2 + $0x1b9] sm:$0xff]
        %v1511 = vld [vmem:[#allocation2 + $0x1c1] sm:$0xff]
        %v1512 = vld [vmem:[#allocation2 + $0x1c9] sm:$0xff]
        %v1513 = vld [vmem:[#allocation2 + $0x1d1] sm:$0xff]
        %v1514 = vld [vmem:[#allocation2 + $0x1d9] sm:$0xff]
        %v1515 = vld [vmem:[#allocation2 + $0x1e1] sm:$0xff]
        %v1516 = vld [vmem:[#allocation2 + $0x1e9] sm:$0xff]
        %v1517 = vld [vmem:[#allocation2 + $0x1f1] sm:$0xff]
        %v1518 = vld [vmem:[#allocation2 + $0x1f9] sm:$0xff]
        %v1519 = vld [vmem:[#allocation2 + $0x201] sm:$0xff]
        %v1520 = vld [vmem:[#allocation2 + $0x209] sm:$0xff]
        %v1521 = vld [vmem:[#allocation2 + $0x211] sm:$0xff]
        %v1522 = vld [vmem:[#allocation2 + $0x219] sm:$0xff]
        %v1523 = vld [vmem:[#allocation2 + $0x221] sm:$0x3f]
        %v1524 = vmax.f32 %v1317, %v1455
        %v1525 = vmax.f32 %v1318, %v1456
        %v1526 = vmax.f32 %v1319, %v1457
        %v1527 = vmax.f32 %v1320, %v1458
        %v1528 = vmax.f32 %v1321, %v1459
        %v1529 = vmax.f32 %v1322, %v1460
        %v1530 = vmax.f32 %v1323, %v1461
        %v1531 = vmax.f32 %v1324, %v1462
        %v1532 = vmax.f32 %v1325, %v1463
        %v1533 = vmax.f32 %v1326, %v1464
        %v1534 = vmax.f32 %v1327, %v1465
        %v1535 = vmax.f32 %v1328, %v1466
        %v1536 = vmax.f32 %v1329, %v1467
        %v1537 = vmax.f32 %v1330, %v1468
        %v1538 = vmax.f32 %v1331, %v1469
        %v1539 = vmax.f32 %v1332, %v1470
        %v1540 = vmax.f32 %v1333, %v1471
        %v1541 = vmax.f32 %v1334, %v1472
        %v1542 = vmax.f32 %v1335, %v1473
        %v1543 = vmax.f32 %v1336, %v1474
        %v1544 = vmax.f32 %v1337, %v1475
        %v1545 = vmax.f32 %v1338, %v1476
        %v1546 = vmax.f32 %v1339, %v1477
        %v1547 = vmax.f32 %v1340, %v1478
        %v1548 = vmax.f32 %v1341, %v1479
        %v1549 = vmax.f32 %v1342, %v1480
        %v1550 = vmax.f32 %v1343, %v1481
        %v1551 = vmax.f32 %v1344, %v1482
        %v1552 = vmax.f32 %v1345, %v1483
        %v1553 = vmax.f32 %v1346, %v1484
        %v1554 = vmax.f32 %v1347, %v1485
        %v1555 = vmax.f32 %v1348, %v1486
        %v1556 = vmax.f32 %v1349, %v1487
        %v1557 = vmax.f32 %v1350, %v1488
        %v1558 = vmax.f32 %v1351, %v1489
        %v1559 = vmax.f32 %v1352, %v1490
        %v1560 = vmax.f32 %v1353, %v1491
        %v1561 = vmax.f32 %v1354, %v1492
        %v1562 = vmax.f32 %v1355, %v1493
        %v1563 = vmax.f32 %v1356, %v1494
        %v1564 = vmax.f32 %v1357, %v1495
        %v1565 = vmax.f32 %v1358, %v1496
        %v1566 = vmax.f32 %v1359, %v1497
        %v1567 = vmax.f32 %v1360, %v1498
        %v1568 = vmax.f32 %v1361, %v1499
        %v1569 = vmax.f32 %v1362, %v1500
        %v1570 = vmax.f32 %v1363, %v1501
        %v1571 = vmax.f32 %v1364, %v1502
        %v1572 = vmax.f32 %v1365, %v1503
        %v1573 = vmax.f32 %v1366, %v1504
        %v1574 = vmax.f32 %v1367, %v1505
        %v1575 = vmax.f32 %v1368, %v1506
        %v1576 = vmax.f32 %v1369, %v1507
        %v1577 = vmax.f32 %v1370, %v1508
        %v1578 = vmax.f32 %v1371, %v1509
        %v1579 = vmax.f32 %v1372, %v1510
        %v1580 = vmax.f32 %v1373, %v1511
        %v1581 = vmax.f32 %v1374, %v1512
        %v1582 = vmax.f32 %v1375, %v1513
        %v1583 = vmax.f32 %v1376, %v1514
        %v1584 = vmax.f32 %v1377, %v1515
        %v1585 = vmax.f32 %v1378, %v1516
        %v1586 = vmax.f32 %v1379, %v1517
        %v1587 = vmax.f32 %v1380, %v1518
        %v1588 = vmax.f32 %v1381, %v1519
        %v1589 = vmax.f32 %v1382, %v1520
        %v1590 = vmax.f32 %v1383, %v1521
        %v1591 = vmax.f32 %v1384, %v1522
        %v1592 = vmax.f32 %v1385, %v1523
        %1593 = vst.msk [vmem:[#allocation2] sm:$0xff] %vm969, %v1524
        %1594 = vst.msk [vmem:[#allocation2 + $0x8] sm:$0xff] %vm969, %v1525
        %1595 = vst.msk [vmem:[#allocation2 + $0x10] sm:$0xff] %vm969, %v1526
        %1596 = vst.msk [vmem:[#allocation2 + $0x18] sm:$0xff] %vm969, %v1527
        %1597 = vst.msk [vmem:[#allocation2 + $0x20] sm:$0xff] %vm969, %v1528
        %1598 = vst.msk [vmem:[#allocation2 + $0x28] sm:$0xff] %vm969, %v1529
        %1599 = vst.msk [vmem:[#allocation2 + $0x30] sm:$0xff] %vm969, %v1530
        %1600 = vst.msk [vmem:[#allocation2 + $0x38] sm:$0xff] %vm969, %v1531
        %1601 = vst.msk [vmem:[#allocation2 + $0x40] sm:$0xff] %vm969, %v1532
        %1602 = vst.msk [vmem:[#allocation2 + $0x48] sm:$0xff] %vm969, %v1533
        %1603 = vst.msk [vmem:[#allocation2 + $0x50] sm:$0xff] %vm969, %v1534
        %1604 = vst.msk [vmem:[#allocation2 + $0x58] sm:$0xff] %vm969, %v1535
        %1605 = vst.msk [vmem:[#allocation2 + $0x60] sm:$0xff] %vm969, %v1536
        %1606 = vst.msk [vmem:[#allocation2 + $0x68] sm:$0xff] %vm969, %v1537
        %1607 = vst.msk [vmem:[#allocation2 + $0x70] sm:$0xff] %vm969, %v1538
        %1608 = vst.msk [vmem:[#allocation2 + $0x78] sm:$0xff] %vm969, %v1539
        %1609 = vst.msk [vmem:[#allocation2 + $0x80] sm:$0xff] %vm969, %v1540
        %1610 = vst.msk [vmem:[#allocation2 + $0x88] sm:$0xff] %vm969, %v1541
        %1611 = vst.msk [vmem:[#allocation2 + $0x90] sm:$0xff] %vm969, %v1542
        %1612 = vst.msk [vmem:[#allocation2 + $0x98] sm:$0xff] %vm969, %v1543
        %1613 = vst.msk [vmem:[#allocation2 + $0xa0] sm:$0xff] %vm969, %v1544
        %1614 = vst.msk [vmem:[#allocation2 + $0xa8] sm:$0xff] %vm969, %v1545
        %1615 = vst.msk [vmem:[#allocation2 + $0xb0] sm:$0xff] %vm969, %v1546
        %1616 = vst.msk [vmem:[#allocation2 + $0xb8] sm:$0xff] %vm969, %v1547
        %1617 = vst.msk [vmem:[#allocation2 + $0xc0] sm:$0xff] %vm969, %v1548
        %1618 = vst.msk [vmem:[#allocation2 + $0xc8] sm:$0xff] %vm969, %v1549
        %1619 = vst.msk [vmem:[#allocation2 + $0xd0] sm:$0xff] %vm969, %v1550
        %1620 = vst.msk [vmem:[#allocation2 + $0xd8] sm:$0xff] %vm969, %v1551
        %1621 = vst.msk [vmem:[#allocation2 + $0xe0] sm:$0xff] %vm969, %v1552
        %1622 = vst.msk [vmem:[#allocation2 + $0xe8] sm:$0xff] %vm969, %v1553
        %1623 = vst.msk [vmem:[#allocation2 + $0xf0] sm:$0xff] %vm969, %v1554
        %1624 = vst.msk [vmem:[#allocation2 + $0xf8] sm:$0xff] %vm969, %v1555
        %1625 = vst.msk [vmem:[#allocation2 + $0x100] sm:$0xff] %vm969, %v1556
        %1626 = vst.msk [vmem:[#allocation2 + $0x108] sm:$0xff] %vm969, %v1557
        %1627 = vst.msk [vmem:[#allocation2 + $0x110] sm:$0xff] %vm969, %v1558
        %1628 = vst.msk [vmem:[#allocation2 + $0x118] sm:$0xff] %vm969, %v1559
        %1629 = vst.msk [vmem:[#allocation2 + $0x120] sm:$0xff] %vm969, %v1560
        %1630 = vst.msk [vmem:[#allocation2 + $0x128] sm:$0xff] %vm969, %v1561
        %1631 = vst.msk [vmem:[#allocation2 + $0x130] sm:$0xff] %vm969, %v1562
        %1632 = vst.msk [vmem:[#allocation2 + $0x138] sm:$0xff] %vm969, %v1563
        %1633 = vst.msk [vmem:[#allocation2 + $0x140] sm:$0xff] %vm969, %v1564
        %1634 = vst.msk [vmem:[#allocation2 + $0x148] sm:$0xff] %vm969, %v1565
        %1635 = vst.msk [vmem:[#allocation2 + $0x150] sm:$0xff] %vm969, %v1566
        %1636 = vst.msk [vmem:[#allocation2 + $0x158] sm:$0xff] %vm969, %v1567
        %1637 = vst.msk [vmem:[#allocation2 + $0x160] sm:$0xff] %vm969, %v1568
        %1638 = vst.msk [vmem:[#allocation2 + $0x168] sm:$0xff] %vm969, %v1569
        %1639 = vst.msk [vmem:[#allocation2 + $0x170] sm:$0xff] %vm969, %v1570
        %1640 = vst.msk [vmem:[#allocation2 + $0x178] sm:$0xff] %vm969, %v1571
        %1641 = vst.msk [vmem:[#allocation2 + $0x180] sm:$0xff] %vm969, %v1572
        %1642 = vst.msk [vmem:[#allocation2 + $0x188] sm:$0xff] %vm969, %v1573
        %1643 = vst.msk [vmem:[#allocation2 + $0x190] sm:$0xff] %vm969, %v1574
        %1644 = vst.msk [vmem:[#allocation2 + $0x198] sm:$0xff] %vm969, %v1575
        %1645 = vst.msk [vmem:[#allocation2 + $0x1a0] sm:$0xff] %vm969, %v1576
        %1646 = vst.msk [vmem:[#allocation2 + $0x1a8] sm:$0xff] %vm969, %v1577
        %1647 = vst.msk [vmem:[#allocation2 + $0x1b0] sm:$0xff] %vm969, %v1578
        %1648 = vst.msk [vmem:[#allocation2 + $0x1b8] sm:$0xff] %vm969, %v1579
        %1649 = vst.msk [vmem:[#allocation2 + $0x1c0] sm:$0xff] %vm969, %v1580
        %1650 = vst.msk [vmem:[#allocation2 + $0x1c8] sm:$0xff] %vm969, %v1581
        %1651 = vst.msk [vmem:[#allocation2 + $0x1d0] sm:$0xff] %vm969, %v1582
        %1652 = vst.msk [vmem:[#allocation2 + $0x1d8] sm:$0xff] %vm969, %v1583
        %1653 = vst.msk [vmem:[#allocation2 + $0x1e0] sm:$0xff] %vm969, %v1584
        %1654 = vst.msk [vmem:[#allocation2 + $0x1e8] sm:$0xff] %vm969, %v1585
        %1655 = vst.msk [vmem:[#allocation2 + $0x1f0] sm:$0xff] %vm969, %v1586
        %1656 = vst.msk [vmem:[#allocation2 + $0x1f8] sm:$0xff] %vm969, %v1587
        %1657 = vst.msk [vmem:[#allocation2 + $0x200] sm:$0xff] %vm969, %v1588
        %1658 = vst.msk [vmem:[#allocation2 + $0x208] sm:$0xff] %vm969, %v1589
        %1659 = vst.msk [vmem:[#allocation2 + $0x210] sm:$0xff] %vm969, %v1590
        %1660 = vst.msk [vmem:[#allocation2 + $0x218] sm:$0xff] %vm969, %v1591
        %1661 = vst.msk [vmem:[#allocation2 + $0x220] sm:$0x3f] %vm1038, %v1592
        %v1662 = vld [vmem:[#allocation2] ss:$5 sm:$0xff]
        %s1663 = scalar_lea.vmem [#allocation2], 40
        %v1664 = vld [vmem:[%s1663] ss:$5 sm:$0xff]
        %s1665 = scalar_lea.vmem [#allocation2], 80
        %v1666 = vld [vmem:[%s1665] ss:$5 sm:$0xff]
        %s1667 = scalar_lea.vmem [#allocation2], 120
        %v1668 = vld [vmem:[%s1667] ss:$5 sm:$0xff]
        %s1669 = scalar_lea.vmem [#allocation2], 160
        %v1670 = vld [vmem:[%s1669] ss:$5 sm:$0xff]
        %s1671 = scalar_lea.vmem [#allocation2], 200
        %v1672 = vld [vmem:[%s1671] ss:$5 sm:$0xff]
        %s1673 = scalar_lea.vmem [#allocation2], 240
        %v1674 = vld [vmem:[%s1673] ss:$5 sm:$0xff]
        %s1675 = scalar_lea.vmem [#allocation2], 280
        %v1676 = vld [vmem:[%s1675] ss:$5 sm:$0xff]
        %s1677 = scalar_lea.vmem [#allocation2], 320
        %v1678 = vld [vmem:[%s1677] ss:$5 sm:$0xff]
        %s1679 = scalar_lea.vmem [#allocation2], 360
        %v1680 = vld [vmem:[%s1679] ss:$5 sm:$0xff]
        %s1681 = scalar_lea.vmem [#allocation2], 400
        %v1682 = vld [vmem:[%s1681] ss:$5 sm:$0xff]
        %s1683 = scalar_lea.vmem [#allocation2], 440
        %v1684 = vld [vmem:[%s1683] ss:$5 sm:$0xff]
        %s1685 = scalar_lea.vmem [#allocation2], 480
        %v1686 = vld [vmem:[%s1685] ss:$5 sm:$0xff]
        %s1687 = scalar_lea.vmem [#allocation2], 520
        %v1688 = vld [vmem:[%s1687] ss:$5 sm:$0x3f]
        %v1689 = vlaneseq
        %v1690 = vshrl.u32 %v1689, 7
        %v1691 = vsub.s32 0, %v1690
        %v1692 = vrot.slane %v346, %v1691
        %v1693 = vadd.f32 %v1662, %v1692
        %v1694 = vadd.f32 %v1664, %v1692
        %v1695 = vadd.f32 %v1666, %v1692
        %v1696 = vadd.f32 %v1668, %v1692
        %v1697 = vadd.f32 %v1670, %v1692
        %v1698 = vadd.f32 %v1672, %v1692
        %v1699 = vadd.f32 %v1674, %v1692
        %v1700 = vadd.f32 %v1676, %v1692
        %v1701 = vadd.f32 %v1678, %v1692
        %v1702 = vadd.f32 %v1680, %v1692
        %v1703 = vadd.f32 %v1682, %v1692
        %v1704 = vadd.f32 %v1684, %v1692
        %v1705 = vadd.f32 %v1686, %v1692
        %v1706 = vadd.f32 %v1688, %v1692
        %v1707 = vmax.f32 %v1693, 0.0
        %v1708 = vmax.f32 %v1694, 0.0
        %v1709 = vmax.f32 %v1695, 0.0
        %v1710 = vmax.f32 %v1696, 0.0
        %v1711 = vmax.f32 %v1697, 0.0
        %v1712 = vmax.f32 %v1698, 0.0
        %v1713 = vmax.f32 %v1699, 0.0
        %v1714 = vmax.f32 %v1700, 0.0
        %v1715 = vmax.f32 %v1701, 0.0
        %v1716 = vmax.f32 %v1702, 0.0
        %v1717 = vmax.f32 %v1703, 0.0
        %v1718 = vmax.f32 %v1704, 0.0
        %v1719 = vmax.f32 %v1705, 0.0
        %v1720 = vmax.f32 %v1706, 0.0
        %1721 = vst.msk [vmem:[#allocation3] sm:$0xff] %vm969, %v1707
        %1722 = vst.msk [vmem:[#allocation3 + $0x8] sm:$0xff] %vm969, %v1708
        %1723 = vst.msk [vmem:[#allocation3 + $0x10] sm:$0xff] %vm969, %v1709
        %1724 = vst.msk [vmem:[#allocation3 + $0x18] sm:$0xff] %vm969, %v1710
        %1725 = vst.msk [vmem:[#allocation3 + $0x20] sm:$0xff] %vm969, %v1711
        %1726 = vst.msk [vmem:[#allocation3 + $0x28] sm:$0xff] %vm969, %v1712
        %1727 = vst.msk [vmem:[#allocation3 + $0x30] sm:$0xff] %vm969, %v1713
        %1728 = vst.msk [vmem:[#allocation3 + $0x38] sm:$0xff] %vm969, %v1714
        %1729 = vst.msk [vmem:[#allocation3 + $0x40] sm:$0xff] %vm969, %v1715
        %1730 = vst.msk [vmem:[#allocation3 + $0x48] sm:$0xff] %vm969, %v1716
        %1731 = vst.msk [vmem:[#allocation3 + $0x50] sm:$0xff] %vm969, %v1717
        %1732 = vst.msk [vmem:[#allocation3 + $0x58] sm:$0xff] %vm969, %v1718
        %1733 = vst.msk [vmem:[#allocation3 + $0x60] sm:$0xff] %vm969, %v1719
        %1734 = vst.msk [vmem:[#allocation3 + $0x68] sm:$0x3f] %vm1038, %v1720
        %v1735 = vld [vmem:[#allocation3 + $0x1] sm:$0xff]
        %v1736 = vld [vmem:[#allocation3 + $0x9] sm:$0xff]
        %v1737 = vld [vmem:[#allocation3 + $0x11] sm:$0xff]
        %v1738 = vld [vmem:[#allocation3 + $0x19] sm:$0xff]
        %v1739 = vld [vmem:[#allocation3 + $0x21] sm:$0xff]
        %v1740 = vld [vmem:[#allocation3 + $0x29] sm:$0xff]
        %v1741 = vld [vmem:[#allocation3 + $0x31] sm:$0xff]
        %v1742 = vld [vmem:[#allocation3 + $0x39] sm:$0xff]
        %v1743 = vld [vmem:[#allocation3 + $0x41] sm:$0xff]
        %v1744 = vld [vmem:[#allocation3 + $0x49] sm:$0xff]
        %v1745 = vld [vmem:[#allocation3 + $0x51] sm:$0xff]
        %v1746 = vld [vmem:[#allocation3 + $0x59] sm:$0xff]
        %v1747 = vld [vmem:[#allocation3 + $0x61] sm:$0xff]
        %v1748 = vld [vmem:[#allocation3 + $0x69] sm:$0x1f]
        %1763 = vrot.lane.b32.xlu0 %v1735, 8
        %v1764 = vpop.permute.xlu0 %1763
        %1765 = vrot.lane.b32.xlu0 %v1736, 8
        %v1766 = vpop.permute.xlu0 %1765
        %1767 = vrot.lane.b32.xlu0 %v1737, 8
        %v1768 = vpop.permute.xlu0 %1767
        %1769 = vrot.lane.b32.xlu0 %v1738, 8
        %v1770 = vpop.permute.xlu0 %1769
        %1771 = vrot.lane.b32.xlu0 %v1739, 8
        %v1772 = vpop.permute.xlu0 %1771
        %1773 = vrot.lane.b32.xlu0 %v1740, 8
        %v1774 = vpop.permute.xlu0 %1773
        %1775 = vrot.lane.b32.xlu0 %v1741, 8
        %v1776 = vpop.permute.xlu0 %1775
        %1777 = vrot.lane.b32.xlu0 %v1742, 8
        %v1778 = vpop.permute.xlu0 %1777
        %1779 = vrot.lane.b32.xlu0 %v1743, 8
        %v1780 = vpop.permute.xlu0 %1779
        %1781 = vrot.lane.b32.xlu0 %v1744, 8
        %v1782 = vpop.permute.xlu0 %1781
        %1783 = vrot.lane.b32.xlu0 %v1745, 8
        %v1784 = vpop.permute.xlu0 %1783
        %1785 = vrot.lane.b32.xlu0 %v1746, 8
        %v1786 = vpop.permute.xlu0 %1785
        %1787 = vrot.lane.b32.xlu0 %v1747, 8
        %v1788 = vpop.permute.xlu0 %1787
        %1789 = vrot.lane.b32.xlu0 %v1748, 8
        %v1790 = vpop.permute.xlu0 %1789
        %vm1805 = vcmask 130112
        %1806 = vst.msk [vmem:[#allocation3] sm:$0xff] %vm1805, %v1764
        %1807 = vst.msk [vmem:[#allocation3 + $0x8] sm:$0xff] %vm1805, %v1766
        %1808 = vst.msk [vmem:[#allocation3 + $0x10] sm:$0xff] %vm1805, %v1768
        %1809 = vst.msk [vmem:[#allocation3 + $0x18] sm:$0xff] %vm1805, %v1770
        %1810 = vst.msk [vmem:[#allocation3 + $0x20] sm:$0xff] %vm1805, %v1772
        %1811 = vst.msk [vmem:[#allocation3 + $0x28] sm:$0xff] %vm1805, %v1774
        %1812 = vst.msk [vmem:[#allocation3 + $0x30] sm:$0xff] %vm1805, %v1776
        %1813 = vst.msk [vmem:[#allocation3 + $0x38] sm:$0xff] %vm1805, %v1778
        %1814 = vst.msk [vmem:[#allocation3 + $0x40] sm:$0xff] %vm1805, %v1780
        %1815 = vst.msk [vmem:[#allocation3 + $0x48] sm:$0xff] %vm1805, %v1782
        %1816 = vst.msk [vmem:[#allocation3 + $0x50] sm:$0xff] %vm1805, %v1784
        %1817 = vst.msk [vmem:[#allocation3 + $0x58] sm:$0xff] %vm1805, %v1786
        %1818 = vst.msk [vmem:[#allocation3 + $0x60] sm:$0xff] %vm1805, %v1788
        %vm1819 = vcmask 127040
        %1820 = vst.msk [vmem:[#allocation3 + $0x68] sm:$0x1f] %vm1819, %v1790
        %vm1821 = vcmask 122944
        %1822 = vst.msk [vmem:[#allocation3 + $0x6d] sm:$0x1] %vm1821, 0.0
        %v1823 = vld [vmem:[#allocation3] sm:$0xff]
        %v1824 = vld [vmem:[#allocation3 + $0x8] sm:$0xff]
        %v1825 = vld [vmem:[#allocation3 + $0x10] sm:$0xff]
        %v1826 = vld [vmem:[#allocation3 + $0x18] sm:$0xff]
        %v1827 = vld [vmem:[#allocation3 + $0x20] sm:$0xff]
        %v1828 = vld [vmem:[#allocation3 + $0x28] sm:$0xff]
        %v1829 = vld [vmem:[#allocation3 + $0x30] sm:$0xff]
        %v1830 = vld [vmem:[#allocation3 + $0x38] sm:$0xff]
        %v1831 = vld [vmem:[#allocation3 + $0x40] sm:$0xff]
        %v1832 = vld [vmem:[#allocation3 + $0x48] sm:$0xff]
        %v1833 = vld [vmem:[#allocation3 + $0x50] sm:$0xff]
        %v1834 = vld [vmem:[#allocation3 + $0x58] sm:$0xff]
        %v1835 = vld [vmem:[#allocation3 + $0x60] sm:$0xff]
        %v1836 = vld [vmem:[#allocation3 + $0x68] sm:$0x3f]
        %v1837 = vld [vmem:[%s2] sm:$0xff]
        %v1838 = vld [vmem:[%s2 + $0x8] sm:$0xff]
        %v1839 = vld [vmem:[%s2 + $0x10] sm:$0x1]
        %vm1840 = vcmask 130048
        %v1842 = vsel %vm1840, %v1823, 0
        %v1845 = vsel %vm1840, %v1824, 0
        %v1848 = vsel %vm1840, %v1825, 0
        %v1851 = vsel %vm1840, %v1826, 0
        %v1854 = vsel %vm1840, %v1827, 0
        %v1857 = vsel %vm1840, %v1828, 0
        %v1860 = vsel %vm1840, %v1829, 0
        %v1863 = vsel %vm1840, %v1830, 0
        %v1866 = vsel %vm1840, %v1831, 0
        %v1869 = vsel %vm1840, %v1832, 0
        %v1872 = vsel %vm1840, %v1833, 0
        %v1875 = vsel %vm1840, %v1834, 0
        %v1878 = vsel %vm1840, %v1835, 0
        %v1881 = vsel %vm1840, %v1836, 0
        %1883 = vmatprep.subr.mxu0 0.0
        %1884 = vmatpush1.msra.mxu0 %v1837
        %1885 = vmatprep.subr.mxu0 0.0
        %1886 = vmatpush1.msra.mxu0 %v1838
        %1887 = vmatprep.subr.mxu0 0.0
        %1888 = vmatpush1.msra.mxu0 0.0
        %1889 = vmatprep.subr.mxu0 0.0
        %1890 = vmatpush1.msra.mxu0 0.0
        %1891 = vmatprep.subr.mxu0 0.0
        %1892 = vmatpush1.msra.mxu0 0.0
        %1893 = vmatprep.subr.mxu0 0.0
        %1894 = vmatpush1.msra.mxu0 0.0
        %1895 = vmatprep.subr.mxu0 0.0
        %1896 = vmatpush1.msra.mxu0 0.0
        %1897 = vmatprep.subr.mxu0 0.0
        %1898 = vmatpush1.msra.mxu0 0.0
        %1899 = vmatprep.subr.mxu0 0.0
        %1900 = vmatpush1.msra.mxu0 0.0
        %1901 = vmatprep.subr.mxu0 0.0
        %1902 = vmatpush1.msra.mxu0 0.0
        %1903 = vmatprep.subr.mxu0 0.0
        %1904 = vmatpush1.msra.mxu0 0.0
        %1905 = vmatprep.subr.mxu0 0.0
        %1906 = vmatpush1.msra.mxu0 0.0
        %1907 = vmatprep.subr.mxu0 0.0
        %1908 = vmatpush1.msra.mxu0 0.0
        %1909 = vmatprep.subr.mxu0 0.0
        %1910 = vmatpush1.msra.mxu0 0.0
        %1911 = vmatprep.subr.mxu0 0.0
        %1912 = vmatpush1.msra.mxu0 0.0
        %1913 = vmatprep.subr.mxu0 0.0
        %1914 = vmatpush1.msra.mxu0 0.0
        %1915 = vmatprep.subr.mxu0 0.0
        %1916 = vmatpush1.msra.mxu0 0.0
        %1917 = vmatprep.subr.mxu0 0.0
        %1918 = vmatpush1.msra.mxu0 0.0
        %1919 = vmatprep.subr.mxu0 0.0
        %1920 = vmatpush1.msra.mxu0 0.0
        %1921 = vmatprep.subr.mxu0 0.0
        %1922 = vmatpush1.msra.mxu0 0.0
        %1923 = vmatprep.subr.mxu0 0.0
        %1924 = vmatpush1.msra.mxu0 0.0
        %1925 = vmatprep.subr.mxu0 0.0
        %1926 = vmatpush1.msra.mxu0 0.0
        %1927 = vmatprep.subr.mxu0 0.0
        %1928 = vmatpush1.msra.mxu0 0.0
        %1929 = vmatprep.subr.mxu0 0.0
        %1930 = vmatpush1.msra.mxu0 0.0
        %1931 = vmatprep.subr.mxu0 0.0
        %1932 = vmatpush1.msra.mxu0 0.0
        %1933 = vmatprep.subr.mxu0 0.0
        %1934 = vmatpush1.msra.mxu0 0.0
        %1935 = vmatprep.subr.mxu0 0.0
        %1936 = vmatpush1.msra.mxu0 0.0
        %1937 = vmatprep.subr.mxu0 0.0
        %1938 = vmatpush1.msra.mxu0 0.0
        %1939 = vmatprep.subr.mxu0 0.0
        %1940 = vmatpush1.msra.mxu0 0.0
        %1941 = vmatprep.subr.mxu0 0.0
        %1942 = vmatpush1.msra.mxu0 0.0
        %1943 = vmatprep.subr.mxu0 0.0
        %1944 = vmatpush1.msra.mxu0 0.0
        %1945 = vmatprep.subr.mxu0 0.0
        %1946 = vmatpush1.msra.mxu0 0.0
        %1947 = vmatprep.mubr.f32.mxu0 0.0
        %1948 = vmatmul.mubr.f32.gmra.mrb[0].mxu0 %v1842
        %v1949 = vpop.f32.mrb[0].mxu0
        %v1950 = vadd.f32 0.0, %v1949
        %v1951 = vpop.f32.mrb[0].mxu0
        %1952 = vmatprep.mubr.f32.mxu0 0.0
        %1953 = vmatmul.mubr.f32.gmra.mrb[0].mxu0 %v1845
        %v1954 = vpop.f32.mrb[0].mxu0
        %v1955 = vadd.f32 0.0, %v1954
        %v1956 = vpop.f32.mrb[0].mxu0
        %1957 = vmatprep.mubr.f32.mxu0 0.0
        %1958 = vmatmul.mubr.f32.gmra.mrb[0].mxu0 %v1848
        %v1959 = vpop.f32.mrb[0].mxu0
        %v1960 = vadd.f32 0.0, %v1959
        %v1961 = vpop.f32.mrb[0].mxu0
        %1962 = vmatprep.mubr.f32.mxu0 0.0
        %1963 = vmatmul.mubr.f32.gmra.mrb[0].mxu0 %v1851
        %v1964 = vpop.f32.mrb[0].mxu0
        %v1965 = vadd.f32 0.0, %v1964
        %v1966 = vpop.f32.mrb[0].mxu0
        %1967 = vmatprep.mubr.f32.mxu0 0.0
        %1968 = vmatmul.mubr.f32.gmra.mrb[0].mxu0 %v1854
        %v1969 = vpop.f32.mrb[0].mxu0
        %v1970 = vadd.f32 0.0, %v1969
        %v1971 = vpop.f32.mrb[0].mxu0
        %1972 = vmatprep.mubr.f32.mxu0 0.0
        %1973 = vmatmul.mubr.f32.gmra.mrb[0].mxu0 %v1857
        %v1974 = vpop.f32.mrb[0].mxu0
        %v1975 = vadd.f32 0.0, %v1974
        %v1976 = vpop.f32.mrb[0].mxu0
        %1977 = vmatprep.mubr.f32.mxu0 0.0
        %1978 = vmatmul.mubr.f32.gmra.mrb[0].mxu0 %v1860
        %v1979 = vpop.f32.mrb[0].mxu0
        %v1980 = vadd.f32 0.0, %v1979
        %v1981 = vpop.f32.mrb[0].mxu0
        %1982 = vmatprep.mubr.f32.mxu0 0.0
        %1983 = vmatmul.mubr.f32.gmra.mrb[0].mxu0 %v1863
        %v1984 = vpop.f32.mrb[0].mxu0
        %v1985 = vadd.f32 0.0, %v1984
        %v1986 = vpop.f32.mrb[0].mxu0
        %1987 = vmatprep.mubr.f32.mxu0 0.0
        %1988 = vmatmul.mubr.f32.gmra.mrb[0].mxu0 %v1866
        %v1989 = vpop.f32.mrb[0].mxu0
        %v1990 = vadd.f32 0.0, %v1989
        %v1991 = vpop.f32.mrb[0].mxu0
        %1992 = vmatprep.mubr.f32.mxu0 0.0
        %1993 = vmatmul.mubr.f32.gmra.mrb[0].mxu0 %v1869
        %v1994 = vpop.f32.mrb[0].mxu0
        %v1995 = vadd.f32 0.0, %v1994
        %v1996 = vpop.f32.mrb[0].mxu0
        %1997 = vmatprep.mubr.f32.mxu0 0.0
        %1998 = vmatmul.mubr.f32.gmra.mrb[0].mxu0 %v1872
        %v1999 = vpop.f32.mrb[0].mxu0
        %v2000 = vadd.f32 0.0, %v1999
        %v2001 = vpop.f32.mrb[0].mxu0
        %2002 = vmatprep.mubr.f32.mxu0 0.0
        %2003 = vmatmul.mubr.f32.gmra.mrb[0].mxu0 %v1875
        %v2004 = vpop.f32.mrb[0].mxu0
        %v2005 = vadd.f32 0.0, %v2004
        %v2006 = vpop.f32.mrb[0].mxu0
        %2007 = vmatprep.mubr.f32.mxu0 0.0
        %2008 = vmatmul.mubr.f32.gmra.mrb[0].mxu0 %v1878
        %v2009 = vpop.f32.mrb[0].mxu0
        %v2010 = vadd.f32 0.0, %v2009
        %v2011 = vpop.f32.mrb[0].mxu0
        %2012 = vmatprep.mubr.f32.mxu0 0.0
        %2013 = vmatmul.mubr.f32.gmra.mrb[0].mxu0 %v1881
        %v2014 = vpop.f32.mrb[0].mxu0
        %v2015 = vadd.f32 0.0, %v2014
        %v2016 = vpop.f32.mrb[0].mxu0
        %2017 = vdwg.mxu0
        %2018 = vst.msk [vmem:[#allocation4] sm:$0xff] %vm1840, %v1950
        %2019 = vst.msk [vmem:[#allocation4 + $0x8] sm:$0xff] %vm1840, %v1955
        %2020 = vst.msk [vmem:[#allocation4 + $0x10] sm:$0xff] %vm1840, %v1960
        %2021 = vst.msk [vmem:[#allocation4 + $0x18] sm:$0xff] %vm1840, %v1965
        %2022 = vst.msk [vmem:[#allocation4 + $0x20] sm:$0xff] %vm1840, %v1970
        %2023 = vst.msk [vmem:[#allocation4 + $0x28] sm:$0xff] %vm1840, %v1975
        %2024 = vst.msk [vmem:[#allocation4 + $0x30] sm:$0xff] %vm1840, %v1980
        %2025 = vst.msk [vmem:[#allocation4 + $0x38] sm:$0xff] %vm1840, %v1985
        %2026 = vst.msk [vmem:[#allocation4 + $0x40] sm:$0xff] %vm1840, %v1990
        %2027 = vst.msk [vmem:[#allocation4 + $0x48] sm:$0xff] %vm1840, %v1995
        %2028 = vst.msk [vmem:[#allocation4 + $0x50] sm:$0xff] %vm1840, %v2000
        %2029 = vst.msk [vmem:[#allocation4 + $0x58] sm:$0xff] %vm1840, %v2005
        %2030 = vst.msk [vmem:[#allocation4 + $0x60] sm:$0xff] %vm1840, %v2010
        %vm2031 = vcmask 128000
        %2032 = vst.msk [vmem:[#allocation4 + $0x68] sm:$0x3f] %vm2031, %v2015
        %2033 = vst.msk [vmem:[#allocation4 + $0x6e] sm:$0xff] %vm1840, 0.0
        %v2034 = vld [vmem:[#allocation4 + $0x1] sm:$0xff]
        %v2035 = vld [vmem:[#allocation4 + $0x9] sm:$0xff]
        %v2036 = vld [vmem:[#allocation4 + $0x11] sm:$0xff]
        %v2037 = vld [vmem:[#allocation4 + $0x19] sm:$0xff]
        %v2038 = vld [vmem:[#allocation4 + $0x21] sm:$0xff]
        %v2039 = vld [vmem:[#allocation4 + $0x29] sm:$0xff]
        %v2040 = vld [vmem:[#allocation4 + $0x31] sm:$0xff]
        %v2041 = vld [vmem:[#allocation4 + $0x39] sm:$0xff]
        %v2042 = vld [vmem:[#allocation4 + $0x41] sm:$0xff]
        %v2043 = vld [vmem:[#allocation4 + $0x49] sm:$0xff]
        %v2044 = vld [vmem:[#allocation4 + $0x51] sm:$0xff]
        %v2045 = vld [vmem:[#allocation4 + $0x59] sm:$0xff]
        %v2046 = vld [vmem:[#allocation4 + $0x61] sm:$0xff]
        %v2047 = vld [vmem:[#allocation4 + $0x69] sm:$0x3f]
        %v2048 = vmax.f32 %v1950, %v2034
        %v2049 = vmax.f32 %v1955, %v2035
        %v2050 = vmax.f32 %v1960, %v2036
        %v2051 = vmax.f32 %v1965, %v2037
        %v2052 = vmax.f32 %v1970, %v2038
        %v2053 = vmax.f32 %v1975, %v2039
        %v2054 = vmax.f32 %v1980, %v2040
        %v2055 = vmax.f32 %v1985, %v2041
        %v2056 = vmax.f32 %v1990, %v2042
        %v2057 = vmax.f32 %v1995, %v2043
        %v2058 = vmax.f32 %v2000, %v2044
        %v2059 = vmax.f32 %v2005, %v2045
        %v2060 = vmax.f32 %v2010, %v2046
        %v2061 = vmax.f32 %v2015, %v2047
        %2062 = vst.msk [vmem:[#allocation4] sm:$0xff] %vm1840, %v2048
        %2063 = vst.msk [vmem:[#allocation4 + $0x8] sm:$0xff] %vm1840, %v2049
        %2064 = vst.msk [vmem:[#allocation4 + $0x10] sm:$0xff] %vm1840, %v2050
        %2065 = vst.msk [vmem:[#allocation4 + $0x18] sm:$0xff] %vm1840, %v2051
        %2066 = vst.msk [vmem:[#allocation4 + $0x20] sm:$0xff] %vm1840, %v2052
        %2067 = vst.msk [vmem:[#allocation4 + $0x28] sm:$0xff] %vm1840, %v2053
        %2068 = vst.msk [vmem:[#allocation4 + $0x30] sm:$0xff] %vm1840, %v2054
        %2069 = vst.msk [vmem:[#allocation4 + $0x38] sm:$0xff] %vm1840, %v2055
        %2070 = vst.msk [vmem:[#allocation4 + $0x40] sm:$0xff] %vm1840, %v2056
        %2071 = vst.msk [vmem:[#allocation4 + $0x48] sm:$0xff] %vm1840, %v2057
        %2072 = vst.msk [vmem:[#allocation4 + $0x50] sm:$0xff] %vm1840, %v2058
        %2073 = vst.msk [vmem:[#allocation4 + $0x58] sm:$0xff] %vm1840, %v2059
        %2074 = vst.msk [vmem:[#allocation4 + $0x60] sm:$0xff] %vm1840, %v2060
        %2075 = vst.msk [vmem:[#allocation4 + $0x68] sm:$0x3f] %vm2031, %v2061
        %v2076 = vld [vmem:[#allocation4 + $0x2] sm:$0xff]
        %v2077 = vld [vmem:[#allocation4 + $0xa] sm:$0xff]
        %v2078 = vld [vmem:[#allocation4 + $0x12] sm:$0xff]
        %v2079 = vld [vmem:[#allocation4 + $0x1a] sm:$0xff]
        %v2080 = vld [vmem:[#allocation4 + $0x22] sm:$0xff]
        %v2081 = vld [vmem:[#allocation4 + $0x2a] sm:$0xff]
        %v2082 = vld [vmem:[#allocation4 + $0x32] sm:$0xff]
        %v2083 = vld [vmem:[#allocation4 + $0x3a] sm:$0xff]
        %v2084 = vld [vmem:[#allocation4 + $0x42] sm:$0xff]
        %v2085 = vld [vmem:[#allocation4 + $0x4a] sm:$0xff]
        %v2086 = vld [vmem:[#allocation4 + $0x52] sm:$0xff]
        %v2087 = vld [vmem:[#allocation4 + $0x5a] sm:$0xff]
        %v2088 = vld [vmem:[#allocation4 + $0x62] sm:$0xff]
        %v2089 = vld [vmem:[#allocation4 + $0x6a] sm:$0x3f]
        %v2090 = vmax.f32 %v2048, %v2076
        %v2091 = vmax.f32 %v2049, %v2077
        %v2092 = vmax.f32 %v2050, %v2078
        %v2093 = vmax.f32 %v2051, %v2079
        %v2094 = vmax.f32 %v2052, %v2080
        %v2095 = vmax.f32 %v2053, %v2081
        %v2096 = vmax.f32 %v2054, %v2082
        %v2097 = vmax.f32 %v2055, %v2083
        %v2098 = vmax.f32 %v2056, %v2084
        %v2099 = vmax.f32 %v2057, %v2085
        %v2100 = vmax.f32 %v2058, %v2086
        %v2101 = vmax.f32 %v2059, %v2087
        %v2102 = vmax.f32 %v2060, %v2088
        %v2103 = vmax.f32 %v2061, %v2089
        %2104 = vst.msk [vmem:[#allocation4] sm:$0xff] %vm1840, %v2090
        %2105 = vst.msk [vmem:[#allocation4 + $0x8] sm:$0xff] %vm1840, %v2091
        %2106 = vst.msk [vmem:[#allocation4 + $0x10] sm:$0xff] %vm1840, %v2092
        %2107 = vst.msk [vmem:[#allocation4 + $0x18] sm:$0xff] %vm1840, %v2093
        %2108 = vst.msk [vmem:[#allocation4 + $0x20] sm:$0xff] %vm1840, %v2094
        %2109 = vst.msk [vmem:[#allocation4 + $0x28] sm:$0xff] %vm1840, %v2095
        %2110 = vst.msk [vmem:[#allocation4 + $0x30] sm:$0xff] %vm1840, %v2096
        %2111 = vst.msk [vmem:[#allocation4 + $0x38] sm:$0xff] %vm1840, %v2097
        %2112 = vst.msk [vmem:[#allocation4 + $0x40] sm:$0xff] %vm1840, %v2098
        %2113 = vst.msk [vmem:[#allocation4 + $0x48] sm:$0xff] %vm1840, %v2099
        %2114 = vst.msk [vmem:[#allocation4 + $0x50] sm:$0xff] %vm1840, %v2100
        %2115 = vst.msk [vmem:[#allocation4 + $0x58] sm:$0xff] %vm1840, %v2101
        %2116 = vst.msk [vmem:[#allocation4 + $0x60] sm:$0xff] %vm1840, %v2102
        %2117 = vst.msk [vmem:[#allocation4 + $0x68] sm:$0x3f] %vm2031, %v2103
        %v2118 = vld [vmem:[#allocation4 + $0x1] sm:$0xff]
        %v2119 = vld [vmem:[#allocation4 + $0x9] sm:$0xff]
        %v2120 = vld [vmem:[#allocation4 + $0x11] sm:$0xff]
        %v2121 = vld [vmem:[#allocation4 + $0x19] sm:$0xff]
        %v2122 = vld [vmem:[#allocation4 + $0x21] sm:$0xff]
        %v2123 = vld [vmem:[#allocation4 + $0x29] sm:$0xff]
        %v2124 = vld [vmem:[#allocation4 + $0x31] sm:$0xff]
        %v2125 = vld [vmem:[#allocation4 + $0x39] sm:$0xff]
        %v2126 = vld [vmem:[#allocation4 + $0x41] sm:$0xff]
        %v2127 = vld [vmem:[#allocation4 + $0x49] sm:$0xff]
        %v2128 = vld [vmem:[#allocation4 + $0x51] sm:$0xff]
        %v2129 = vld [vmem:[#allocation4 + $0x59] sm:$0xff]
        %v2130 = vld [vmem:[#allocation4 + $0x61] sm:$0xff]
        %v2131 = vld [vmem:[#allocation4 + $0x69] sm:$0x3f]
        %v2132 = vmax.f32 %v2090, %v2118
        %v2133 = vmax.f32 %v2091, %v2119
        %v2134 = vmax.f32 %v2092, %v2120
        %v2135 = vmax.f32 %v2093, %v2121
        %v2136 = vmax.f32 %v2094, %v2122
        %v2137 = vmax.f32 %v2095, %v2123
        %v2138 = vmax.f32 %v2096, %v2124
        %v2139 = vmax.f32 %v2097, %v2125
        %v2140 = vmax.f32 %v2098, %v2126
        %v2141 = vmax.f32 %v2099, %v2127
        %v2142 = vmax.f32 %v2100, %v2128
        %v2143 = vmax.f32 %v2101, %v2129
        %v2144 = vmax.f32 %v2102, %v2130
        %v2145 = vmax.f32 %v2103, %v2131
        %2146 = vst.msk [vmem:[#allocation4] sm:$0xff] %vm1840, %v2132
        %2147 = vst.msk [vmem:[#allocation4 + $0x8] sm:$0xff] %vm1840, %v2133
        %2148 = vst.msk [vmem:[#allocation4 + $0x10] sm:$0xff] %vm1840, %v2134
        %2149 = vst.msk [vmem:[#allocation4 + $0x18] sm:$0xff] %vm1840, %v2135
        %2150 = vst.msk [vmem:[#allocation4 + $0x20] sm:$0xff] %vm1840, %v2136
        %2151 = vst.msk [vmem:[#allocation4 + $0x28] sm:$0xff] %vm1840, %v2137
        %2152 = vst.msk [vmem:[#allocation4 + $0x30] sm:$0xff] %vm1840, %v2138
        %2153 = vst.msk [vmem:[#allocation4 + $0x38] sm:$0xff] %vm1840, %v2139
        %2154 = vst.msk [vmem:[#allocation4 + $0x40] sm:$0xff] %vm1840, %v2140
        %2155 = vst.msk [vmem:[#allocation4 + $0x48] sm:$0xff] %vm1840, %v2141
        %2156 = vst.msk [vmem:[#allocation4 + $0x50] sm:$0xff] %vm1840, %v2142
        %2157 = vst.msk [vmem:[#allocation4 + $0x58] sm:$0xff] %vm1840, %v2143
        %2158 = vst.msk [vmem:[#allocation4 + $0x60] sm:$0xff] %vm1840, %v2144
        %2159 = vst.msk [vmem:[#allocation4 + $0x68] sm:$0x3f] %vm2031, %v2145
        %v2160 = vld [vmem:[#allocation4] ss:$5 sm:$0xff]
        %s2161 = scalar_lea.vmem [#allocation4], 40
        %v2162 = vld [vmem:[%s2161] ss:$5 sm:$0xff]
        %s2163 = scalar_lea.vmem [#allocation4], 80
        %v2164 = vld [vmem:[%s2163] ss:$5 sm:$0x3f]
        %v2165 = vlaneseq
        %v2166 = vshrl.u32 %v2165, 7
        %v2167 = vsub.s32 0, %v2166
        %v2168 = vrot.slane %v1839, %v2167
        %v2169 = vadd.f32 %v2160, %v2168
        %v2170 = vadd.f32 %v2162, %v2168
        %v2171 = vadd.f32 %v2164, %v2168
        %v2172 = vmax.f32 %v2169, 0.0
        %v2173 = vmax.f32 %v2170, 0.0
        %v2174 = vmax.f32 %v2171, 0.0
        %2175 = vst.msk [vmem:[#allocation5] sm:$0xff] %vm1840, %v2172
        %2176 = vst.msk [vmem:[#allocation5 + $0x8] sm:$0xff] %vm1840, %v2173
        %2177 = vst.msk [vmem:[#allocation5 + $0x10] sm:$0x3f] %vm2031, %v2174
        %v2178 = vld [vmem:[#allocation5 + $0x1] sm:$0xff]
        %v2179 = vld [vmem:[#allocation5 + $0x9] sm:$0xff]
        %v2180 = vld [vmem:[#allocation5 + $0x11] sm:$0x1f]
        %2184 = vrot.lane.b32.xlu0 %v2178, 16
        %v2185 = vpop.permute.xlu0 %2184
        %2186 = vrot.lane.b32.xlu0 %v2179, 16
        %v2187 = vpop.permute.xlu0 %2186
        %2188 = vrot.lane.b32.xlu0 %v2180, 16
        %v2189 = vpop.permute.xlu0 %2188
        %vm2193 = vcmask 261248
        %2194 = vst.msk [vmem:[#allocation5] sm:$0xff] %vm2193, %v2185
        %2195 = vst.msk [vmem:[#allocation5 + $0x8] sm:$0xff] %vm2193, %v2187
        %vm2196 = vcmask 258176
        %2197 = vst.msk [vmem:[#allocation5 + $0x10] sm:$0x1f] %vm2196, %v2189
        %vm2198 = vcmask 254080
        %2199 = vst.msk [vmem:[#allocation5 + $0x15] sm:$0x1] %vm2198, 0.0
        %v2200 = vld [vmem:[#allocation5] sm:$0xff]
        %v2201 = vld [vmem:[#allocation5 + $0x8] sm:$0xff]
        %v2202 = vld [vmem:[#allocation5 + $0x10] sm:$0x3f]
        %v2203 = vld [vmem:[%s3] sm:$0xff]
        %v2204 = vld [vmem:[%s3 + $0x8] sm:$0xff]
        %v2205 = vld [vmem:[%s3 + $0x10] sm:$0xff]
        %v2206 = vld [vmem:[%s3 + $0x18] sm:$0xff]
        %v2207 = vld [vmem:[%s3 + $0x20] sm:$0x1]
        %vm2208 = vcmask 261120
        %v2210 = vsel %vm2208, %v2200, 0
        %v2213 = vsel %vm2208, %v2201, 0
        %v2216 = vsel %vm2208, %v2202, 0
        %2218 = vmatprep.subr.mxu0 0.0
        %2219 = vmatpush1.msra.mxu0 %v2203
        %2220 = vmatprep.subr.mxu0 0.0
        %2221 = vmatpush1.msra.mxu0 %v2204
        %2222 = vmatprep.subr.mxu0 0.0
        %2223 = vmatpush1.msra.mxu0 %v2205
        %2224 = vmatprep.subr.mxu0 0.0
        %2225 = vmatpush1.msra.mxu0 %v2206
        %2226 = vmatprep.subr.mxu0 0.0
        %2227 = vmatpush1.msra.mxu0 0.0
        %2228 = vmatprep.subr.mxu0 0.0
        %2229 = vmatpush1.msra.mxu0 0.0
        %2230 = vmatprep.subr.mxu0 0.0
        %2231 = vmatpush1.msra.mxu0 0.0
        %2232 = vmatprep.subr.mxu0 0.0
        %2233 = vmatpush1.msra.mxu0 0.0
        %2234 = vmatprep.subr.mxu0 0.0
        %2235 = vmatpush1.msra.mxu0 0.0
        %2236 = vmatprep.subr.mxu0 0.0
        %2237 = vmatpush1.msra.mxu0 0.0
        %2238 = vmatprep.subr.mxu0 0.0
        %2239 = vmatpush1.msra.mxu0 0.0
        %2240 = vmatprep.subr.mxu0 0.0
        %2241 = vmatpush1.msra.mxu0 0.0
        %2242 = vmatprep.subr.mxu0 0.0
        %2243 = vmatpush1.msra.mxu0 0.0
        %2244 = vmatprep.subr.mxu0 0.0
        %2245 = vmatpush1.msra.mxu0 0.0
        %2246 = vmatprep.subr.mxu0 0.0
        %2247 = vmatpush1.msra.mxu0 0.0
        %2248 = vmatprep.subr.mxu0 0.0
        %2249 = vmatpush1.msra.mxu0 0.0
        %2250 = vmatprep.subr.mxu0 0.0
        %2251 = vmatpush1.msra.mxu0 0.0
        %2252 = vmatprep.subr.mxu0 0.0
        %2253 = vmatpush1.msra.mxu0 0.0
        %2254 = vmatprep.subr.mxu0 0.0
        %2255 = vmatpush1.msra.mxu0 0.0
        %2256 = vmatprep.subr.mxu0 0.0
        %2257 = vmatpush1.msra.mxu0 0.0
        %2258 = vmatprep.subr.mxu0 0.0
        %2259 = vmatpush1.msra.mxu0 0.0
        %2260 = vmatprep.subr.mxu0 0.0
        %2261 = vmatpush1.msra.mxu0 0.0
        %2262 = vmatprep.subr.mxu0 0.0
        %2263 = vmatpush1.msra.mxu0 0.0
        %2264 = vmatprep.subr.mxu0 0.0
        %2265 = vmatpush1.msra.mxu0 0.0
        %2266 = vmatprep.subr.mxu0 0.0
        %2267 = vmatpush1.msra.mxu0 0.0
        %2268 = vmatprep.subr.mxu0 0.0
        %2269 = vmatpush1.msra.mxu0 0.0
        %2270 = vmatprep.subr.mxu0 0.0
        %2271 = vmatpush1.msra.mxu0 0.0
        %2272 = vmatprep.subr.mxu0 0.0
        %2273 = vmatpush1.msra.mxu0 0.0
        %2274 = vmatprep.subr.mxu0 0.0
        %2275 = vmatpush1.msra.mxu0 0.0
        %2276 = vmatprep.subr.mxu0 0.0
        %2277 = vmatpush1.msra.mxu0 0.0
        %2278 = vmatprep.subr.mxu0 0.0
        %2279 = vmatpush1.msra.mxu0 0.0
        %2280 = vmatprep.subr.mxu0 0.0
        %2281 = vmatpush1.msra.mxu0 0.0
        %2282 = vmatprep.mubr.f32.mxu0 0.0
        %2283 = vmatmul.mubr.f32.gmra.mrb[0].mxu0 %v2210
        %v2284 = vpop.f32.mrb[0].mxu0
        %v2285 = vadd.f32 0.0, %v2284
        %v2286 = vpop.f32.mrb[0].mxu0
        %2287 = vmatprep.mubr.f32.mxu0 0.0
        %2288 = vmatmul.mubr.f32.gmra.mrb[0].mxu0 %v2213
        %v2289 = vpop.f32.mrb[0].mxu0
        %v2290 = vadd.f32 0.0, %v2289
        %v2291 = vpop.f32.mrb[0].mxu0
        %2292 = vmatprep.mubr.f32.mxu0 0.0
        %2293 = vmatmul.mubr.f32.gmra.mrb[0].mxu0 %v2216
        %v2294 = vpop.f32.mrb[0].mxu0
        %v2295 = vadd.f32 0.0, %v2294
        %v2296 = vpop.f32.mrb[0].mxu0
        %2297 = vdwg.mxu0
        %2298 = vst.msk [vmem:[#allocation6] sm:$0xff] %vm1840, %v2285
        %2299 = vst.msk [vmem:[#allocation6 + $0x8] sm:$0xff] %vm1840, %v2290
        %2300 = vst.msk [vmem:[#allocation6 + $0x10] sm:$0x3f] %vm2031, %v2295
        %2301 = vst.msk [vmem:[#allocation6 + $0x16] sm:$0xff] %vm1840, 0.0
        %v2302 = vld [vmem:[#allocation6 + $0x1] sm:$0xff]
        %v2303 = vld [vmem:[#allocation6 + $0x9] sm:$0xff]
        %v2304 = vld [vmem:[#allocation6 + $0x11] sm:$0x3f]
        %v2305 = vmax.f32 %v2285, %v2302
        %v2306 = vmax.f32 %v2290, %v2303
        %v2307 = vmax.f32 %v2295, %v2304
        %2308 = vst.msk [vmem:[#allocation6] sm:$0xff] %vm1840, %v2305
        %2309 = vst.msk [vmem:[#allocation6 + $0x8] sm:$0xff] %vm1840, %v2306
        %2310 = vst.msk [vmem:[#allocation6 + $0x10] sm:$0x3f] %vm2031, %v2307
        %v2311 = vld [vmem:[#allocation6] ss:$2 sm:$0xff]
        %s2312 = scalar_lea.vmem [#allocation6], 16
        %v2313 = vld [vmem:[%s2312] ss:$2 sm:$0x7]
        %v2314 = vlaneseq
        %v2315 = vshrl.u32 %v2314, 7
        %v2316 = vsub.s32 0, %v2315
        %v2317 = vrot.slane %v2207, %v2316
        %v2318 = vadd.f32 %v2311, %v2317
        %v2319 = vadd.f32 %v2313, %v2317
        %v2320 = vmax.f32 %v2318, 0.0
        %v2321 = vmax.f32 %v2319, 0.0
        %v2322 = vld [vmem:[%s4] sm:$0xff]
        %v2323 = vld [vmem:[%s4 + $0x8] sm:$0xff]
        %v2324 = vld [vmem:[%s4 + $0x10] sm:$0xff]
        %v2325 = vld [vmem:[%s4 + $0x18] sm:$0xff]
        %v2326 = vld [vmem:[%s4 + $0x20] sm:$0xff]
        %v2327 = vld [vmem:[%s4 + $0x28] sm:$0xff]
        %v2328 = vld [vmem:[%s4 + $0x30] sm:$0x1]
        %v2329 = vld [vmem:[%s4 + $0x31] sm:$0x1]
        %vm2330 = vcmp.gt.f32.partialorder %v2329, 0.5
        %v2331 = vlaneseq
        %v2332 = vshrl.u32 %v2331, 7
        %v2333 = vsub.s32 0, %v2332
        %v2334 = vrot.slane %v2328, %v2333
        %v2336 = vsel %vm1840, %v2320, 0
        %v2339 = vsel %vm1840, %v2321, 0
        %2341 = vmatprep.subr.mxu0 0.0
        %2342 = vmatpush1.msra.mxu0 %v2322
        %2343 = vmatprep.subr.mxu0 0.0
        %2344 = vmatpush1.msra.mxu0 %v2323
        %2345 = vmatprep.subr.mxu0 0.0
        %2346 = vmatpush1.msra.mxu0 0.0
        %2347 = vmatprep.subr.mxu0 0.0
        %2348 = vmatpush1.msra.mxu0 0.0
        %2349 = vmatprep.subr.mxu0 0.0
        %2350 = vmatpush1.msra.mxu0 0.0
        %2351 = vmatprep.subr.mxu0 0.0
        %2352 = vmatpush1.msra.mxu0 0.0
        %2353 = vmatprep.subr.mxu0 0.0
        %2354 = vmatpush1.msra.mxu0 0.0
        %2355 = vmatprep.subr.mxu0 0.0
        %2356 = vmatpush1.msra.mxu0 0.0
        %2357 = vmatprep.subr.mxu0 0.0
        %2358 = vmatpush1.msra.mxu0 0.0
        %2359 = vmatprep.subr.mxu0 0.0
        %2360 = vmatpush1.msra.mxu0 0.0
        %2361 = vmatprep.subr.mxu0 0.0
        %2362 = vmatpush1.msra.mxu0 0.0
        %2363 = vmatprep.subr.mxu0 0.0
        %2364 = vmatpush1.msra.mxu0 0.0
        %2365 = vmatprep.subr.mxu0 0.0
        %2366 = vmatpush1.msra.mxu0 0.0
        %2367 = vmatprep.subr.mxu0 0.0
        %2368 = vmatpush1.msra.mxu0 0.0
        %2369 = vmatprep.subr.mxu0 0.0
        %2370 = vmatpush1.msra.mxu0 0.0
        %2371 = vmatprep.subr.mxu0 0.0
        %2372 = vmatpush1.msra.mxu0 0.0
        %2373 = vmatprep.subr.mxu0 0.0
        %2374 = vmatpush1.msra.mxu0 0.0
        %2375 = vmatprep.subr.mxu0 0.0
        %2376 = vmatpush1.msra.mxu0 0.0
        %2377 = vmatprep.subr.mxu0 0.0
        %2378 = vmatpush1.msra.mxu0 0.0
        %2379 = vmatprep.subr.mxu0 0.0
        %2380 = vmatpush1.msra.mxu0 0.0
        %2381 = vmatprep.subr.mxu0 0.0
        %2382 = vmatpush1.msra.mxu0 0.0
        %2383 = vmatprep.subr.mxu0 0.0
        %2384 = vmatpush1.msra.mxu0 0.0
        %2385 = vmatprep.subr.mxu0 0.0
        %2386 = vmatpush1.msra.mxu0 0.0
        %2387 = vmatprep.subr.mxu0 0.0
        %2388 = vmatpush1.msra.mxu0 0.0
        %2389 = vmatprep.subr.mxu0 0.0
        %2390 = vmatpush1.msra.mxu0 0.0
        %2391 = vmatprep.subr.mxu0 0.0
        %2392 = vmatpush1.msra.mxu0 0.0
        %2393 = vmatprep.subr.mxu0 0.0
        %2394 = vmatpush1.msra.mxu0 0.0
        %2395 = vmatprep.subr.mxu0 0.0
        %2396 = vmatpush1.msra.mxu0 0.0
        %2397 = vmatprep.subr.mxu0 0.0
        %2398 = vmatpush1.msra.mxu0 0.0
        %2399 = vmatprep.subr.mxu0 0.0
        %2400 = vmatpush1.msra.mxu0 0.0
        %2401 = vmatprep.subr.mxu0 0.0
        %2402 = vmatpush1.msra.mxu0 0.0
        %2403 = vmatprep.subr.mxu0 0.0
        %2404 = vmatpush1.msra.mxu0 0.0
        %2405 = vmatprep.mubr.f32.mxu0 0.0
        %2406 = vmatmul.mubr.f32.gmra.mrb[0].mxu0 %v2336
        %v2407 = vpop.f32.mrb[0].mxu0
        %v2408 = vadd.f32 %v2334, %v2407
        %v2409 = vpop.f32.mrb[0].mxu0
        %2410 = vmatprep.mubr.f32.mxu0 0.0
        %2411 = vmatmul.mubr.f32.gmra.mrb[0].mxu0 %v2339
        %v2412 = vpop.f32.mrb[0].mxu0
        %v2413 = vadd.f32 %v2334, %v2412
        %v2414 = vpop.f32.mrb[0].mxu0
        %2415 = vdwg.mxu0
        %2416 = vst [vmem:[#allocation7] sm:$0xff] %v2408
        %2417 = vst [vmem:[#allocation7 + $0x8] sm:$0x7] %v2413
        %v2418 = vld [vmem:[#allocation7] sm:$0x1]
        %v2419 = vld [vmem:[#allocation7 + $0xa] sm:$0x1]
        %v2420 = vsel %vm2330, %v2418, %v2419
        %2421 = vst [vmem:[#allocation8] sm:$0x1] %v2420
        %v2422 = vld [vmem:[#allocation7 + $0x1] sm:$0x1]
        %v2423 = vld [vmem:[#allocation7 + $0x9] sm:$0x1]
        %v2424 = vsel %vm2330, %v2422, %v2423
        %2425 = vst [vmem:[#allocation8 + $0x1] sm:$0x1] %v2424
        %v2426 = vld [vmem:[#allocation7 + $0x2] sm:$0x1]
        %v2427 = vld [vmem:[#allocation7 + $0x8] sm:$0x1]
        %v2428 = vsel %vm2330, %v2426, %v2427
        %2429 = vst [vmem:[#allocation8 + $0x2] sm:$0x1] %v2428
        %v2430 = vld [vmem:[#allocation7 + $0x3] sm:$0x1]
        %v2431 = vld [vmem:[#allocation7 + $0x7] sm:$0x1]
        %v2432 = vsel %vm2330, %v2430, %v2431
        %2433 = vst [vmem:[#allocation8 + $0x3] sm:$0x1] %v2432
        %v2434 = vld [vmem:[#allocation7 + $0x4] sm:$0x1]
        %v2435 = vld [vmem:[#allocation7 + $0x6] sm:$0x1]
        %v2436 = vsel %vm2330, %v2434, %v2435
        %2437 = vst [vmem:[#allocation8 + $0x4] sm:$0x1] %v2436
        %v2438 = vld [vmem:[#allocation7 + $0x5] sm:$0x1]
        %2439 = vst [vmem:[#allocation8 + $0x5] sm:$0x1] %v2438
        %v2440 = vld [vmem:[#allocation7 + $0x6] sm:$0x1]
        %v2441 = vld [vmem:[#allocation7 + $0x4] sm:$0x1]
        %v2442 = vsel %vm2330, %v2440, %v2441
        %2443 = vst [vmem:[#allocation8 + $0x6] sm:$0x1] %v2442
        %v2444 = vld [vmem:[#allocation7 + $0x7] sm:$0x1]
        %v2445 = vld [vmem:[#allocation7 + $0x3] sm:$0x1]
        %v2446 = vsel %vm2330, %v2444, %v2445
        %2447 = vst [vmem:[#allocation8 + $0x7] sm:$0x1] %v2446
        %v2448 = vld [vmem:[#allocation7 + $0x8] sm:$0x1]
        %v2449 = vld [vmem:[#allocation7 + $0x2] sm:$0x1]
        %v2450 = vsel %vm2330, %v2448, %v2449
        %2451 = vst [vmem:[#allocation8 + $0x8] sm:$0x1] %v2450
        %v2452 = vld [vmem:[#allocation7 + $0x9] sm:$0x1]
        %v2453 = vld [vmem:[#allocation7 + $0x1] sm:$0x1]
        %v2454 = vsel %vm2330, %v2452, %v2453
        %2455 = vst [vmem:[#allocation8 + $0x9] sm:$0x1] %v2454
        %v2456 = vld [vmem:[#allocation7 + $0xa] sm:$0x1]
        %v2457 = vld [vmem:[#allocation7] sm:$0x1]
        %v2458 = vsel %vm2330, %v2456, %v2457
        %2459 = vst [vmem:[#allocation8 + $0xa] sm:$0x1] %v2458
        %v2460 = vld [vmem:[#allocation8] sm:$0x1]
        %v2462 = vsel %vm2208, 0.0, 0
        %2464 = vmatprep.subr.mxu0 0.0
        %2465 = vmatpush1.msra.mxu0 %v2324
        %2466 = vmatprep.subr.mxu0 0.0
        %2467 = vmatpush1.msra.mxu0 %v2325
        %2468 = vmatprep.subr.mxu0 0.0
        %2469 = vmatpush1.msra.mxu0 %v2326
        %2470 = vmatprep.subr.mxu0 0.0
        %2471 = vmatpush1.msra.mxu0 %v2327
        %2472 = vmatprep.subr.mxu0 0.0
        %2473 = vmatpush1.msra.mxu0 0.0
        %2474 = vmatprep.subr.mxu0 0.0
        %2475 = vmatpush1.msra.mxu0 0.0
        %2476 = vmatprep.subr.mxu0 0.0
        %2477 = vmatpush1.msra.mxu0 0.0
        %2478 = vmatprep.subr.mxu0 0.0
        %2479 = vmatpush1.msra.mxu0 0.0
        %2480 = vmatprep.subr.mxu0 0.0
        %2481 = vmatpush1.msra.mxu0 0.0
        %2482 = vmatprep.subr.mxu0 0.0
        %2483 = vmatpush1.msra.mxu0 0.0
        %2484 = vmatprep.subr.mxu0 0.0
        %2485 = vmatpush1.msra.mxu0 0.0
        %2486 = vmatprep.subr.mxu0 0.0
        %2487 = vmatpush1.msra.mxu0 0.0
        %2488 = vmatprep.subr.mxu0 0.0
        %2489 = vmatpush1.msra.mxu0 0.0
        %2490 = vmatprep.subr.mxu0 0.0
        %2491 = vmatpush1.msra.mxu0 0.0
        %2492 = vmatprep.subr.mxu0 0.0
        %2493 = vmatpush1.msra.mxu0 0.0
        %2494 = vmatprep.subr.mxu0 0.0
        %2495 = vmatpush1.msra.mxu0 0.0
        %2496 = vmatprep.subr.mxu0 0.0
        %2497 = vmatpush1.msra.mxu0 0.0
        %2498 = vmatprep.subr.mxu0 0.0
        %2499 = vmatpush1.msra.mxu0 0.0
        %2500 = vmatprep.subr.mxu0 0.0
        %2501 = vmatpush1.msra.mxu0 0.0
        %2502 = vmatprep.subr.mxu0 0.0
        %2503 = vmatpush1.msra.mxu0 0.0
        %2504 = vmatprep.subr.mxu0 0.0
        %2505 = vmatpush1.msra.mxu0 0.0
        %2506 = vmatprep.subr.mxu0 0.0
        %2507 = vmatpush1.msra.mxu0 0.0
        %2508 = vmatprep.subr.mxu0 0.0
        %2509 = vmatpush1.msra.mxu0 0.0
        %2510 = vmatprep.subr.mxu0 0.0
        %2511 = vmatpush1.msra.mxu0 0.0
        %2512 = vmatprep.subr.mxu0 0.0
        %2513 = vmatpush1.msra.mxu0 0.0
        %2514 = vmatprep.subr.mxu0 0.0
        %2515 = vmatpush1.msra.mxu0 0.0
        %2516 = vmatprep.subr.mxu0 0.0
        %2517 = vmatpush1.msra.mxu0 0.0
        %2518 = vmatprep.subr.mxu0 0.0
        %2519 = vmatpush1.msra.mxu0 0.0
        %2520 = vmatprep.subr.mxu0 0.0
        %2521 = vmatpush1.msra.mxu0 0.0
        %2522 = vmatprep.subr.mxu0 0.0
        %2523 = vmatpush1.msra.mxu0 0.0
        %2524 = vmatprep.subr.mxu0 0.0
        %2525 = vmatpush1.msra.mxu0 0.0
        %2526 = vmatprep.subr.mxu0 0.0
        %2527 = vmatpush1.msra.mxu0 0.0
        %2528 = vmatprep.mubr.f32.mxu0 0.0
        %2529 = vmatmul.mubr.f32.gmra.mrb[0].mxu0 %v2462
        %v2530 = vpop.f32.mrb[0].mxu0
        %v2531 = vadd.f32 0.0, %v2530
        %v2532 = vpop.f32.mrb[0].mxu0
        %2533 = vdwg.mxu0
        %v2534 = vadd.f32 %v2460, %v2531
        %v2535 = vxor.u32 %v2534, 2147483648
        %v2536 = vmul.f32 %v2535, 1.442695
        %v2537 = vpow.pop %v2536
        %v2538 = vadd.f32 %v2537, 1.0
        %v2539 = vrcp.pop %v2538
        %v2540 = vmul.f32 1.0, %v2539
        %v2541 = vtanh.pop %v2534
        %v2542 = vmul.f32 %v2540, 0.0
        %2544 = vrot.lane.b32.xlu0 %v2541, 32
        %v2545 = vpop.permute.xlu0 %2544
        %v2547 = vmul.f32 %v2540, %v2545
        %2549 = vrot.lane.b32.xlu0 %v2547, 32
        %v2550 = vpop.permute.xlu0 %2549
        %v2552 = vadd.f32 %v2542, %v2550
        %v2553 = vtanh.pop %v2552
        %2555 = vrot.lane.b32.xlu0 %v2553, 32
        %v2556 = vpop.permute.xlu0 %2555
        %v2558 = vmul.f32 %v2540, %v2556
        %2560 = vrot.lane.b32.xlu0 %v2558, 64
        %v2561 = vpop.permute.xlu0 %2560
        %vm2563 = vcmask 253952
        %2564 = vst.msk [vmem:[#allocation9] sm:$0x1] %vm2563, %v2561
        %2565 = vst.msk [vmem:[#allocation10 + $0xa] sm:$0x1] %vm2563, %v2561
        %v2566 = vld [vmem:[#allocation8 + $0x1] sm:$0x1]
        %v2567 = vsel %vm2208, %v2561, 0
        %2569 = vmatprep.subr.mxu0 0.0
        %2570 = vmatpush1.msra.mxu0 %v2324
        %2571 = vmatprep.subr.mxu0 0.0
        %2572 = vmatpush1.msra.mxu0 %v2325
        %2573 = vmatprep.subr.mxu0 0.0
        %2574 = vmatpush1.msra.mxu0 %v2326
        %2575 = vmatprep.subr.mxu0 0.0
        %2576 = vmatpush1.msra.mxu0 %v2327
        %2577 = vmatprep.subr.mxu0 0.0
        %2578 = vmatpush1.msra.mxu0 0.0
        %2579 = vmatprep.subr.mxu0 0.0
        %2580 = vmatpush1.msra.mxu0 0.0
        %2581 = vmatprep.subr.mxu0 0.0
        %2582 = vmatpush1.msra.mxu0 0.0
        %2583 = vmatprep.subr.mxu0 0.0
        %2584 = vmatpush1.msra.mxu0 0.0
        %2585 = vmatprep.subr.mxu0 0.0
        %2586 = vmatpush1.msra.mxu0 0.0
        %2587 = vmatprep.subr.mxu0 0.0
        %2588 = vmatpush1.msra.mxu0 0.0
        %2589 = vmatprep.subr.mxu0 0.0
        %2590 = vmatpush1.msra.mxu0 0.0
        %2591 = vmatprep.subr.mxu0 0.0
        %2592 = vmatpush1.msra.mxu0 0.0
        %2593 = vmatprep.subr.mxu0 0.0
        %2594 = vmatpush1.msra.mxu0 0.0
        %2595 = vmatprep.subr.mxu0 0.0
        %2596 = vmatpush1.msra.mxu0 0.0
        %2597 = vmatprep.subr.mxu0 0.0
        %2598 = vmatpush1.msra.mxu0 0.0
        %2599 = vmatprep.subr.mxu0 0.0
        %2600 = vmatpush1.msra.mxu0 0.0
        %2601 = vmatprep.subr.mxu0 0.0
        %2602 = vmatpush1.msra.mxu0 0.0
        %2603 = vmatprep.subr.mxu0 0.0
        %2604 = vmatpush1.msra.mxu0 0.0
        %2605 = vmatprep.subr.mxu0 0.0
        %2606 = vmatpush1.msra.mxu0 0.0
        %2607 = vmatprep.subr.mxu0 0.0
        %2608 = vmatpush1.msra.mxu0 0.0
        %2609 = vmatprep.subr.mxu0 0.0
        %2610 = vmatpush1.msra.mxu0 0.0
        %2611 = vmatprep.subr.mxu0 0.0
        %2612 = vmatpush1.msra.mxu0 0.0
        %2613 = vmatprep.subr.mxu0 0.0
        %2614 = vmatpush1.msra.mxu0 0.0
        %2615 = vmatprep.subr.mxu0 0.0
        %2616 = vmatpush1.msra.mxu0 0.0
        %2617 = vmatprep.subr.mxu0 0.0
        %2618 = vmatpush1.msra.mxu0 0.0
        %2619 = vmatprep.subr.mxu0 0.0
        %2620 = vmatpush1.msra.mxu0 0.0
        %2621 = vmatprep.subr.mxu0 0.0
        %2622 = vmatpush1.msra.mxu0 0.0
        %2623 = vmatprep.subr.mxu0 0.0
        %2624 = vmatpush1.msra.mxu0 0.0
        %2625 = vmatprep.subr.mxu0 0.0
        %2626 = vmatpush1.msra.mxu0 0.0
        %2627 = vmatprep.subr.mxu0 0.0
        %2628 = vmatpush1.msra.mxu0 0.0
        %2629 = vmatprep.subr.mxu0 0.0
        %2630 = vmatpush1.msra.mxu0 0.0
        %2631 = vmatprep.subr.mxu0 0.0
        %2632 = vmatpush1.msra.mxu0 0.0
        %2633 = vmatprep.mubr.f32.mxu0 0.0
        %2634 = vmatmul.mubr.f32.gmra.mrb[0].mxu0 %v2567
        %v2635 = vpop.f32.mrb[0].mxu0
        %v2636 = vadd.f32 0.0, %v2635
        %v2637 = vpop.f32.mrb[0].mxu0
        %2638 = vdwg.mxu0
        %v2639 = vadd.f32 %v2566, %v2636
        %v2640 = vxor.u32 %v2639, 2147483648
        %v2641 = vmul.f32 %v2640, 1.442695
        %v2642 = vpow.pop %v2641
        %v2643 = vadd.f32 %v2642, 1.0
        %v2644 = vrcp.pop %v2643
        %v2645 = vmul.f32 1.0, %v2644
        %v2646 = vtanh.pop %v2639
        %v2647 = vmul.f32 %v2645, %v2552
        %2649 = vrot.lane.b32.xlu0 %v2646, 32
        %v2650 = vpop.permute.xlu0 %2649
        %v2652 = vmul.f32 %v2645, %v2650
        %2654 = vrot.lane.b32.xlu0 %v2652, 32
        %v2655 = vpop.permute.xlu0 %2654
        %v2657 = vadd.f32 %v2647, %v2655
        %v2658 = vtanh.pop %v2657
        %2660 = vrot.lane.b32.xlu0 %v2658, 32
        %v2661 = vpop.permute.xlu0 %2660
        %v2663 = vmul.f32 %v2645, %v2661
        %2665 = vrot.lane.b32.xlu0 %v2663, 64
        %v2666 = vpop.permute.xlu0 %2665
        %2668 = vst.msk [vmem:[#allocation9 + $0x1] sm:$0x1] %vm2563, %v2666
        %2669 = vst.msk [vmem:[#allocation10 + $0x9] sm:$0x1] %vm2563, %v2666
        %v2670 = vld [vmem:[#allocation8 + $0x2] sm:$0x1]
        %v2671 = vsel %vm2208, %v2666, 0
        %2673 = vmatprep.subr.mxu0 0.0
        %2674 = vmatpush1.msra.mxu0 %v2324
        %2675 = vmatprep.subr.mxu0 0.0
        %2676 = vmatpush1.msra.mxu0 %v2325
        %2677 = vmatprep.subr.mxu0 0.0
        %2678 = vmatpush1.msra.mxu0 %v2326
        %2679 = vmatprep.subr.mxu0 0.0
        %2680 = vmatpush1.msra.mxu0 %v2327
        %2681 = vmatprep.subr.mxu0 0.0
        %2682 = vmatpush1.msra.mxu0 0.0
        %2683 = vmatprep.subr.mxu0 0.0
        %2684 = vmatpush1.msra.mxu0 0.0
        %2685 = vmatprep.subr.mxu0 0.0
        %2686 = vmatpush1.msra.mxu0 0.0
        %2687 = vmatprep.subr.mxu0 0.0
        %2688 = vmatpush1.msra.mxu0 0.0
        %2689 = vmatprep.subr.mxu0 0.0
        %2690 = vmatpush1.msra.mxu0 0.0
        %2691 = vmatprep.subr.mxu0 0.0
        %2692 = vmatpush1.msra.mxu0 0.0
        %2693 = vmatprep.subr.mxu0 0.0
        %2694 = vmatpush1.msra.mxu0 0.0
        %2695 = vmatprep.subr.mxu0 0.0
        %2696 = vmatpush1.msra.mxu0 0.0
        %2697 = vmatprep.subr.mxu0 0.0
        %2698 = vmatpush1.msra.mxu0 0.0
        %2699 = vmatprep.subr.mxu0 0.0
        %2700 = vmatpush1.msra.mxu0 0.0
        %2701 = vmatprep.subr.mxu0 0.0
        %2702 = vmatpush1.msra.mxu0 0.0
        %2703 = vmatprep.subr.mxu0 0.0
        %2704 = vmatpush1.msra.mxu0 0.0
        %2705 = vmatprep.subr.mxu0 0.0
        %2706 = vmatpush1.msra.mxu0 0.0
        %2707 = vmatprep.subr.mxu0 0.0
        %2708 = vmatpush1.msra.mxu0 0.0
        %2709 = vmatprep.subr.mxu0 0.0
        %2710 = vmatpush1.msra.mxu0 0.0
        %2711 = vmatprep.subr.mxu0 0.0
        %2712 = vmatpush1.msra.mxu0 0.0
        %2713 = vmatprep.subr.mxu0 0.0
        %2714 = vmatpush1.msra.mxu0 0.0
        %2715 = vmatprep.subr.mxu0 0.0
        %2716 = vmatpush1.msra.mxu0 0.0
        %2717 = vmatprep.subr.mxu0 0.0
        %2718 = vmatpush1.msra.mxu0 0.0
        %2719 = vmatprep.subr.mxu0 0.0
        %2720 = vmatpush1.msra.mxu0 0.0
        %2721 = vmatprep.subr.mxu0 0.0
        %2722 = vmatpush1.msra.mxu0 0.0
        %2723 = vmatprep.subr.mxu0 0.0
        %2724 = vmatpush1.msra.mxu0 0.0
        %2725 = vmatprep.subr.mxu0 0.0
        %2726 = vmatpush1.msra.mxu0 0.0
        %2727 = vmatprep.subr.mxu0 0.0
        %2728 = vmatpush1.msra.mxu0 0.0
        %2729 = vmatprep.subr.mxu0 0.0
        %2730 = vmatpush1.msra.mxu0 0.0
        %2731 = vmatprep.subr.mxu0 0.0
        %2732 = vmatpush1.msra.mxu0 0.0
        %2733 = vmatprep.subr.mxu0 0.0
        %2734 = vmatpush1.msra.mxu0 0.0
        %2735 = vmatprep.subr.mxu0 0.0
        %2736 = vmatpush1.msra.mxu0 0.0
        %2737 = vmatprep.mubr.f32.mxu0 0.0
        %2738 = vmatmul.mubr.f32.gmra.mrb[0].mxu0 %v2671
        %v2739 = vpop.f32.mrb[0].mxu0
        %v2740 = vadd.f32 0.0, %v2739
        %v2741 = vpop.f32.mrb[0].mxu0
        %2742 = vdwg.mxu0
        %v2743 = vadd.f32 %v2670, %v2740
        %v2744 = vxor.u32 %v2743, 2147483648
        %v2745 = vmul.f32 %v2744, 1.442695
        %v2746 = vpow.pop %v2745
        %v2747 = vadd.f32 %v2746, 1.0
        %v2748 = vrcp.pop %v2747
        %v2749 = vmul.f32 1.0, %v2748
        %v2750 = vtanh.pop %v2743
        %v2751 = vmul.f32 %v2749, %v2657
        %2753 = vrot.lane.b32.xlu0 %v2750, 32
        %v2754 = vpop.permute.xlu0 %2753
        %v2756 = vmul.f32 %v2749, %v2754
        %2758 = vrot.lane.b32.xlu0 %v2756, 32
        %v2759 = vpop.permute.xlu0 %2758
        %v2761 = vadd.f32 %v2751, %v2759
        %v2762 = vtanh.pop %v2761
        %2764 = vrot.lane.b32.xlu0 %v2762, 32
        %v2765 = vpop.permute.xlu0 %2764
        %v2767 = vmul.f32 %v2749, %v2765
        %2769 = vrot.lane.b32.xlu0 %v2767, 64
        %v2770 = vpop.permute.xlu0 %2769
        %2772 = vst.msk [vmem:[#allocation9 + $0x2] sm:$0x1] %vm2563, %v2770
        %2773 = vst.msk [vmem:[#allocation10 + $0x8] sm:$0x1] %vm2563, %v2770
        %v2774 = vld [vmem:[#allocation8 + $0x3] sm:$0x1]
        %v2775 = vsel %vm2208, %v2770, 0
        %2777 = vmatprep.subr.mxu0 0.0
        %2778 = vmatpush1.msra.mxu0 %v2324
        %2779 = vmatprep.subr.mxu0 0.0
        %2780 = vmatpush1.msra.mxu0 %v2325
        %2781 = vmatprep.subr.mxu0 0.0
        %2782 = vmatpush1.msra.mxu0 %v2326
        %2783 = vmatprep.subr.mxu0 0.0
        %2784 = vmatpush1.msra.mxu0 %v2327
        %2785 = vmatprep.subr.mxu0 0.0
        %2786 = vmatpush1.msra.mxu0 0.0
        %2787 = vmatprep.subr.mxu0 0.0
        %2788 = vmatpush1.msra.mxu0 0.0
        %2789 = vmatprep.subr.mxu0 0.0
        %2790 = vmatpush1.msra.mxu0 0.0
        %2791 = vmatprep.subr.mxu0 0.0
        %2792 = vmatpush1.msra.mxu0 0.0
        %2793 = vmatprep.subr.mxu0 0.0
        %2794 = vmatpush1.msra.mxu0 0.0
        %2795 = vmatprep.subr.mxu0 0.0
        %2796 = vmatpush1.msra.mxu0 0.0
        %2797 = vmatprep.subr.mxu0 0.0
        %2798 = vmatpush1.msra.mxu0 0.0
        %2799 = vmatprep.subr.mxu0 0.0
        %2800 = vmatpush1.msra.mxu0 0.0
        %2801 = vmatprep.subr.mxu0 0.0
        %2802 = vmatpush1.msra.mxu0 0.0
        %2803 = vmatprep.subr.mxu0 0.0
        %2804 = vmatpush1.msra.mxu0 0.0
        %2805 = vmatprep.subr.mxu0 0.0
        %2806 = vmatpush1.msra.mxu0 0.0
        %2807 = vmatprep.subr.mxu0 0.0
        %2808 = vmatpush1.msra.mxu0 0.0
        %2809 = vmatprep.subr.mxu0 0.0
        %2810 = vmatpush1.msra.mxu0 0.0
        %2811 = vmatprep.subr.mxu0 0.0
        %2812 = vmatpush1.msra.mxu0 0.0
        %2813 = vmatprep.subr.mxu0 0.0
        %2814 = vmatpush1.msra.mxu0 0.0
        %2815 = vmatprep.subr.mxu0 0.0
        %2816 = vmatpush1.msra.mxu0 0.0
        %2817 = vmatprep.subr.mxu0 0.0
        %2818 = vmatpush1.msra.mxu0 0.0
        %2819 = vmatprep.subr.mxu0 0.0
        %2820 = vmatpush1.msra.mxu0 0.0
        %2821 = vmatprep.subr.mxu0 0.0
        %2822 = vmatpush1.msra.mxu0 0.0
        %2823 = vmatprep.subr.mxu0 0.0
        %2824 = vmatpush1.msra.mxu0 0.0
        %2825 = vmatprep.subr.mxu0 0.0
        %2826 = vmatpush1.msra.mxu0 0.0
        %2827 = vmatprep.subr.mxu0 0.0
        %2828 = vmatpush1.msra.mxu0 0.0
        %2829 = vmatprep.subr.mxu0 0.0
        %2830 = vmatpush1.msra.mxu0 0.0
        %2831 = vmatprep.subr.mxu0 0.0
        %2832 = vmatpush1.msra.mxu0 0.0
        %2833 = vmatprep.subr.mxu0 0.0
        %2834 = vmatpush1.msra.mxu0 0.0
        %2835 = vmatprep.subr.mxu0 0.0
        %2836 = vmatpush1.msra.mxu0 0.0
        %2837 = vmatprep.subr.mxu0 0.0
        %2838 = vmatpush1.msra.mxu0 0.0
        %2839 = vmatprep.subr.mxu0 0.0
        %2840 = vmatpush1.msra.mxu0 0.0
        %2841 = vmatprep.mubr.f32.mxu0 0.0
        %2842 = vmatmul.mubr.f32.gmra.mrb[0].mxu0 %v2775
        %v2843 = vpop.f32.mrb[0].mxu0
        %v2844 = vadd.f32 0.0, %v2843
        %v2845 = vpop.f32.mrb[0].mxu0
        %2846 = vdwg.mxu0
        %v2847 = vadd.f32 %v2774, %v2844
        %v2848 = vxor.u32 %v2847, 2147483648
        %v2849 = vmul.f32 %v2848, 1.442695
        %v2850 = vpow.pop %v2849
        %v2851 = vadd.f32 %v2850, 1.0
        %v2852 = vrcp.pop %v2851
        %v2853 = vmul.f32 1.0, %v2852
        %v2854 = vtanh.pop %v2847
        %v2855 = vmul.f32 %v2853, %v2761
        %2857 = vrot.lane.b32.xlu0 %v2854, 32
        %v2858 = vpop.permute.xlu0 %2857
        %v2860 = vmul.f32 %v2853, %v2858
        %2862 = vrot.lane.b32.xlu0 %v2860, 32
        %v2863 = vpop.permute.xlu0 %2862
        %v2865 = vadd.f32 %v2855, %v2863
        %v2866 = vtanh.pop %v2865
        %2868 = vrot.lane.b32.xlu0 %v2866, 32
        %v2869 = vpop.permute.xlu0 %2868
        %v2871 = vmul.f32 %v2853, %v2869
        %2873 = vrot.lane.b32.xlu0 %v2871, 64
        %v2874 = vpop.permute.xlu0 %2873
        %2876 = vst.msk [vmem:[#allocation9 + $0x3] sm:$0x1] %vm2563, %v2874
        %2877 = vst.msk [vmem:[#allocation10 + $0x7] sm:$0x1] %vm2563, %v2874
        %v2878 = vld [vmem:[#allocation8 + $0x4] sm:$0x1]
        %v2879 = vsel %vm2208, %v2874, 0
        %2881 = vmatprep.subr.mxu0 0.0
        %2882 = vmatpush1.msra.mxu0 %v2324
        %2883 = vmatprep.subr.mxu0 0.0
        %2884 = vmatpush1.msra.mxu0 %v2325
        %2885 = vmatprep.subr.mxu0 0.0
        %2886 = vmatpush1.msra.mxu0 %v2326
        %2887 = vmatprep.subr.mxu0 0.0
        %2888 = vmatpush1.msra.mxu0 %v2327
        %2889 = vmatprep.subr.mxu0 0.0
        %2890 = vmatpush1.msra.mxu0 0.0
        %2891 = vmatprep.subr.mxu0 0.0
        %2892 = vmatpush1.msra.mxu0 0.0
        %2893 = vmatprep.subr.mxu0 0.0
        %2894 = vmatpush1.msra.mxu0 0.0
        %2895 = vmatprep.subr.mxu0 0.0
        %2896 = vmatpush1.msra.mxu0 0.0
        %2897 = vmatprep.subr.mxu0 0.0
        %2898 = vmatpush1.msra.mxu0 0.0
        %2899 = vmatprep.subr.mxu0 0.0
        %2900 = vmatpush1.msra.mxu0 0.0
        %2901 = vmatprep.subr.mxu0 0.0
        %2902 = vmatpush1.msra.mxu0 0.0
        %2903 = vmatprep.subr.mxu0 0.0
        %2904 = vmatpush1.msra.mxu0 0.0
        %2905 = vmatprep.subr.mxu0 0.0
        %2906 = vmatpush1.msra.mxu0 0.0
        %2907 = vmatprep.subr.mxu0 0.0
        %2908 = vmatpush1.msra.mxu0 0.0
        %2909 = vmatprep.subr.mxu0 0.0
        %2910 = vmatpush1.msra.mxu0 0.0
        %2911 = vmatprep.subr.mxu0 0.0
        %2912 = vmatpush1.msra.mxu0 0.0
        %2913 = vmatprep.subr.mxu0 0.0
        %2914 = vmatpush1.msra.mxu0 0.0
        %2915 = vmatprep.subr.mxu0 0.0
        %2916 = vmatpush1.msra.mxu0 0.0
        %2917 = vmatprep.subr.mxu0 0.0
        %2918 = vmatpush1.msra.mxu0 0.0
        %2919 = vmatprep.subr.mxu0 0.0
        %2920 = vmatpush1.msra.mxu0 0.0
        %2921 = vmatprep.subr.mxu0 0.0
        %2922 = vmatpush1.msra.mxu0 0.0
        %2923 = vmatprep.subr.mxu0 0.0
        %2924 = vmatpush1.msra.mxu0 0.0
        %2925 = vmatprep.subr.mxu0 0.0
        %2926 = vmatpush1.msra.mxu0 0.0
        %2927 = vmatprep.subr.mxu0 0.0
        %2928 = vmatpush1.msra.mxu0 0.0
        %2929 = vmatprep.subr.mxu0 0.0
        %2930 = vmatpush1.msra.mxu0 0.0
        %2931 = vmatprep.subr.mxu0 0.0
        %2932 = vmatpush1.msra.mxu0 0.0
        %2933 = vmatprep.subr.mxu0 0.0
        %2934 = vmatpush1.msra.mxu0 0.0
        %2935 = vmatprep.subr.mxu0 0.0
        %2936 = vmatpush1.msra.mxu0 0.0
        %2937 = vmatprep.subr.mxu0 0.0
        %2938 = vmatpush1.msra.mxu0 0.0
        %2939 = vmatprep.subr.mxu0 0.0
        %2940 = vmatpush1.msra.mxu0 0.0
        %2941 = vmatprep.subr.mxu0 0.0
        %2942 = vmatpush1.msra.mxu0 0.0
        %2943 = vmatprep.subr.mxu0 0.0
        %2944 = vmatpush1.msra.mxu0 0.0
        %2945 = vmatprep.mubr.f32.mxu0 0.0
        %2946 = vmatmul.mubr.f32.gmra.mrb[0].mxu0 %v2879
        %v2947 = vpop.f32.mrb[0].mxu0
        %v2948 = vadd.f32 0.0, %v2947
        %v2949 = vpop.f32.mrb[0].mxu0
        %2950 = vdwg.mxu0
        %v2951 = vadd.f32 %v2878, %v2948
        %v2952 = vxor.u32 %v2951, 2147483648
        %v2953 = vmul.f32 %v2952, 1.442695
        %v2954 = vpow.pop %v2953
        %v2955 = vadd.f32 %v2954, 1.0
        %v2956 = vrcp.pop %v2955
        %v2957 = vmul.f32 1.0, %v2956
        %v2958 = vtanh.pop %v2951
        %v2959 = vmul.f32 %v2957, %v2865
        %2961 = vrot.lane.b32.xlu0 %v2958, 32
        %v2962 = vpop.permute.xlu0 %2961
        %v2964 = vmul.f32 %v2957, %v2962
        %2966 = vrot.lane.b32.xlu0 %v2964, 32
        %v2967 = vpop.permute.xlu0 %2966
        %v2969 = vadd.f32 %v2959, %v2967
        %v2970 = vtanh.pop %v2969
        %2972 = vrot.lane.b32.xlu0 %v2970, 32
        %v2973 = vpop.permute.xlu0 %2972
        %v2975 = vmul.f32 %v2957, %v2973
        %2977 = vrot.lane.b32.xlu0 %v2975, 64
        %v2978 = vpop.permute.xlu0 %2977
        %2980 = vst.msk [vmem:[#allocation9 + $0x4] sm:$0x1] %vm2563, %v2978
        %2981 = vst.msk [vmem:[#allocation10 + $0x6] sm:$0x1] %vm2563, %v2978
        %v2982 = vld [vmem:[#allocation8 + $0x5] sm:$0x1]
        %v2983 = vsel %vm2208, %v2978, 0
        %2985 = vmatprep.subr.mxu0 0.0
        %2986 = vmatpush1.msra.mxu0 %v2324
        %2987 = vmatprep.subr.mxu0 0.0
        %2988 = vmatpush1.msra.mxu0 %v2325
        %2989 = vmatprep.subr.mxu0 0.0
        %2990 = vmatpush1.msra.mxu0 %v2326
        %2991 = vmatprep.subr.mxu0 0.0
        %2992 = vmatpush1.msra.mxu0 %v2327
        %2993 = vmatprep.subr.mxu0 0.0
        %2994 = vmatpush1.msra.mxu0 0.0
        %2995 = vmatprep.subr.mxu0 0.0
        %2996 = vmatpush1.msra.mxu0 0.0
        %2997 = vmatprep.subr.mxu0 0.0
        %2998 = vmatpush1.msra.mxu0 0.0
        %2999 = vmatprep.subr.mxu0 0.0
        %3000 = vmatpush1.msra.mxu0 0.0
        %3001 = vmatprep.subr.mxu0 0.0
        %3002 = vmatpush1.msra.mxu0 0.0
        %3003 = vmatprep.subr.mxu0 0.0
        %3004 = vmatpush1.msra.mxu0 0.0
        %3005 = vmatprep.subr.mxu0 0.0
        %3006 = vmatpush1.msra.mxu0 0.0
        %3007 = vmatprep.subr.mxu0 0.0
        %3008 = vmatpush1.msra.mxu0 0.0
        %3009 = vmatprep.subr.mxu0 0.0
        %3010 = vmatpush1.msra.mxu0 0.0
        %3011 = vmatprep.subr.mxu0 0.0
        %3012 = vmatpush1.msra.mxu0 0.0
        %3013 = vmatprep.subr.mxu0 0.0
        %3014 = vmatpush1.msra.mxu0 0.0
        %3015 = vmatprep.subr.mxu0 0.0
        %3016 = vmatpush1.msra.mxu0 0.0
        %3017 = vmatprep.subr.mxu0 0.0
        %3018 = vmatpush1.msra.mxu0 0.0
        %3019 = vmatprep.subr.mxu0 0.0
        %3020 = vmatpush1.msra.mxu0 0.0
        %3021 = vmatprep.subr.mxu0 0.0
        %3022 = vmatpush1.msra.mxu0 0.0
        %3023 = vmatprep.subr.mxu0 0.0
        %3024 = vmatpush1.msra.mxu0 0.0
        %3025 = vmatprep.subr.mxu0 0.0
        %3026 = vmatpush1.msra.mxu0 0.0
        %3027 = vmatprep.subr.mxu0 0.0
        %3028 = vmatpush1.msra.mxu0 0.0
        %3029 = vmatprep.subr.mxu0 0.0
        %3030 = vmatpush1.msra.mxu0 0.0
        %3031 = vmatprep.subr.mxu0 0.0
        %3032 = vmatpush1.msra.mxu0 0.0
        %3033 = vmatprep.subr.mxu0 0.0
        %3034 = vmatpush1.msra.mxu0 0.0
        %3035 = vmatprep.subr.mxu0 0.0
        %3036 = vmatpush1.msra.mxu0 0.0
        %3037 = vmatprep.subr.mxu0 0.0
        %3038 = vmatpush1.msra.mxu0 0.0
        %3039 = vmatprep.subr.mxu0 0.0
        %3040 = vmatpush1.msra.mxu0 0.0
        %3041 = vmatprep.subr.mxu0 0.0
        %3042 = vmatpush1.msra.mxu0 0.0
        %3043 = vmatprep.subr.mxu0 0.0
        %3044 = vmatpush1.msra.mxu0 0.0
        %3045 = vmatprep.subr.mxu0 0.0
        %3046 = vmatpush1.msra.mxu0 0.0
        %3047 = vmatprep.subr.mxu0 0.0
        %3048 = vmatpush1.msra.mxu0 0.0
        %3049 = vmatprep.mubr.f32.mxu0 0.0
        %3050 = vmatmul.mubr.f32.gmra.mrb[0].mxu0 %v2983
        %v3051 = vpop.f32.mrb[0].mxu0
        %v3052 = vadd.f32 0.0, %v3051
        %v3053 = vpop.f32.mrb[0].mxu0
        %3054 = vdwg.mxu0
        %v3055 = vadd.f32 %v2982, %v3052
        %v3056 = vxor.u32 %v3055, 2147483648
        %v3057 = vmul.f32 %v3056, 1.442695
        %v3058 = vpow.pop %v3057
        %v3059 = vadd.f32 %v3058, 1.0
        %v3060 = vrcp.pop %v3059
        %v3061 = vmul.f32 1.0, %v3060
        %v3062 = vtanh.pop %v3055
        %v3063 = vmul.f32 %v3061, %v2969
        %3065 = vrot.lane.b32.xlu0 %v3062, 32
        %v3066 = vpop.permute.xlu0 %3065
        %v3068 = vmul.f32 %v3061, %v3066
        %3070 = vrot.lane.b32.xlu0 %v3068, 32
        %v3071 = vpop.permute.xlu0 %3070
        %v3073 = vadd.f32 %v3063, %v3071
        %v3074 = vtanh.pop %v3073
        %3076 = vrot.lane.b32.xlu0 %v3074, 32
        %v3077 = vpop.permute.xlu0 %3076
        %v3079 = vmul.f32 %v3061, %v3077
        %3081 = vrot.lane.b32.xlu0 %v3079, 64
        %v3082 = vpop.permute.xlu0 %3081
        %3084 = vst.msk [vmem:[#allocation9 + $0x5] sm:$0x1] %vm2563, %v3082
        %3085 = vst.msk [vmem:[#allocation10 + $0x5] sm:$0x1] %vm2563, %v3082
        %v3086 = vld [vmem:[#allocation8 + $0x6] sm:$0x1]
        %v3087 = vsel %vm2208, %v3082, 0
        %3089 = vmatprep.subr.mxu0 0.0
        %3090 = vmatpush1.msra.mxu0 %v2324
        %3091 = vmatprep.subr.mxu0 0.0
        %3092 = vmatpush1.msra.mxu0 %v2325
        %3093 = vmatprep.subr.mxu0 0.0
        %3094 = vmatpush1.msra.mxu0 %v2326
        %3095 = vmatprep.subr.mxu0 0.0
        %3096 = vmatpush1.msra.mxu0 %v2327
        %3097 = vmatprep.subr.mxu0 0.0
        %3098 = vmatpush1.msra.mxu0 0.0
        %3099 = vmatprep.subr.mxu0 0.0
        %3100 = vmatpush1.msra.mxu0 0.0
        %3101 = vmatprep.subr.mxu0 0.0
        %3102 = vmatpush1.msra.mxu0 0.0
        %3103 = vmatprep.subr.mxu0 0.0
        %3104 = vmatpush1.msra.mxu0 0.0
        %3105 = vmatprep.subr.mxu0 0.0
        %3106 = vmatpush1.msra.mxu0 0.0
        %3107 = vmatprep.subr.mxu0 0.0
        %3108 = vmatpush1.msra.mxu0 0.0
        %3109 = vmatprep.subr.mxu0 0.0
        %3110 = vmatpush1.msra.mxu0 0.0
        %3111 = vmatprep.subr.mxu0 0.0
        %3112 = vmatpush1.msra.mxu0 0.0
        %3113 = vmatprep.subr.mxu0 0.0
        %3114 = vmatpush1.msra.mxu0 0.0
        %3115 = vmatprep.subr.mxu0 0.0
        %3116 = vmatpush1.msra.mxu0 0.0
        %3117 = vmatprep.subr.mxu0 0.0
        %3118 = vmatpush1.msra.mxu0 0.0
        %3119 = vmatprep.subr.mxu0 0.0
        %3120 = vmatpush1.msra.mxu0 0.0
        %3121 = vmatprep.subr.mxu0 0.0
        %3122 = vmatpush1.msra.mxu0 0.0
        %3123 = vmatprep.subr.mxu0 0.0
        %3124 = vmatpush1.msra.mxu0 0.0
        %3125 = vmatprep.subr.mxu0 0.0
        %3126 = vmatpush1.msra.mxu0 0.0
        %3127 = vmatprep.subr.mxu0 0.0
        %3128 = vmatpush1.msra.mxu0 0.0
        %3129 = vmatprep.subr.mxu0 0.0
        %3130 = vmatpush1.msra.mxu0 0.0
        %3131 = vmatprep.subr.mxu0 0.0
        %3132 = vmatpush1.msra.mxu0 0.0
        %3133 = vmatprep.subr.mxu0 0.0
        %3134 = vmatpush1.msra.mxu0 0.0
        %3135 = vmatprep.subr.mxu0 0.0
        %3136 = vmatpush1.msra.mxu0 0.0
        %3137 = vmatprep.subr.mxu0 0.0
        %3138 = vmatpush1.msra.mxu0 0.0
        %3139 = vmatprep.subr.mxu0 0.0
        %3140 = vmatpush1.msra.mxu0 0.0
        %3141 = vmatprep.subr.mxu0 0.0
        %3142 = vmatpush1.msra.mxu0 0.0
        %3143 = vmatprep.subr.mxu0 0.0
        %3144 = vmatpush1.msra.mxu0 0.0
        %3145 = vmatprep.subr.mxu0 0.0
        %3146 = vmatpush1.msra.mxu0 0.0
        %3147 = vmatprep.subr.mxu0 0.0
        %3148 = vmatpush1.msra.mxu0 0.0
        %3149 = vmatprep.subr.mxu0 0.0
        %3150 = vmatpush1.msra.mxu0 0.0
        %3151 = vmatprep.subr.mxu0 0.0
        %3152 = vmatpush1.msra.mxu0 0.0
        %3153 = vmatprep.mubr.f32.mxu0 0.0
        %3154 = vmatmul.mubr.f32.gmra.mrb[0].mxu0 %v3087
        %v3155 = vpop.f32.mrb[0].mxu0
        %v3156 = vadd.f32 0.0, %v3155
        %v3157 = vpop.f32.mrb[0].mxu0
        %3158 = vdwg.mxu0
        %v3159 = vadd.f32 %v3086, %v3156
        %v3160 = vxor.u32 %v3159, 2147483648
        %v3161 = vmul.f32 %v3160, 1.442695
        %v3162 = vpow.pop %v3161
        %v3163 = vadd.f32 %v3162, 1.0
        %v3164 = vrcp.pop %v3163
        %v3165 = vmul.f32 1.0, %v3164
        %v3166 = vtanh.pop %v3159
        %v3167 = vmul.f32 %v3165, %v3073
        %3169 = vrot.lane.b32.xlu0 %v3166, 32
        %v3170 = vpop.permute.xlu0 %3169
        %v3172 = vmul.f32 %v3165, %v3170
        %3174 = vrot.lane.b32.xlu0 %v3172, 32
        %v3175 = vpop.permute.xlu0 %3174
        %v3177 = vadd.f32 %v3167, %v3175
        %v3178 = vtanh.pop %v3177
        %3180 = vrot.lane.b32.xlu0 %v3178, 32
        %v3181 = vpop.permute.xlu0 %3180
        %v3183 = vmul.f32 %v3165, %v3181
        %3185 = vrot.lane.b32.xlu0 %v3183, 64
        %v3186 = vpop.permute.xlu0 %3185
        %3188 = vst.msk [vmem:[#allocation9 + $0x6] sm:$0x1] %vm2563, %v3186
        %3189 = vst.msk [vmem:[#allocation10 + $0x4] sm:$0x1] %vm2563, %v3186
        %v3190 = vld [vmem:[#allocation8 + $0x7] sm:$0x1]
        %v3191 = vsel %vm2208, %v3186, 0
        %3193 = vmatprep.subr.mxu0 0.0
        %3194 = vmatpush1.msra.mxu0 %v2324
        %3195 = vmatprep.subr.mxu0 0.0
        %3196 = vmatpush1.msra.mxu0 %v2325
        %3197 = vmatprep.subr.mxu0 0.0
        %3198 = vmatpush1.msra.mxu0 %v2326
        %3199 = vmatprep.subr.mxu0 0.0
        %3200 = vmatpush1.msra.mxu0 %v2327
        %3201 = vmatprep.subr.mxu0 0.0
        %3202 = vmatpush1.msra.mxu0 0.0
        %3203 = vmatprep.subr.mxu0 0.0
        %3204 = vmatpush1.msra.mxu0 0.0
        %3205 = vmatprep.subr.mxu0 0.0
        %3206 = vmatpush1.msra.mxu0 0.0
        %3207 = vmatprep.subr.mxu0 0.0
        %3208 = vmatpush1.msra.mxu0 0.0
        %3209 = vmatprep.subr.mxu0 0.0
        %3210 = vmatpush1.msra.mxu0 0.0
        %3211 = vmatprep.subr.mxu0 0.0
        %3212 = vmatpush1.msra.mxu0 0.0
        %3213 = vmatprep.subr.mxu0 0.0
        %3214 = vmatpush1.msra.mxu0 0.0
        %3215 = vmatprep.subr.mxu0 0.0
        %3216 = vmatpush1.msra.mxu0 0.0
        %3217 = vmatprep.subr.mxu0 0.0
        %3218 = vmatpush1.msra.mxu0 0.0
        %3219 = vmatprep.subr.mxu0 0.0
        %3220 = vmatpush1.msra.mxu0 0.0
        %3221 = vmatprep.subr.mxu0 0.0
        %3222 = vmatpush1.msra.mxu0 0.0
        %3223 = vmatprep.subr.mxu0 0.0
        %3224 = vmatpush1.msra.mxu0 0.0
        %3225 = vmatprep.subr.mxu0 0.0
        %3226 = vmatpush1.msra.mxu0 0.0
        %3227 = vmatprep.subr.mxu0 0.0
        %3228 = vmatpush1.msra.mxu0 0.0
        %3229 = vmatprep.subr.mxu0 0.0
        %3230 = vmatpush1.msra.mxu0 0.0
        %3231 = vmatprep.subr.mxu0 0.0
        %3232 = vmatpush1.msra.mxu0 0.0
        %3233 = vmatprep.subr.mxu0 0.0
        %3234 = vmatpush1.msra.mxu0 0.0
        %3235 = vmatprep.subr.mxu0 0.0
        %3236 = vmatpush1.msra.mxu0 0.0
        %3237 = vmatprep.subr.mxu0 0.0
        %3238 = vmatpush1.msra.mxu0 0.0
        %3239 = vmatprep.subr.mxu0 0.0
        %3240 = vmatpush1.msra.mxu0 0.0
        %3241 = vmatprep.subr.mxu0 0.0
        %3242 = vmatpush1.msra.mxu0 0.0
        %3243 = vmatprep.subr.mxu0 0.0
        %3244 = vmatpush1.msra.mxu0 0.0
        %3245 = vmatprep.subr.mxu0 0.0
        %3246 = vmatpush1.msra.mxu0 0.0
        %3247 = vmatprep.subr.mxu0 0.0
        %3248 = vmatpush1.msra.mxu0 0.0
        %3249 = vmatprep.subr.mxu0 0.0
        %3250 = vmatpush1.msra.mxu0 0.0
        %3251 = vmatprep.subr.mxu0 0.0
        %3252 = vmatpush1.msra.mxu0 0.0
        %3253 = vmatprep.subr.mxu0 0.0
        %3254 = vmatpush1.msra.mxu0 0.0
        %3255 = vmatprep.subr.mxu0 0.0
        %3256 = vmatpush1.msra.mxu0 0.0
        %3257 = vmatprep.mubr.f32.mxu0 0.0
        %3258 = vmatmul.mubr.f32.gmra.mrb[0].mxu0 %v3191
        %v3259 = vpop.f32.mrb[0].mxu0
        %v3260 = vadd.f32 0.0, %v3259
        %v3261 = vpop.f32.mrb[0].mxu0
        %3262 = vdwg.mxu0
        %v3263 = vadd.f32 %v3190, %v3260
        %v3264 = vxor.u32 %v3263, 2147483648
        %v3265 = vmul.f32 %v3264, 1.442695
        %v3266 = vpow.pop %v3265
        %v3267 = vadd.f32 %v3266, 1.0
        %v3268 = vrcp.pop %v3267
        %v3269 = vmul.f32 1.0, %v3268
        %v3270 = vtanh.pop %v3263
        %v3271 = vmul.f32 %v3269, %v3177
        %3273 = vrot.lane.b32.xlu0 %v3270, 32
        %v3274 = vpop.permute.xlu0 %3273
        %v3276 = vmul.f32 %v3269, %v3274
        %3278 = vrot.lane.b32.xlu0 %v3276, 32
        %v3279 = vpop.permute.xlu0 %3278
        %v3281 = vadd.f32 %v3271, %v3279
        %v3282 = vtanh.pop %v3281
        %3284 = vrot.lane.b32.xlu0 %v3282, 32
        %v3285 = vpop.permute.xlu0 %3284
        %v3287 = vmul.f32 %v3269, %v3285
        %3289 = vrot.lane.b32.xlu0 %v3287, 64
        %v3290 = vpop.permute.xlu0 %3289
        %3292 = vst.msk [vmem:[#allocation9 + $0x7] sm:$0x1] %vm2563, %v3290
        %3293 = vst.msk [vmem:[#allocation10 + $0x3] sm:$0x1] %vm2563, %v3290
        %v3294 = vld [vmem:[#allocation8 + $0x8] sm:$0x1]
        %v3295 = vsel %vm2208, %v3290, 0
        %3297 = vmatprep.subr.mxu0 0.0
        %3298 = vmatpush1.msra.mxu0 %v2324
        %3299 = vmatprep.subr.mxu0 0.0
        %3300 = vmatpush1.msra.mxu0 %v2325
        %3301 = vmatprep.subr.mxu0 0.0
        %3302 = vmatpush1.msra.mxu0 %v2326
        %3303 = vmatprep.subr.mxu0 0.0
        %3304 = vmatpush1.msra.mxu0 %v2327
        %3305 = vmatprep.subr.mxu0 0.0
        %3306 = vmatpush1.msra.mxu0 0.0
        %3307 = vmatprep.subr.mxu0 0.0
        %3308 = vmatpush1.msra.mxu0 0.0
        %3309 = vmatprep.subr.mxu0 0.0
        %3310 = vmatpush1.msra.mxu0 0.0
        %3311 = vmatprep.subr.mxu0 0.0
        %3312 = vmatpush1.msra.mxu0 0.0
        %3313 = vmatprep.subr.mxu0 0.0
        %3314 = vmatpush1.msra.mxu0 0.0
        %3315 = vmatprep.subr.mxu0 0.0
        %3316 = vmatpush1.msra.mxu0 0.0
        %3317 = vmatprep.subr.mxu0 0.0
        %3318 = vmatpush1.msra.mxu0 0.0
        %3319 = vmatprep.subr.mxu0 0.0
        %3320 = vmatpush1.msra.mxu0 0.0
        %3321 = vmatprep.subr.mxu0 0.0
        %3322 = vmatpush1.msra.mxu0 0.0
        %3323 = vmatprep.subr.mxu0 0.0
        %3324 = vmatpush1.msra.mxu0 0.0
        %3325 = vmatprep.subr.mxu0 0.0
        %3326 = vmatpush1.msra.mxu0 0.0
        %3327 = vmatprep.subr.mxu0 0.0
        %3328 = vmatpush1.msra.mxu0 0.0
        %3329 = vmatprep.subr.mxu0 0.0
        %3330 = vmatpush1.msra.mxu0 0.0
        %3331 = vmatprep.subr.mxu0 0.0
        %3332 = vmatpush1.msra.mxu0 0.0
        %3333 = vmatprep.subr.mxu0 0.0
        %3334 = vmatpush1.msra.mxu0 0.0
        %3335 = vmatprep.subr.mxu0 0.0
        %3336 = vmatpush1.msra.mxu0 0.0
        %3337 = vmatprep.subr.mxu0 0.0
        %3338 = vmatpush1.msra.mxu0 0.0
        %3339 = vmatprep.subr.mxu0 0.0
        %3340 = vmatpush1.msra.mxu0 0.0
        %3341 = vmatprep.subr.mxu0 0.0
        %3342 = vmatpush1.msra.mxu0 0.0
        %3343 = vmatprep.subr.mxu0 0.0
        %3344 = vmatpush1.msra.mxu0 0.0
        %3345 = vmatprep.subr.mxu0 0.0
        %3346 = vmatpush1.msra.mxu0 0.0
        %3347 = vmatprep.subr.mxu0 0.0
        %3348 = vmatpush1.msra.mxu0 0.0
        %3349 = vmatprep.subr.mxu0 0.0
        %3350 = vmatpush1.msra.mxu0 0.0
        %3351 = vmatprep.subr.mxu0 0.0
        %3352 = vmatpush1.msra.mxu0 0.0
        %3353 = vmatprep.subr.mxu0 0.0
        %3354 = vmatpush1.msra.mxu0 0.0
        %3355 = vmatprep.subr.mxu0 0.0
        %3356 = vmatpush1.msra.mxu0 0.0
        %3357 = vmatprep.subr.mxu0 0.0
        %3358 = vmatpush1.msra.mxu0 0.0
        %3359 = vmatprep.subr.mxu0 0.0
        %3360 = vmatpush1.msra.mxu0 0.0
        %3361 = vmatprep.mubr.f32.mxu0 0.0
        %3362 = vmatmul.mubr.f32.gmra.mrb[0].mxu0 %v3295
        %v3363 = vpop.f32.mrb[0].mxu0
        %v3364 = vadd.f32 0.0, %v3363
        %v3365 = vpop.f32.mrb[0].mxu0
        %3366 = vdwg.mxu0
        %v3367 = vadd.f32 %v3294, %v3364
        %v3368 = vxor.u32 %v3367, 2147483648
        %v3369 = vmul.f32 %v3368, 1.442695
        %v3370 = vpow.pop %v3369
        %v3371 = vadd.f32 %v3370, 1.0
        %v3372 = vrcp.pop %v3371
        %v3373 = vmul.f32 1.0, %v3372
        %v3374 = vtanh.pop %v3367
        %v3375 = vmul.f32 %v3373, %v3281
        %3377 = vrot.lane.b32.xlu0 %v3374, 32
        %v3378 = vpop.permute.xlu0 %3377
        %v3380 = vmul.f32 %v3373, %v3378
        %3382 = vrot.lane.b32.xlu0 %v3380, 32
        %v3383 = vpop.permute.xlu0 %3382
        %v3385 = vadd.f32 %v3375, %v3383
        %v3386 = vtanh.pop %v3385
        %3388 = vrot.lane.b32.xlu0 %v3386, 32
        %v3389 = vpop.permute.xlu0 %3388
        %v3391 = vmul.f32 %v3373, %v3389
        %3393 = vrot.lane.b32.xlu0 %v3391, 64
        %v3394 = vpop.permute.xlu0 %3393
        %3396 = vst.msk [vmem:[#allocation9 + $0x8] sm:$0x1] %vm2563, %v3394
        %3397 = vst.msk [vmem:[#allocation10 + $0x2] sm:$0x1] %vm2563, %v3394
        %v3398 = vld [vmem:[#allocation8 + $0x9] sm:$0x1]
        %v3399 = vsel %vm2208, %v3394, 0
        %3401 = vmatprep.subr.mxu0 0.0
        %3402 = vmatpush1.msra.mxu0 %v2324
        %3403 = vmatprep.subr.mxu0 0.0
        %3404 = vmatpush1.msra.mxu0 %v2325
        %3405 = vmatprep.subr.mxu0 0.0
        %3406 = vmatpush1.msra.mxu0 %v2326
        %3407 = vmatprep.subr.mxu0 0.0
        %3408 = vmatpush1.msra.mxu0 %v2327
        %3409 = vmatprep.subr.mxu0 0.0
        %3410 = vmatpush1.msra.mxu0 0.0
        %3411 = vmatprep.subr.mxu0 0.0
        %3412 = vmatpush1.msra.mxu0 0.0
        %3413 = vmatprep.subr.mxu0 0.0
        %3414 = vmatpush1.msra.mxu0 0.0
        %3415 = vmatprep.subr.mxu0 0.0
        %3416 = vmatpush1.msra.mxu0 0.0
        %3417 = vmatprep.subr.mxu0 0.0
        %3418 = vmatpush1.msra.mxu0 0.0
        %3419 = vmatprep.subr.mxu0 0.0
        %3420 = vmatpush1.msra.mxu0 0.0
        %3421 = vmatprep.subr.mxu0 0.0
        %3422 = vmatpush1.msra.mxu0 0.0
        %3423 = vmatprep.subr.mxu0 0.0
        %3424 = vmatpush1.msra.mxu0 0.0
        %3425 = vmatprep.subr.mxu0 0.0
        %3426 = vmatpush1.msra.mxu0 0.0
        %3427 = vmatprep.subr.mxu0 0.0
        %3428 = vmatpush1.msra.mxu0 0.0
        %3429 = vmatprep.subr.mxu0 0.0
        %3430 = vmatpush1.msra.mxu0 0.0
        %3431 = vmatprep.subr.mxu0 0.0
        %3432 = vmatpush1.msra.mxu0 0.0
        %3433 = vmatprep.subr.mxu0 0.0
        %3434 = vmatpush1.msra.mxu0 0.0
        %3435 = vmatprep.subr.mxu0 0.0
        %3436 = vmatpush1.msra.mxu0 0.0
        %3437 = vmatprep.subr.mxu0 0.0
        %3438 = vmatpush1.msra.mxu0 0.0
        %3439 = vmatprep.subr.mxu0 0.0
        %3440 = vmatpush1.msra.mxu0 0.0
        %3441 = vmatprep.subr.mxu0 0.0
        %3442 = vmatpush1.msra.mxu0 0.0
        %3443 = vmatprep.subr.mxu0 0.0
        %3444 = vmatpush1.msra.mxu0 0.0
        %3445 = vmatprep.subr.mxu0 0.0
        %3446 = vmatpush1.msra.mxu0 0.0
        %3447 = vmatprep.subr.mxu0 0.0
        %3448 = vmatpush1.msra.mxu0 0.0
        %3449 = vmatprep.subr.mxu0 0.0
        %3450 = vmatpush1.msra.mxu0 0.0
        %3451 = vmatprep.subr.mxu0 0.0
        %3452 = vmatpush1.msra.mxu0 0.0
        %3453 = vmatprep.subr.mxu0 0.0
        %3454 = vmatpush1.msra.mxu0 0.0
        %3455 = vmatprep.subr.mxu0 0.0
        %3456 = vmatpush1.msra.mxu0 0.0
        %3457 = vmatprep.subr.mxu0 0.0
        %3458 = vmatpush1.msra.mxu0 0.0
        %3459 = vmatprep.subr.mxu0 0.0
        %3460 = vmatpush1.msra.mxu0 0.0
        %3461 = vmatprep.subr.mxu0 0.0
        %3462 = vmatpush1.msra.mxu0 0.0
        %3463 = vmatprep.subr.mxu0 0.0
        %3464 = vmatpush1.msra.mxu0 0.0
        %3465 = vmatprep.mubr.f32.mxu0 0.0
        %3466 = vmatmul.mubr.f32.gmra.mrb[0].mxu0 %v3399
        %v3467 = vpop.f32.mrb[0].mxu0
        %v3468 = vadd.f32 0.0, %v3467
        %v3469 = vpop.f32.mrb[0].mxu0
        %3470 = vdwg.mxu0
        %v3471 = vadd.f32 %v3398, %v3468
        %v3472 = vxor.u32 %v3471, 2147483648
        %v3473 = vmul.f32 %v3472, 1.442695
        %v3474 = vpow.pop %v3473
        %v3475 = vadd.f32 %v3474, 1.0
        %v3476 = vrcp.pop %v3475
        %v3477 = vmul.f32 1.0, %v3476
        %v3478 = vtanh.pop %v3471
        %v3479 = vmul.f32 %v3477, %v3385
        %3481 = vrot.lane.b32.xlu0 %v3478, 32
        %v3482 = vpop.permute.xlu0 %3481
        %v3484 = vmul.f32 %v3477, %v3482
        %3486 = vrot.lane.b32.xlu0 %v3484, 32
        %v3487 = vpop.permute.xlu0 %3486
        %v3489 = vadd.f32 %v3479, %v3487
        %v3490 = vtanh.pop %v3489
        %3492 = vrot.lane.b32.xlu0 %v3490, 32
        %v3493 = vpop.permute.xlu0 %3492
        %v3495 = vmul.f32 %v3477, %v3493
        %3497 = vrot.lane.b32.xlu0 %v3495, 64
        %v3498 = vpop.permute.xlu0 %3497
        %3500 = vst.msk [vmem:[#allocation9 + $0x9] sm:$0x1] %vm2563, %v3498
        %3501 = vst.msk [vmem:[#allocation10 + $0x1] sm:$0x1] %vm2563, %v3498
        %v3502 = vld [vmem:[#allocation8 + $0xa] sm:$0x1]
        %v3503 = vsel %vm2208, %v3498, 0
        %3505 = vmatprep.subr.mxu0 0.0
        %3506 = vmatpush1.msra.mxu0 %v2324
        %3507 = vmatprep.subr.mxu0 0.0
        %3508 = vmatpush1.msra.mxu0 %v2325
        %3509 = vmatprep.subr.mxu0 0.0
        %3510 = vmatpush1.msra.mxu0 %v2326
        %3511 = vmatprep.subr.mxu0 0.0
        %3512 = vmatpush1.msra.mxu0 %v2327
        %3513 = vmatprep.subr.mxu0 0.0
        %3514 = vmatpush1.msra.mxu0 0.0
        %3515 = vmatprep.subr.mxu0 0.0
        %3516 = vmatpush1.msra.mxu0 0.0
        %3517 = vmatprep.subr.mxu0 0.0
        %3518 = vmatpush1.msra.mxu0 0.0
        %3519 = vmatprep.subr.mxu0 0.0
        %3520 = vmatpush1.msra.mxu0 0.0
        %3521 = vmatprep.subr.mxu0 0.0
        %3522 = vmatpush1.msra.mxu0 0.0
        %3523 = vmatprep.subr.mxu0 0.0
        %3524 = vmatpush1.msra.mxu0 0.0
        %3525 = vmatprep.subr.mxu0 0.0
        %3526 = vmatpush1.msra.mxu0 0.0
        %3527 = vmatprep.subr.mxu0 0.0
        %3528 = vmatpush1.msra.mxu0 0.0
        %3529 = vmatprep.subr.mxu0 0.0
        %3530 = vmatpush1.msra.mxu0 0.0
        %3531 = vmatprep.subr.mxu0 0.0
        %3532 = vmatpush1.msra.mxu0 0.0
        %3533 = vmatprep.subr.mxu0 0.0
        %3534 = vmatpush1.msra.mxu0 0.0
        %3535 = vmatprep.subr.mxu0 0.0
        %3536 = vmatpush1.msra.mxu0 0.0
        %3537 = vmatprep.subr.mxu0 0.0
        %3538 = vmatpush1.msra.mxu0 0.0
        %3539 = vmatprep.subr.mxu0 0.0
        %3540 = vmatpush1.msra.mxu0 0.0
        %3541 = vmatprep.subr.mxu0 0.0
        %3542 = vmatpush1.msra.mxu0 0.0
        %3543 = vmatprep.subr.mxu0 0.0
        %3544 = vmatpush1.msra.mxu0 0.0
        %3545 = vmatprep.subr.mxu0 0.0
        %3546 = vmatpush1.msra.mxu0 0.0
        %3547 = vmatprep.subr.mxu0 0.0
        %3548 = vmatpush1.msra.mxu0 0.0
        %3549 = vmatprep.subr.mxu0 0.0
        %3550 = vmatpush1.msra.mxu0 0.0
        %3551 = vmatprep.subr.mxu0 0.0
        %3552 = vmatpush1.msra.mxu0 0.0
        %3553 = vmatprep.subr.mxu0 0.0
        %3554 = vmatpush1.msra.mxu0 0.0
        %3555 = vmatprep.subr.mxu0 0.0
        %3556 = vmatpush1.msra.mxu0 0.0
        %3557 = vmatprep.subr.mxu0 0.0
        %3558 = vmatpush1.msra.mxu0 0.0
        %3559 = vmatprep.subr.mxu0 0.0
        %3560 = vmatpush1.msra.mxu0 0.0
        %3561 = vmatprep.subr.mxu0 0.0
        %3562 = vmatpush1.msra.mxu0 0.0
        %3563 = vmatprep.subr.mxu0 0.0
        %3564 = vmatpush1.msra.mxu0 0.0
        %3565 = vmatprep.subr.mxu0 0.0
        %3566 = vmatpush1.msra.mxu0 0.0
        %3567 = vmatprep.subr.mxu0 0.0
        %3568 = vmatpush1.msra.mxu0 0.0
        %3569 = vmatprep.mubr.f32.mxu0 0.0
        %3570 = vmatmul.mubr.f32.gmra.mrb[0].mxu0 %v3503
        %v3571 = vpop.f32.mrb[0].mxu0
        %v3572 = vadd.f32 0.0, %v3571
        %v3573 = vpop.f32.mrb[0].mxu0
        %3574 = vdwg.mxu0
        %v3575 = vadd.f32 %v3502, %v3572
        %v3576 = vxor.u32 %v3575, 2147483648
        %v3577 = vmul.f32 %v3576, 1.442695
        %v3578 = vpow.pop %v3577
        %v3579 = vadd.f32 %v3578, 1.0
        %v3580 = vrcp.pop %v3579
        %v3581 = vmul.f32 1.0, %v3580
        %v3582 = vtanh.pop %v3575
        %v3583 = vmul.f32 %v3581, %v3489
        %3585 = vrot.lane.b32.xlu0 %v3582, 32
        %v3586 = vpop.permute.xlu0 %3585
        %v3588 = vmul.f32 %v3581, %v3586
        %3590 = vrot.lane.b32.xlu0 %v3588, 32
        %v3591 = vpop.permute.xlu0 %3590
        %v3593 = vadd.f32 %v3583, %v3591
        %v3594 = vtanh.pop %v3593
        %3596 = vrot.lane.b32.xlu0 %v3594, 32
        %v3597 = vpop.permute.xlu0 %3596
        %v3599 = vmul.f32 %v3581, %v3597
        %3601 = vrot.lane.b32.xlu0 %v3599, 64
        %v3602 = vpop.permute.xlu0 %3601
        %3604 = vst.msk [vmem:[#allocation9 + $0xa] sm:$0x1] %vm2563, %v3602
        %3605 = vst.msk [vmem:[#allocation10] sm:$0x1] %vm2563, %v3602
        %v3606 = vld [vmem:[#allocation9] sm:$0xff]
        %v3607 = vld [vmem:[#allocation9 + $0x8] sm:$0x7]
        %v3608 = vld [vmem:[#allocation10] sm:$0xff]
        %v3609 = vld [vmem:[#allocation10 + $0x8] sm:$0x7]
        %v3610 = vsel %vm2330, 1, 0
        %v3611 = vlaneseq
        %v3612 = vshrl.u32 %v3611, 7
        %v3613 = vsub.s32 0, %v3612
        %v3614 = vrot.slane %v3610, %v3613
        %vm3615 = vcmp.eq.s32.totalorder %v3614, 1
        %v3616 = vsel %vm3615, %v3606, %v3608
        %v3617 = vsel %vm3615, %v3607, %v3609
        %v3618 = vld [vmem:[%s5] sm:$0xff]
        %v3619 = vld [vmem:[%s5 + $0x8] sm:$0xff]
        %v3620 = vld [vmem:[%s5 + $0x10] sm:$0xff]
        %v3621 = vld [vmem:[%s5 + $0x18] sm:$0xff]
        %v3622 = vld [vmem:[%s5 + $0x20] sm:$0xff]
        %v3623 = vld [vmem:[%s5 + $0x28] sm:$0xff]
        %v3624 = vld [vmem:[%s5 + $0x30] sm:$0xff]
        %v3625 = vld [vmem:[%s5 + $0x38] sm:$0xff]
        %v3626 = vld [vmem:[%s5 + $0x40] sm:$0x1]
        %v3627 = vld [vmem:[%s5 + $0x41] sm:$0x1]
        %vm3628 = vcmp.gt.f32.partialorder %v3627, 0.5
        %v3629 = vlaneseq
        %v3630 = vshrl.u32 %v3629, 7
        %v3631 = vsub.s32 0, %v3630
        %v3632 = vrot.slane %v3626, %v3631
        %v3634 = vsel %vm2208, %v3616, 0
        %v3637 = vsel %vm2208, %v3617, 0
        %3639 = vmatprep.subr.mxu0 0.0
        %3640 = vmatpush1.msra.mxu0 %v3618
        %3641 = vmatprep.subr.mxu0 0.0
        %3642 = vmatpush1.msra.mxu0 %v3619
        %3643 = vmatprep.subr.mxu0 0.0
        %3644 = vmatpush1.msra.mxu0 %v3620
        %3645 = vmatprep.subr.mxu0 0.0
        %3646 = vmatpush1.msra.mxu0 %v3621
        %3647 = vmatprep.subr.mxu0 0.0
        %3648 = vmatpush1.msra.mxu0 0.0
        %3649 = vmatprep.subr.mxu0 0.0
        %3650 = vmatpush1.msra.mxu0 0.0
        %3651 = vmatprep.subr.mxu0 0.0
        %3652 = vmatpush1.msra.mxu0 0.0
        %3653 = vmatprep.subr.mxu0 0.0
        %3654 = vmatpush1.msra.mxu0 0.0
        %3655 = vmatprep.subr.mxu0 0.0
        %3656 = vmatpush1.msra.mxu0 0.0
        %3657 = vmatprep.subr.mxu0 0.0
        %3658 = vmatpush1.msra.mxu0 0.0
        %3659 = vmatprep.subr.mxu0 0.0
        %3660 = vmatpush1.msra.mxu0 0.0
        %3661 = vmatprep.subr.mxu0 0.0
        %3662 = vmatpush1.msra.mxu0 0.0
        %3663 = vmatprep.subr.mxu0 0.0
        %3664 = vmatpush1.msra.mxu0 0.0
        %3665 = vmatprep.subr.mxu0 0.0
        %3666 = vmatpush1.msra.mxu0 0.0
        %3667 = vmatprep.subr.mxu0 0.0
        %3668 = vmatpush1.msra.mxu0 0.0
        %3669 = vmatprep.subr.mxu0 0.0
        %3670 = vmatpush1.msra.mxu0 0.0
        %3671 = vmatprep.subr.mxu0 0.0
        %3672 = vmatpush1.msra.mxu0 0.0
        %3673 = vmatprep.subr.mxu0 0.0
        %3674 = vmatpush1.msra.mxu0 0.0
        %3675 = vmatprep.subr.mxu0 0.0
        %3676 = vmatpush1.msra.mxu0 0.0
        %3677 = vmatprep.subr.mxu0 0.0
        %3678 = vmatpush1.msra.mxu0 0.0
        %3679 = vmatprep.subr.mxu0 0.0
        %3680 = vmatpush1.msra.mxu0 0.0
        %3681 = vmatprep.subr.mxu0 0.0
        %3682 = vmatpush1.msra.mxu0 0.0
        %3683 = vmatprep.subr.mxu0 0.0
        %3684 = vmatpush1.msra.mxu0 0.0
        %3685 = vmatprep.subr.mxu0 0.0
        %3686 = vmatpush1.msra.mxu0 0.0
        %3687 = vmatprep.subr.mxu0 0.0
        %3688 = vmatpush1.msra.mxu0 0.0
        %3689 = vmatprep.subr.mxu0 0.0
        %3690 = vmatpush1.msra.mxu0 0.0
        %3691 = vmatprep.subr.mxu0 0.0
        %3692 = vmatpush1.msra.mxu0 0.0
        %3693 = vmatprep.subr.mxu0 0.0
        %3694 = vmatpush1.msra.mxu0 0.0
        %3695 = vmatprep.subr.mxu0 0.0
        %3696 = vmatpush1.msra.mxu0 0.0
        %3697 = vmatprep.subr.mxu0 0.0
        %3698 = vmatpush1.msra.mxu0 0.0
        %3699 = vmatprep.subr.mxu0 0.0
        %3700 = vmatpush1.msra.mxu0 0.0
        %3701 = vmatprep.subr.mxu0 0.0
        %3702 = vmatpush1.msra.mxu0 0.0
        %3703 = vmatprep.mubr.f32.mxu0 0.0
        %3704 = vmatmul.mubr.f32.gmra.mrb[0].mxu0 %v3634
        %v3705 = vpop.f32.mrb[0].mxu0
        %v3706 = vadd.f32 %v3632, %v3705
        %v3707 = vpop.f32.mrb[0].mxu0
        %3708 = vmatprep.mubr.f32.mxu0 0.0
        %3709 = vmatmul.mubr.f32.gmra.mrb[0].mxu0 %v3637
        %v3710 = vpop.f32.mrb[0].mxu0
        %v3711 = vadd.f32 %v3632, %v3710
        %v3712 = vpop.f32.mrb[0].mxu0
        %3713 = vdwg.mxu0
        %3714 = vst [vmem:[#allocation11] sm:$0xff] %v3706
        %3715 = vst [vmem:[#allocation11 + $0x8] sm:$0x7] %v3711
        %v3716 = vld [vmem:[#allocation11] sm:$0x1]
        %v3717 = vld [vmem:[#allocation11 + $0xa] sm:$0x1]
        %v3718 = vsel %vm3628, %v3716, %v3717
        %3719 = vst [vmem:[#allocation12] sm:$0x1] %v3718
        %v3720 = vld [vmem:[#allocation11 + $0x1] sm:$0x1]
        %v3721 = vld [vmem:[#allocation11 + $0x9] sm:$0x1]
        %v3722 = vsel %vm3628, %v3720, %v3721
        %3723 = vst [vmem:[#allocation12 + $0x1] sm:$0x1] %v3722
        %v3724 = vld [vmem:[#allocation11 + $0x2] sm:$0x1]
        %v3725 = vld [vmem:[#allocation11 + $0x8] sm:$0x1]
        %v3726 = vsel %vm3628, %v3724, %v3725
        %3727 = vst [vmem:[#allocation12 + $0x2] sm:$0x1] %v3726
        %v3728 = vld [vmem:[#allocation11 + $0x3] sm:$0x1]
        %v3729 = vld [vmem:[#allocation11 + $0x7] sm:$0x1]
        %v3730 = vsel %vm3628, %v3728, %v3729
        %3731 = vst [vmem:[#allocation12 + $0x3] sm:$0x1] %v3730
        %v3732 = vld [vmem:[#allocation11 + $0x4] sm:$0x1]
        %v3733 = vld [vmem:[#allocation11 + $0x6] sm:$0x1]
        %v3734 = vsel %vm3628, %v3732, %v3733
        %3735 = vst [vmem:[#allocation12 + $0x4] sm:$0x1] %v3734
        %v3736 = vld [vmem:[#allocation11 + $0x5] sm:$0x1]
        %3737 = vst [vmem:[#allocation12 + $0x5] sm:$0x1] %v3736
        %v3738 = vld [vmem:[#allocation11 + $0x6] sm:$0x1]
        %v3739 = vld [vmem:[#allocation11 + $0x4] sm:$0x1]
        %v3740 = vsel %vm3628, %v3738, %v3739
        %3741 = vst [vmem:[#allocation12 + $0x6] sm:$0x1] %v3740
        %v3742 = vld [vmem:[#allocation11 + $0x7] sm:$0x1]
        %v3743 = vld [vmem:[#allocation11 + $0x3] sm:$0x1]
        %v3744 = vsel %vm3628, %v3742, %v3743
        %3745 = vst [vmem:[#allocation12 + $0x7] sm:$0x1] %v3744
        %v3746 = vld [vmem:[#allocation11 + $0x8] sm:$0x1]
        %v3747 = vld [vmem:[#allocation11 + $0x2] sm:$0x1]
        %v3748 = vsel %vm3628, %v3746, %v3747
        %3749 = vst [vmem:[#allocation12 + $0x8] sm:$0x1] %v3748
        %v3750 = vld [vmem:[#allocation11 + $0x9] sm:$0x1]
        %v3751 = vld [vmem:[#allocation11 + $0x1] sm:$0x1]
        %v3752 = vsel %vm3628, %v3750, %v3751
        %3753 = vst [vmem:[#allocation12 + $0x9] sm:$0x1] %v3752
        %v3754 = vld [vmem:[#allocation11 + $0xa] sm:$0x1]
        %v3755 = vld [vmem:[#allocation11] sm:$0x1]
        %v3756 = vsel %vm3628, %v3754, %v3755
        %3757 = vst [vmem:[#allocation12 + $0xa] sm:$0x1] %v3756
        %v3758 = vld [vmem:[#allocation12] sm:$0x1]
        %3759 = vmatprep.subr.mxu0 0.0
        %3760 = vmatpush1.msra.mxu0 %v3622
        %3761 = vmatprep.subr.mxu0 0.0
        %3762 = vmatpush1.msra.mxu0 %v3623
        %3763 = vmatprep.subr.mxu0 0.0
        %3764 = vmatpush1.msra.mxu0 %v3624
        %3765 = vmatprep.subr.mxu0 0.0
        %3766 = vmatpush1.msra.mxu0 %v3625
        %3767 = vmatprep.subr.mxu0 0.0
        %3768 = vmatpush1.msra.mxu0 0.0
        %3769 = vmatprep.subr.mxu0 0.0
        %3770 = vmatpush1.msra.mxu0 0.0
        %3771 = vmatprep.subr.mxu0 0.0
        %3772 = vmatpush1.msra.mxu0 0.0
        %3773 = vmatprep.subr.mxu0 0.0
        %3774 = vmatpush1.msra.mxu0 0.0
        %3775 = vmatprep.subr.mxu0 0.0
        %3776 = vmatpush1.msra.mxu0 0.0
        %3777 = vmatprep.subr.mxu0 0.0
        %3778 = vmatpush1.msra.mxu0 0.0
        %3779 = vmatprep.subr.mxu0 0.0
        %3780 = vmatpush1.msra.mxu0 0.0
        %3781 = vmatprep.subr.mxu0 0.0
        %3782 = vmatpush1.msra.mxu0 0.0
        %3783 = vmatprep.subr.mxu0 0.0
        %3784 = vmatpush1.msra.mxu0 0.0
        %3785 = vmatprep.subr.mxu0 0.0
        %3786 = vmatpush1.msra.mxu0 0.0
        %3787 = vmatprep.subr.mxu0 0.0
        %3788 = vmatpush1.msra.mxu0 0.0
        %3789 = vmatprep.subr.mxu0 0.0
        %3790 = vmatpush1.msra.mxu0 0.0
        %3791 = vmatprep.subr.mxu0 0.0
        %3792 = vmatpush1.msra.mxu0 0.0
        %3793 = vmatprep.subr.mxu0 0.0
        %3794 = vmatpush1.msra.mxu0 0.0
        %3795 = vmatprep.subr.mxu0 0.0
        %3796 = vmatpush1.msra.mxu0 0.0
        %3797 = vmatprep.subr.mxu0 0.0
        %3798 = vmatpush1.msra.mxu0 0.0
        %3799 = vmatprep.subr.mxu0 0.0
        %3800 = vmatpush1.msra.mxu0 0.0
        %3801 = vmatprep.subr.mxu0 0.0
        %3802 = vmatpush1.msra.mxu0 0.0
        %3803 = vmatprep.subr.mxu0 0.0
        %3804 = vmatpush1.msra.mxu0 0.0
        %3805 = vmatprep.subr.mxu0 0.0
        %3806 = vmatpush1.msra.mxu0 0.0
        %3807 = vmatprep.subr.mxu0 0.0
        %3808 = vmatpush1.msra.mxu0 0.0
        %3809 = vmatprep.subr.mxu0 0.0
        %3810 = vmatpush1.msra.mxu0 0.0
        %3811 = vmatprep.subr.mxu0 0.0
        %3812 = vmatpush1.msra.mxu0 0.0
        %3813 = vmatprep.subr.mxu0 0.0
        %3814 = vmatpush1.msra.mxu0 0.0
        %3815 = vmatprep.subr.mxu0 0.0
        %3816 = vmatpush1.msra.mxu0 0.0
        %3817 = vmatprep.subr.mxu0 0.0
        %3818 = vmatpush1.msra.mxu0 0.0
        %3819 = vmatprep.subr.mxu0 0.0
        %3820 = vmatpush1.msra.mxu0 0.0
        %3821 = vmatprep.subr.mxu0 0.0
        %3822 = vmatpush1.msra.mxu0 0.0
        %3823 = vmatprep.mubr.f32.mxu0 0.0
        %3824 = vmatmul.mubr.f32.gmra.mrb[0].mxu0 %v2462
        %v3825 = vpop.f32.mrb[0].mxu0
        %v3826 = vadd.f32 0.0, %v3825
        %v3827 = vpop.f32.mrb[0].mxu0
        %3828 = vdwg.mxu0
        %v3829 = vadd.f32 %v3758, %v3826
        %v3830 = vxor.u32 %v3829, 2147483648
        %v3831 = vmul.f32 %v3830, 1.442695
        %v3832 = vpow.pop %v3831
        %v3833 = vadd.f32 %v3832, 1.0
        %v3834 = vrcp.pop %v3833
        %v3835 = vmul.f32 1.0, %v3834
        %v3836 = vtanh.pop %v3829
        %v3837 = vmul.f32 %v3835, 0.0
        %3839 = vrot.lane.b32.xlu0 %v3836, 32
        %v3840 = vpop.permute.xlu0 %3839
        %v3842 = vmul.f32 %v3835, %v3840
        %3844 = vrot.lane.b32.xlu0 %v3842, 32
        %v3845 = vpop.permute.xlu0 %3844
        %v3847 = vadd.f32 %v3837, %v3845
        %v3848 = vtanh.pop %v3847
        %3850 = vrot.lane.b32.xlu0 %v3848, 32
        %v3851 = vpop.permute.xlu0 %3850
        %v3853 = vmul.f32 %v3835, %v3851
        %3855 = vrot.lane.b32.xlu0 %v3853, 64
        %v3856 = vpop.permute.xlu0 %3855
        %3858 = vst.msk [vmem:[#allocation13] sm:$0x1] %vm2563, %v3856
        %3859 = vst.msk [vmem:[#allocation14 + $0xa] sm:$0x1] %vm2563, %v3856
        %v3860 = vld [vmem:[#allocation12 + $0x1] sm:$0x1]
        %v3861 = vsel %vm2208, %v3856, 0
        %3863 = vmatprep.subr.mxu0 0.0
        %3864 = vmatpush1.msra.mxu0 %v3622
        %3865 = vmatprep.subr.mxu0 0.0
        %3866 = vmatpush1.msra.mxu0 %v3623
        %3867 = vmatprep.subr.mxu0 0.0
        %3868 = vmatpush1.msra.mxu0 %v3624
        %3869 = vmatprep.subr.mxu0 0.0
        %3870 = vmatpush1.msra.mxu0 %v3625
        %3871 = vmatprep.subr.mxu0 0.0
        %3872 = vmatpush1.msra.mxu0 0.0
        %3873 = vmatprep.subr.mxu0 0.0
        %3874 = vmatpush1.msra.mxu0 0.0
        %3875 = vmatprep.subr.mxu0 0.0
        %3876 = vmatpush1.msra.mxu0 0.0
        %3877 = vmatprep.subr.mxu0 0.0
        %3878 = vmatpush1.msra.mxu0 0.0
        %3879 = vmatprep.subr.mxu0 0.0
        %3880 = vmatpush1.msra.mxu0 0.0
        %3881 = vmatprep.subr.mxu0 0.0
        %3882 = vmatpush1.msra.mxu0 0.0
        %3883 = vmatprep.subr.mxu0 0.0
        %3884 = vmatpush1.msra.mxu0 0.0
        %3885 = vmatprep.subr.mxu0 0.0
        %3886 = vmatpush1.msra.mxu0 0.0
        %3887 = vmatprep.subr.mxu0 0.0
        %3888 = vmatpush1.msra.mxu0 0.0
        %3889 = vmatprep.subr.mxu0 0.0
        %3890 = vmatpush1.msra.mxu0 0.0
        %3891 = vmatprep.subr.mxu0 0.0
        %3892 = vmatpush1.msra.mxu0 0.0
        %3893 = vmatprep.subr.mxu0 0.0
        %3894 = vmatpush1.msra.mxu0 0.0
        %3895 = vmatprep.subr.mxu0 0.0
        %3896 = vmatpush1.msra.mxu0 0.0
        %3897 = vmatprep.subr.mxu0 0.0
        %3898 = vmatpush1.msra.mxu0 0.0
        %3899 = vmatprep.subr.mxu0 0.0
        %3900 = vmatpush1.msra.mxu0 0.0
        %3901 = vmatprep.subr.mxu0 0.0
        %3902 = vmatpush1.msra.mxu0 0.0
        %3903 = vmatprep.subr.mxu0 0.0
        %3904 = vmatpush1.msra.mxu0 0.0
        %3905 = vmatprep.subr.mxu0 0.0
        %3906 = vmatpush1.msra.mxu0 0.0
        %3907 = vmatprep.subr.mxu0 0.0
        %3908 = vmatpush1.msra.mxu0 0.0
        %3909 = vmatprep.subr.mxu0 0.0
        %3910 = vmatpush1.msra.mxu0 0.0
        %3911 = vmatprep.subr.mxu0 0.0
        %3912 = vmatpush1.msra.mxu0 0.0
        %3913 = vmatprep.subr.mxu0 0.0
        %3914 = vmatpush1.msra.mxu0 0.0
        %3915 = vmatprep.subr.mxu0 0.0
        %3916 = vmatpush1.msra.mxu0 0.0
        %3917 = vmatprep.subr.mxu0 0.0
        %3918 = vmatpush1.msra.mxu0 0.0
        %3919 = vmatprep.subr.mxu0 0.0
        %3920 = vmatpush1.msra.mxu0 0.0
        %3921 = vmatprep.subr.mxu0 0.0
        %3922 = vmatpush1.msra.mxu0 0.0
        %3923 = vmatprep.subr.mxu0 0.0
        %3924 = vmatpush1.msra.mxu0 0.0
        %3925 = vmatprep.subr.mxu0 0.0
        %3926 = vmatpush1.msra.mxu0 0.0
        %3927 = vmatprep.mubr.f32.mxu0 0.0
        %3928 = vmatmul.mubr.f32.gmra.mrb[0].mxu0 %v3861
        %v3929 = vpop.f32.mrb[0].mxu0
        %v3930 = vadd.f32 0.0, %v3929
        %v3931 = vpop.f32.mrb[0].mxu0
        %3932 = vdwg.mxu0
        %v3933 = vadd.f32 %v3860, %v3930
        %v3934 = vxor.u32 %v3933, 2147483648
        %v3935 = vmul.f32 %v3934, 1.442695
        %v3936 = vpow.pop %v3935
        %v3937 = vadd.f32 %v3936, 1.0
        %v3938 = vrcp.pop %v3937
        %v3939 = vmul.f32 1.0, %v3938
        %v3940 = vtanh.pop %v3933
        %v3941 = vmul.f32 %v3939, %v3847
        %3943 = vrot.lane.b32.xlu0 %v3940, 32
        %v3944 = vpop.permute.xlu0 %3943
        %v3946 = vmul.f32 %v3939, %v3944
        %3948 = vrot.lane.b32.xlu0 %v3946, 32
        %v3949 = vpop.permute.xlu0 %3948
        %v3951 = vadd.f32 %v3941, %v3949
        %v3952 = vtanh.pop %v3951
        %3954 = vrot.lane.b32.xlu0 %v3952, 32
        %v3955 = vpop.permute.xlu0 %3954
        %v3957 = vmul.f32 %v3939, %v3955
        %3959 = vrot.lane.b32.xlu0 %v3957, 64
        %v3960 = vpop.permute.xlu0 %3959
        %3962 = vst.msk [vmem:[#allocation13 + $0x1] sm:$0x1] %vm2563, %v3960
        %3963 = vst.msk [vmem:[#allocation14 + $0x9] sm:$0x1] %vm2563, %v3960
        %v3964 = vld [vmem:[#allocation12 + $0x2] sm:$0x1]
        %v3965 = vsel %vm2208, %v3960, 0
        %3967 = vmatprep.subr.mxu0 0.0
        %3968 = vmatpush1.msra.mxu0 %v3622
        %3969 = vmatprep.subr.mxu0 0.0
        %3970 = vmatpush1.msra.mxu0 %v3623
        %3971 = vmatprep.subr.mxu0 0.0
        %3972 = vmatpush1.msra.mxu0 %v3624
        %3973 = vmatprep.subr.mxu0 0.0
        %3974 = vmatpush1.msra.mxu0 %v3625
        %3975 = vmatprep.subr.mxu0 0.0
        %3976 = vmatpush1.msra.mxu0 0.0
        %3977 = vmatprep.subr.mxu0 0.0
        %3978 = vmatpush1.msra.mxu0 0.0
        %3979 = vmatprep.subr.mxu0 0.0
        %3980 = vmatpush1.msra.mxu0 0.0
        %3981 = vmatprep.subr.mxu0 0.0
        %3982 = vmatpush1.msra.mxu0 0.0
        %3983 = vmatprep.subr.mxu0 0.0
        %3984 = vmatpush1.msra.mxu0 0.0
        %3985 = vmatprep.subr.mxu0 0.0
        %3986 = vmatpush1.msra.mxu0 0.0
        %3987 = vmatprep.subr.mxu0 0.0
        %3988 = vmatpush1.msra.mxu0 0.0
        %3989 = vmatprep.subr.mxu0 0.0
        %3990 = vmatpush1.msra.mxu0 0.0
        %3991 = vmatprep.subr.mxu0 0.0
        %3992 = vmatpush1.msra.mxu0 0.0
        %3993 = vmatprep.subr.mxu0 0.0
        %3994 = vmatpush1.msra.mxu0 0.0
        %3995 = vmatprep.subr.mxu0 0.0
        %3996 = vmatpush1.msra.mxu0 0.0
        %3997 = vmatprep.subr.mxu0 0.0
        %3998 = vmatpush1.msra.mxu0 0.0
        %3999 = vmatprep.subr.mxu0 0.0
        %4000 = vmatpush1.msra.mxu0 0.0
        %4001 = vmatprep.subr.mxu0 0.0
        %4002 = vmatpush1.msra.mxu0 0.0
        %4003 = vmatprep.subr.mxu0 0.0
        %4004 = vmatpush1.msra.mxu0 0.0
        %4005 = vmatprep.subr.mxu0 0.0
        %4006 = vmatpush1.msra.mxu0 0.0
        %4007 = vmatprep.subr.mxu0 0.0
        %4008 = vmatpush1.msra.mxu0 0.0
        %4009 = vmatprep.subr.mxu0 0.0
        %4010 = vmatpush1.msra.mxu0 0.0
        %4011 = vmatprep.subr.mxu0 0.0
        %4012 = vmatpush1.msra.mxu0 0.0
        %4013 = vmatprep.subr.mxu0 0.0
        %4014 = vmatpush1.msra.mxu0 0.0
        %4015 = vmatprep.subr.mxu0 0.0
        %4016 = vmatpush1.msra.mxu0 0.0
        %4017 = vmatprep.subr.mxu0 0.0
        %4018 = vmatpush1.msra.mxu0 0.0
        %4019 = vmatprep.subr.mxu0 0.0
        %4020 = vmatpush1.msra.mxu0 0.0
        %4021 = vmatprep.subr.mxu0 0.0
        %4022 = vmatpush1.msra.mxu0 0.0
        %4023 = vmatprep.subr.mxu0 0.0
        %4024 = vmatpush1.msra.mxu0 0.0
        %4025 = vmatprep.subr.mxu0 0.0
        %4026 = vmatpush1.msra.mxu0 0.0
        %4027 = vmatprep.subr.mxu0 0.0
        %4028 = vmatpush1.msra.mxu0 0.0
        %4029 = vmatprep.subr.mxu0 0.0
        %4030 = vmatpush1.msra.mxu0 0.0
        %4031 = vmatprep.mubr.f32.mxu0 0.0
        %4032 = vmatmul.mubr.f32.gmra.mrb[0].mxu0 %v3965
        %v4033 = vpop.f32.mrb[0].mxu0
        %v4034 = vadd.f32 0.0, %v4033
        %v4035 = vpop.f32.mrb[0].mxu0
        %4036 = vdwg.mxu0
        %v4037 = vadd.f32 %v3964, %v4034
        %v4038 = vxor.u32 %v4037, 2147483648
        %v4039 = vmul.f32 %v4038, 1.442695
        %v4040 = vpow.pop %v4039
        %v4041 = vadd.f32 %v4040, 1.0
        %v4042 = vrcp.pop %v4041
        %v4043 = vmul.f32 1.0, %v4042
        %v4044 = vtanh.pop %v4037
        %v4045 = vmul.f32 %v4043, %v3951
        %4047 = vrot.lane.b32.xlu0 %v4044, 32
        %v4048 = vpop.permute.xlu0 %4047
        %v4050 = vmul.f32 %v4043, %v4048
        %4052 = vrot.lane.b32.xlu0 %v4050, 32
        %v4053 = vpop.permute.xlu0 %4052
        %v4055 = vadd.f32 %v4045, %v4053
        %v4056 = vtanh.pop %v4055
        %4058 = vrot.lane.b32.xlu0 %v4056, 32
        %v4059 = vpop.permute.xlu0 %4058
        %v4061 = vmul.f32 %v4043, %v4059
        %4063 = vrot.lane.b32.xlu0 %v4061, 64
        %v4064 = vpop.permute.xlu0 %4063
        %4066 = vst.msk [vmem:[#allocation13 + $0x2] sm:$0x1] %vm2563, %v4064
        %4067 = vst.msk [vmem:[#allocation14 + $0x8] sm:$0x1] %vm2563, %v4064
        %v4068 = vld [vmem:[#allocation12 + $0x3] sm:$0x1]
        %v4069 = vsel %vm2208, %v4064, 0
        %4071 = vmatprep.subr.mxu0 0.0
        %4072 = vmatpush1.msra.mxu0 %v3622
        %4073 = vmatprep.subr.mxu0 0.0
        %4074 = vmatpush1.msra.mxu0 %v3623
        %4075 = vmatprep.subr.mxu0 0.0
        %4076 = vmatpush1.msra.mxu0 %v3624
        %4077 = vmatprep.subr.mxu0 0.0
        %4078 = vmatpush1.msra.mxu0 %v3625
        %4079 = vmatprep.subr.mxu0 0.0
        %4080 = vmatpush1.msra.mxu0 0.0
        %4081 = vmatprep.subr.mxu0 0.0
        %4082 = vmatpush1.msra.mxu0 0.0
        %4083 = vmatprep.subr.mxu0 0.0
        %4084 = vmatpush1.msra.mxu0 0.0
        %4085 = vmatprep.subr.mxu0 0.0
        %4086 = vmatpush1.msra.mxu0 0.0
        %4087 = vmatprep.subr.mxu0 0.0
        %4088 = vmatpush1.msra.mxu0 0.0
        %4089 = vmatprep.subr.mxu0 0.0
        %4090 = vmatpush1.msra.mxu0 0.0
        %4091 = vmatprep.subr.mxu0 0.0
        %4092 = vmatpush1.msra.mxu0 0.0
        %4093 = vmatprep.subr.mxu0 0.0
        %4094 = vmatpush1.msra.mxu0 0.0
        %4095 = vmatprep.subr.mxu0 0.0
        %4096 = vmatpush1.msra.mxu0 0.0
        %4097 = vmatprep.subr.mxu0 0.0
        %4098 = vmatpush1.msra.mxu0 0.0
        %4099 = vmatprep.subr.mxu0 0.0
        %4100 = vmatpush1.msra.mxu0 0.0
        %4101 = vmatprep.subr.mxu0 0.0
        %4102 = vmatpush1.msra.mxu0 0.0
        %4103 = vmatprep.subr.mxu0 0.0
        %4104 = vmatpush1.msra.mxu0 0.0
        %4105 = vmatprep.subr.mxu0 0.0
        %4106 = vmatpush1.msra.mxu0 0.0
        %4107 = vmatprep.subr.mxu0 0.0
        %4108 = vmatpush1.msra.mxu0 0.0
        %4109 = vmatprep.subr.mxu0 0.0
        %4110 = vmatpush1.msra.mxu0 0.0
        %4111 = vmatprep.subr.mxu0 0.0
        %4112 = vmatpush1.msra.mxu0 0.0
        %4113 = vmatprep.subr.mxu0 0.0
        %4114 = vmatpush1.msra.mxu0 0.0
        %4115 = vmatprep.subr.mxu0 0.0
        %4116 = vmatpush1.msra.mxu0 0.0
        %4117 = vmatprep.subr.mxu0 0.0
        %4118 = vmatpush1.msra.mxu0 0.0
        %4119 = vmatprep.subr.mxu0 0.0
        %4120 = vmatpush1.msra.mxu0 0.0
        %4121 = vmatprep.subr.mxu0 0.0
        %4122 = vmatpush1.msra.mxu0 0.0
        %4123 = vmatprep.subr.mxu0 0.0
        %4124 = vmatpush1.msra.mxu0 0.0
        %4125 = vmatprep.subr.mxu0 0.0
        %4126 = vmatpush1.msra.mxu0 0.0
        %4127 = vmatprep.subr.mxu0 0.0
        %4128 = vmatpush1.msra.mxu0 0.0
        %4129 = vmatprep.subr.mxu0 0.0
        %4130 = vmatpush1.msra.mxu0 0.0
        %4131 = vmatprep.subr.mxu0 0.0
        %4132 = vmatpush1.msra.mxu0 0.0
        %4133 = vmatprep.subr.mxu0 0.0
        %4134 = vmatpush1.msra.mxu0 0.0
        %4135 = vmatprep.mubr.f32.mxu0 0.0
        %4136 = vmatmul.mubr.f32.gmra.mrb[0].mxu0 %v4069
        %v4137 = vpop.f32.mrb[0].mxu0
        %v4138 = vadd.f32 0.0, %v4137
        %v4139 = vpop.f32.mrb[0].mxu0
        %4140 = vdwg.mxu0
        %v4141 = vadd.f32 %v4068, %v4138
        %v4142 = vxor.u32 %v4141, 2147483648
        %v4143 = vmul.f32 %v4142, 1.442695
        %v4144 = vpow.pop %v4143
        %v4145 = vadd.f32 %v4144, 1.0
        %v4146 = vrcp.pop %v4145
        %v4147 = vmul.f32 1.0, %v4146
        %v4148 = vtanh.pop %v4141
        %v4149 = vmul.f32 %v4147, %v4055
        %4151 = vrot.lane.b32.xlu0 %v4148, 32
        %v4152 = vpop.permute.xlu0 %4151
        %v4154 = vmul.f32 %v4147, %v4152
        %4156 = vrot.lane.b32.xlu0 %v4154, 32
        %v4157 = vpop.permute.xlu0 %4156
        %v4159 = vadd.f32 %v4149, %v4157
        %v4160 = vtanh.pop %v4159
        %4162 = vrot.lane.b32.xlu0 %v4160, 32
        %v4163 = vpop.permute.xlu0 %4162
        %v4165 = vmul.f32 %v4147, %v4163
        %4167 = vrot.lane.b32.xlu0 %v4165, 64
        %v4168 = vpop.permute.xlu0 %4167
        %4170 = vst.msk [vmem:[#allocation13 + $0x3] sm:$0x1] %vm2563, %v4168
        %4171 = vst.msk [vmem:[#allocation14 + $0x7] sm:$0x1] %vm2563, %v4168
        %v4172 = vld [vmem:[#allocation12 + $0x4] sm:$0x1]
        %v4173 = vsel %vm2208, %v4168, 0
        %4175 = vmatprep.subr.mxu0 0.0
        %4176 = vmatpush1.msra.mxu0 %v3622
        %4177 = vmatprep.subr.mxu0 0.0
        %4178 = vmatpush1.msra.mxu0 %v3623
        %4179 = vmatprep.subr.mxu0 0.0
        %4180 = vmatpush1.msra.mxu0 %v3624
        %4181 = vmatprep.subr.mxu0 0.0
        %4182 = vmatpush1.msra.mxu0 %v3625
        %4183 = vmatprep.subr.mxu0 0.0
        %4184 = vmatpush1.msra.mxu0 0.0
        %4185 = vmatprep.subr.mxu0 0.0
        %4186 = vmatpush1.msra.mxu0 0.0
        %4187 = vmatprep.subr.mxu0 0.0
        %4188 = vmatpush1.msra.mxu0 0.0
        %4189 = vmatprep.subr.mxu0 0.0
        %4190 = vmatpush1.msra.mxu0 0.0
        %4191 = vmatprep.subr.mxu0 0.0
        %4192 = vmatpush1.msra.mxu0 0.0
        %4193 = vmatprep.subr.mxu0 0.0
        %4194 = vmatpush1.msra.mxu0 0.0
        %4195 = vmatprep.subr.mxu0 0.0
        %4196 = vmatpush1.msra.mxu0 0.0
        %4197 = vmatprep.subr.mxu0 0.0
        %4198 = vmatpush1.msra.mxu0 0.0
        %4199 = vmatprep.subr.mxu0 0.0
        %4200 = vmatpush1.msra.mxu0 0.0
        %4201 = vmatprep.subr.mxu0 0.0
        %4202 = vmatpush1.msra.mxu0 0.0
        %4203 = vmatprep.subr.mxu0 0.0
        %4204 = vmatpush1.msra.mxu0 0.0
        %4205 = vmatprep.subr.mxu0 0.0
        %4206 = vmatpush1.msra.mxu0 0.0
        %4207 = vmatprep.subr.mxu0 0.0
        %4208 = vmatpush1.msra.mxu0 0.0
        %4209 = vmatprep.subr.mxu0 0.0
        %4210 = vmatpush1.msra.mxu0 0.0
        %4211 = vmatprep.subr.mxu0 0.0
        %4212 = vmatpush1.msra.mxu0 0.0
        %4213 = vmatprep.subr.mxu0 0.0
        %4214 = vmatpush1.msra.mxu0 0.0
        %4215 = vmatprep.subr.mxu0 0.0
        %4216 = vmatpush1.msra.mxu0 0.0
        %4217 = vmatprep.subr.mxu0 0.0
        %4218 = vmatpush1.msra.mxu0 0.0
        %4219 = vmatprep.subr.mxu0 0.0
        %4220 = vmatpush1.msra.mxu0 0.0
        %4221 = vmatprep.subr.mxu0 0.0
        %4222 = vmatpush1.msra.mxu0 0.0
        %4223 = vmatprep.subr.mxu0 0.0
        %4224 = vmatpush1.msra.mxu0 0.0
        %4225 = vmatprep.subr.mxu0 0.0
        %4226 = vmatpush1.msra.mxu0 0.0
        %4227 = vmatprep.subr.mxu0 0.0
        %4228 = vmatpush1.msra.mxu0 0.0
        %4229 = vmatprep.subr.mxu0 0.0
        %4230 = vmatpush1.msra.mxu0 0.0
        %4231 = vmatprep.subr.mxu0 0.0
        %4232 = vmatpush1.msra.mxu0 0.0
        %4233 = vmatprep.subr.mxu0 0.0
        %4234 = vmatpush1.msra.mxu0 0.0
        %4235 = vmatprep.subr.mxu0 0.0
        %4236 = vmatpush1.msra.mxu0 0.0
        %4237 = vmatprep.subr.mxu0 0.0
        %4238 = vmatpush1.msra.mxu0 0.0
        %4239 = vmatprep.mubr.f32.mxu0 0.0
        %4240 = vmatmul.mubr.f32.gmra.mrb[0].mxu0 %v4173
        %v4241 = vpop.f32.mrb[0].mxu0
        %v4242 = vadd.f32 0.0, %v4241
        %v4243 = vpop.f32.mrb[0].mxu0
        %4244 = vdwg.mxu0
        %v4245 = vadd.f32 %v4172, %v4242
        %v4246 = vxor.u32 %v4245, 2147483648
        %v4247 = vmul.f32 %v4246, 1.442695
        %v4248 = vpow.pop %v4247
        %v4249 = vadd.f32 %v4248, 1.0
        %v4250 = vrcp.pop %v4249
        %v4251 = vmul.f32 1.0, %v4250
        %v4252 = vtanh.pop %v4245
        %v4253 = vmul.f32 %v4251, %v4159
        %4255 = vrot.lane.b32.xlu0 %v4252, 32
        %v4256 = vpop.permute.xlu0 %4255
        %v4258 = vmul.f32 %v4251, %v4256
        %4260 = vrot.lane.b32.xlu0 %v4258, 32
        %v4261 = vpop.permute.xlu0 %4260
        %v4263 = vadd.f32 %v4253, %v4261
        %v4264 = vtanh.pop %v4263
        %4266 = vrot.lane.b32.xlu0 %v4264, 32
        %v4267 = vpop.permute.xlu0 %4266
        %v4269 = vmul.f32 %v4251, %v4267
        %4271 = vrot.lane.b32.xlu0 %v4269, 64
        %v4272 = vpop.permute.xlu0 %4271
        %4274 = vst.msk [vmem:[#allocation13 + $0x4] sm:$0x1] %vm2563, %v4272
        %4275 = vst.msk [vmem:[#allocation14 + $0x6] sm:$0x1] %vm2563, %v4272
        %v4276 = vld [vmem:[#allocation12 + $0x5] sm:$0x1]
        %v4277 = vsel %vm2208, %v4272, 0
        %4279 = vmatprep.subr.mxu0 0.0
        %4280 = vmatpush1.msra.mxu0 %v3622
        %4281 = vmatprep.subr.mxu0 0.0
        %4282 = vmatpush1.msra.mxu0 %v3623
        %4283 = vmatprep.subr.mxu0 0.0
        %4284 = vmatpush1.msra.mxu0 %v3624
        %4285 = vmatprep.subr.mxu0 0.0
        %4286 = vmatpush1.msra.mxu0 %v3625
        %4287 = vmatprep.subr.mxu0 0.0
        %4288 = vmatpush1.msra.mxu0 0.0
        %4289 = vmatprep.subr.mxu0 0.0
        %4290 = vmatpush1.msra.mxu0 0.0
        %4291 = vmatprep.subr.mxu0 0.0
        %4292 = vmatpush1.msra.mxu0 0.0
        %4293 = vmatprep.subr.mxu0 0.0
        %4294 = vmatpush1.msra.mxu0 0.0
        %4295 = vmatprep.subr.mxu0 0.0
        %4296 = vmatpush1.msra.mxu0 0.0
        %4297 = vmatprep.subr.mxu0 0.0
        %4298 = vmatpush1.msra.mxu0 0.0
        %4299 = vmatprep.subr.mxu0 0.0
        %4300 = vmatpush1.msra.mxu0 0.0
        %4301 = vmatprep.subr.mxu0 0.0
        %4302 = vmatpush1.msra.mxu0 0.0
        %4303 = vmatprep.subr.mxu0 0.0
        %4304 = vmatpush1.msra.mxu0 0.0
        %4305 = vmatprep.subr.mxu0 0.0
        %4306 = vmatpush1.msra.mxu0 0.0
        %4307 = vmatprep.subr.mxu0 0.0
        %4308 = vmatpush1.msra.mxu0 0.0
        %4309 = vmatprep.subr.mxu0 0.0
        %4310 = vmatpush1.msra.mxu0 0.0
        %4311 = vmatprep.subr.mxu0 0.0
        %4312 = vmatpush1.msra.mxu0 0.0
        %4313 = vmatprep.subr.mxu0 0.0
        %4314 = vmatpush1.msra.mxu0 0.0
        %4315 = vmatprep.subr.mxu0 0.0
        %4316 = vmatpush1.msra.mxu0 0.0
        %4317 = vmatprep.subr.mxu0 0.0
        %4318 = vmatpush1.msra.mxu0 0.0
        %4319 = vmatprep.subr.mxu0 0.0
        %4320 = vmatpush1.msra.mxu0 0.0
        %4321 = vmatprep.subr.mxu0 0.0
        %4322 = vmatpush1.msra.mxu0 0.0
        %4323 = vmatprep.subr.mxu0 0.0
        %4324 = vmatpush1.msra.mxu0 0.0
        %4325 = vmatprep.subr.mxu0 0.0
        %4326 = vmatpush1.msra.mxu0 0.0
        %4327 = vmatprep.subr.mxu0 0.0
        %4328 = vmatpush1.msra.mxu0 0.0
        %4329 = vmatprep.subr.mxu0 0.0
        %4330 = vmatpush1.msra.mxu0 0.0
        %4331 = vmatprep.subr.mxu0 0.0
        %4332 = vmatpush1.msra.mxu0 0.0
        %4333 = vmatprep.subr.mxu0 0.0
        %4334 = vmatpush1.msra.mxu0 0.0
        %4335 = vmatprep.subr.mxu0 0.0
        %4336 = vmatpush1.msra.mxu0 0.0
        %4337 = vmatprep.subr.mxu0 0.0
        %4338 = vmatpush1.msra.mxu0 0.0
        %4339 = vmatprep.subr.mxu0 0.0
        %4340 = vmatpush1.msra.mxu0 0.0
        %4341 = vmatprep.subr.mxu0 0.0
        %4342 = vmatpush1.msra.mxu0 0.0
        %4343 = vmatprep.mubr.f32.mxu0 0.0
        %4344 = vmatmul.mubr.f32.gmra.mrb[0].mxu0 %v4277
        %v4345 = vpop.f32.mrb[0].mxu0
        %v4346 = vadd.f32 0.0, %v4345
        %v4347 = vpop.f32.mrb[0].mxu0
        %4348 = vdwg.mxu0
        %v4349 = vadd.f32 %v4276, %v4346
        %v4350 = vxor.u32 %v4349, 2147483648
        %v4351 = vmul.f32 %v4350, 1.442695
        %v4352 = vpow.pop %v4351
        %v4353 = vadd.f32 %v4352, 1.0
        %v4354 = vrcp.pop %v4353
        %v4355 = vmul.f32 1.0, %v4354
        %v4356 = vtanh.pop %v4349
        %v4357 = vmul.f32 %v4355, %v4263
        %4359 = vrot.lane.b32.xlu0 %v4356, 32
        %v4360 = vpop.permute.xlu0 %4359
        %v4362 = vmul.f32 %v4355, %v4360
        %4364 = vrot.lane.b32.xlu0 %v4362, 32
        %v4365 = vpop.permute.xlu0 %4364
        %v4367 = vadd.f32 %v4357, %v4365
        %v4368 = vtanh.pop %v4367
        %4370 = vrot.lane.b32.xlu0 %v4368, 32
        %v4371 = vpop.permute.xlu0 %4370
        %v4373 = vmul.f32 %v4355, %v4371
        %4375 = vrot.lane.b32.xlu0 %v4373, 64
        %v4376 = vpop.permute.xlu0 %4375
        %4378 = vst.msk [vmem:[#allocation13 + $0x5] sm:$0x1] %vm2563, %v4376
        %4379 = vst.msk [vmem:[#allocation14 + $0x5] sm:$0x1] %vm2563, %v4376
        %v4380 = vld [vmem:[#allocation12 + $0x6] sm:$0x1]
        %v4381 = vsel %vm2208, %v4376, 0
        %4383 = vmatprep.subr.mxu0 0.0
        %4384 = vmatpush1.msra.mxu0 %v3622
        %4385 = vmatprep.subr.mxu0 0.0
        %4386 = vmatpush1.msra.mxu0 %v3623
        %4387 = vmatprep.subr.mxu0 0.0
        %4388 = vmatpush1.msra.mxu0 %v3624
        %4389 = vmatprep.subr.mxu0 0.0
        %4390 = vmatpush1.msra.mxu0 %v3625
        %4391 = vmatprep.subr.mxu0 0.0
        %4392 = vmatpush1.msra.mxu0 0.0
        %4393 = vmatprep.subr.mxu0 0.0
        %4394 = vmatpush1.msra.mxu0 0.0
        %4395 = vmatprep.subr.mxu0 0.0
        %4396 = vmatpush1.msra.mxu0 0.0
        %4397 = vmatprep.subr.mxu0 0.0
        %4398 = vmatpush1.msra.mxu0 0.0
        %4399 = vmatprep.subr.mxu0 0.0
        %4400 = vmatpush1.msra.mxu0 0.0
        %4401 = vmatprep.subr.mxu0 0.0
        %4402 = vmatpush1.msra.mxu0 0.0
        %4403 = vmatprep.subr.mxu0 0.0
        %4404 = vmatpush1.msra.mxu0 0.0
        %4405 = vmatprep.subr.mxu0 0.0
        %4406 = vmatpush1.msra.mxu0 0.0
        %4407 = vmatprep.subr.mxu0 0.0
        %4408 = vmatpush1.msra.mxu0 0.0
        %4409 = vmatprep.subr.mxu0 0.0
        %4410 = vmatpush1.msra.mxu0 0.0
        %4411 = vmatprep.subr.mxu0 0.0
        %4412 = vmatpush1.msra.mxu0 0.0
        %4413 = vmatprep.subr.mxu0 0.0
        %4414 = vmatpush1.msra.mxu0 0.0
        %4415 = vmatprep.subr.mxu0 0.0
        %4416 = vmatpush1.msra.mxu0 0.0
        %4417 = vmatprep.subr.mxu0 0.0
        %4418 = vmatpush1.msra.mxu0 0.0
        %4419 = vmatprep.subr.mxu0 0.0
        %4420 = vmatpush1.msra.mxu0 0.0
        %4421 = vmatprep.subr.mxu0 0.0
        %4422 = vmatpush1.msra.mxu0 0.0
        %4423 = vmatprep.subr.mxu0 0.0
        %4424 = vmatpush1.msra.mxu0 0.0
        %4425 = vmatprep.subr.mxu0 0.0
        %4426 = vmatpush1.msra.mxu0 0.0
        %4427 = vmatprep.subr.mxu0 0.0
        %4428 = vmatpush1.msra.mxu0 0.0
        %4429 = vmatprep.subr.mxu0 0.0
        %4430 = vmatpush1.msra.mxu0 0.0
        %4431 = vmatprep.subr.mxu0 0.0
        %4432 = vmatpush1.msra.mxu0 0.0
        %4433 = vmatprep.subr.mxu0 0.0
        %4434 = vmatpush1.msra.mxu0 0.0
        %4435 = vmatprep.subr.mxu0 0.0
        %4436 = vmatpush1.msra.mxu0 0.0
        %4437 = vmatprep.subr.mxu0 0.0
        %4438 = vmatpush1.msra.mxu0 0.0
        %4439 = vmatprep.subr.mxu0 0.0
        %4440 = vmatpush1.msra.mxu0 0.0
        %4441 = vmatprep.subr.mxu0 0.0
        %4442 = vmatpush1.msra.mxu0 0.0
        %4443 = vmatprep.subr.mxu0 0.0
        %4444 = vmatpush1.msra.mxu0 0.0
        %4445 = vmatprep.subr.mxu0 0.0
        %4446 = vmatpush1.msra.mxu0 0.0
        %4447 = vmatprep.mubr.f32.mxu0 0.0
        %4448 = vmatmul.mubr.f32.gmra.mrb[0].mxu0 %v4381
        %v4449 = vpop.f32.mrb[0].mxu0
        %v4450 = vadd.f32 0.0, %v4449
        %v4451 = vpop.f32.mrb[0].mxu0
        %4452 = vdwg.mxu0
        %v4453 = vadd.f32 %v4380, %v4450
        %v4454 = vxor.u32 %v4453, 2147483648
        %v4455 = vmul.f32 %v4454, 1.442695
        %v4456 = vpow.pop %v4455
        %v4457 = vadd.f32 %v4456, 1.0
        %v4458 = vrcp.pop %v4457
        %v4459 = vmul.f32 1.0, %v4458
        %v4460 = vtanh.pop %v4453
        %v4461 = vmul.f32 %v4459, %v4367
        %4463 = vrot.lane.b32.xlu0 %v4460, 32
        %v4464 = vpop.permute.xlu0 %4463
        %v4466 = vmul.f32 %v4459, %v4464
        %4468 = vrot.lane.b32.xlu0 %v4466, 32
        %v4469 = vpop.permute.xlu0 %4468
        %v4471 = vadd.f32 %v4461, %v4469
        %v4472 = vtanh.pop %v4471
        %4474 = vrot.lane.b32.xlu0 %v4472, 32
        %v4475 = vpop.permute.xlu0 %4474
        %v4477 = vmul.f32 %v4459, %v4475
        %4479 = vrot.lane.b32.xlu0 %v4477, 64
        %v4480 = vpop.permute.xlu0 %4479
        %4482 = vst.msk [vmem:[#allocation13 + $0x6] sm:$0x1] %vm2563, %v4480
        %4483 = vst.msk [vmem:[#allocation14 + $0x4] sm:$0x1] %vm2563, %v4480
        %v4484 = vld [vmem:[#allocation12 + $0x7] sm:$0x1]
        %v4485 = vsel %vm2208, %v4480, 0
        %4487 = vmatprep.subr.mxu0 0.0
        %4488 = vmatpush1.msra.mxu0 %v3622
        %4489 = vmatprep.subr.mxu0 0.0
        %4490 = vmatpush1.msra.mxu0 %v3623
        %4491 = vmatprep.subr.mxu0 0.0
        %4492 = vmatpush1.msra.mxu0 %v3624
        %4493 = vmatprep.subr.mxu0 0.0
        %4494 = vmatpush1.msra.mxu0 %v3625
        %4495 = vmatprep.subr.mxu0 0.0
        %4496 = vmatpush1.msra.mxu0 0.0
        %4497 = vmatprep.subr.mxu0 0.0
        %4498 = vmatpush1.msra.mxu0 0.0
        %4499 = vmatprep.subr.mxu0 0.0
        %4500 = vmatpush1.msra.mxu0 0.0
        %4501 = vmatprep.subr.mxu0 0.0
        %4502 = vmatpush1.msra.mxu0 0.0
        %4503 = vmatprep.subr.mxu0 0.0
        %4504 = vmatpush1.msra.mxu0 0.0
        %4505 = vmatprep.subr.mxu0 0.0
        %4506 = vmatpush1.msra.mxu0 0.0
        %4507 = vmatprep.subr.mxu0 0.0
        %4508 = vmatpush1.msra.mxu0 0.0
        %4509 = vmatprep.subr.mxu0 0.0
        %4510 = vmatpush1.msra.mxu0 0.0
        %4511 = vmatprep.subr.mxu0 0.0
        %4512 = vmatpush1.msra.mxu0 0.0
        %4513 = vmatprep.subr.mxu0 0.0
        %4514 = vmatpush1.msra.mxu0 0.0
        %4515 = vmatprep.subr.mxu0 0.0
        %4516 = vmatpush1.msra.mxu0 0.0
        %4517 = vmatprep.subr.mxu0 0.0
        %4518 = vmatpush1.msra.mxu0 0.0
        %4519 = vmatprep.subr.mxu0 0.0
        %4520 = vmatpush1.msra.mxu0 0.0
        %4521 = vmatprep.subr.mxu0 0.0
        %4522 = vmatpush1.msra.mxu0 0.0
        %4523 = vmatprep.subr.mxu0 0.0
        %4524 = vmatpush1.msra.mxu0 0.0
        %4525 = vmatprep.subr.mxu0 0.0
        %4526 = vmatpush1.msra.mxu0 0.0
        %4527 = vmatprep.subr.mxu0 0.0
        %4528 = vmatpush1.msra.mxu0 0.0
        %4529 = vmatprep.subr.mxu0 0.0
        %4530 = vmatpush1.msra.mxu0 0.0
        %4531 = vmatprep.subr.mxu0 0.0
        %4532 = vmatpush1.msra.mxu0 0.0
        %4533 = vmatprep.subr.mxu0 0.0
        %4534 = vmatpush1.msra.mxu0 0.0
        %4535 = vmatprep.subr.mxu0 0.0
        %4536 = vmatpush1.msra.mxu0 0.0
        %4537 = vmatprep.subr.mxu0 0.0
        %4538 = vmatpush1.msra.mxu0 0.0
        %4539 = vmatprep.subr.mxu0 0.0
        %4540 = vmatpush1.msra.mxu0 0.0
        %4541 = vmatprep.subr.mxu0 0.0
        %4542 = vmatpush1.msra.mxu0 0.0
        %4543 = vmatprep.subr.mxu0 0.0
        %4544 = vmatpush1.msra.mxu0 0.0
        %4545 = vmatprep.subr.mxu0 0.0
        %4546 = vmatpush1.msra.mxu0 0.0
        %4547 = vmatprep.subr.mxu0 0.0
        %4548 = vmatpush1.msra.mxu0 0.0
        %4549 = vmatprep.subr.mxu0 0.0
        %4550 = vmatpush1.msra.mxu0 0.0
        %4551 = vmatprep.mubr.f32.mxu0 0.0
        %4552 = vmatmul.mubr.f32.gmra.mrb[0].mxu0 %v4485
        %v4553 = vpop.f32.mrb[0].mxu0
        %v4554 = vadd.f32 0.0, %v4553
        %v4555 = vpop.f32.mrb[0].mxu0
        %4556 = vdwg.mxu0
        %v4557 = vadd.f32 %v4484, %v4554
        %v4558 = vxor.u32 %v4557, 2147483648
        %v4559 = vmul.f32 %v4558, 1.442695
        %v4560 = vpow.pop %v4559
        %v4561 = vadd.f32 %v4560, 1.0
        %v4562 = vrcp.pop %v4561
        %v4563 = vmul.f32 1.0, %v4562
        %v4564 = vtanh.pop %v4557
        %v4565 = vmul.f32 %v4563, %v4471
        %4567 = vrot.lane.b32.xlu0 %v4564, 32
        %v4568 = vpop.permute.xlu0 %4567
        %v4570 = vmul.f32 %v4563, %v4568
        %4572 = vrot.lane.b32.xlu0 %v4570, 32
        %v4573 = vpop.permute.xlu0 %4572
        %v4575 = vadd.f32 %v4565, %v4573
        %v4576 = vtanh.pop %v4575
        %4578 = vrot.lane.b32.xlu0 %v4576, 32
        %v4579 = vpop.permute.xlu0 %4578
        %v4581 = vmul.f32 %v4563, %v4579
        %4583 = vrot.lane.b32.xlu0 %v4581, 64
        %v4584 = vpop.permute.xlu0 %4583
        %4586 = vst.msk [vmem:[#allocation13 + $0x7] sm:$0x1] %vm2563, %v4584
        %4587 = vst.msk [vmem:[#allocation14 + $0x3] sm:$0x1] %vm2563, %v4584
        %v4588 = vld [vmem:[#allocation12 + $0x8] sm:$0x1]
        %v4589 = vsel %vm2208, %v4584, 0
        %4591 = vmatprep.subr.mxu0 0.0
        %4592 = vmatpush1.msra.mxu0 %v3622
        %4593 = vmatprep.subr.mxu0 0.0
        %4594 = vmatpush1.msra.mxu0 %v3623
        %4595 = vmatprep.subr.mxu0 0.0
        %4596 = vmatpush1.msra.mxu0 %v3624
        %4597 = vmatprep.subr.mxu0 0.0
        %4598 = vmatpush1.msra.mxu0 %v3625
        %4599 = vmatprep.subr.mxu0 0.0
        %4600 = vmatpush1.msra.mxu0 0.0
        %4601 = vmatprep.subr.mxu0 0.0
        %4602 = vmatpush1.msra.mxu0 0.0
        %4603 = vmatprep.subr.mxu0 0.0
        %4604 = vmatpush1.msra.mxu0 0.0
        %4605 = vmatprep.subr.mxu0 0.0
        %4606 = vmatpush1.msra.mxu0 0.0
        %4607 = vmatprep.subr.mxu0 0.0
        %4608 = vmatpush1.msra.mxu0 0.0
        %4609 = vmatprep.subr.mxu0 0.0
        %4610 = vmatpush1.msra.mxu0 0.0
        %4611 = vmatprep.subr.mxu0 0.0
        %4612 = vmatpush1.msra.mxu0 0.0
        %4613 = vmatprep.subr.mxu0 0.0
        %4614 = vmatpush1.msra.mxu0 0.0
        %4615 = vmatprep.subr.mxu0 0.0
        %4616 = vmatpush1.msra.mxu0 0.0
        %4617 = vmatprep.subr.mxu0 0.0
        %4618 = vmatpush1.msra.mxu0 0.0
        %4619 = vmatprep.subr.mxu0 0.0
        %4620 = vmatpush1.msra.mxu0 0.0
        %4621 = vmatprep.subr.mxu0 0.0
        %4622 = vmatpush1.msra.mxu0 0.0
        %4623 = vmatprep.subr.mxu0 0.0
        %4624 = vmatpush1.msra.mxu0 0.0
        %4625 = vmatprep.subr.mxu0 0.0
        %4626 = vmatpush1.msra.mxu0 0.0
        %4627 = vmatprep.subr.mxu0 0.0
        %4628 = vmatpush1.msra.mxu0 0.0
        %4629 = vmatprep.subr.mxu0 0.0
        %4630 = vmatpush1.msra.mxu0 0.0
        %4631 = vmatprep.subr.mxu0 0.0
        %4632 = vmatpush1.msra.mxu0 0.0
        %4633 = vmatprep.subr.mxu0 0.0
        %4634 = vmatpush1.msra.mxu0 0.0
        %4635 = vmatprep.subr.mxu0 0.0
        %4636 = vmatpush1.msra.mxu0 0.0
        %4637 = vmatprep.subr.mxu0 0.0
        %4638 = vmatpush1.msra.mxu0 0.0
        %4639 = vmatprep.subr.mxu0 0.0
        %4640 = vmatpush1.msra.mxu0 0.0
        %4641 = vmatprep.subr.mxu0 0.0
        %4642 = vmatpush1.msra.mxu0 0.0
        %4643 = vmatprep.subr.mxu0 0.0
        %4644 = vmatpush1.msra.mxu0 0.0
        %4645 = vmatprep.subr.mxu0 0.0
        %4646 = vmatpush1.msra.mxu0 0.0
        %4647 = vmatprep.subr.mxu0 0.0
        %4648 = vmatpush1.msra.mxu0 0.0
        %4649 = vmatprep.subr.mxu0 0.0
        %4650 = vmatpush1.msra.mxu0 0.0
        %4651 = vmatprep.subr.mxu0 0.0
        %4652 = vmatpush1.msra.mxu0 0.0
        %4653 = vmatprep.subr.mxu0 0.0
        %4654 = vmatpush1.msra.mxu0 0.0
        %4655 = vmatprep.mubr.f32.mxu0 0.0
        %4656 = vmatmul.mubr.f32.gmra.mrb[0].mxu0 %v4589
        %v4657 = vpop.f32.mrb[0].mxu0
        %v4658 = vadd.f32 0.0, %v4657
        %v4659 = vpop.f32.mrb[0].mxu0
        %4660 = vdwg.mxu0
        %v4661 = vadd.f32 %v4588, %v4658
        %v4662 = vxor.u32 %v4661, 2147483648
        %v4663 = vmul.f32 %v4662, 1.442695
        %v4664 = vpow.pop %v4663
        %v4665 = vadd.f32 %v4664, 1.0
        %v4666 = vrcp.pop %v4665
        %v4667 = vmul.f32 1.0, %v4666
        %v4668 = vtanh.pop %v4661
        %v4669 = vmul.f32 %v4667, %v4575
        %4671 = vrot.lane.b32.xlu0 %v4668, 32
        %v4672 = vpop.permute.xlu0 %4671
        %v4674 = vmul.f32 %v4667, %v4672
        %4676 = vrot.lane.b32.xlu0 %v4674, 32
        %v4677 = vpop.permute.xlu0 %4676
        %v4679 = vadd.f32 %v4669, %v4677
        %v4680 = vtanh.pop %v4679
        %4682 = vrot.lane.b32.xlu0 %v4680, 32
        %v4683 = vpop.permute.xlu0 %4682
        %v4685 = vmul.f32 %v4667, %v4683
        %4687 = vrot.lane.b32.xlu0 %v4685, 64
        %v4688 = vpop.permute.xlu0 %4687
        %4690 = vst.msk [vmem:[#allocation13 + $0x8] sm:$0x1] %vm2563, %v4688
        %4691 = vst.msk [vmem:[#allocation14 + $0x2] sm:$0x1] %vm2563, %v4688
        %v4692 = vld [vmem:[#allocation12 + $0x9] sm:$0x1]
        %v4693 = vsel %vm2208, %v4688, 0
        %4695 = vmatprep.subr.mxu0 0.0
        %4696 = vmatpush1.msra.mxu0 %v3622
        %4697 = vmatprep.subr.mxu0 0.0
        %4698 = vmatpush1.msra.mxu0 %v3623
        %4699 = vmatprep.subr.mxu0 0.0
        %4700 = vmatpush1.msra.mxu0 %v3624
        %4701 = vmatprep.subr.mxu0 0.0
        %4702 = vmatpush1.msra.mxu0 %v3625
        %4703 = vmatprep.subr.mxu0 0.0
        %4704 = vmatpush1.msra.mxu0 0.0
        %4705 = vmatprep.subr.mxu0 0.0
        %4706 = vmatpush1.msra.mxu0 0.0
        %4707 = vmatprep.subr.mxu0 0.0
        %4708 = vmatpush1.msra.mxu0 0.0
        %4709 = vmatprep.subr.mxu0 0.0
        %4710 = vmatpush1.msra.mxu0 0.0
        %4711 = vmatprep.subr.mxu0 0.0
        %4712 = vmatpush1.msra.mxu0 0.0
        %4713 = vmatprep.subr.mxu0 0.0
        %4714 = vmatpush1.msra.mxu0 0.0
        %4715 = vmatprep.subr.mxu0 0.0
        %4716 = vmatpush1.msra.mxu0 0.0
        %4717 = vmatprep.subr.mxu0 0.0
        %4718 = vmatpush1.msra.mxu0 0.0
        %4719 = vmatprep.subr.mxu0 0.0
        %4720 = vmatpush1.msra.mxu0 0.0
        %4721 = vmatprep.subr.mxu0 0.0
        %4722 = vmatpush1.msra.mxu0 0.0
        %4723 = vmatprep.subr.mxu0 0.0
        %4724 = vmatpush1.msra.mxu0 0.0
        %4725 = vmatprep.subr.mxu0 0.0
        %4726 = vmatpush1.msra.mxu0 0.0
        %4727 = vmatprep.subr.mxu0 0.0
        %4728 = vmatpush1.msra.mxu0 0.0
        %4729 = vmatprep.subr.mxu0 0.0
        %4730 = vmatpush1.msra.mxu0 0.0
        %4731 = vmatprep.subr.mxu0 0.0
        %4732 = vmatpush1.msra.mxu0 0.0
        %4733 = vmatprep.subr.mxu0 0.0
        %4734 = vmatpush1.msra.mxu0 0.0
        %4735 = vmatprep.subr.mxu0 0.0
        %4736 = vmatpush1.msra.mxu0 0.0
        %4737 = vmatprep.subr.mxu0 0.0
        %4738 = vmatpush1.msra.mxu0 0.0
        %4739 = vmatprep.subr.mxu0 0.0
        %4740 = vmatpush1.msra.mxu0 0.0
        %4741 = vmatprep.subr.mxu0 0.0
        %4742 = vmatpush1.msra.mxu0 0.0
        %4743 = vmatprep.subr.mxu0 0.0
        %4744 = vmatpush1.msra.mxu0 0.0
        %4745 = vmatprep.subr.mxu0 0.0
        %4746 = vmatpush1.msra.mxu0 0.0
        %4747 = vmatprep.subr.mxu0 0.0
        %4748 = vmatpush1.msra.mxu0 0.0
        %4749 = vmatprep.subr.mxu0 0.0
        %4750 = vmatpush1.msra.mxu0 0.0
        %4751 = vmatprep.subr.mxu0 0.0
        %4752 = vmatpush1.msra.mxu0 0.0
        %4753 = vmatprep.subr.mxu0 0.0
        %4754 = vmatpush1.msra.mxu0 0.0
        %4755 = vmatprep.subr.mxu0 0.0
        %4756 = vmatpush1.msra.mxu0 0.0
        %4757 = vmatprep.subr.mxu0 0.0
        %4758 = vmatpush1.msra.mxu0 0.0
        %4759 = vmatprep.mubr.f32.mxu0 0.0
        %4760 = vmatmul.mubr.f32.gmra.mrb[0].mxu0 %v4693
        %v4761 = vpop.f32.mrb[0].mxu0
        %v4762 = vadd.f32 0.0, %v4761
        %v4763 = vpop.f32.mrb[0].mxu0
        %4764 = vdwg.mxu0
        %v4765 = vadd.f32 %v4692, %v4762
        %v4766 = vxor.u32 %v4765, 2147483648
        %v4767 = vmul.f32 %v4766, 1.442695
        %v4768 = vpow.pop %v4767
        %v4769 = vadd.f32 %v4768, 1.0
        %v4770 = vrcp.pop %v4769
        %v4771 = vmul.f32 1.0, %v4770
        %v4772 = vtanh.pop %v4765
        %v4773 = vmul.f32 %v4771, %v4679
        %4775 = vrot.lane.b32.xlu0 %v4772, 32
        %v4776 = vpop.permute.xlu0 %4775
        %v4778 = vmul.f32 %v4771, %v4776
        %4780 = vrot.lane.b32.xlu0 %v4778, 32
        %v4781 = vpop.permute.xlu0 %4780
        %v4783 = vadd.f32 %v4773, %v4781
        %v4784 = vtanh.pop %v4783
        %4786 = vrot.lane.b32.xlu0 %v4784, 32
        %v4787 = vpop.permute.xlu0 %4786
        %v4789 = vmul.f32 %v4771, %v4787
        %4791 = vrot.lane.b32.xlu0 %v4789, 64
        %v4792 = vpop.permute.xlu0 %4791
        %4794 = vst.msk [vmem:[#allocation13 + $0x9] sm:$0x1] %vm2563, %v4792
        %4795 = vst.msk [vmem:[#allocation14 + $0x1] sm:$0x1] %vm2563, %v4792
        %v4796 = vld [vmem:[#allocation12 + $0xa] sm:$0x1]
        %v4797 = vsel %vm2208, %v4792, 0
        %4799 = vmatprep.subr.mxu0 0.0
        %4800 = vmatpush1.msra.mxu0 %v3622
        %4801 = vmatprep.subr.mxu0 0.0
        %4802 = vmatpush1.msra.mxu0 %v3623
        %4803 = vmatprep.subr.mxu0 0.0
        %4804 = vmatpush1.msra.mxu0 %v3624
        %4805 = vmatprep.subr.mxu0 0.0
        %4806 = vmatpush1.msra.mxu0 %v3625
        %4807 = vmatprep.subr.mxu0 0.0
        %4808 = vmatpush1.msra.mxu0 0.0
        %4809 = vmatprep.subr.mxu0 0.0
        %4810 = vmatpush1.msra.mxu0 0.0
        %4811 = vmatprep.subr.mxu0 0.0
        %4812 = vmatpush1.msra.mxu0 0.0
        %4813 = vmatprep.subr.mxu0 0.0
        %4814 = vmatpush1.msra.mxu0 0.0
        %4815 = vmatprep.subr.mxu0 0.0
        %4816 = vmatpush1.msra.mxu0 0.0
        %4817 = vmatprep.subr.mxu0 0.0
        %4818 = vmatpush1.msra.mxu0 0.0
        %4819 = vmatprep.subr.mxu0 0.0
        %4820 = vmatpush1.msra.mxu0 0.0
        %4821 = vmatprep.subr.mxu0 0.0
        %4822 = vmatpush1.msra.mxu0 0.0
        %4823 = vmatprep.subr.mxu0 0.0
        %4824 = vmatpush1.msra.mxu0 0.0
        %4825 = vmatprep.subr.mxu0 0.0
        %4826 = vmatpush1.msra.mxu0 0.0
        %4827 = vmatprep.subr.mxu0 0.0
        %4828 = vmatpush1.msra.mxu0 0.0
        %4829 = vmatprep.subr.mxu0 0.0
        %4830 = vmatpush1.msra.mxu0 0.0
        %4831 = vmatprep.subr.mxu0 0.0
        %4832 = vmatpush1.msra.mxu0 0.0
        %4833 = vmatprep.subr.mxu0 0.0
        %4834 = vmatpush1.msra.mxu0 0.0
        %4835 = vmatprep.subr.mxu0 0.0
        %4836 = vmatpush1.msra.mxu0 0.0
        %4837 = vmatprep.subr.mxu0 0.0
        %4838 = vmatpush1.msra.mxu0 0.0
        %4839 = vmatprep.subr.mxu0 0.0
        %4840 = vmatpush1.msra.mxu0 0.0
        %4841 = vmatprep.subr.mxu0 0.0
        %4842 = vmatpush1.msra.mxu0 0.0
        %4843 = vmatprep.subr.mxu0 0.0
        %4844 = vmatpush1.msra.mxu0 0.0
        %4845 = vmatprep.subr.mxu0 0.0
        %4846 = vmatpush1.msra.mxu0 0.0
        %4847 = vmatprep.subr.mxu0 0.0
        %4848 = vmatpush1.msra.mxu0 0.0
        %4849 = vmatprep.subr.mxu0 0.0
        %4850 = vmatpush1.msra.mxu0 0.0
        %4851 = vmatprep.subr.mxu0 0.0
        %4852 = vmatpush1.msra.mxu0 0.0
        %4853 = vmatprep.subr.mxu0 0.0
        %4854 = vmatpush1.msra.mxu0 0.0
        %4855 = vmatprep.subr.mxu0 0.0
        %4856 = vmatpush1.msra.mxu0 0.0
        %4857 = vmatprep.subr.mxu0 0.0
        %4858 = vmatpush1.msra.mxu0 0.0
        %4859 = vmatprep.subr.mxu0 0.0
        %4860 = vmatpush1.msra.mxu0 0.0
        %4861 = vmatprep.subr.mxu0 0.0
        %4862 = vmatpush1.msra.mxu0 0.0
        %4863 = vmatprep.mubr.f32.mxu0 0.0
        %4864 = vmatmul.mubr.f32.gmra.mrb[0].mxu0 %v4797
        %v4865 = vpop.f32.mrb[0].mxu0
        %v4866 = vadd.f32 0.0, %v4865
        %v4867 = vpop.f32.mrb[0].mxu0
        %4868 = vdwg.mxu0
        %v4869 = vadd.f32 %v4796, %v4866
        %v4870 = vxor.u32 %v4869, 2147483648
        %v4871 = vmul.f32 %v4870, 1.442695
        %v4872 = vpow.pop %v4871
        %v4873 = vadd.f32 %v4872, 1.0
        %v4874 = vrcp.pop %v4873
        %v4875 = vmul.f32 1.0, %v4874
        %v4876 = vtanh.pop %v4869
        %v4877 = vmul.f32 %v4875, %v4783
        %4879 = vrot.lane.b32.xlu0 %v4876, 32
        %v4880 = vpop.permute.xlu0 %4879
        %v4882 = vmul.f32 %v4875, %v4880
        %4884 = vrot.lane.b32.xlu0 %v4882, 32
        %v4885 = vpop.permute.xlu0 %4884
        %v4887 = vadd.f32 %v4877, %v4885
        %v4888 = vtanh.pop %v4887
        %4890 = vrot.lane.b32.xlu0 %v4888, 32
        %v4891 = vpop.permute.xlu0 %4890
        %v4893 = vmul.f32 %v4875, %v4891
        %4895 = vrot.lane.b32.xlu0 %v4893, 64
        %v4896 = vpop.permute.xlu0 %4895
        %4898 = vst.msk [vmem:[#allocation13 + $0xa] sm:$0x1] %vm2563, %v4896
        %4899 = vst.msk [vmem:[#allocation14] sm:$0x1] %vm2563, %v4896
        %v4900 = vld [vmem:[#allocation13] sm:$0xff]
        %v4901 = vld [vmem:[#allocation13 + $0x8] sm:$0x7]
        %v4902 = vld [vmem:[#allocation14] sm:$0xff]
        %v4903 = vld [vmem:[#allocation14 + $0x8] sm:$0x7]
        %v4904 = vsel %vm3628, 1, 0
        %v4905 = vlaneseq
        %v4906 = vshrl.u32 %v4905, 7
        %v4907 = vsub.s32 0, %v4906
        %v4908 = vrot.slane %v4904, %v4907
        %vm4909 = vcmp.eq.s32.totalorder %v4908, 1
        %v4910 = vsel %vm4909, %v4900, %v4902
        %v4911 = vsel %vm4909, %v4901, %v4903
        %4912 = vst.msk [vmem:[#allocation13] sm:$0xff] %vm2208, %v4910
        %vm4913 = vcmask 256000
        %4914 = vst.msk [vmem:[#allocation13 + $0x8] sm:$0x7] %vm4913, %v4911
        %v4915 = vld [vmem:[%s6 + $0x160] sm:$0x1]
        %v4916 = vld [vmem:[#allocation13] sm:$0x1]
        %v4917 = vld [vmem:[%s6] sm:$0xff]
        %v4918 = vld [vmem:[%s6 + $0x8] sm:$0xff]
        %v4919 = vld [vmem:[%s6 + $0x10] sm:$0xff]
        %v4920 = vld [vmem:[%s6 + $0x18] sm:$0xff]
        %v4922 = vsel %vm2208, %v4916, 0
        %4924 = vmatprep.subr.mxu0 0.0
        %4925 = vmatpush1.msra.mxu0 %v4917
        %4926 = vmatprep.subr.mxu0 0.0
        %4927 = vmatpush1.msra.mxu0 %v4918
        %4928 = vmatprep.subr.mxu0 0.0
        %4929 = vmatpush1.msra.mxu0 %v4919
        %4930 = vmatprep.subr.mxu0 0.0
        %4931 = vmatpush1.msra.mxu0 %v4920
        %4932 = vmatprep.subr.mxu0 0.0
        %4933 = vmatpush1.msra.mxu0 0.0
        %4934 = vmatprep.subr.mxu0 0.0
        %4935 = vmatpush1.msra.mxu0 0.0
        %4936 = vmatprep.subr.mxu0 0.0
        %4937 = vmatpush1.msra.mxu0 0.0
        %4938 = vmatprep.subr.mxu0 0.0
        %4939 = vmatpush1.msra.mxu0 0.0
        %4940 = vmatprep.subr.mxu0 0.0
        %4941 = vmatpush1.msra.mxu0 0.0
        %4942 = vmatprep.subr.mxu0 0.0
        %4943 = vmatpush1.msra.mxu0 0.0
        %4944 = vmatprep.subr.mxu0 0.0
        %4945 = vmatpush1.msra.mxu0 0.0
        %4946 = vmatprep.subr.mxu0 0.0
        %4947 = vmatpush1.msra.mxu0 0.0
        %4948 = vmatprep.subr.mxu0 0.0
        %4949 = vmatpush1.msra.mxu0 0.0
        %4950 = vmatprep.subr.mxu0 0.0
        %4951 = vmatpush1.msra.mxu0 0.0
        %4952 = vmatprep.subr.mxu0 0.0
        %4953 = vmatpush1.msra.mxu0 0.0
        %4954 = vmatprep.subr.mxu0 0.0
        %4955 = vmatpush1.msra.mxu0 0.0
        %4956 = vmatprep.subr.mxu0 0.0
        %4957 = vmatpush1.msra.mxu0 0.0
        %4958 = vmatprep.subr.mxu0 0.0
        %4959 = vmatpush1.msra.mxu0 0.0
        %4960 = vmatprep.subr.mxu0 0.0
        %4961 = vmatpush1.msra.mxu0 0.0
        %4962 = vmatprep.subr.mxu0 0.0
        %4963 = vmatpush1.msra.mxu0 0.0
        %4964 = vmatprep.subr.mxu0 0.0
        %4965 = vmatpush1.msra.mxu0 0.0
        %4966 = vmatprep.subr.mxu0 0.0
        %4967 = vmatpush1.msra.mxu0 0.0
        %4968 = vmatprep.subr.mxu0 0.0
        %4969 = vmatpush1.msra.mxu0 0.0
        %4970 = vmatprep.subr.mxu0 0.0
        %4971 = vmatpush1.msra.mxu0 0.0
        %4972 = vmatprep.subr.mxu0 0.0
        %4973 = vmatpush1.msra.mxu0 0.0
        %4974 = vmatprep.subr.mxu0 0.0
        %4975 = vmatpush1.msra.mxu0 0.0
        %4976 = vmatprep.subr.mxu0 0.0
        %4977 = vmatpush1.msra.mxu0 0.0
        %4978 = vmatprep.subr.mxu0 0.0
        %4979 = vmatpush1.msra.mxu0 0.0
        %4980 = vmatprep.subr.mxu0 0.0
        %4981 = vmatpush1.msra.mxu0 0.0
        %4982 = vmatprep.subr.mxu0 0.0
        %4983 = vmatpush1.msra.mxu0 0.0
        %4984 = vmatprep.subr.mxu0 0.0
        %4985 = vmatpush1.msra.mxu0 0.0
        %4986 = vmatprep.subr.mxu0 0.0
        %4987 = vmatpush1.msra.mxu0 0.0
        %4988 = vmatprep.mubr.f32.mxu0 0.0
        %4989 = vmatmul.mubr.f32.gmra.mrb[0].mxu0 %v4922
        %v4990 = vpop.f32.mrb[0].mxu0
        %v4991 = vadd.f32 0.0, %v4990
        %v4992 = vpop.f32.mrb[0].mxu0
        %4993 = vdwg.mxu0
        %v4994 = vadd.f32 %v4915, %v4991
        %v4995 = vld [vmem:[#allocation13 + $0x1] sm:$0x1]
        %v4996 = vld [vmem:[%s6 + $0x20] sm:$0xff]
        %v4997 = vld [vmem:[%s6 + $0x28] sm:$0xff]
        %v4998 = vld [vmem:[%s6 + $0x30] sm:$0xff]
        %v4999 = vld [vmem:[%s6 + $0x38] sm:$0xff]
        %v5001 = vsel %vm2208, %v4995, 0
        %5003 = vmatprep.subr.mxu0 0.0
        %5004 = vmatpush1.msra.mxu0 %v4996
        %5005 = vmatprep.subr.mxu0 0.0
        %5006 = vmatpush1.msra.mxu0 %v4997
        %5007 = vmatprep.subr.mxu0 0.0
        %5008 = vmatpush1.msra.mxu0 %v4998
        %5009 = vmatprep.subr.mxu0 0.0
        %5010 = vmatpush1.msra.mxu0 %v4999
        %5011 = vmatprep.subr.mxu0 0.0
        %5012 = vmatpush1.msra.mxu0 0.0
        %5013 = vmatprep.subr.mxu0 0.0
        %5014 = vmatpush1.msra.mxu0 0.0
        %5015 = vmatprep.subr.mxu0 0.0
        %5016 = vmatpush1.msra.mxu0 0.0
        %5017 = vmatprep.subr.mxu0 0.0
        %5018 = vmatpush1.msra.mxu0 0.0
        %5019 = vmatprep.subr.mxu0 0.0
        %5020 = vmatpush1.msra.mxu0 0.0
        %5021 = vmatprep.subr.mxu0 0.0
        %5022 = vmatpush1.msra.mxu0 0.0
        %5023 = vmatprep.subr.mxu0 0.0
        %5024 = vmatpush1.msra.mxu0 0.0
        %5025 = vmatprep.subr.mxu0 0.0
        %5026 = vmatpush1.msra.mxu0 0.0
        %5027 = vmatprep.subr.mxu0 0.0
        %5028 = vmatpush1.msra.mxu0 0.0
        %5029 = vmatprep.subr.mxu0 0.0
        %5030 = vmatpush1.msra.mxu0 0.0
        %5031 = vmatprep.subr.mxu0 0.0
        %5032 = vmatpush1.msra.mxu0 0.0
        %5033 = vmatprep.subr.mxu0 0.0
        %5034 = vmatpush1.msra.mxu0 0.0
        %5035 = vmatprep.subr.mxu0 0.0
        %5036 = vmatpush1.msra.mxu0 0.0
        %5037 = vmatprep.subr.mxu0 0.0
        %5038 = vmatpush1.msra.mxu0 0.0
        %5039 = vmatprep.subr.mxu0 0.0
        %5040 = vmatpush1.msra.mxu0 0.0
        %5041 = vmatprep.subr.mxu0 0.0
        %5042 = vmatpush1.msra.mxu0 0.0
        %5043 = vmatprep.subr.mxu0 0.0
        %5044 = vmatpush1.msra.mxu0 0.0
        %5045 = vmatprep.subr.mxu0 0.0
        %5046 = vmatpush1.msra.mxu0 0.0
        %5047 = vmatprep.subr.mxu0 0.0
        %5048 = vmatpush1.msra.mxu0 0.0
        %5049 = vmatprep.subr.mxu0 0.0
        %5050 = vmatpush1.msra.mxu0 0.0
        %5051 = vmatprep.subr.mxu0 0.0
        %5052 = vmatpush1.msra.mxu0 0.0
        %5053 = vmatprep.subr.mxu0 0.0
        %5054 = vmatpush1.msra.mxu0 0.0
        %5055 = vmatprep.subr.mxu0 0.0
        %5056 = vmatpush1.msra.mxu0 0.0
        %5057 = vmatprep.subr.mxu0 0.0
        %5058 = vmatpush1.msra.mxu0 0.0
        %5059 = vmatprep.subr.mxu0 0.0
        %5060 = vmatpush1.msra.mxu0 0.0
        %5061 = vmatprep.subr.mxu0 0.0
        %5062 = vmatpush1.msra.mxu0 0.0
        %5063 = vmatprep.subr.mxu0 0.0
        %5064 = vmatpush1.msra.mxu0 0.0
        %5065 = vmatprep.subr.mxu0 0.0
        %5066 = vmatpush1.msra.mxu0 0.0
        %5067 = vmatprep.mubr.f32.mxu0 0.0
        %5068 = vmatmul.mubr.f32.gmra.mrb[0].mxu0 %v5001
        %v5069 = vpop.f32.mrb[0].mxu0
        %v5070 = vadd.f32 0.0, %v5069
        %v5071 = vpop.f32.mrb[0].mxu0
        %5072 = vdwg.mxu0
        %v5073 = vadd.f32 %v4994, %v5070
        %v5074 = vld [vmem:[#allocation13 + $0x2] sm:$0x1]
        %v5075 = vld [vmem:[%s6 + $0x40] sm:$0xff]
        %v5076 = vld [vmem:[%s6 + $0x48] sm:$0xff]
        %v5077 = vld [vmem:[%s6 + $0x50] sm:$0xff]
        %v5078 = vld [vmem:[%s6 + $0x58] sm:$0xff]
        %v5080 = vsel %vm2208, %v5074, 0
        %5082 = vmatprep.subr.mxu0 0.0
        %5083 = vmatpush1.msra.mxu0 %v5075
        %5084 = vmatprep.subr.mxu0 0.0
        %5085 = vmatpush1.msra.mxu0 %v5076
        %5086 = vmatprep.subr.mxu0 0.0
        %5087 = vmatpush1.msra.mxu0 %v5077
        %5088 = vmatprep.subr.mxu0 0.0
        %5089 = vmatpush1.msra.mxu0 %v5078
        %5090 = vmatprep.subr.mxu0 0.0
        %5091 = vmatpush1.msra.mxu0 0.0
        %5092 = vmatprep.subr.mxu0 0.0
        %5093 = vmatpush1.msra.mxu0 0.0
        %5094 = vmatprep.subr.mxu0 0.0
        %5095 = vmatpush1.msra.mxu0 0.0
        %5096 = vmatprep.subr.mxu0 0.0
        %5097 = vmatpush1.msra.mxu0 0.0
        %5098 = vmatprep.subr.mxu0 0.0
        %5099 = vmatpush1.msra.mxu0 0.0
        %5100 = vmatprep.subr.mxu0 0.0
        %5101 = vmatpush1.msra.mxu0 0.0
        %5102 = vmatprep.subr.mxu0 0.0
        %5103 = vmatpush1.msra.mxu0 0.0
        %5104 = vmatprep.subr.mxu0 0.0
        %5105 = vmatpush1.msra.mxu0 0.0
        %5106 = vmatprep.subr.mxu0 0.0
        %5107 = vmatpush1.msra.mxu0 0.0
        %5108 = vmatprep.subr.mxu0 0.0
        %5109 = vmatpush1.msra.mxu0 0.0
        %5110 = vmatprep.subr.mxu0 0.0
        %5111 = vmatpush1.msra.mxu0 0.0
        %5112 = vmatprep.subr.mxu0 0.0
        %5113 = vmatpush1.msra.mxu0 0.0
        %5114 = vmatprep.subr.mxu0 0.0
        %5115 = vmatpush1.msra.mxu0 0.0
        %5116 = vmatprep.subr.mxu0 0.0
        %5117 = vmatpush1.msra.mxu0 0.0
        %5118 = vmatprep.subr.mxu0 0.0
        %5119 = vmatpush1.msra.mxu0 0.0
        %5120 = vmatprep.subr.mxu0 0.0
        %5121 = vmatpush1.msra.mxu0 0.0
        %5122 = vmatprep.subr.mxu0 0.0
        %5123 = vmatpush1.msra.mxu0 0.0
        %5124 = vmatprep.subr.mxu0 0.0
        %5125 = vmatpush1.msra.mxu0 0.0
        %5126 = vmatprep.subr.mxu0 0.0
        %5127 = vmatpush1.msra.mxu0 0.0
        %5128 = vmatprep.subr.mxu0 0.0
        %5129 = vmatpush1.msra.mxu0 0.0
        %5130 = vmatprep.subr.mxu0 0.0
        %5131 = vmatpush1.msra.mxu0 0.0
        %5132 = vmatprep.subr.mxu0 0.0
        %5133 = vmatpush1.msra.mxu0 0.0
        %5134 = vmatprep.subr.mxu0 0.0
        %5135 = vmatpush1.msra.mxu0 0.0
        %5136 = vmatprep.subr.mxu0 0.0
        %5137 = vmatpush1.msra.mxu0 0.0
        %5138 = vmatprep.subr.mxu0 0.0
        %5139 = vmatpush1.msra.mxu0 0.0
        %5140 = vmatprep.subr.mxu0 0.0
        %5141 = vmatpush1.msra.mxu0 0.0
        %5142 = vmatprep.subr.mxu0 0.0
        %5143 = vmatpush1.msra.mxu0 0.0
        %5144 = vmatprep.subr.mxu0 0.0
        %5145 = vmatpush1.msra.mxu0 0.0
        %5146 = vmatprep.mubr.f32.mxu0 0.0
        %5147 = vmatmul.mubr.f32.gmra.mrb[0].mxu0 %v5080
        %v5148 = vpop.f32.mrb[0].mxu0
        %v5149 = vadd.f32 0.0, %v5148
        %v5150 = vpop.f32.mrb[0].mxu0
        %5151 = vdwg.mxu0
        %v5152 = vadd.f32 %v5073, %v5149
        %v5153 = vld [vmem:[#allocation13 + $0x3] sm:$0x1]
        %v5154 = vld [vmem:[%s6 + $0x60] sm:$0xff]
        %v5155 = vld [vmem:[%s6 + $0x68] sm:$0xff]
        %v5156 = vld [vmem:[%s6 + $0x70] sm:$0xff]
        %v5157 = vld [vmem:[%s6 + $0x78] sm:$0xff]
        %v5159 = vsel %vm2208, %v5153, 0
        %5161 = vmatprep.subr.mxu0 0.0
        %5162 = vmatpush1.msra.mxu0 %v5154
        %5163 = vmatprep.subr.mxu0 0.0
        %5164 = vmatpush1.msra.mxu0 %v5155
        %5165 = vmatprep.subr.mxu0 0.0
        %5166 = vmatpush1.msra.mxu0 %v5156
        %5167 = vmatprep.subr.mxu0 0.0
        %5168 = vmatpush1.msra.mxu0 %v5157
        %5169 = vmatprep.subr.mxu0 0.0
        %5170 = vmatpush1.msra.mxu0 0.0
        %5171 = vmatprep.subr.mxu0 0.0
        %5172 = vmatpush1.msra.mxu0 0.0
        %5173 = vmatprep.subr.mxu0 0.0
        %5174 = vmatpush1.msra.mxu0 0.0
        %5175 = vmatprep.subr.mxu0 0.0
        %5176 = vmatpush1.msra.mxu0 0.0
        %5177 = vmatprep.subr.mxu0 0.0
        %5178 = vmatpush1.msra.mxu0 0.0
        %5179 = vmatprep.subr.mxu0 0.0
        %5180 = vmatpush1.msra.mxu0 0.0
        %5181 = vmatprep.subr.mxu0 0.0
        %5182 = vmatpush1.msra.mxu0 0.0
        %5183 = vmatprep.subr.mxu0 0.0
        %5184 = vmatpush1.msra.mxu0 0.0
        %5185 = vmatprep.subr.mxu0 0.0
        %5186 = vmatpush1.msra.mxu0 0.0
        %5187 = vmatprep.subr.mxu0 0.0
        %5188 = vmatpush1.msra.mxu0 0.0
        %5189 = vmatprep.subr.mxu0 0.0
        %5190 = vmatpush1.msra.mxu0 0.0
        %5191 = vmatprep.subr.mxu0 0.0
        %5192 = vmatpush1.msra.mxu0 0.0
        %5193 = vmatprep.subr.mxu0 0.0
        %5194 = vmatpush1.msra.mxu0 0.0
        %5195 = vmatprep.subr.mxu0 0.0
        %5196 = vmatpush1.msra.mxu0 0.0
        %5197 = vmatprep.subr.mxu0 0.0
        %5198 = vmatpush1.msra.mxu0 0.0
        %5199 = vmatprep.subr.mxu0 0.0
        %5200 = vmatpush1.msra.mxu0 0.0
        %5201 = vmatprep.subr.mxu0 0.0
        %5202 = vmatpush1.msra.mxu0 0.0
        %5203 = vmatprep.subr.mxu0 0.0
        %5204 = vmatpush1.msra.mxu0 0.0
        %5205 = vmatprep.subr.mxu0 0.0
        %5206 = vmatpush1.msra.mxu0 0.0
        %5207 = vmatprep.subr.mxu0 0.0
        %5208 = vmatpush1.msra.mxu0 0.0
        %5209 = vmatprep.subr.mxu0 0.0
        %5210 = vmatpush1.msra.mxu0 0.0
        %5211 = vmatprep.subr.mxu0 0.0
        %5212 = vmatpush1.msra.mxu0 0.0
        %5213 = vmatprep.subr.mxu0 0.0
        %5214 = vmatpush1.msra.mxu0 0.0
        %5215 = vmatprep.subr.mxu0 0.0
        %5216 = vmatpush1.msra.mxu0 0.0
        %5217 = vmatprep.subr.mxu0 0.0
        %5218 = vmatpush1.msra.mxu0 0.0
        %5219 = vmatprep.subr.mxu0 0.0
        %5220 = vmatpush1.msra.mxu0 0.0
        %5221 = vmatprep.subr.mxu0 0.0
        %5222 = vmatpush1.msra.mxu0 0.0
        %5223 = vmatprep.subr.mxu0 0.0
        %5224 = vmatpush1.msra.mxu0 0.0
        %5225 = vmatprep.mubr.f32.mxu0 0.0
        %5226 = vmatmul.mubr.f32.gmra.mrb[0].mxu0 %v5159
        %v5227 = vpop.f32.mrb[0].mxu0
        %v5228 = vadd.f32 0.0, %v5227
        %v5229 = vpop.f32.mrb[0].mxu0
        %5230 = vdwg.mxu0
        %v5231 = vadd.f32 %v5152, %v5228
        %v5232 = vld [vmem:[#allocation13 + $0x4] sm:$0x1]
        %v5233 = vld [vmem:[%s6 + $0x80] sm:$0xff]
        %v5234 = vld [vmem:[%s6 + $0x88] sm:$0xff]
        %v5235 = vld [vmem:[%s6 + $0x90] sm:$0xff]
        %v5236 = vld [vmem:[%s6 + $0x98] sm:$0xff]
        %v5238 = vsel %vm2208, %v5232, 0
        %5240 = vmatprep.subr.mxu0 0.0
        %5241 = vmatpush1.msra.mxu0 %v5233
        %5242 = vmatprep.subr.mxu0 0.0
        %5243 = vmatpush1.msra.mxu0 %v5234
        %5244 = vmatprep.subr.mxu0 0.0
        %5245 = vmatpush1.msra.mxu0 %v5235
        %5246 = vmatprep.subr.mxu0 0.0
        %5247 = vmatpush1.msra.mxu0 %v5236
        %5248 = vmatprep.subr.mxu0 0.0
        %5249 = vmatpush1.msra.mxu0 0.0
        %5250 = vmatprep.subr.mxu0 0.0
        %5251 = vmatpush1.msra.mxu0 0.0
        %5252 = vmatprep.subr.mxu0 0.0
        %5253 = vmatpush1.msra.mxu0 0.0
        %5254 = vmatprep.subr.mxu0 0.0
        %5255 = vmatpush1.msra.mxu0 0.0
        %5256 = vmatprep.subr.mxu0 0.0
        %5257 = vmatpush1.msra.mxu0 0.0
        %5258 = vmatprep.subr.mxu0 0.0
        %5259 = vmatpush1.msra.mxu0 0.0
        %5260 = vmatprep.subr.mxu0 0.0
        %5261 = vmatpush1.msra.mxu0 0.0
        %5262 = vmatprep.subr.mxu0 0.0
        %5263 = vmatpush1.msra.mxu0 0.0
        %5264 = vmatprep.subr.mxu0 0.0
        %5265 = vmatpush1.msra.mxu0 0.0
        %5266 = vmatprep.subr.mxu0 0.0
        %5267 = vmatpush1.msra.mxu0 0.0
        %5268 = vmatprep.subr.mxu0 0.0
        %5269 = vmatpush1.msra.mxu0 0.0
        %5270 = vmatprep.subr.mxu0 0.0
        %5271 = vmatpush1.msra.mxu0 0.0
        %5272 = vmatprep.subr.mxu0 0.0
        %5273 = vmatpush1.msra.mxu0 0.0
        %5274 = vmatprep.subr.mxu0 0.0
        %5275 = vmatpush1.msra.mxu0 0.0
        %5276 = vmatprep.subr.mxu0 0.0
        %5277 = vmatpush1.msra.mxu0 0.0
        %5278 = vmatprep.subr.mxu0 0.0
        %5279 = vmatpush1.msra.mxu0 0.0
        %5280 = vmatprep.subr.mxu0 0.0
        %5281 = vmatpush1.msra.mxu0 0.0
        %5282 = vmatprep.subr.mxu0 0.0
        %5283 = vmatpush1.msra.mxu0 0.0
        %5284 = vmatprep.subr.mxu0 0.0
        %5285 = vmatpush1.msra.mxu0 0.0
        %5286 = vmatprep.subr.mxu0 0.0
        %5287 = vmatpush1.msra.mxu0 0.0
        %5288 = vmatprep.subr.mxu0 0.0
        %5289 = vmatpush1.msra.mxu0 0.0
        %5290 = vmatprep.subr.mxu0 0.0
        %5291 = vmatpush1.msra.mxu0 0.0
        %5292 = vmatprep.subr.mxu0 0.0
        %5293 = vmatpush1.msra.mxu0 0.0
        %5294 = vmatprep.subr.mxu0 0.0
        %5295 = vmatpush1.msra.mxu0 0.0
        %5296 = vmatprep.subr.mxu0 0.0
        %5297 = vmatpush1.msra.mxu0 0.0
        %5298 = vmatprep.subr.mxu0 0.0
        %5299 = vmatpush1.msra.mxu0 0.0
        %5300 = vmatprep.subr.mxu0 0.0
        %5301 = vmatpush1.msra.mxu0 0.0
        %5302 = vmatprep.subr.mxu0 0.0
        %5303 = vmatpush1.msra.mxu0 0.0
        %5304 = vmatprep.mubr.f32.mxu0 0.0
        %5305 = vmatmul.mubr.f32.gmra.mrb[0].mxu0 %v5238
        %v5306 = vpop.f32.mrb[0].mxu0
        %v5307 = vadd.f32 0.0, %v5306
        %v5308 = vpop.f32.mrb[0].mxu0
        %5309 = vdwg.mxu0
        %v5310 = vadd.f32 %v5231, %v5307
        %v5311 = vld [vmem:[#allocation13 + $0x5] sm:$0x1]
        %v5312 = vld [vmem:[%s6 + $0xa0] sm:$0xff]
        %v5313 = vld [vmem:[%s6 + $0xa8] sm:$0xff]
        %v5314 = vld [vmem:[%s6 + $0xb0] sm:$0xff]
        %v5315 = vld [vmem:[%s6 + $0xb8] sm:$0xff]
        %v5317 = vsel %vm2208, %v5311, 0
        %5319 = vmatprep.subr.mxu0 0.0
        %5320 = vmatpush1.msra.mxu0 %v5312
        %5321 = vmatprep.subr.mxu0 0.0
        %5322 = vmatpush1.msra.mxu0 %v5313
        %5323 = vmatprep.subr.mxu0 0.0
        %5324 = vmatpush1.msra.mxu0 %v5314
        %5325 = vmatprep.subr.mxu0 0.0
        %5326 = vmatpush1.msra.mxu0 %v5315
        %5327 = vmatprep.subr.mxu0 0.0
        %5328 = vmatpush1.msra.mxu0 0.0
        %5329 = vmatprep.subr.mxu0 0.0
        %5330 = vmatpush1.msra.mxu0 0.0
        %5331 = vmatprep.subr.mxu0 0.0
        %5332 = vmatpush1.msra.mxu0 0.0
        %5333 = vmatprep.subr.mxu0 0.0
        %5334 = vmatpush1.msra.mxu0 0.0
        %5335 = vmatprep.subr.mxu0 0.0
        %5336 = vmatpush1.msra.mxu0 0.0
        %5337 = vmatprep.subr.mxu0 0.0
        %5338 = vmatpush1.msra.mxu0 0.0
        %5339 = vmatprep.subr.mxu0 0.0
        %5340 = vmatpush1.msra.mxu0 0.0
        %5341 = vmatprep.subr.mxu0 0.0
        %5342 = vmatpush1.msra.mxu0 0.0
        %5343 = vmatprep.subr.mxu0 0.0
        %5344 = vmatpush1.msra.mxu0 0.0
        %5345 = vmatprep.subr.mxu0 0.0
        %5346 = vmatpush1.msra.mxu0 0.0
        %5347 = vmatprep.subr.mxu0 0.0
        %5348 = vmatpush1.msra.mxu0 0.0
        %5349 = vmatprep.subr.mxu0 0.0
        %5350 = vmatpush1.msra.mxu0 0.0
        %5351 = vmatprep.subr.mxu0 0.0
        %5352 = vmatpush1.msra.mxu0 0.0
        %5353 = vmatprep.subr.mxu0 0.0
        %5354 = vmatpush1.msra.mxu0 0.0
        %5355 = vmatprep.subr.mxu0 0.0
        %5356 = vmatpush1.msra.mxu0 0.0
        %5357 = vmatprep.subr.mxu0 0.0
        %5358 = vmatpush1.msra.mxu0 0.0
        %5359 = vmatprep.subr.mxu0 0.0
        %5360 = vmatpush1.msra.mxu0 0.0
        %5361 = vmatprep.subr.mxu0 0.0
        %5362 = vmatpush1.msra.mxu0 0.0
        %5363 = vmatprep.subr.mxu0 0.0
        %5364 = vmatpush1.msra.mxu0 0.0
        %5365 = vmatprep.subr.mxu0 0.0
        %5366 = vmatpush1.msra.mxu0 0.0
        %5367 = vmatprep.subr.mxu0 0.0
        %5368 = vmatpush1.msra.mxu0 0.0
        %5369 = vmatprep.subr.mxu0 0.0
        %5370 = vmatpush1.msra.mxu0 0.0
        %5371 = vmatprep.subr.mxu0 0.0
        %5372 = vmatpush1.msra.mxu0 0.0
        %5373 = vmatprep.subr.mxu0 0.0
        %5374 = vmatpush1.msra.mxu0 0.0
        %5375 = vmatprep.subr.mxu0 0.0
        %5376 = vmatpush1.msra.mxu0 0.0
        %5377 = vmatprep.subr.mxu0 0.0
        %5378 = vmatpush1.msra.mxu0 0.0
        %5379 = vmatprep.subr.mxu0 0.0
        %5380 = vmatpush1.msra.mxu0 0.0
        %5381 = vmatprep.subr.mxu0 0.0
        %5382 = vmatpush1.msra.mxu0 0.0
        %5383 = vmatprep.mubr.f32.mxu0 0.0
        %5384 = vmatmul.mubr.f32.gmra.mrb[0].mxu0 %v5317
        %v5385 = vpop.f32.mrb[0].mxu0
        %v5386 = vadd.f32 0.0, %v5385
        %v5387 = vpop.f32.mrb[0].mxu0
        %5388 = vdwg.mxu0
        %v5389 = vadd.f32 %v5310, %v5386
        %v5390 = vld [vmem:[#allocation13 + $0x6] sm:$0x1]
        %v5391 = vld [vmem:[%s6 + $0xc0] sm:$0xff]
        %v5392 = vld [vmem:[%s6 + $0xc8] sm:$0xff]
        %v5393 = vld [vmem:[%s6 + $0xd0] sm:$0xff]
        %v5394 = vld [vmem:[%s6 + $0xd8] sm:$0xff]
        %v5396 = vsel %vm2208, %v5390, 0
        %5398 = vmatprep.subr.mxu0 0.0
        %5399 = vmatpush1.msra.mxu0 %v5391
        %5400 = vmatprep.subr.mxu0 0.0
        %5401 = vmatpush1.msra.mxu0 %v5392
        %5402 = vmatprep.subr.mxu0 0.0
        %5403 = vmatpush1.msra.mxu0 %v5393
        %5404 = vmatprep.subr.mxu0 0.0
        %5405 = vmatpush1.msra.mxu0 %v5394
        %5406 = vmatprep.subr.mxu0 0.0
        %5407 = vmatpush1.msra.mxu0 0.0
        %5408 = vmatprep.subr.mxu0 0.0
        %5409 = vmatpush1.msra.mxu0 0.0
        %5410 = vmatprep.subr.mxu0 0.0
        %5411 = vmatpush1.msra.mxu0 0.0
        %5412 = vmatprep.subr.mxu0 0.0
        %5413 = vmatpush1.msra.mxu0 0.0
        %5414 = vmatprep.subr.mxu0 0.0
        %5415 = vmatpush1.msra.mxu0 0.0
        %5416 = vmatprep.subr.mxu0 0.0
        %5417 = vmatpush1.msra.mxu0 0.0
        %5418 = vmatprep.subr.mxu0 0.0
        %5419 = vmatpush1.msra.mxu0 0.0
        %5420 = vmatprep.subr.mxu0 0.0
        %5421 = vmatpush1.msra.mxu0 0.0
        %5422 = vmatprep.subr.mxu0 0.0
        %5423 = vmatpush1.msra.mxu0 0.0
        %5424 = vmatprep.subr.mxu0 0.0
        %5425 = vmatpush1.msra.mxu0 0.0
        %5426 = vmatprep.subr.mxu0 0.0
        %5427 = vmatpush1.msra.mxu0 0.0
        %5428 = vmatprep.subr.mxu0 0.0
        %5429 = vmatpush1.msra.mxu0 0.0
        %5430 = vmatprep.subr.mxu0 0.0
        %5431 = vmatpush1.msra.mxu0 0.0
        %5432 = vmatprep.subr.mxu0 0.0
        %5433 = vmatpush1.msra.mxu0 0.0
        %5434 = vmatprep.subr.mxu0 0.0
        %5435 = vmatpush1.msra.mxu0 0.0
        %5436 = vmatprep.subr.mxu0 0.0
        %5437 = vmatpush1.msra.mxu0 0.0
        %5438 = vmatprep.subr.mxu0 0.0
        %5439 = vmatpush1.msra.mxu0 0.0
        %5440 = vmatprep.subr.mxu0 0.0
        %5441 = vmatpush1.msra.mxu0 0.0
        %5442 = vmatprep.subr.mxu0 0.0
        %5443 = vmatpush1.msra.mxu0 0.0
        %5444 = vmatprep.subr.mxu0 0.0
        %5445 = vmatpush1.msra.mxu0 0.0
        %5446 = vmatprep.subr.mxu0 0.0
        %5447 = vmatpush1.msra.mxu0 0.0
        %5448 = vmatprep.subr.mxu0 0.0
        %5449 = vmatpush1.msra.mxu0 0.0
        %5450 = vmatprep.subr.mxu0 0.0
        %5451 = vmatpush1.msra.mxu0 0.0
        %5452 = vmatprep.subr.mxu0 0.0
        %5453 = vmatpush1.msra.mxu0 0.0
        %5454 = vmatprep.subr.mxu0 0.0
        %5455 = vmatpush1.msra.mxu0 0.0
        %5456 = vmatprep.subr.mxu0 0.0
        %5457 = vmatpush1.msra.mxu0 0.0
        %5458 = vmatprep.subr.mxu0 0.0
        %5459 = vmatpush1.msra.mxu0 0.0
        %5460 = vmatprep.subr.mxu0 0.0
        %5461 = vmatpush1.msra.mxu0 0.0
        %5462 = vmatprep.mubr.f32.mxu0 0.0
        %5463 = vmatmul.mubr.f32.gmra.mrb[0].mxu0 %v5396
        %v5464 = vpop.f32.mrb[0].mxu0
        %v5465 = vadd.f32 0.0, %v5464
        %v5466 = vpop.f32.mrb[0].mxu0
        %5467 = vdwg.mxu0
        %v5468 = vadd.f32 %v5389, %v5465
        %v5469 = vld [vmem:[#allocation13 + $0x7] sm:$0x1]
        %v5470 = vld [vmem:[%s6 + $0xe0] sm:$0xff]
        %v5471 = vld [vmem:[%s6 + $0xe8] sm:$0xff]
        %v5472 = vld [vmem:[%s6 + $0xf0] sm:$0xff]
        %v5473 = vld [vmem:[%s6 + $0xf8] sm:$0xff]
        %v5475 = vsel %vm2208, %v5469, 0
        %5477 = vmatprep.subr.mxu0 0.0
        %5478 = vmatpush1.msra.mxu0 %v5470
        %5479 = vmatprep.subr.mxu0 0.0
        %5480 = vmatpush1.msra.mxu0 %v5471
        %5481 = vmatprep.subr.mxu0 0.0
        %5482 = vmatpush1.msra.mxu0 %v5472
        %5483 = vmatprep.subr.mxu0 0.0
        %5484 = vmatpush1.msra.mxu0 %v5473
        %5485 = vmatprep.subr.mxu0 0.0
        %5486 = vmatpush1.msra.mxu0 0.0
        %5487 = vmatprep.subr.mxu0 0.0
        %5488 = vmatpush1.msra.mxu0 0.0
        %5489 = vmatprep.subr.mxu0 0.0
        %5490 = vmatpush1.msra.mxu0 0.0
        %5491 = vmatprep.subr.mxu0 0.0
        %5492 = vmatpush1.msra.mxu0 0.0
        %5493 = vmatprep.subr.mxu0 0.0
        %5494 = vmatpush1.msra.mxu0 0.0
        %5495 = vmatprep.subr.mxu0 0.0
        %5496 = vmatpush1.msra.mxu0 0.0
        %5497 = vmatprep.subr.mxu0 0.0
        %5498 = vmatpush1.msra.mxu0 0.0
        %5499 = vmatprep.subr.mxu0 0.0
        %5500 = vmatpush1.msra.mxu0 0.0
        %5501 = vmatprep.subr.mxu0 0.0
        %5502 = vmatpush1.msra.mxu0 0.0
        %5503 = vmatprep.subr.mxu0 0.0
        %5504 = vmatpush1.msra.mxu0 0.0
        %5505 = vmatprep.subr.mxu0 0.0
        %5506 = vmatpush1.msra.mxu0 0.0
        %5507 = vmatprep.subr.mxu0 0.0
        %5508 = vmatpush1.msra.mxu0 0.0
        %5509 = vmatprep.subr.mxu0 0.0
        %5510 = vmatpush1.msra.mxu0 0.0
        %5511 = vmatprep.subr.mxu0 0.0
        %5512 = vmatpush1.msra.mxu0 0.0
        %5513 = vmatprep.subr.mxu0 0.0
        %5514 = vmatpush1.msra.mxu0 0.0
        %5515 = vmatprep.subr.mxu0 0.0
        %5516 = vmatpush1.msra.mxu0 0.0
        %5517 = vmatprep.subr.mxu0 0.0
        %5518 = vmatpush1.msra.mxu0 0.0
        %5519 = vmatprep.subr.mxu0 0.0
        %5520 = vmatpush1.msra.mxu0 0.0
        %5521 = vmatprep.subr.mxu0 0.0
        %5522 = vmatpush1.msra.mxu0 0.0
        %5523 = vmatprep.subr.mxu0 0.0
        %5524 = vmatpush1.msra.mxu0 0.0
        %5525 = vmatprep.subr.mxu0 0.0
        %5526 = vmatpush1.msra.mxu0 0.0
        %5527 = vmatprep.subr.mxu0 0.0
        %5528 = vmatpush1.msra.mxu0 0.0
        %5529 = vmatprep.subr.mxu0 0.0
        %5530 = vmatpush1.msra.mxu0 0.0
        %5531 = vmatprep.subr.mxu0 0.0
        %5532 = vmatpush1.msra.mxu0 0.0
        %5533 = vmatprep.subr.mxu0 0.0
        %5534 = vmatpush1.msra.mxu0 0.0
        %5535 = vmatprep.subr.mxu0 0.0
        %5536 = vmatpush1.msra.mxu0 0.0
        %5537 = vmatprep.subr.mxu0 0.0
        %5538 = vmatpush1.msra.mxu0 0.0
        %5539 = vmatprep.subr.mxu0 0.0
        %5540 = vmatpush1.msra.mxu0 0.0
        %5541 = vmatprep.mubr.f32.mxu0 0.0
        %5542 = vmatmul.mubr.f32.gmra.mrb[0].mxu0 %v5475
        %v5543 = vpop.f32.mrb[0].mxu0
        %v5544 = vadd.f32 0.0, %v5543
        %v5545 = vpop.f32.mrb[0].mxu0
        %5546 = vdwg.mxu0
        %v5547 = vadd.f32 %v5468, %v5544
        %v5548 = vld [vmem:[#allocation13 + $0x8] sm:$0x1]
        %v5549 = vld [vmem:[%s6 + $0x100] sm:$0xff]
        %v5550 = vld [vmem:[%s6 + $0x108] sm:$0xff]
        %v5551 = vld [vmem:[%s6 + $0x110] sm:$0xff]
        %v5552 = vld [vmem:[%s6 + $0x118] sm:$0xff]
        %v5554 = vsel %vm2208, %v5548, 0
        %5556 = vmatprep.subr.mxu0 0.0
        %5557 = vmatpush1.msra.mxu0 %v5549
        %5558 = vmatprep.subr.mxu0 0.0
        %5559 = vmatpush1.msra.mxu0 %v5550
        %5560 = vmatprep.subr.mxu0 0.0
        %5561 = vmatpush1.msra.mxu0 %v5551
        %5562 = vmatprep.subr.mxu0 0.0
        %5563 = vmatpush1.msra.mxu0 %v5552
        %5564 = vmatprep.subr.mxu0 0.0
        %5565 = vmatpush1.msra.mxu0 0.0
        %5566 = vmatprep.subr.mxu0 0.0
        %5567 = vmatpush1.msra.mxu0 0.0
        %5568 = vmatprep.subr.mxu0 0.0
        %5569 = vmatpush1.msra.mxu0 0.0
        %5570 = vmatprep.subr.mxu0 0.0
        %5571 = vmatpush1.msra.mxu0 0.0
        %5572 = vmatprep.subr.mxu0 0.0
        %5573 = vmatpush1.msra.mxu0 0.0
        %5574 = vmatprep.subr.mxu0 0.0
        %5575 = vmatpush1.msra.mxu0 0.0
        %5576 = vmatprep.subr.mxu0 0.0
        %5577 = vmatpush1.msra.mxu0 0.0
        %5578 = vmatprep.subr.mxu0 0.0
        %5579 = vmatpush1.msra.mxu0 0.0
        %5580 = vmatprep.subr.mxu0 0.0
        %5581 = vmatpush1.msra.mxu0 0.0
        %5582 = vmatprep.subr.mxu0 0.0
        %5583 = vmatpush1.msra.mxu0 0.0
        %5584 = vmatprep.subr.mxu0 0.0
        %5585 = vmatpush1.msra.mxu0 0.0
        %5586 = vmatprep.subr.mxu0 0.0
        %5587 = vmatpush1.msra.mxu0 0.0
        %5588 = vmatprep.subr.mxu0 0.0
        %5589 = vmatpush1.msra.mxu0 0.0
        %5590 = vmatprep.subr.mxu0 0.0
        %5591 = vmatpush1.msra.mxu0 0.0
        %5592 = vmatprep.subr.mxu0 0.0
        %5593 = vmatpush1.msra.mxu0 0.0
        %5594 = vmatprep.subr.mxu0 0.0
        %5595 = vmatpush1.msra.mxu0 0.0
        %5596 = vmatprep.subr.mxu0 0.0
        %5597 = vmatpush1.msra.mxu0 0.0
        %5598 = vmatprep.subr.mxu0 0.0
        %5599 = vmatpush1.msra.mxu0 0.0
        %5600 = vmatprep.subr.mxu0 0.0
        %5601 = vmatpush1.msra.mxu0 0.0
        %5602 = vmatprep.subr.mxu0 0.0
        %5603 = vmatpush1.msra.mxu0 0.0
        %5604 = vmatprep.subr.mxu0 0.0
        %5605 = vmatpush1.msra.mxu0 0.0
        %5606 = vmatprep.subr.mxu0 0.0
        %5607 = vmatpush1.msra.mxu0 0.0
        %5608 = vmatprep.subr.mxu0 0.0
        %5609 = vmatpush1.msra.mxu0 0.0
        %5610 = vmatprep.subr.mxu0 0.0
        %5611 = vmatpush1.msra.mxu0 0.0
        %5612 = vmatprep.subr.mxu0 0.0
        %5613 = vmatpush1.msra.mxu0 0.0
        %5614 = vmatprep.subr.mxu0 0.0
        %5615 = vmatpush1.msra.mxu0 0.0
        %5616 = vmatprep.subr.mxu0 0.0
        %5617 = vmatpush1.msra.mxu0 0.0
        %5618 = vmatprep.subr.mxu0 0.0
        %5619 = vmatpush1.msra.mxu0 0.0
        %5620 = vmatprep.mubr.f32.mxu0 0.0
        %5621 = vmatmul.mubr.f32.gmra.mrb[0].mxu0 %v5554
        %v5622 = vpop.f32.mrb[0].mxu0
        %v5623 = vadd.f32 0.0, %v5622
        %v5624 = vpop.f32.mrb[0].mxu0
        %5625 = vdwg.mxu0
        %v5626 = vadd.f32 %v5547, %v5623
        %v5627 = vld [vmem:[#allocation13 + $0x9] sm:$0x1]
        %v5628 = vld [vmem:[%s6 + $0x120] sm:$0xff]
        %v5629 = vld [vmem:[%s6 + $0x128] sm:$0xff]
        %v5630 = vld [vmem:[%s6 + $0x130] sm:$0xff]
        %v5631 = vld [vmem:[%s6 + $0x138] sm:$0xff]
        %v5633 = vsel %vm2208, %v5627, 0
        %5635 = vmatprep.subr.mxu0 0.0
        %5636 = vmatpush1.msra.mxu0 %v5628
        %5637 = vmatprep.subr.mxu0 0.0
        %5638 = vmatpush1.msra.mxu0 %v5629
        %5639 = vmatprep.subr.mxu0 0.0
        %5640 = vmatpush1.msra.mxu0 %v5630
        %5641 = vmatprep.subr.mxu0 0.0
        %5642 = vmatpush1.msra.mxu0 %v5631
        %5643 = vmatprep.subr.mxu0 0.0
        %5644 = vmatpush1.msra.mxu0 0.0
        %5645 = vmatprep.subr.mxu0 0.0
        %5646 = vmatpush1.msra.mxu0 0.0
        %5647 = vmatprep.subr.mxu0 0.0
        %5648 = vmatpush1.msra.mxu0 0.0
        %5649 = vmatprep.subr.mxu0 0.0
        %5650 = vmatpush1.msra.mxu0 0.0
        %5651 = vmatprep.subr.mxu0 0.0
        %5652 = vmatpush1.msra.mxu0 0.0
        %5653 = vmatprep.subr.mxu0 0.0
        %5654 = vmatpush1.msra.mxu0 0.0
        %5655 = vmatprep.subr.mxu0 0.0
        %5656 = vmatpush1.msra.mxu0 0.0
        %5657 = vmatprep.subr.mxu0 0.0
        %5658 = vmatpush1.msra.mxu0 0.0
        %5659 = vmatprep.subr.mxu0 0.0
        %5660 = vmatpush1.msra.mxu0 0.0
        %5661 = vmatprep.subr.mxu0 0.0
        %5662 = vmatpush1.msra.mxu0 0.0
        %5663 = vmatprep.subr.mxu0 0.0
        %5664 = vmatpush1.msra.mxu0 0.0
        %5665 = vmatprep.subr.mxu0 0.0
        %5666 = vmatpush1.msra.mxu0 0.0
        %5667 = vmatprep.subr.mxu0 0.0
        %5668 = vmatpush1.msra.mxu0 0.0
        %5669 = vmatprep.subr.mxu0 0.0
        %5670 = vmatpush1.msra.mxu0 0.0
        %5671 = vmatprep.subr.mxu0 0.0
        %5672 = vmatpush1.msra.mxu0 0.0
        %5673 = vmatprep.subr.mxu0 0.0
        %5674 = vmatpush1.msra.mxu0 0.0
        %5675 = vmatprep.subr.mxu0 0.0
        %5676 = vmatpush1.msra.mxu0 0.0
        %5677 = vmatprep.subr.mxu0 0.0
        %5678 = vmatpush1.msra.mxu0 0.0
        %5679 = vmatprep.subr.mxu0 0.0
        %5680 = vmatpush1.msra.mxu0 0.0
        %5681 = vmatprep.subr.mxu0 0.0
        %5682 = vmatpush1.msra.mxu0 0.0
        %5683 = vmatprep.subr.mxu0 0.0
        %5684 = vmatpush1.msra.mxu0 0.0
        %5685 = vmatprep.subr.mxu0 0.0
        %5686 = vmatpush1.msra.mxu0 0.0
        %5687 = vmatprep.subr.mxu0 0.0
        %5688 = vmatpush1.msra.mxu0 0.0
        %5689 = vmatprep.subr.mxu0 0.0
        %5690 = vmatpush1.msra.mxu0 0.0
        %5691 = vmatprep.subr.mxu0 0.0
        %5692 = vmatpush1.msra.mxu0 0.0
        %5693 = vmatprep.subr.mxu0 0.0
        %5694 = vmatpush1.msra.mxu0 0.0
        %5695 = vmatprep.subr.mxu0 0.0
        %5696 = vmatpush1.msra.mxu0 0.0
        %5697 = vmatprep.subr.mxu0 0.0
        %5698 = vmatpush1.msra.mxu0 0.0
        %5699 = vmatprep.mubr.f32.mxu0 0.0
        %5700 = vmatmul.mubr.f32.gmra.mrb[0].mxu0 %v5633
        %v5701 = vpop.f32.mrb[0].mxu0
        %v5702 = vadd.f32 0.0, %v5701
        %v5703 = vpop.f32.mrb[0].mxu0
        %5704 = vdwg.mxu0
        %v5705 = vadd.f32 %v5626, %v5702
        %v5706 = vld [vmem:[#allocation13 + $0xa] sm:$0x1]
        %v5707 = vld [vmem:[%s6 + $0x140] sm:$0xff]
        %v5708 = vld [vmem:[%s6 + $0x148] sm:$0xff]
        %v5709 = vld [vmem:[%s6 + $0x150] sm:$0xff]
        %v5710 = vld [vmem:[%s6 + $0x158] sm:$0xff]
        %v5712 = vsel %vm2208, %v5706, 0
        %5714 = vmatprep.subr.mxu0 0.0
        %5715 = vmatpush1.msra.mxu0 %v5707
        %5716 = vmatprep.subr.mxu0 0.0
        %5717 = vmatpush1.msra.mxu0 %v5708
        %5718 = vmatprep.subr.mxu0 0.0
        %5719 = vmatpush1.msra.mxu0 %v5709
        %5720 = vmatprep.subr.mxu0 0.0
        %5721 = vmatpush1.msra.mxu0 %v5710
        %5722 = vmatprep.subr.mxu0 0.0
        %5723 = vmatpush1.msra.mxu0 0.0
        %5724 = vmatprep.subr.mxu0 0.0
        %5725 = vmatpush1.msra.mxu0 0.0
        %5726 = vmatprep.subr.mxu0 0.0
        %5727 = vmatpush1.msra.mxu0 0.0
        %5728 = vmatprep.subr.mxu0 0.0
        %5729 = vmatpush1.msra.mxu0 0.0
        %5730 = vmatprep.subr.mxu0 0.0
        %5731 = vmatpush1.msra.mxu0 0.0
        %5732 = vmatprep.subr.mxu0 0.0
        %5733 = vmatpush1.msra.mxu0 0.0
        %5734 = vmatprep.subr.mxu0 0.0
        %5735 = vmatpush1.msra.mxu0 0.0
        %5736 = vmatprep.subr.mxu0 0.0
        %5737 = vmatpush1.msra.mxu0 0.0
        %5738 = vmatprep.subr.mxu0 0.0
        %5739 = vmatpush1.msra.mxu0 0.0
        %5740 = vmatprep.subr.mxu0 0.0
        %5741 = vmatpush1.msra.mxu0 0.0
        %5742 = vmatprep.subr.mxu0 0.0
        %5743 = vmatpush1.msra.mxu0 0.0
        %5744 = vmatprep.subr.mxu0 0.0
        %5745 = vmatpush1.msra.mxu0 0.0
        %5746 = vmatprep.subr.mxu0 0.0
        %5747 = vmatpush1.msra.mxu0 0.0
        %5748 = vmatprep.subr.mxu0 0.0
        %5749 = vmatpush1.msra.mxu0 0.0
        %5750 = vmatprep.subr.mxu0 0.0
        %5751 = vmatpush1.msra.mxu0 0.0
        %5752 = vmatprep.subr.mxu0 0.0
        %5753 = vmatpush1.msra.mxu0 0.0
        %5754 = vmatprep.subr.mxu0 0.0
        %5755 = vmatpush1.msra.mxu0 0.0
        %5756 = vmatprep.subr.mxu0 0.0
        %5757 = vmatpush1.msra.mxu0 0.0
        %5758 = vmatprep.subr.mxu0 0.0
        %5759 = vmatpush1.msra.mxu0 0.0
        %5760 = vmatprep.subr.mxu0 0.0
        %5761 = vmatpush1.msra.mxu0 0.0
        %5762 = vmatprep.subr.mxu0 0.0
        %5763 = vmatpush1.msra.mxu0 0.0
        %5764 = vmatprep.subr.mxu0 0.0
        %5765 = vmatpush1.msra.mxu0 0.0
        %5766 = vmatprep.subr.mxu0 0.0
        %5767 = vmatpush1.msra.mxu0 0.0
        %5768 = vmatprep.subr.mxu0 0.0
        %5769 = vmatpush1.msra.mxu0 0.0
        %5770 = vmatprep.subr.mxu0 0.0
        %5771 = vmatpush1.msra.mxu0 0.0
        %5772 = vmatprep.subr.mxu0 0.0
        %5773 = vmatpush1.msra.mxu0 0.0
        %5774 = vmatprep.subr.mxu0 0.0
        %5775 = vmatpush1.msra.mxu0 0.0
        %5776 = vmatprep.subr.mxu0 0.0
        %5777 = vmatpush1.msra.mxu0 0.0
        %5778 = vmatprep.mubr.f32.mxu0 0.0
        %5779 = vmatmul.mubr.f32.gmra.mrb[0].mxu0 %v5712
        %v5780 = vpop.f32.mrb[0].mxu0
        %v5781 = vadd.f32 0.0, %v5780
        %v5782 = vpop.f32.mrb[0].mxu0
        %5783 = vdwg.mxu0
        %v5784 = vadd.f32 %v5705, %v5781
        %v5785 = vmax.f32 %v5784, 0.0
        %vm5786 = vcmask 24576
        %5787 = vst.msk [vmem:[%s270] sm:$0x1] %vm5786, %v5785
        %s5788 = sand.u32 %s181, 1
        %s5789 = scalar_lea.sflag [#allocation16], %s5788
        %s5790 = sand.u32 %s181, 1
        %s5791 = scalar_lea.vmem [#allocation15], %s5790
        // Predicated region
        $region49: #{tpu_custom_call.1} parent=47 // pred_check
          %p5792 = pneg %p191
        $region50: #{tpu_custom_call.1} parent=47 // pred_check_branch
          %5794 = sbr.rel (%p5792) target = $region52
        $region51: #{tpu_custom_call.1} parent=47 // pred_region
          %s5796 = ssub.s32 16, 16
          %5797 = vsyncadd %s5789, %s5796
          %s5798 = smul.addr %s21, 16
          %s5799 = scalar_lea.hbm %s7, %s5798
          %s5801 = sshll.u32 %s5791, 4
          %s5802 = int_to_ptr.vmem [resolvable:$true] %s5801
          %5804 = dma.vmem_to_hbm [thread:$0]  %s5802, 16, %s5799, %s5789
        $region52: #{tpu_custom_call.1} parent=47 // pred_fallthru
          _
      $region48: #{tpu_custom_call.1} parent=5 // pred_fallthru
        _
      %p5805 = scmp.le.s32.totalorder 2, %s16
      // Predicated region
      $region53: #{tpu_custom_call.1} parent=5 // pred_check
        %p5806 = pneg %p5805
      $region54: #{tpu_custom_call.1} parent=5 // pred_check_branch
        %5808 = sbr.rel (%p5806) target = $region56
      $region55: #{tpu_custom_call.1} parent=5 // pred_region
        %s5809 = ssub.s32 %s16, 2
        // Predicated region
        $region57: #{tpu_custom_call.1} parent=55 // pred_check
          %p5810 = pneg %p197
        $region58: #{tpu_custom_call.1} parent=55 // pred_check_branch
          %5812 = sbr.rel (%p5810) target = $region60
        $region59: #{tpu_custom_call.1} parent=55 // pred_region
          %s5813 = sand.u32 %s182, 1
          %s5814 = scalar_lea.sflag [#allocation16], %s5813
          %s5815 = sand.u32 %s182, 1
          %s5816 = scalar_lea.vmem [#allocation15], %s5815
          %5817 = dma.done %s5814, 16
        $region60: #{tpu_custom_call.1} parent=55 // pred_fallthru
          _
      $region56: #{tpu_custom_call.1} parent=5 // pred_fallthru
        _
    $region6: #{tpu_custom_call.1} parent=1 // loop_footer
      %s20 = sadd.s32 1, %s16
    $region7: #{tpu_custom_call.1} parent=1 // loop_footer_branch
      %15 = sbr.rel target = $region3
    $region8: #{tpu_custom_call.1} parent=1 // loop_exit
      _
    %5818 = vsyncpa [#allocation16], 1
    %s5819 = scalar_lea.sflag [#allocation16], 1
    %5820 = vsyncpa %s5819, 1

</llo_original>
